<compile_context>
chip_gen: v7x
topology: tpu7x:2x2x1
jax: 0.10.0
libtpu: 0.0.40
codegen_flags: <defaults>
</compile_context>

<pallas_src>
import jax
import jax.numpy as jnp
from jax.experimental import pallas as pl
from jax.experimental.pallas import tpu as pltpu  # noqa: F401  (TPU backend)

NOISE_DIM = 100
DATA_DIM = 32
GF_DIM = 32
GKERNEL = 5
BN_EPS = 1e-5
LRELU_SLOPE = 0.01

L0 = 4            # length after nn.Unflatten(1, (256, 4)) (number of position blocks)
WIDTH = 256       # phase*channel lane width of every intermediate activation

# (cin, cout, stride, padding, p_in) per ConvTranspose1d.
# p_in = phases per position-block on the layer's input (input length = 4 * p_in).
CONV_CFG = (
    (256, 128, 2, 2, 1),
    (128, 64, 2, 2, 2),
    (64, 32, 2, 2, 4),
    (32, 1, 1, 2, 8),
)
BN_CHANNELS = (256, 128, 64, 32)


# ------------------------------ Pallas kernel --------------------------------

def _generator_kernel(x_ref, lw_ref, lb_ref,
                      g0_ref, be0_ref, w0_ref, b0_ref,
                      g1_ref, be1_ref, w1_ref, b1_ref,
                      g2_ref, be2_ref, w2_ref, b2_ref,
                      g3_ref, be3_ref, w3_ref, b3_ref,
                      out_ref):
    f32 = jnp.float32
    n = x_ref.shape[0]
    rows = L0 * n

    def dot(a, b):
        return jnp.dot(a, b, preferred_element_type=f32)

    # Row-shift matrices (one position-block step), built once from 2-D iota.
    ri = jax.lax.broadcasted_iota(jnp.int32, (rows, rows), 0)
    ci = jax.lax.broadcasted_iota(jnp.int32, (rows, rows), 1)
    s_up = (ci == ri + n).astype(f32)   # (s_up @ a)[r] = a[r + n]  (next block, zero fill)
    s_dn = (ci + n == ri).astype(f32)   # (s_dn @ a)[r] = a[r - n]  (prev block, zero fill)

    # ---- Linear(100 -> 1024) with init-permuted weights; place the 4 Unflatten
    #      positions into row blocks with tiny placement matmuls (no reshape). --
    h = dot(x_ref[...], lw_ref[...]) + lb_ref[...]               # (N, 4*256)
    pr = jax.lax.broadcasted_iota(jnp.int32, (rows, n), 0)
    pc = jax.lax.broadcasted_iota(jnp.int32, (rows, n), 1)
    a = jnp.zeros((rows, WIDTH), f32)
    for m in range(L0):
        place_m = (pr == pc + m * n).astype(f32)                 # (rows, N)
        a = a + dot(place_m, h[:, m * WIDTH:(m + 1) * WIDTH])    # rows = m*N + batch

    def bn_lrelu(v, gamma_t, beta_t, c):
        # Train-mode BatchNorm1d (batch stats, biased var) + LeakyReLU(0.01).
        # Channel of lane j is (j % c); stats are folded across phase blocks with
        # a block-circulant 0/1 matrix so everything stays 2-D and lane-dense.
        w = v.shape[1]
        cnt = float(v.shape[0] * (w // c))                       # = N * L
        ji = jax.lax.broadcasted_iota(jnp.int32, (w, w), 0)
        jj = jax.lax.broadcasted_iota(jnp.int32, (w, w), 1)
        blk = ((ji % c) == (jj % c)).astype(f32)                 # (w, w)
        mean_t = dot(jnp.sum(v, axis=0, keepdims=True), blk) / cnt
        d = v - mean_t
        var_t = dot(jnp.sum(d * d, axis=0, keepdims=True), blk) / cnt
        y = d * (gamma_t * jax.lax.rsqrt(var_t + BN_EPS)) + beta_t
        return jnp.where(y >= 0, y, LRELU_SLOPE * y)

    def conv_t(v, w_ref, b_ref):
        # ConvTranspose1d folded (at init) into three dense routing matmuls:
        #   out = a[m-1] @ Wdn + a[m] @ Wx + a[m+1] @ Wup + bias
        return (dot(dot(s_dn, v), w_ref[0])
                + dot(v, w_ref[1])
                + dot(dot(s_up, v), w_ref[2])
                + b_ref[...])

    a = bn_lrelu(a, g0_ref[...], be0_ref[...], 256)
    a = conv_t(a, w0_ref, b0_ref)                                # (4N, 256)  L=8,  C=128
    a = bn_lrelu(a, g1_ref[...], be1_ref[...], 128)
    a = conv_t(a, w1_ref, b1_ref)                                # (4N, 256)  L=16, C=64
    a = bn_lrelu(a, g2_ref[...], be2_ref[...], 64)
    a = conv_t(a, w2_ref, b2_ref)                                # (4N, 256)  L=32, C=32
    a = bn_lrelu(a, g3_ref[...], be3_ref[...], 32)
    out_ref[...] = conv_t(a, w3_ref, b3_ref)                     # (4N, 8)    L=32, C=1


# -------------------- init-time parameter repacking (hoisted) ----------------

def _fold_convT_weights(w, b, stride, padding, p_in):
    """Fold a ConvTranspose1d (torch weight layout (cin, cout, K)) into three
    routing matrices for the fixed (rows = m*N + batch, lanes = phase*channel)
    activation layout, plus a phase-tiled bias."""
    cin, cout, k_sz = w.shape
    p_out = p_in * stride
    shape = (p_in * cin, p_out * cout)
    wdn = jnp.zeros(shape, jnp.float32)
    wx = jnp.zeros(shape, jnp.float32)
    wup = jnp.zeros(shape, jnp.float32)
    for qp in range(p_out):                 # output phase within a position block
        for k in range(k_sz):
            num = qp + padding - k
            if num % stride != 0:           # tap does not hit an input sample
                continue
            tau = num // stride             # source phase (may fall in block m +/- 1)
            tap = w[:, :, k]
            cols = slice(qp * cout, (qp + 1) * cout)
            if 0 <= tau < p_in:
                wx = wx.at[tau * cin:(tau + 1) * cin, cols].add(tap)
            elif tau >= p_in:
                t = tau - p_in
                wup = wup.at[t * cin:(t + 1) * cin, cols].add(tap)
            else:
                t = tau + p_in
                wdn = wdn.at[t * cin:(t + 1) * cin, cols].add(tap)
    b_t = jnp.tile(b.reshape(1, cout), (1, p_out))
    return jnp.stack([wdn, wx, wup], axis=0), b_t


def prepare_params(p):
    """One-time repack of torch-layout parameters into the kernel layout."""
    q = {}
    # Linear: torch (1024, 100) with out index c*4 + m  ->  (100, 1024) with
    # column index m*256 + c so the kernel needs no in-kernel transpose/reshape.
    wl = p["lin_w"].reshape(WIDTH, L0, NOISE_DIM).transpose(1, 0, 2)
    q["lin_w"] = wl.reshape(L0 * WIDTH, NOISE_DIM).T
    q["lin_b"] = p["lin_b"].reshape(WIDTH, L0).T.reshape(1, L0 * WIDTH)
    for i, (cin, cout, stride, pad, p_in) in enumerate(CONV_CFG):
        q[f"ct{i}_w"], q[f"ct{i}_b"] = _fold_convT_weights(
            p[f"ct{i}_w"], p[f"ct{i}_b"], stride, pad, p_in)
    for i, c in enumerate(BN_CHANNELS):
        reps = WIDTH // c
        q[f"bn{i}_g"] = jnp.tile(p[f"bn{i}_g"].reshape(1, c), (1, reps))
        q[f"bn{i}_b"] = jnp.tile(p[f"bn{i}_b"].reshape(1, c), (1, reps))
    return q


# ------------------------------ forward wrapper ------------------------------

def _full_spec(arr):
    nd = arr.ndim
    if nd == 2:
        return pl.BlockSpec(arr.shape, lambda i: (0, 0))
    return pl.BlockSpec(arr.shape, lambda i: (0, 0, 0))


def generator_forward(prep, x):
    """x: (N, 100) noise -> (N, 1, 32)."""
    n = x.shape[0]
    args = (
        x.astype(jnp.float32),
        prep["lin_w"], prep["lin_b"],
        prep["bn0_g"], prep["bn0_b"], prep["ct0_w"], prep["ct0_b"],
        prep["bn1_g"], prep["bn1_b"], prep["ct1_w"], prep["ct1_b"],
        prep["bn2_g"], prep["bn2_b"], prep["ct2_w"], prep["ct2_b"],
        prep["bn3_g"], prep["bn3_b"], prep["ct3_w"], prep["ct3_b"],
    )
    out = pl.pallas_call(
        _generator_kernel,
        grid=(1,),   # whole problem fits one VMEM-resident block (~3 MiB of params)
        in_specs=[_full_spec(a) for a in args],
        out_specs=pl.BlockSpec((L0 * n, 8), lambda i: (0, 0)),
        out_shape=jax.ShapeDtypeStruct((L0 * n, 8), jnp.float32),
    )(*args)
    # rows are (position_block m)*N + batch; lanes are the 8 phases -> (N, 1, 32)
    return out.reshape(L0, n, 8).transpose(1, 0, 2).reshape(n, 1, DATA_DIM)


# ------------------------------ parameter init -------------------------------

def init_params(key):
    ks = jax.random.split(key, 20)

    def nrm(k, shape, scale=0.05):
        return scale * jax.random.normal(k, shape, dtype=jnp.float32)

    p = {}
    p["lin_w"] = nrm(ks[0], (DATA_DIM * GF_DIM, NOISE_DIM))   # (1024, 100) torch layout
    p["lin_b"] = nrm(ks[1], (DATA_DIM * GF_DIM,))
    conv_chans = [(256, 128), (128, 64), (64, 32), (32, 1)]
    for i, (cin, cout) in enumerate(conv_chans):
        p[f"ct{i}_w"] = nrm(ks[2 + 2 * i], (cin, cout, GKERNEL))
        p[f"ct{i}_b"] = nrm(ks[3 + 2 * i], (cout,))
    for i, c in enumerate(BN_CHANNELS):
        p[f"bn{i}_g"] = 1.0 + nrm(ks[10 + 2 * i], (c,))
        p[f"bn{i}_b"] = nrm(ks[11 + 2 * i], (c,))
    return p


# ----------------------- pure-JAX reference (check) --------------------------

def _ref_bn_lrelu(x, gamma, beta):
    mean = x.mean(axis=(0, 2), keepdims=True)
    var = ((x - mean) ** 2).mean(axis=(0, 2), keepdims=True)
    xhat = (x - mean) / jnp.sqrt(var + BN_EPS)
    y = xhat * gamma[None, :, None] + beta[None, :, None]
    return jnp.where(y >= 0, y, LRELU_SLOPE * y)


def _ref_conv_transpose1d(x, w, b, *, stride, padding, output_padding):
    K = w.shape[2]
    w_conv = jnp.flip(w, axis=2).transpose(1, 0, 2)              # (Cout, Cin, K)
    y = jax.lax.conv_general_dilated(
        x, w_conv, window_strides=(1,),
        padding=[(K - 1 - padding, K - 1 - padding + output_padding)],
        lhs_dilation=(stride,),
        dimension_numbers=("NCH", "OIH", "NCH"),
        precision=jax.lax.Precision.HIGHEST)
    return y + b[None, :, None]


def ref_forward(params, x):
    N = x.shape[0]
    y = jnp.dot(x, params["lin_w"].T,
                precision=jax.lax.Precision.HIGHEST) + params["lin_b"]
    y = y.reshape(N, 256, 4)
    y = _ref_bn_lrelu(y, params["bn0_g"], params["bn0_b"])
    y = _ref_conv_transpose1d(y, params["ct0_w"], params["ct0_b"],
                              stride=2, padding=2, output_padding=1)
    y = _ref_bn_lrelu(y, params["bn1_g"], params["bn1_b"])
    y = _ref_conv_transpose1d(y, params["ct1_w"], params["ct1_b"],
                              stride=2, padding=2, output_padding=1)
    y = _ref_bn_lrelu(y, params["bn2_g"], params["bn2_b"])
    y = _ref_conv_transpose1d(y, params["ct2_w"], params["ct2_b"],
                              stride=2, padding=2, output_padding=1)
    y = _ref_bn_lrelu(y, params["bn3_g"], params["bn3_b"])
    y = _ref_conv_transpose1d(y, params["ct3_w"], params["ct3_b"],
                              stride=1, padding=2, output_padding=0)
    return y


if __name__ == "__main__":
    key = jax.random.PRNGKey(0)
    pkey, xkey = jax.random.split(key)
    params = init_params(pkey)
    prep = jax.block_until_ready(prepare_params(params))   # one-time repack (hoisted)

    N = 4
    x = jax.random.normal(xkey, (N, NOISE_DIM), dtype=jnp.float32)

    out = jax.block_until_ready(generator_forward(prep, x))
    assert out.shape == (N, 1, DATA_DIM), out.shape

    ref = jax.block_until_ready(ref_forward(params, x))
    max_err = float(jnp.max(jnp.abs(out - ref)))
    assert max_err < 1e-2, f"mismatch vs reference: max abs err = {max_err}"

    print("KERNEL_OK")
</pallas_src>

<mosaic_0001>
module attributes {stable_mosaic.version = 11 : i64} {
  func.func @_generator_kernel(%arg0: i32, %arg1: memref<4x100xf32, #tpu.memory_space<vmem>>, %arg2: memref<100x1024xf32, #tpu.memory_space<vmem>>, %arg3: memref<1x1024xf32, #tpu.memory_space<vmem>>, %arg4: memref<1x256xf32, #tpu.memory_space<vmem>>, %arg5: memref<1x256xf32, #tpu.memory_space<vmem>>, %arg6: memref<3x256x256xf32, #tpu.memory_space<vmem>>, %arg7: memref<1x256xf32, #tpu.memory_space<vmem>>, %arg8: memref<1x256xf32, #tpu.memory_space<vmem>>, %arg9: memref<1x256xf32, #tpu.memory_space<vmem>>, %arg10: memref<3x256x256xf32, #tpu.memory_space<vmem>>, %arg11: memref<1x256xf32, #tpu.memory_space<vmem>>, %arg12: memref<1x256xf32, #tpu.memory_space<vmem>>, %arg13: memref<1x256xf32, #tpu.memory_space<vmem>>, %arg14: memref<3x256x256xf32, #tpu.memory_space<vmem>>, %arg15: memref<1x256xf32, #tpu.memory_space<vmem>>, %arg16: memref<1x256xf32, #tpu.memory_space<vmem>>, %arg17: memref<1x256xf32, #tpu.memory_space<vmem>>, %arg18: memref<3x256x8xf32, #tpu.memory_space<vmem>>, %arg19: memref<1x8xf32, #tpu.memory_space<vmem>>, %arg20: memref<16x8xf32, #tpu.memory_space<vmem>>) attributes {dimension_semantics = [#tpu.dimension_semantics<arbitrary>], iteration_bounds = array<i64: 1>, scalar_prefetch = 0 : i64, scratch_operands = 0 : i64, tpu.core_type = #tpu.core_type<tc>, window_params = [{pipeline_mode = #tpu.pipeline_mode<synchronous>, transform_indices = @transform_0, window_bounds = array<i64: 4, 100>}, {pipeline_mode = #tpu.pipeline_mode<synchronous>, transform_indices = @transform_1, window_bounds = array<i64: 100, 1024>}, {pipeline_mode = #tpu.pipeline_mode<synchronous>, transform_indices = @transform_2, window_bounds = array<i64: 1, 1024>}, {pipeline_mode = #tpu.pipeline_mode<synchronous>, transform_indices = @transform_3, window_bounds = array<i64: 1, 256>}, {pipeline_mode = #tpu.pipeline_mode<synchronous>, transform_indices = @transform_4, window_bounds = array<i64: 1, 256>}, {pipeline_mode = #tpu.pipeline_mode<synchronous>, transform_indices = @transform_5, window_bounds = array<i64: 3, 256, 256>}, {pipeline_mode = #tpu.pipeline_mode<synchronous>, transform_indices = @transform_6, window_bounds = array<i64: 1, 256>}, {pipeline_mode = #tpu.pipeline_mode<synchronous>, transform_indices = @transform_7, window_bounds = array<i64: 1, 256>}, {pipeline_mode = #tpu.pipeline_mode<synchronous>, transform_indices = @transform_8, window_bounds = array<i64: 1, 256>}, {pipeline_mode = #tpu.pipeline_mode<synchronous>, transform_indices = @transform_9, window_bounds = array<i64: 3, 256, 256>}, {pipeline_mode = #tpu.pipeline_mode<synchronous>, transform_indices = @transform_10, window_bounds = array<i64: 1, 256>}, {pipeline_mode = #tpu.pipeline_mode<synchronous>, transform_indices = @transform_11, window_bounds = array<i64: 1, 256>}, {pipeline_mode = #tpu.pipeline_mode<synchronous>, transform_indices = @transform_12, window_bounds = array<i64: 1, 256>}, {pipeline_mode = #tpu.pipeline_mode<synchronous>, transform_indices = @transform_13, window_bounds = array<i64: 3, 256, 256>}, {pipeline_mode = #tpu.pipeline_mode<synchronous>, transform_indices = @transform_14, window_bounds = array<i64: 1, 256>}, {pipeline_mode = #tpu.pipeline_mode<synchronous>, transform_indices = @transform_15, window_bounds = array<i64: 1, 256>}, {pipeline_mode = #tpu.pipeline_mode<synchronous>, transform_indices = @transform_16, window_bounds = array<i64: 1, 256>}, {pipeline_mode = #tpu.pipeline_mode<synchronous>, transform_indices = @transform_17, window_bounds = array<i64: 3, 256, 8>}, {pipeline_mode = #tpu.pipeline_mode<synchronous>, transform_indices = @transform_18, window_bounds = array<i64: 1, 8>}, {pipeline_mode = #tpu.pipeline_mode<synchronous>, transform_indices = @transform_19, window_bounds = array<i64: 16, 8>}]} {
    %0 = tpu.iota {dimensions = array<i32: 0>} : vector<16x16xi32>
    %1 = tpu.iota {dimensions = array<i32: 1>} : vector<16x16xi32>
    %c4_i32 = arith.constant 4 : i32
    %2 = vector.broadcast %c4_i32 : i32 to vector<16x16xi32>
    %3 = arith.addi %0, %2 : vector<16x16xi32>
    %4 = arith.cmpi eq, %1, %3 : vector<16x16xi32>
    %5 = arith.extui %4 : vector<16x16xi1> to vector<16x16xi32>
    %6 = arith.sitofp %5 : vector<16x16xi32> to vector<16x16xf32>
    %c4_i32_0 = arith.constant 4 : i32
    %7 = vector.broadcast %c4_i32_0 : i32 to vector<16x16xi32>
    %8 = arith.addi %1, %7 : vector<16x16xi32>
    %9 = arith.cmpi eq, %8, %0 : vector<16x16xi32>
    %10 = arith.extui %9 : vector<16x16xi1> to vector<16x16xi32>
    %11 = arith.sitofp %10 : vector<16x16xi32> to vector<16x16xf32>
    %c0 = arith.constant 0 : index
    %c0_1 = arith.constant 0 : index
    %12 = vector.load %arg1[%c0, %c0_1] : memref<4x100xf32, #tpu.memory_space<vmem>>, vector<4x100xf32>
    %c0_2 = arith.constant 0 : index
    %c0_3 = arith.constant 0 : index
    %13 = vector.load %arg2[%c0_2, %c0_3] : memref<100x1024xf32, #tpu.memory_space<vmem>>, vector<100x1024xf32>
    %cst = arith.constant dense<0.000000e+00> : vector<4x1024xf32>
    %14 = tpu.matmul %12, %13, %cst {dimension_numbers = #tpu.dot_dimension_numbers<[1], [0], [0], [1], [0, 0, 1, 1], [], []>} : vector<4x100xf32>, vector<100x1024xf32>, vector<4x1024xf32> -> vector<4x1024xf32>
    %c0_4 = arith.constant 0 : index
    %c0_5 = arith.constant 0 : index
    %15 = vector.load %arg3[%c0_4, %c0_5] : memref<1x1024xf32, #tpu.memory_space<vmem>>, vector<1x1024xf32>
    %16 = vector.broadcast %15 : vector<1x1024xf32> to vector<4x1024xf32>
    %17 = arith.addf %14, %16 : vector<4x1024xf32>
    %18 = tpu.iota {dimensions = array<i32: 0>} : vector<16x4xi32>
    %19 = tpu.iota {dimensions = array<i32: 1>} : vector<16x4xi32>
    %cst_6 = arith.constant 0.000000e+00 : f32
    %20 = vector.broadcast %cst_6 : f32 to vector<16x256xf32>
    %c0_i32 = arith.constant 0 : i32
    %21 = vector.broadcast %c0_i32 : i32 to vector<16x4xi32>
    %22 = arith.addi %19, %21 : vector<16x4xi32>
    %23 = arith.cmpi eq, %18, %22 : vector<16x4xi32>
    %24 = arith.extui %23 : vector<16x4xi1> to vector<16x4xi32>
    %25 = arith.sitofp %24 : vector<16x4xi32> to vector<16x4xf32>
    %26 = vector.extract_strided_slice %17 {offsets = [0, 0], sizes = [4, 256], strides = [1, 1]} : vector<4x1024xf32> to vector<4x256xf32>
    %cst_7 = arith.constant dense<0.000000e+00> : vector<16x256xf32>
    %27 = tpu.matmul %25, %26, %cst_7 {dimension_numbers = #tpu.dot_dimension_numbers<[1], [0], [0], [1], [0, 0, 1, 1], [], []>} : vector<16x4xf32>, vector<4x256xf32>, vector<16x256xf32> -> vector<16x256xf32>
    %28 = arith.addf %20, %27 : vector<16x256xf32>
    %c4_i32_8 = arith.constant 4 : i32
    %29 = vector.broadcast %c4_i32_8 : i32 to vector<16x4xi32>
    %30 = arith.addi %19, %29 : vector<16x4xi32>
    %31 = arith.cmpi eq, %18, %30 : vector<16x4xi32>
    %32 = arith.extui %31 : vector<16x4xi1> to vector<16x4xi32>
    %33 = arith.sitofp %32 : vector<16x4xi32> to vector<16x4xf32>
    %34 = vector.extract_strided_slice %17 {offsets = [0, 256], sizes = [4, 256], strides = [1, 1]} : vector<4x1024xf32> to vector<4x256xf32>
    %cst_9 = arith.constant dense<0.000000e+00> : vector<16x256xf32>
    %35 = tpu.matmul %33, %34, %cst_9 {dimension_numbers = #tpu.dot_dimension_numbers<[1], [0], [0], [1], [0, 0, 1, 1], [], []>} : vector<16x4xf32>, vector<4x256xf32>, vector<16x256xf32> -> vector<16x256xf32>
    %36 = arith.addf %28, %35 : vector<16x256xf32>
    %c8_i32 = arith.constant 8 : i32
    %37 = vector.broadcast %c8_i32 : i32 to vector<16x4xi32>
    %38 = arith.addi %19, %37 : vector<16x4xi32>
    %39 = arith.cmpi eq, %18, %38 : vector<16x4xi32>
    %40 = arith.extui %39 : vector<16x4xi1> to vector<16x4xi32>
    %41 = arith.sitofp %40 : vector<16x4xi32> to vector<16x4xf32>
    %42 = vector.extract_strided_slice %17 {offsets = [0, 512], sizes = [4, 256], strides = [1, 1]} : vector<4x1024xf32> to vector<4x256xf32>
    %cst_10 = arith.constant dense<0.000000e+00> : vector<16x256xf32>
    %43 = tpu.matmul %41, %42, %cst_10 {dimension_numbers = #tpu.dot_dimension_numbers<[1], [0], [0], [1], [0, 0, 1, 1], [], []>} : vector<16x4xf32>, vector<4x256xf32>, vector<16x256xf32> -> vector<16x256xf32>
    %44 = arith.addf %36, %43 : vector<16x256xf32>
    %c12_i32 = arith.constant 12 : i32
    %45 = vector.broadcast %c12_i32 : i32 to vector<16x4xi32>
    %46 = arith.addi %19, %45 : vector<16x4xi32>
    %47 = arith.cmpi eq, %18, %46 : vector<16x4xi32>
    %48 = arith.extui %47 : vector<16x4xi1> to vector<16x4xi32>
    %49 = arith.sitofp %48 : vector<16x4xi32> to vector<16x4xf32>
    %50 = vector.extract_strided_slice %17 {offsets = [0, 768], sizes = [4, 256], strides = [1, 1]} : vector<4x1024xf32> to vector<4x256xf32>
    %cst_11 = arith.constant dense<0.000000e+00> : vector<16x256xf32>
    %51 = tpu.matmul %49, %50, %cst_11 {dimension_numbers = #tpu.dot_dimension_numbers<[1], [0], [0], [1], [0, 0, 1, 1], [], []>} : vector<16x4xf32>, vector<4x256xf32>, vector<16x256xf32> -> vector<16x256xf32>
    %52 = arith.addf %44, %51 : vector<16x256xf32>
    %c0_12 = arith.constant 0 : index
    %c0_13 = arith.constant 0 : index
    %53 = vector.load %arg4[%c0_12, %c0_13] : memref<1x256xf32, #tpu.memory_space<vmem>>, vector<1x256xf32>
    %c0_14 = arith.constant 0 : index
    %c0_15 = arith.constant 0 : index
    %54 = vector.load %arg5[%c0_14, %c0_15] : memref<1x256xf32, #tpu.memory_space<vmem>>, vector<1x256xf32>
    %55 = tpu.iota {dimensions = array<i32: 0>} : vector<256x256xi32>
    %56 = tpu.iota {dimensions = array<i32: 1>} : vector<256x256xi32>
    %c256_i32 = arith.constant 256 : i32
    %c0_i32_16 = arith.constant 0 : i32
    %57 = arith.cmpi eq, %c256_i32, %c0_i32_16 : i32
    %c1_i32 = arith.constant 1 : i32
    %58 = arith.select %57, %c1_i32, %c256_i32 : i32
    %59 = vector.broadcast %58 : i32 to vector<256x256xi32>
    %60 = arith.remsi %55, %59 : vector<256x256xi32>
    %c0_i32_17 = arith.constant 0 : i32
    %61 = vector.broadcast %c0_i32_17 : i32 to vector<256x256xi32>
    %62 = arith.cmpi ne, %60, %61 : vector<256x256xi32>
    %c0_i32_18 = arith.constant 0 : i32
    %63 = vector.broadcast %c0_i32_18 : i32 to vector<256x256xi32>
    %64 = arith.cmpi slt, %60, %63 : vector<256x256xi32>
    %c0_i32_19 = arith.constant 0 : i32
    %65 = arith.cmpi slt, %58, %c0_i32_19 : i32
    %66 = vector.broadcast %65 : i1 to vector<256x256xi1>
    %67 = vector.broadcast %66 : vector<256x256xi1> to vector<256x256xi1>
    %68 = arith.xori %64, %67 : vector<256x256xi1>
    %69 = arith.andi %68, %62 : vector<256x256xi1>
    %70 = vector.broadcast %58 : i32 to vector<256x256xi32>
    %71 = arith.addi %60, %70 : vector<256x256xi32>
    %72 = arith.select %69, %71, %60 : vector<256x256xi1>, vector<256x256xi32>
    %c256_i32_20 = arith.constant 256 : i32
    %c0_i32_21 = arith.constant 0 : i32
    %73 = arith.cmpi eq, %c256_i32_20, %c0_i32_21 : i32
    %c1_i32_22 = arith.constant 1 : i32
    %74 = arith.select %73, %c1_i32_22, %c256_i32_20 : i32
    %75 = vector.broadcast %74 : i32 to vector<256x256xi32>
    %76 = arith.remsi %56, %75 : vector<256x256xi32>
    %c0_i32_23 = arith.constant 0 : i32
    %77 = vector.broadcast %c0_i32_23 : i32 to vector<256x256xi32>
    %78 = arith.cmpi ne, %76, %77 : vector<256x256xi32>
    %c0_i32_24 = arith.constant 0 : i32
    %79 = vector.broadcast %c0_i32_24 : i32 to vector<256x256xi32>
    %80 = arith.cmpi slt, %76, %79 : vector<256x256xi32>
    %c0_i32_25 = arith.constant 0 : i32
    %81 = arith.cmpi slt, %74, %c0_i32_25 : i32
    %82 = vector.broadcast %81 : i1 to vector<256x256xi1>
    %83 = vector.broadcast %82 : vector<256x256xi1> to vector<256x256xi1>
    %84 = arith.xori %80, %83 : vector<256x256xi1>
    %85 = arith.andi %84, %78 : vector<256x256xi1>
    %86 = vector.broadcast %74 : i32 to vector<256x256xi32>
    %87 = arith.addi %76, %86 : vector<256x256xi32>
    %88 = arith.select %85, %87, %76 : vector<256x256xi1>, vector<256x256xi32>
    %89 = arith.cmpi eq, %72, %88 : vector<256x256xi32>
    %90 = arith.extui %89 : vector<256x256xi1> to vector<256x256xi32>
    %91 = arith.sitofp %90 : vector<256x256xi32> to vector<256x256xf32>
    %cst_26 = arith.constant dense<0.000000e+00> : vector<256xf32>
    %92 = vector.multi_reduction <add>, %52, %cst_26 [0] : vector<16x256xf32> to vector<256xf32>
    %93 = vector.shape_cast %92 : vector<256xf32> to vector<1x256xf32>
    %cst_27 = arith.constant dense<0.000000e+00> : vector<1x256xf32>
    %94 = tpu.matmul %93, %91, %cst_27 {dimension_numbers = #tpu.dot_dimension_numbers<[1], [0], [0], [1], [0, 0, 1, 1], [], []>} : vector<1x256xf32>, vector<256x256xf32>, vector<1x256xf32> -> vector<1x256xf32>
    %cst_28 = arith.constant 1.600000e+01 : f32
    %95 = vector.broadcast %cst_28 : f32 to vector<1x256xf32>
    %96 = arith.divf %94, %95 : vector<1x256xf32>
    %97 = vector.broadcast %96 : vector<1x256xf32> to vector<16x256xf32>
    %98 = arith.subf %52, %97 : vector<16x256xf32>
    %99 = arith.mulf %98, %98 : vector<16x256xf32>
    %cst_29 = arith.constant dense<0.000000e+00> : vector<256xf32>
    %100 = vector.multi_reduction <add>, %99, %cst_29 [0] : vector<16x256xf32> to vector<256xf32>
    %101 = vector.shape_cast %100 : vector<256xf32> to vector<1x256xf32>
    %cst_30 = arith.constant dense<0.000000e+00> : vector<1x256xf32>
    %102 = tpu.matmul %101, %91, %cst_30 {dimension_numbers = #tpu.dot_dimension_numbers<[1], [0], [0], [1], [0, 0, 1, 1], [], []>} : vector<1x256xf32>, vector<256x256xf32>, vector<1x256xf32> -> vector<1x256xf32>
    %cst_31 = arith.constant 1.600000e+01 : f32
    %103 = vector.broadcast %cst_31 : f32 to vector<1x256xf32>
    %104 = arith.divf %102, %103 : vector<1x256xf32>
    %cst_32 = arith.constant 9.99999974E-6 : f32
    %105 = vector.broadcast %cst_32 : f32 to vector<1x256xf32>
    %106 = arith.addf %104, %105 : vector<1x256xf32>
    %107 = math.rsqrt %106 : vector<1x256xf32>
    %108 = arith.mulf %53, %107 : vector<1x256xf32>
    %109 = vector.broadcast %108 : vector<1x256xf32> to vector<16x256xf32>
    %110 = arith.mulf %98, %109 : vector<16x256xf32>
    %111 = vector.broadcast %54 : vector<1x256xf32> to vector<16x256xf32>
    %112 = arith.addf %110, %111 : vector<16x256xf32>
    %cst_33 = arith.constant 0.000000e+00 : f32
    %113 = vector.broadcast %cst_33 : f32 to vector<16x256xf32>
    %114 = arith.cmpf oge, %112, %113 : vector<16x256xf32>
    %cst_34 = arith.constant 0.00999999977 : f32
    %115 = vector.broadcast %cst_34 : f32 to vector<16x256xf32>
    %116 = arith.mulf %115, %112 : vector<16x256xf32>
    %117 = arith.select %114, %112, %116 : vector<16x256xi1>, vector<16x256xf32>
    %cst_35 = arith.constant dense<0.000000e+00> : vector<16x256xf32>
    %118 = tpu.matmul %11, %117, %cst_35 {dimension_numbers = #tpu.dot_dimension_numbers<[1], [0], [0], [1], [0, 0, 1, 1], [], []>} : vector<16x16xf32>, vector<16x256xf32>, vector<16x256xf32> -> vector<16x256xf32>
    %c0_36 = arith.constant 0 : index
    %c0_37 = arith.constant 0 : index
    %c0_38 = arith.constant 0 : index
    %119 = vector.load %arg6[%c0_36, %c0_37, %c0_38] : memref<3x256x256xf32, #tpu.memory_space<vmem>>, vector<1x256x256xf32>
    %120 = vector.shape_cast %119 : vector<1x256x256xf32> to vector<256x256xf32>
    %cst_39 = arith.constant dense<0.000000e+00> : vector<16x256xf32>
    %121 = tpu.matmul %118, %120, %cst_39 {dimension_numbers = #tpu.dot_dimension_numbers<[1], [0], [0], [1], [0, 0, 1, 1], [], []>} : vector<16x256xf32>, vector<256x256xf32>, vector<16x256xf32> -> vector<16x256xf32>
    %c1 = arith.constant 1 : index
    %c0_40 = arith.constant 0 : index
    %c0_41 = arith.constant 0 : index
    %122 = vector.load %arg6[%c1, %c0_40, %c0_41] : memref<3x256x256xf32, #tpu.memory_space<vmem>>, vector<1x256x256xf32>
    %123 = vector.shape_cast %122 : vector<1x256x256xf32> to vector<256x256xf32>
    %cst_42 = arith.constant dense<0.000000e+00> : vector<16x256xf32>
    %124 = tpu.matmul %117, %123, %cst_42 {dimension_numbers = #tpu.dot_dimension_numbers<[1], [0], [0], [1], [0, 0, 1, 1], [], []>} : vector<16x256xf32>, vector<256x256xf32>, vector<16x256xf32> -> vector<16x256xf32>
    %125 = arith.addf %121, %124 : vector<16x256xf32>
    %cst_43 = arith.constant dense<0.000000e+00> : vector<16x256xf32>
    %126 = tpu.matmul %6, %117, %cst_43 {dimension_numbers = #tpu.dot_dimension_numbers<[1], [0], [0], [1], [0, 0, 1, 1], [], []>} : vector<16x16xf32>, vector<16x256xf32>, vector<16x256xf32> -> vector<16x256xf32>
    %c2 = arith.constant 2 : index
    %c0_44 = arith.constant 0 : index
    %c0_45 = arith.constant 0 : index
    %127 = vector.load %arg6[%c2, %c0_44, %c0_45] : memref<3x256x256xf32, #tpu.memory_space<vmem>>, vector<1x256x256xf32>
    %128 = vector.shape_cast %127 : vector<1x256x256xf32> to vector<256x256xf32>
    %cst_46 = arith.constant dense<0.000000e+00> : vector<16x256xf32>
    %129 = tpu.matmul %126, %128, %cst_46 {dimension_numbers = #tpu.dot_dimension_numbers<[1], [0], [0], [1], [0, 0, 1, 1], [], []>} : vector<16x256xf32>, vector<256x256xf32>, vector<16x256xf32> -> vector<16x256xf32>
    %130 = arith.addf %125, %129 : vector<16x256xf32>
    %c0_47 = arith.constant 0 : index
    %c0_48 = arith.constant 0 : index
    %131 = vector.load %arg7[%c0_47, %c0_48] : memref<1x256xf32, #tpu.memory_space<vmem>>, vector<1x256xf32>
    %132 = vector.broadcast %131 : vector<1x256xf32> to vector<16x256xf32>
    %133 = arith.addf %130, %132 : vector<16x256xf32>
    %c0_49 = arith.constant 0 : index
    %c0_50 = arith.constant 0 : index
    %134 = vector.load %arg8[%c0_49, %c0_50] : memref<1x256xf32, #tpu.memory_space<vmem>>, vector<1x256xf32>
    %c0_51 = arith.constant 0 : index
    %c0_52 = arith.constant 0 : index
    %135 = vector.load %arg9[%c0_51, %c0_52] : memref<1x256xf32, #tpu.memory_space<vmem>>, vector<1x256xf32>
    %136 = tpu.iota {dimensions = array<i32: 0>} : vector<256x256xi32>
    %137 = tpu.iota {dimensions = array<i32: 1>} : vector<256x256xi32>
    %c128_i32 = arith.constant 128 : i32
    %c0_i32_53 = arith.constant 0 : i32
    %138 = arith.cmpi eq, %c128_i32, %c0_i32_53 : i32
    %c1_i32_54 = arith.constant 1 : i32
    %139 = arith.select %138, %c1_i32_54, %c128_i32 : i32
    %140 = vector.broadcast %139 : i32 to vector<256x256xi32>
    %141 = arith.remsi %136, %140 : vector<256x256xi32>
    %c0_i32_55 = arith.constant 0 : i32
    %142 = vector.broadcast %c0_i32_55 : i32 to vector<256x256xi32>
    %143 = arith.cmpi ne, %141, %142 : vector<256x256xi32>
    %c0_i32_56 = arith.constant 0 : i32
    %144 = vector.broadcast %c0_i32_56 : i32 to vector<256x256xi32>
    %145 = arith.cmpi slt, %141, %144 : vector<256x256xi32>
    %c0_i32_57 = arith.constant 0 : i32
    %146 = arith.cmpi slt, %139, %c0_i32_57 : i32
    %147 = vector.broadcast %146 : i1 to vector<256x256xi1>
    %148 = vector.broadcast %147 : vector<256x256xi1> to vector<256x256xi1>
    %149 = arith.xori %145, %148 : vector<256x256xi1>
    %150 = arith.andi %149, %143 : vector<256x256xi1>
    %151 = vector.broadcast %139 : i32 to vector<256x256xi32>
    %152 = arith.addi %141, %151 : vector<256x256xi32>
    %153 = arith.select %150, %152, %141 : vector<256x256xi1>, vector<256x256xi32>
    %c128_i32_58 = arith.constant 128 : i32
    %c0_i32_59 = arith.constant 0 : i32
    %154 = arith.cmpi eq, %c128_i32_58, %c0_i32_59 : i32
    %c1_i32_60 = arith.constant 1 : i32
    %155 = arith.select %154, %c1_i32_60, %c128_i32_58 : i32
    %156 = vector.broadcast %155 : i32 to vector<256x256xi32>
    %157 = arith.remsi %137, %156 : vector<256x256xi32>
    %c0_i32_61 = arith.constant 0 : i32
    %158 = vector.broadcast %c0_i32_61 : i32 to vector<256x256xi32>
    %159 = arith.cmpi ne, %157, %158 : vector<256x256xi32>
    %c0_i32_62 = arith.constant 0 : i32
    %160 = vector.broadcast %c0_i32_62 : i32 to vector<256x256xi32>
    %161 = arith.cmpi slt, %157, %160 : vector<256x256xi32>
    %c0_i32_63 = arith.constant 0 : i32
    %162 = arith.cmpi slt, %155, %c0_i32_63 : i32
    %163 = vector.broadcast %162 : i1 to vector<256x256xi1>
    %164 = vector.broadcast %163 : vector<256x256xi1> to vector<256x256xi1>
    %165 = arith.xori %161, %164 : vector<256x256xi1>
    %166 = arith.andi %165, %159 : vector<256x256xi1>
    %167 = vector.broadcast %155 : i32 to vector<256x256xi32>
    %168 = arith.addi %157, %167 : vector<256x256xi32>
    %169 = arith.select %166, %168, %157 : vector<256x256xi1>, vector<256x256xi32>
    %170 = arith.cmpi eq, %153, %169 : vector<256x256xi32>
    %171 = arith.extui %170 : vector<256x256xi1> to vector<256x256xi32>
    %172 = arith.sitofp %171 : vector<256x256xi32> to vector<256x256xf32>
    %cst_64 = arith.constant dense<0.000000e+00> : vector<256xf32>
    %173 = vector.multi_reduction <add>, %133, %cst_64 [0] : vector<16x256xf32> to vector<256xf32>
    %174 = vector.shape_cast %173 : vector<256xf32> to vector<1x256xf32>
    %cst_65 = arith.constant dense<0.000000e+00> : vector<1x256xf32>
    %175 = tpu.matmul %174, %172, %cst_65 {dimension_numbers = #tpu.dot_dimension_numbers<[1], [0], [0], [1], [0, 0, 1, 1], [], []>} : vector<1x256xf32>, vector<256x256xf32>, vector<1x256xf32> -> vector<1x256xf32>
    %cst_66 = arith.constant 3.200000e+01 : f32
    %176 = vector.broadcast %cst_66 : f32 to vector<1x256xf32>
    %177 = arith.divf %175, %176 : vector<1x256xf32>
    %178 = vector.broadcast %177 : vector<1x256xf32> to vector<16x256xf32>
    %179 = arith.subf %133, %178 : vector<16x256xf32>
    %180 = arith.mulf %179, %179 : vector<16x256xf32>
    %cst_67 = arith.constant dense<0.000000e+00> : vector<256xf32>
    %181 = vector.multi_reduction <add>, %180, %cst_67 [0] : vector<16x256xf32> to vector<256xf32>
    %182 = vector.shape_cast %181 : vector<256xf32> to vector<1x256xf32>
    %cst_68 = arith.constant dense<0.000000e+00> : vector<1x256xf32>
    %183 = tpu.matmul %182, %172, %cst_68 {dimension_numbers = #tpu.dot_dimension_numbers<[1], [0], [0], [1], [0, 0, 1, 1], [], []>} : vector<1x256xf32>, vector<256x256xf32>, vector<1x256xf32> -> vector<1x256xf32>
    %cst_69 = arith.constant 3.200000e+01 : f32
    %184 = vector.broadcast %cst_69 : f32 to vector<1x256xf32>
    %185 = arith.divf %183, %184 : vector<1x256xf32>
    %cst_70 = arith.constant 9.99999974E-6 : f32
    %186 = vector.broadcast %cst_70 : f32 to vector<1x256xf32>
    %187 = arith.addf %185, %186 : vector<1x256xf32>
    %188 = math.rsqrt %187 : vector<1x256xf32>
    %189 = arith.mulf %134, %188 : vector<1x256xf32>
    %190 = vector.broadcast %189 : vector<1x256xf32> to vector<16x256xf32>
    %191 = arith.mulf %179, %190 : vector<16x256xf32>
    %192 = vector.broadcast %135 : vector<1x256xf32> to vector<16x256xf32>
    %193 = arith.addf %191, %192 : vector<16x256xf32>
    %cst_71 = arith.constant 0.000000e+00 : f32
    %194 = vector.broadcast %cst_71 : f32 to vector<16x256xf32>
    %195 = arith.cmpf oge, %193, %194 : vector<16x256xf32>
    %cst_72 = arith.constant 0.00999999977 : f32
    %196 = vector.broadcast %cst_72 : f32 to vector<16x256xf32>
    %197 = arith.mulf %196, %193 : vector<16x256xf32>
    %198 = arith.select %195, %193, %197 : vector<16x256xi1>, vector<16x256xf32>
    %cst_73 = arith.constant dense<0.000000e+00> : vector<16x256xf32>
    %199 = tpu.matmul %11, %198, %cst_73 {dimension_numbers = #tpu.dot_dimension_numbers<[1], [0], [0], [1], [0, 0, 1, 1], [], []>} : vector<16x16xf32>, vector<16x256xf32>, vector<16x256xf32> -> vector<16x256xf32>
    %c0_74 = arith.constant 0 : index
    %c0_75 = arith.constant 0 : index
    %c0_76 = arith.constant 0 : index
    %200 = vector.load %arg10[%c0_74, %c0_75, %c0_76] : memref<3x256x256xf32, #tpu.memory_space<vmem>>, vector<1x256x256xf32>
    %201 = vector.shape_cast %200 : vector<1x256x256xf32> to vector<256x256xf32>
    %cst_77 = arith.constant dense<0.000000e+00> : vector<16x256xf32>
    %202 = tpu.matmul %199, %201, %cst_77 {dimension_numbers = #tpu.dot_dimension_numbers<[1], [0], [0], [1], [0, 0, 1, 1], [], []>} : vector<16x256xf32>, vector<256x256xf32>, vector<16x256xf32> -> vector<16x256xf32>
    %c1_78 = arith.constant 1 : index
    %c0_79 = arith.constant 0 : index
    %c0_80 = arith.constant 0 : index
    %203 = vector.load %arg10[%c1_78, %c0_79, %c0_80] : memref<3x256x256xf32, #tpu.memory_space<vmem>>, vector<1x256x256xf32>
    %204 = vector.shape_cast %203 : vector<1x256x256xf32> to vector<256x256xf32>
    %cst_81 = arith.constant dense<0.000000e+00> : vector<16x256xf32>
    %205 = tpu.matmul %198, %204, %cst_81 {dimension_numbers = #tpu.dot_dimension_numbers<[1], [0], [0], [1], [0, 0, 1, 1], [], []>} : vector<16x256xf32>, vector<256x256xf32>, vector<16x256xf32> -> vector<16x256xf32>
    %206 = arith.addf %202, %205 : vector<16x256xf32>
    %cst_82 = arith.constant dense<0.000000e+00> : vector<16x256xf32>
    %207 = tpu.matmul %6, %198, %cst_82 {dimension_numbers = #tpu.dot_dimension_numbers<[1], [0], [0], [1], [0, 0, 1, 1], [], []>} : vector<16x16xf32>, vector<16x256xf32>, vector<16x256xf32> -> vector<16x256xf32>
    %c2_83 = arith.constant 2 : index
    %c0_84 = arith.constant 0 : index
    %c0_85 = arith.constant 0 : index
    %208 = vector.load %arg10[%c2_83, %c0_84, %c0_85] : memref<3x256x256xf32, #tpu.memory_space<vmem>>, vector<1x256x256xf32>
    %209 = vector.shape_cast %208 : vector<1x256x256xf32> to vector<256x256xf32>
    %cst_86 = arith.constant dense<0.000000e+00> : vector<16x256xf32>
    %210 = tpu.matmul %207, %209, %cst_86 {dimension_numbers = #tpu.dot_dimension_numbers<[1], [0], [0], [1], [0, 0, 1, 1], [], []>} : vector<16x256xf32>, vector<256x256xf32>, vector<16x256xf32> -> vector<16x256xf32>
    %211 = arith.addf %206, %210 : vector<16x256xf32>
    %c0_87 = arith.constant 0 : index
    %c0_88 = arith.constant 0 : index
    %212 = vector.load %arg11[%c0_87, %c0_88] : memref<1x256xf32, #tpu.memory_space<vmem>>, vector<1x256xf32>
    %213 = vector.broadcast %212 : vector<1x256xf32> to vector<16x256xf32>
    %214 = arith.addf %211, %213 : vector<16x256xf32>
    %c0_89 = arith.constant 0 : index
    %c0_90 = arith.constant 0 : index
    %215 = vector.load %arg12[%c0_89, %c0_90] : memref<1x256xf32, #tpu.memory_space<vmem>>, vector<1x256xf32>
    %c0_91 = arith.constant 0 : index
    %c0_92 = arith.constant 0 : index
    %216 = vector.load %arg13[%c0_91, %c0_92] : memref<1x256xf32, #tpu.memory_space<vmem>>, vector<1x256xf32>
    %217 = tpu.iota {dimensions = array<i32: 0>} : vector<256x256xi32>
    %218 = tpu.iota {dimensions = array<i32: 1>} : vector<256x256xi32>
    %c64_i32 = arith.constant 64 : i32
    %c0_i32_93 = arith.constant 0 : i32
    %219 = arith.cmpi eq, %c64_i32, %c0_i32_93 : i32
    %c1_i32_94 = arith.constant 1 : i32
    %220 = arith.select %219, %c1_i32_94, %c64_i32 : i32
    %221 = vector.broadcast %220 : i32 to vector<256x256xi32>
    %222 = arith.remsi %217, %221 : vector<256x256xi32>
    %c0_i32_95 = arith.constant 0 : i32
    %223 = vector.broadcast %c0_i32_95 : i32 to vector<256x256xi32>
    %224 = arith.cmpi ne, %222, %223 : vector<256x256xi32>
    %c0_i32_96 = arith.constant 0 : i32
    %225 = vector.broadcast %c0_i32_96 : i32 to vector<256x256xi32>
    %226 = arith.cmpi slt, %222, %225 : vector<256x256xi32>
    %c0_i32_97 = arith.constant 0 : i32
    %227 = arith.cmpi slt, %220, %c0_i32_97 : i32
    %228 = vector.broadcast %227 : i1 to vector<256x256xi1>
    %229 = vector.broadcast %228 : vector<256x256xi1> to vector<256x256xi1>
    %230 = arith.xori %226, %229 : vector<256x256xi1>
    %231 = arith.andi %230, %224 : vector<256x256xi1>
    %232 = vector.broadcast %220 : i32 to vector<256x256xi32>
    %233 = arith.addi %222, %232 : vector<256x256xi32>
    %234 = arith.select %231, %233, %222 : vector<256x256xi1>, vector<256x256xi32>
    %c64_i32_98 = arith.constant 64 : i32
    %c0_i32_99 = arith.constant 0 : i32
    %235 = arith.cmpi eq, %c64_i32_98, %c0_i32_99 : i32
    %c1_i32_100 = arith.constant 1 : i32
    %236 = arith.select %235, %c1_i32_100, %c64_i32_98 : i32
    %237 = vector.broadcast %236 : i32 to vector<256x256xi32>
    %238 = arith.remsi %218, %237 : vector<256x256xi32>
    %c0_i32_101 = arith.constant 0 : i32
    %239 = vector.broadcast %c0_i32_101 : i32 to vector<256x256xi32>
    %240 = arith.cmpi ne, %238, %239 : vector<256x256xi32>
    %c0_i32_102 = arith.constant 0 : i32
    %241 = vector.broadcast %c0_i32_102 : i32 to vector<256x256xi32>
    %242 = arith.cmpi slt, %238, %241 : vector<256x256xi32>
    %c0_i32_103 = arith.constant 0 : i32
    %243 = arith.cmpi slt, %236, %c0_i32_103 : i32
    %244 = vector.broadcast %243 : i1 to vector<256x256xi1>
    %245 = vector.broadcast %244 : vector<256x256xi1> to vector<256x256xi1>
    %246 = arith.xori %242, %245 : vector<256x256xi1>
    %247 = arith.andi %246, %240 : vector<256x256xi1>
    %248 = vector.broadcast %236 : i32 to vector<256x256xi32>
    %249 = arith.addi %238, %248 : vector<256x256xi32>
    %250 = arith.select %247, %249, %238 : vector<256x256xi1>, vector<256x256xi32>
    %251 = arith.cmpi eq, %234, %250 : vector<256x256xi32>
    %252 = arith.extui %251 : vector<256x256xi1> to vector<256x256xi32>
    %253 = arith.sitofp %252 : vector<256x256xi32> to vector<256x256xf32>
    %cst_104 = arith.constant dense<0.000000e+00> : vector<256xf32>
    %254 = vector.multi_reduction <add>, %214, %cst_104 [0] : vector<16x256xf32> to vector<256xf32>
    %255 = vector.shape_cast %254 : vector<256xf32> to vector<1x256xf32>
    %cst_105 = arith.constant dense<0.000000e+00> : vector<1x256xf32>
    %256 = tpu.matmul %255, %253, %cst_105 {dimension_numbers = #tpu.dot_dimension_numbers<[1], [0], [0], [1], [0, 0, 1, 1], [], []>} : vector<1x256xf32>, vector<256x256xf32>, vector<1x256xf32> -> vector<1x256xf32>
    %cst_106 = arith.constant 6.400000e+01 : f32
    %257 = vector.broadcast %cst_106 : f32 to vector<1x256xf32>
    %258 = arith.divf %256, %257 : vector<1x256xf32>
    %259 = vector.broadcast %258 : vector<1x256xf32> to vector<16x256xf32>
    %260 = arith.subf %214, %259 : vector<16x256xf32>
    %261 = arith.mulf %260, %260 : vector<16x256xf32>
    %cst_107 = arith.constant dense<0.000000e+00> : vector<256xf32>
    %262 = vector.multi_reduction <add>, %261, %cst_107 [0] : vector<16x256xf32> to vector<256xf32>
    %263 = vector.shape_cast %262 : vector<256xf32> to vector<1x256xf32>
    %cst_108 = arith.constant dense<0.000000e+00> : vector<1x256xf32>
    %264 = tpu.matmul %263, %253, %cst_108 {dimension_numbers = #tpu.dot_dimension_numbers<[1], [0], [0], [1], [0, 0, 1, 1], [], []>} : vector<1x256xf32>, vector<256x256xf32>, vector<1x256xf32> -> vector<1x256xf32>
    %cst_109 = arith.constant 6.400000e+01 : f32
    %265 = vector.broadcast %cst_109 : f32 to vector<1x256xf32>
    %266 = arith.divf %264, %265 : vector<1x256xf32>
    %cst_110 = arith.constant 9.99999974E-6 : f32
    %267 = vector.broadcast %cst_110 : f32 to vector<1x256xf32>
    %268 = arith.addf %266, %267 : vector<1x256xf32>
    %269 = math.rsqrt %268 : vector<1x256xf32>
    %270 = arith.mulf %215, %269 : vector<1x256xf32>
    %271 = vector.broadcast %270 : vector<1x256xf32> to vector<16x256xf32>
    %272 = arith.mulf %260, %271 : vector<16x256xf32>
    %273 = vector.broadcast %216 : vector<1x256xf32> to vector<16x256xf32>
    %274 = arith.addf %272, %273 : vector<16x256xf32>
    %cst_111 = arith.constant 0.000000e+00 : f32
    %275 = vector.broadcast %cst_111 : f32 to vector<16x256xf32>
    %276 = arith.cmpf oge, %274, %275 : vector<16x256xf32>
    %cst_112 = arith.constant 0.00999999977 : f32
    %277 = vector.broadcast %cst_112 : f32 to vector<16x256xf32>
    %278 = arith.mulf %277, %274 : vector<16x256xf32>
    %279 = arith.select %276, %274, %278 : vector<16x256xi1>, vector<16x256xf32>
    %cst_113 = arith.constant dense<0.000000e+00> : vector<16x256xf32>
    %280 = tpu.matmul %11, %279, %cst_113 {dimension_numbers = #tpu.dot_dimension_numbers<[1], [0], [0], [1], [0, 0, 1, 1], [], []>} : vector<16x16xf32>, vector<16x256xf32>, vector<16x256xf32> -> vector<16x256xf32>
    %c0_114 = arith.constant 0 : index
    %c0_115 = arith.constant 0 : index
    %c0_116 = arith.constant 0 : index
    %281 = vector.load %arg14[%c0_114, %c0_115, %c0_116] : memref<3x256x256xf32, #tpu.memory_space<vmem>>, vector<1x256x256xf32>
    %282 = vector.shape_cast %281 : vector<1x256x256xf32> to vector<256x256xf32>
    %cst_117 = arith.constant dense<0.000000e+00> : vector<16x256xf32>
    %283 = tpu.matmul %280, %282, %cst_117 {dimension_numbers = #tpu.dot_dimension_numbers<[1], [0], [0], [1], [0, 0, 1, 1], [], []>} : vector<16x256xf32>, vector<256x256xf32>, vector<16x256xf32> -> vector<16x256xf32>
    %c1_118 = arith.constant 1 : index
    %c0_119 = arith.constant 0 : index
    %c0_120 = arith.constant 0 : index
    %284 = vector.load %arg14[%c1_118, %c0_119, %c0_120] : memref<3x256x256xf32, #tpu.memory_space<vmem>>, vector<1x256x256xf32>
    %285 = vector.shape_cast %284 : vector<1x256x256xf32> to vector<256x256xf32>
    %cst_121 = arith.constant dense<0.000000e+00> : vector<16x256xf32>
    %286 = tpu.matmul %279, %285, %cst_121 {dimension_numbers = #tpu.dot_dimension_numbers<[1], [0], [0], [1], [0, 0, 1, 1], [], []>} : vector<16x256xf32>, vector<256x256xf32>, vector<16x256xf32> -> vector<16x256xf32>
    %287 = arith.addf %283, %286 : vector<16x256xf32>
    %cst_122 = arith.constant dense<0.000000e+00> : vector<16x256xf32>
    %288 = tpu.matmul %6, %279, %cst_122 {dimension_numbers = #tpu.dot_dimension_numbers<[1], [0], [0], [1], [0, 0, 1, 1], [], []>} : vector<16x16xf32>, vector<16x256xf32>, vector<16x256xf32> -> vector<16x256xf32>
    %c2_123 = arith.constant 2 : index
    %c0_124 = arith.constant 0 : index
    %c0_125 = arith.constant 0 : index
    %289 = vector.load %arg14[%c2_123, %c0_124, %c0_125] : memref<3x256x256xf32, #tpu.memory_space<vmem>>, vector<1x256x256xf32>
    %290 = vector.shape_cast %289 : vector<1x256x256xf32> to vector<256x256xf32>
    %cst_126 = arith.constant dense<0.000000e+00> : vector<16x256xf32>
    %291 = tpu.matmul %288, %290, %cst_126 {dimension_numbers = #tpu.dot_dimension_numbers<[1], [0], [0], [1], [0, 0, 1, 1], [], []>} : vector<16x256xf32>, vector<256x256xf32>, vector<16x256xf32> -> vector<16x256xf32>
    %292 = arith.addf %287, %291 : vector<16x256xf32>
    %c0_127 = arith.constant 0 : index
    %c0_128 = arith.constant 0 : index
    %293 = vector.load %arg15[%c0_127, %c0_128] : memref<1x256xf32, #tpu.memory_space<vmem>>, vector<1x256xf32>
    %294 = vector.broadcast %293 : vector<1x256xf32> to vector<16x256xf32>
    %295 = arith.addf %292, %294 : vector<16x256xf32>
    %c0_129 = arith.constant 0 : index
    %c0_130 = arith.constant 0 : index
    %296 = vector.load %arg16[%c0_129, %c0_130] : memref<1x256xf32, #tpu.memory_space<vmem>>, vector<1x256xf32>
    %c0_131 = arith.constant 0 : index
    %c0_132 = arith.constant 0 : index
    %297 = vector.load %arg17[%c0_131, %c0_132] : memref<1x256xf32, #tpu.memory_space<vmem>>, vector<1x256xf32>
    %298 = tpu.iota {dimensions = array<i32: 0>} : vector<256x256xi32>
    %299 = tpu.iota {dimensions = array<i32: 1>} : vector<256x256xi32>
    %c32_i32 = arith.constant 32 : i32
    %c0_i32_133 = arith.constant 0 : i32
    %300 = arith.cmpi eq, %c32_i32, %c0_i32_133 : i32
    %c1_i32_134 = arith.constant 1 : i32
    %301 = arith.select %300, %c1_i32_134, %c32_i32 : i32
    %302 = vector.broadcast %301 : i32 to vector<256x256xi32>
    %303 = arith.remsi %298, %302 : vector<256x256xi32>
    %c0_i32_135 = arith.constant 0 : i32
    %304 = vector.broadcast %c0_i32_135 : i32 to vector<256x256xi32>
    %305 = arith.cmpi ne, %303, %304 : vector<256x256xi32>
    %c0_i32_136 = arith.constant 0 : i32
    %306 = vector.broadcast %c0_i32_136 : i32 to vector<256x256xi32>
    %307 = arith.cmpi slt, %303, %306 : vector<256x256xi32>
    %c0_i32_137 = arith.constant 0 : i32
    %308 = arith.cmpi slt, %301, %c0_i32_137 : i32
    %309 = vector.broadcast %308 : i1 to vector<256x256xi1>
    %310 = vector.broadcast %309 : vector<256x256xi1> to vector<256x256xi1>
    %311 = arith.xori %307, %310 : vector<256x256xi1>
    %312 = arith.andi %311, %305 : vector<256x256xi1>
    %313 = vector.broadcast %301 : i32 to vector<256x256xi32>
    %314 = arith.addi %303, %313 : vector<256x256xi32>
    %315 = arith.select %312, %314, %303 : vector<256x256xi1>, vector<256x256xi32>
    %c32_i32_138 = arith.constant 32 : i32
    %c0_i32_139 = arith.constant 0 : i32
    %316 = arith.cmpi eq, %c32_i32_138, %c0_i32_139 : i32
    %c1_i32_140 = arith.constant 1 : i32
    %317 = arith.select %316, %c1_i32_140, %c32_i32_138 : i32
    %318 = vector.broadcast %317 : i32 to vector<256x256xi32>
    %319 = arith.remsi %299, %318 : vector<256x256xi32>
    %c0_i32_141 = arith.constant 0 : i32
    %320 = vector.broadcast %c0_i32_141 : i32 to vector<256x256xi32>
    %321 = arith.cmpi ne, %319, %320 : vector<256x256xi32>
    %c0_i32_142 = arith.constant 0 : i32
    %322 = vector.broadcast %c0_i32_142 : i32 to vector<256x256xi32>
    %323 = arith.cmpi slt, %319, %322 : vector<256x256xi32>
    %c0_i32_143 = arith.constant 0 : i32
    %324 = arith.cmpi slt, %317, %c0_i32_143 : i32
    %325 = vector.broadcast %324 : i1 to vector<256x256xi1>
    %326 = vector.broadcast %325 : vector<256x256xi1> to vector<256x256xi1>
    %327 = arith.xori %323, %326 : vector<256x256xi1>
    %328 = arith.andi %327, %321 : vector<256x256xi1>
    %329 = vector.broadcast %317 : i32 to vector<256x256xi32>
    %330 = arith.addi %319, %329 : vector<256x256xi32>
    %331 = arith.select %328, %330, %319 : vector<256x256xi1>, vector<256x256xi32>
    %332 = arith.cmpi eq, %315, %331 : vector<256x256xi32>
    %333 = arith.extui %332 : vector<256x256xi1> to vector<256x256xi32>
    %334 = arith.sitofp %333 : vector<256x256xi32> to vector<256x256xf32>
    %cst_144 = arith.constant dense<0.000000e+00> : vector<256xf32>
    %335 = vector.multi_reduction <add>, %295, %cst_144 [0] : vector<16x256xf32> to vector<256xf32>
    %336 = vector.shape_cast %335 : vector<256xf32> to vector<1x256xf32>
    %cst_145 = arith.constant dense<0.000000e+00> : vector<1x256xf32>
    %337 = tpu.matmul %336, %334, %cst_145 {dimension_numbers = #tpu.dot_dimension_numbers<[1], [0], [0], [1], [0, 0, 1, 1], [], []>} : vector<1x256xf32>, vector<256x256xf32>, vector<1x256xf32> -> vector<1x256xf32>
    %cst_146 = arith.constant 1.280000e+02 : f32
    %338 = vector.broadcast %cst_146 : f32 to vector<1x256xf32>
    %339 = arith.divf %337, %338 : vector<1x256xf32>
    %340 = vector.broadcast %339 : vector<1x256xf32> to vector<16x256xf32>
    %341 = arith.subf %295, %340 : vector<16x256xf32>
    %342 = arith.mulf %341, %341 : vector<16x256xf32>
    %cst_147 = arith.constant dense<0.000000e+00> : vector<256xf32>
    %343 = vector.multi_reduction <add>, %342, %cst_147 [0] : vector<16x256xf32> to vector<256xf32>
    %344 = vector.shape_cast %343 : vector<256xf32> to vector<1x256xf32>
    %cst_148 = arith.constant dense<0.000000e+00> : vector<1x256xf32>
    %345 = tpu.matmul %344, %334, %cst_148 {dimension_numbers = #tpu.dot_dimension_numbers<[1], [0], [0], [1], [0, 0, 1, 1], [], []>} : vector<1x256xf32>, vector<256x256xf32>, vector<1x256xf32> -> vector<1x256xf32>
    %cst_149 = arith.constant 1.280000e+02 : f32
    %346 = vector.broadcast %cst_149 : f32 to vector<1x256xf32>
    %347 = arith.divf %345, %346 : vector<1x256xf32>
    %cst_150 = arith.constant 9.99999974E-6 : f32
    %348 = vector.broadcast %cst_150 : f32 to vector<1x256xf32>
    %349 = arith.addf %347, %348 : vector<1x256xf32>
    %350 = math.rsqrt %349 : vector<1x256xf32>
    %351 = arith.mulf %296, %350 : vector<1x256xf32>
    %352 = vector.broadcast %351 : vector<1x256xf32> to vector<16x256xf32>
    %353 = arith.mulf %341, %352 : vector<16x256xf32>
    %354 = vector.broadcast %297 : vector<1x256xf32> to vector<16x256xf32>
    %355 = arith.addf %353, %354 : vector<16x256xf32>
    %cst_151 = arith.constant 0.000000e+00 : f32
    %356 = vector.broadcast %cst_151 : f32 to vector<16x256xf32>
    %357 = arith.cmpf oge, %355, %356 : vector<16x256xf32>
    %cst_152 = arith.constant 0.00999999977 : f32
    %358 = vector.broadcast %cst_152 : f32 to vector<16x256xf32>
    %359 = arith.mulf %358, %355 : vector<16x256xf32>
    %360 = arith.select %357, %355, %359 : vector<16x256xi1>, vector<16x256xf32>
    %cst_153 = arith.constant dense<0.000000e+00> : vector<16x256xf32>
    %361 = tpu.matmul %11, %360, %cst_153 {dimension_numbers = #tpu.dot_dimension_numbers<[1], [0], [0], [1], [0, 0, 1, 1], [], []>} : vector<16x16xf32>, vector<16x256xf32>, vector<16x256xf32> -> vector<16x256xf32>
    %c0_154 = arith.constant 0 : index
    %c0_155 = arith.constant 0 : index
    %c0_156 = arith.constant 0 : index
    %362 = vector.load %arg18[%c0_154, %c0_155, %c0_156] : memref<3x256x8xf32, #tpu.memory_space<vmem>>, vector<1x256x8xf32>
    %363 = vector.shape_cast %362 : vector<1x256x8xf32> to vector<256x8xf32>
    %cst_157 = arith.constant dense<0.000000e+00> : vector<16x8xf32>
    %364 = tpu.matmul %361, %363, %cst_157 {dimension_numbers = #tpu.dot_dimension_numbers<[1], [0], [0], [1], [0, 0, 1, 1], [], []>} : vector<16x256xf32>, vector<256x8xf32>, vector<16x8xf32> -> vector<16x8xf32>
    %c1_158 = arith.constant 1 : index
    %c0_159 = arith.constant 0 : index
    %c0_160 = arith.constant 0 : index
    %365 = vector.load %arg18[%c1_158, %c0_159, %c0_160] : memref<3x256x8xf32, #tpu.memory_space<vmem>>, vector<1x256x8xf32>
    %366 = vector.shape_cast %365 : vector<1x256x8xf32> to vector<256x8xf32>
    %cst_161 = arith.constant dense<0.000000e+00> : vector<16x8xf32>
    %367 = tpu.matmul %360, %366, %cst_161 {dimension_numbers = #tpu.dot_dimension_numbers<[1], [0], [0], [1], [0, 0, 1, 1], [], []>} : vector<16x256xf32>, vector<256x8xf32>, vector<16x8xf32> -> vector<16x8xf32>
    %368 = arith.addf %364, %367 : vector<16x8xf32>
    %cst_162 = arith.constant dense<0.000000e+00> : vector<16x256xf32>
    %369 = tpu.matmul %6, %360, %cst_162 {dimension_numbers = #tpu.dot_dimension_numbers<[1], [0], [0], [1], [0, 0, 1, 1], [], []>} : vector<16x16xf32>, vector<16x256xf32>, vector<16x256xf32> -> vector<16x256xf32>
    %c2_163 = arith.constant 2 : index
    %c0_164 = arith.constant 0 : index
    %c0_165 = arith.constant 0 : index
    %370 = vector.load %arg18[%c2_163, %c0_164, %c0_165] : memref<3x256x8xf32, #tpu.memory_space<vmem>>, vector<1x256x8xf32>
    %371 = vector.shape_cast %370 : vector<1x256x8xf32> to vector<256x8xf32>
    %cst_166 = arith.constant dense<0.000000e+00> : vector<16x8xf32>
    %372 = tpu.matmul %369, %371, %cst_166 {dimension_numbers = #tpu.dot_dimension_numbers<[1], [0], [0], [1], [0, 0, 1, 1], [], []>} : vector<16x256xf32>, vector<256x8xf32>, vector<16x8xf32> -> vector<16x8xf32>
    %373 = arith.addf %368, %372 : vector<16x8xf32>
    %c0_167 = arith.constant 0 : index
    %c0_168 = arith.constant 0 : index
    %374 = vector.load %arg19[%c0_167, %c0_168] : memref<1x8xf32, #tpu.memory_space<vmem>>, vector<1x8xf32>
    %375 = vector.broadcast %374 : vector<1x8xf32> to vector<16x8xf32>
    %376 = arith.addf %373, %375 : vector<16x8xf32>
    %c0_169 = arith.constant 0 : index
    %c0_170 = arith.constant 0 : index
    %377 = vector.load %arg20[%c0_169, %c0_170] : memref<16x8xf32, #tpu.memory_space<vmem>>, vector<16x8xf32>
    tpu.vector_store %arg20[%c0_169, %c0_170], %376 {strides = array<i32>} : memref<16x8xf32, #tpu.memory_space<vmem>>, vector<16x8xf32>,
    return
  }
  func.func @transform_0(%arg0: i32) -> (i32, i32) {
    %c0_i32 = arith.constant 0 : i32
    %c0_i32_0 = arith.constant 0 : i32
    %c0_i32_1 = arith.constant 0 : i32
    return %c0_i32, %c0_i32_0 : i32, i32
  }
  func.func @transform_1(%arg0: i32) -> (i32, i32) {
    %c0_i32 = arith.constant 0 : i32
    %c0_i32_0 = arith.constant 0 : i32
    %c0_i32_1 = arith.constant 0 : i32
    return %c0_i32, %c0_i32_0 : i32, i32
  }
  func.func @transform_2(%arg0: i32) -> (i32, i32) {
    %c0_i32 = arith.constant 0 : i32
    %c0_i32_0 = arith.constant 0 : i32
    %c0_i32_1 = arith.constant 0 : i32
    return %c0_i32, %c0_i32_0 : i32, i32
  }
  func.func @transform_3(%arg0: i32) -> (i32, i32) {
    %c0_i32 = arith.constant 0 : i32
    %c0_i32_0 = arith.constant 0 : i32
    %c0_i32_1 = arith.constant 0 : i32
    return %c0_i32, %c0_i32_0 : i32, i32
  }
  func.func @transform_4(%arg0: i32) -> (i32, i32) {
    %c0_i32 = arith.constant 0 : i32
    %c0_i32_0 = arith.constant 0 : i32
    %c0_i32_1 = arith.constant 0 : i32
    return %c0_i32, %c0_i32_0 : i32, i32
  }
  func.func @transform_5(%arg0: i32) -> (i32, i32, i32) {
    %c0_i32 = arith.constant 0 : i32
    %c0_i32_0 = arith.constant 0 : i32
    %c0_i32_1 = arith.constant 0 : i32
    %c0_i32_2 = arith.constant 0 : i32
    return %c0_i32, %c0_i32_0, %c0_i32_1 : i32, i32, i32
  }
  func.func @transform_6(%arg0: i32) -> (i32, i32) {
    %c0_i32 = arith.constant 0 : i32
    %c0_i32_0 = arith.constant 0 : i32
    %c0_i32_1 = arith.constant 0 : i32
    return %c0_i32, %c0_i32_0 : i32, i32
  }
  func.func @transform_7(%arg0: i32) -> (i32, i32) {
    %c0_i32 = arith.constant 0 : i32
    %c0_i32_0 = arith.constant 0 : i32
    %c0_i32_1 = arith.constant 0 : i32
    return %c0_i32, %c0_i32_0 : i32, i32
  }
  func.func @transform_8(%arg0: i32) -> (i32, i32) {
    %c0_i32 = arith.constant 0 : i32
    %c0_i32_0 = arith.constant 0 : i32
    %c0_i32_1 = arith.constant 0 : i32
    return %c0_i32, %c0_i32_0 : i32, i32
  }
  func.func @transform_9(%arg0: i32) -> (i32, i32, i32) {
    %c0_i32 = arith.constant 0 : i32
    %c0_i32_0 = arith.constant 0 : i32
    %c0_i32_1 = arith.constant 0 : i32
    %c0_i32_2 = arith.constant 0 : i32
    return %c0_i32, %c0_i32_0, %c0_i32_1 : i32, i32, i32
  }
  func.func @transform_10(%arg0: i32) -> (i32, i32) {
    %c0_i32 = arith.constant 0 : i32
    %c0_i32_0 = arith.constant 0 : i32
    %c0_i32_1 = arith.constant 0 : i32
    return %c0_i32, %c0_i32_0 : i32, i32
  }
  func.func @transform_11(%arg0: i32) -> (i32, i32) {
    %c0_i32 = arith.constant 0 : i32
    %c0_i32_0 = arith.constant 0 : i32
    %c0_i32_1 = arith.constant 0 : i32
    return %c0_i32, %c0_i32_0 : i32, i32
  }
  func.func @transform_12(%arg0: i32) -> (i32, i32) {
    %c0_i32 = arith.constant 0 : i32
    %c0_i32_0 = arith.constant 0 : i32
    %c0_i32_1 = arith.constant 0 : i32
    return %c0_i32, %c0_i32_0 : i32, i32
  }
  func.func @transform_13(%arg0: i32) -> (i32, i32, i32) {
    %c0_i32 = arith.constant 0 : i32
    %c0_i32_0 = arith.constant 0 : i32
    %c0_i32_1 = arith.constant 0 : i32
    %c0_i32_2 = arith.constant 0 : i32
    return %c0_i32, %c0_i32_0, %c0_i32_1 : i32, i32, i32
  }
  func.func @transform_14(%arg0: i32) -> (i32, i32) {
    %c0_i32 = arith.constant 0 : i32
    %c0_i32_0 = arith.constant 0 : i32
    %c0_i32_1 = arith.constant 0 : i32
    return %c0_i32, %c0_i32_0 : i32, i32
  }
  func.func @transform_15(%arg0: i32) -> (i32, i32) {
    %c0_i32 = arith.constant 0 : i32
    %c0_i32_0 = arith.constant 0 : i32
    %c0_i32_1 = arith.constant 0 : i32
    return %c0_i32, %c0_i32_0 : i32, i32
  }
  func.func @transform_16(%arg0: i32) -> (i32, i32) {
    %c0_i32 = arith.constant 0 : i32
    %c0_i32_0 = arith.constant 0 : i32
    %c0_i32_1 = arith.constant 0 : i32
    return %c0_i32, %c0_i32_0 : i32, i32
  }
  func.func @transform_17(%arg0: i32) -> (i32, i32, i32) {
    %c0_i32 = arith.constant 0 : i32
    %c0_i32_0 = arith.constant 0 : i32
    %c0_i32_1 = arith.constant 0 : i32
    %c0_i32_2 = arith.constant 0 : i32
    return %c0_i32, %c0_i32_0, %c0_i32_1 : i32, i32, i32
  }
  func.func @transform_18(%arg0: i32) -> (i32, i32) {
    %c0_i32 = arith.constant 0 : i32
    %c0_i32_0 = arith.constant 0 : i32
    %c0_i32_1 = arith.constant 0 : i32
    return %c0_i32, %c0_i32_0 : i32, i32
  }
  func.func @transform_19(%arg0: i32) -> (i32, i32) {
    %c0_i32 = arith.constant 0 : i32
    %c0_i32_0 = arith.constant 0 : i32
    %c0_i32_1 = arith.constant 0 : i32
    return %c0_i32, %c0_i32_0 : i32, i32
  }
}

</mosaic_0001>

<llo_original>
// kernel: tpu_custom_call.1
$region0: #{tpu_custom_call.1}
  #allocation0 [shape = 'u32[]', space=smem, size = 0x4, offset = 0x4, fixed_abs, tag = 'smem constant byte address 0x4 - core index']
  #allocation1 [shape = 'u32[144,128]{1,0:T(1,128)}', space=vmem, size = 0x12000, scoped, tag = 'internal scratch']
  %s0 = inlined_call_operand.vmem [shape: f32[4,100], index: 0, kind: input, shape index: {}]
  %s1 = inlined_call_operand.hbm [shape: f32[100,1024], index: 1, kind: input, shape index: {}]
  %s2 = inlined_call_operand.vmem [shape: f32[1,1024], index: 2, kind: input, shape index: {}]
  %s3 = inlined_call_operand.vmem [shape: f32[1,256], index: 3, kind: input, shape index: {}]
  %s4 = inlined_call_operand.vmem [shape: f32[1,256], index: 4, kind: input, shape index: {}]
  %s5 = inlined_call_operand.hbm [shape: f32[3,256,256], index: 5, kind: input, shape index: {}]
  %s6 = inlined_call_operand.vmem [shape: f32[1,256], index: 6, kind: input, shape index: {}]
  %s7 = inlined_call_operand.vmem [shape: f32[1,256], index: 7, kind: input, shape index: {}]
  %s8 = inlined_call_operand.vmem [shape: f32[1,256], index: 8, kind: input, shape index: {}]
  %s9 = inlined_call_operand.hbm [shape: f32[3,256,256], index: 9, kind: input, shape index: {}]
  %s10 = inlined_call_operand.vmem [shape: f32[1,256], index: 10, kind: input, shape index: {}]
  %s11 = inlined_call_operand.vmem [shape: f32[1,256], index: 11, kind: input, shape index: {}]
  %s12 = inlined_call_operand.vmem [shape: f32[1,256], index: 12, kind: input, shape index: {}]
  %s13 = inlined_call_operand.hbm [shape: f32[3,256,256], index: 13, kind: input, shape index: {}]
  %s14 = inlined_call_operand.vmem [shape: f32[1,256], index: 14, kind: input, shape index: {}]
  %s15 = inlined_call_operand.vmem [shape: f32[1,256], index: 15, kind: input, shape index: {}]
  %s16 = inlined_call_operand.vmem [shape: f32[1,256], index: 16, kind: input, shape index: {}]
  %s17 = inlined_call_operand.vmem [shape: f32[3,256,8], index: 17, kind: input, shape index: {}]
  %s18 = inlined_call_operand.vmem [shape: f32[1,8], index: 18, kind: input, shape index: {}]
  %s19 = inlined_call_operand.vmem [shape: f32[16,8], index: 19, kind: output, shape index: {}]
  %s20 = sld [smem:[#allocation0]]
  $region102: #{tpu_custom_call.1} parent=0
    _
  %s22 = ssub.s32 1, %s20
  %s23 = scalar_select 0, %s22, %s20
  $region1: #{tpu_custom_call.1} parent=0
    #allocation2 [shape = 'u8[425984]{0}', space=vmem, size = 0x68000, scoped, tag = 'input window, operand 1, single buffered']
    #allocation3 [shape = 's32[1]{0}', space=sflag, size = 0x4, scoped, tag = 'scoped memory for tpu_custom_call.1']
    #allocation4 [shape = 'u8[786432]{0}', space=vmem, size = 0xc0000, scoped, tag = 'input window, operand 5, single buffered']
    #allocation5 [shape = 's32[1]{0}', space=sflag, size = 0x4, scoped, tag = 'scoped memory for tpu_custom_call.1']
    #allocation6 [shape = 'u8[786432]{0}', space=vmem, size = 0xc0000, scoped, tag = 'input window, operand 9, single buffered']
    #allocation7 [shape = 'u8[786432]{0}', space=vmem, size = 0xc0000, scoped, tag = 'input window, operand 13, single buffered']
    #allocation8 [shape = 's32[1]{0}', space=sflag, size = 0x4, scoped, tag = 'scoped memory for tpu_custom_call.1']
    %24 = vsyncpa [#allocation3], 0
    %25 = vsyncpa [#allocation5], 0
    %26 = vsyncpa [#allocation8], 0
    // Predicated region
    $region2: #{tpu_custom_call.1} parent=1 // pred_check
      _
    $region3: #{tpu_custom_call.1} parent=1 // pred_check_branch
      %28 = sbr.rel (0) target = $region5
    $region4: #{tpu_custom_call.1} parent=1 // pred_region
      _
    $region5: #{tpu_custom_call.1} parent=1 // pred_fallthru
      _
    // Predicated region
    $region6: #{tpu_custom_call.1} parent=1 // pred_check
      _
    $region7: #{tpu_custom_call.1} parent=1 // pred_check_branch
      %30 = sbr.rel (0) target = $region9
    $region8: #{tpu_custom_call.1} parent=1 // pred_region
      %s32 = ssub.s32 13312, 13312
      %33 = vsyncadd [#allocation3], %s32
      %s34 = sshll.u32 [#allocation2], 4
      %s35 = int_to_ptr.vmem [resolvable:$true] %s34
      %40 = dma.hbm_to_vmem [thread:$0]  %s1, 13312, %s35, [#allocation3], 1024, 1024, 64
    $region9: #{tpu_custom_call.1} parent=1 // pred_fallthru
      _
    // Predicated region
    $region10: #{tpu_custom_call.1} parent=1 // pred_check
      _
    $region11: #{tpu_custom_call.1} parent=1 // pred_check_branch
      %42 = sbr.rel (0) target = $region13
    $region12: #{tpu_custom_call.1} parent=1 // pred_region
      _
    $region13: #{tpu_custom_call.1} parent=1 // pred_fallthru
      _
    // Predicated region
    $region14: #{tpu_custom_call.1} parent=1 // pred_check
      _
    $region15: #{tpu_custom_call.1} parent=1 // pred_check_branch
      %44 = sbr.rel (0) target = $region17
    $region16: #{tpu_custom_call.1} parent=1 // pred_region
      _
    $region17: #{tpu_custom_call.1} parent=1 // pred_fallthru
      _
    // Predicated region
    $region18: #{tpu_custom_call.1} parent=1 // pred_check
      _
    $region19: #{tpu_custom_call.1} parent=1 // pred_check_branch
      %46 = sbr.rel (0) target = $region21
    $region20: #{tpu_custom_call.1} parent=1 // pred_region
      _
    $region21: #{tpu_custom_call.1} parent=1 // pred_fallthru
      _
    // Predicated region
    $region22: #{tpu_custom_call.1} parent=1 // pred_check
      _
    $region23: #{tpu_custom_call.1} parent=1 // pred_check_branch
      %48 = sbr.rel (0) target = $region25
    $region24: #{tpu_custom_call.1} parent=1 // pred_region
      %s50 = ssub.s32 24576, 24576
      %51 = vsyncadd [#allocation5], %s50
      %s52 = sshll.u32 [#allocation4], 4
      %s53 = int_to_ptr.vmem [resolvable:$true] %s52
      %58 = dma.hbm_to_vmem [thread:$0]  %s5, 24576, %s53, [#allocation5], 256, 256, 16
    $region25: #{tpu_custom_call.1} parent=1 // pred_fallthru
      _
    // Predicated region
    $region26: #{tpu_custom_call.1} parent=1 // pred_check
      _
    $region27: #{tpu_custom_call.1} parent=1 // pred_check_branch
      %60 = sbr.rel (0) target = $region29
    $region28: #{tpu_custom_call.1} parent=1 // pred_region
      _
    $region29: #{tpu_custom_call.1} parent=1 // pred_fallthru
      _
    // Predicated region
    $region30: #{tpu_custom_call.1} parent=1 // pred_check
      _
    $region31: #{tpu_custom_call.1} parent=1 // pred_check_branch
      %62 = sbr.rel (0) target = $region33
    $region32: #{tpu_custom_call.1} parent=1 // pred_region
      _
    $region33: #{tpu_custom_call.1} parent=1 // pred_fallthru
      _
    // Predicated region
    $region34: #{tpu_custom_call.1} parent=1 // pred_check
      _
    $region35: #{tpu_custom_call.1} parent=1 // pred_check_branch
      %64 = sbr.rel (0) target = $region37
    $region36: #{tpu_custom_call.1} parent=1 // pred_region
      _
    $region37: #{tpu_custom_call.1} parent=1 // pred_fallthru
      _
    // Predicated region
    $region38: #{tpu_custom_call.1} parent=1 // pred_check
      _
    $region39: #{tpu_custom_call.1} parent=1 // pred_check_branch
      %66 = sbr.rel (0) target = $region41
    $region40: #{tpu_custom_call.1} parent=1 // pred_region
      %s68 = ssub.s32 24576, 24576
      %69 = vsyncadd [#allocation5], %s68
      %s70 = sshll.u32 [#allocation6], 4
      %s71 = int_to_ptr.vmem [resolvable:$true] %s70
      %76 = dma.hbm_to_vmem [thread:$0]  %s9, 24576, %s71, [#allocation5], 256, 256, 16
    $region41: #{tpu_custom_call.1} parent=1 // pred_fallthru
      _
    // Predicated region
    $region42: #{tpu_custom_call.1} parent=1 // pred_check
      _
    $region43: #{tpu_custom_call.1} parent=1 // pred_check_branch
      %78 = sbr.rel (0) target = $region45
    $region44: #{tpu_custom_call.1} parent=1 // pred_region
      _
    $region45: #{tpu_custom_call.1} parent=1 // pred_fallthru
      _
    // Predicated region
    $region46: #{tpu_custom_call.1} parent=1 // pred_check
      _
    $region47: #{tpu_custom_call.1} parent=1 // pred_check_branch
      %80 = sbr.rel (0) target = $region49
    $region48: #{tpu_custom_call.1} parent=1 // pred_region
      _
    $region49: #{tpu_custom_call.1} parent=1 // pred_fallthru
      _
    // Predicated region
    $region50: #{tpu_custom_call.1} parent=1 // pred_check
      _
    $region51: #{tpu_custom_call.1} parent=1 // pred_check_branch
      %82 = sbr.rel (0) target = $region53
    $region52: #{tpu_custom_call.1} parent=1 // pred_region
      _
    $region53: #{tpu_custom_call.1} parent=1 // pred_fallthru
      _
    // Predicated region
    $region54: #{tpu_custom_call.1} parent=1 // pred_check
      _
    $region55: #{tpu_custom_call.1} parent=1 // pred_check_branch
      %84 = sbr.rel (0) target = $region57
    $region56: #{tpu_custom_call.1} parent=1 // pred_region
      %s86 = ssub.s32 24576, 24576
      %87 = vsyncadd [#allocation8], %s86
      %s88 = sshll.u32 [#allocation7], 4
      %s89 = int_to_ptr.vmem [resolvable:$true] %s88
      %94 = dma.hbm_to_vmem [thread:$0]  %s13, 24576, %s89, [#allocation8], 256, 256, 16
    $region57: #{tpu_custom_call.1} parent=1 // pred_fallthru
      _
    // Predicated region
    $region58: #{tpu_custom_call.1} parent=1 // pred_check
      _
    $region59: #{tpu_custom_call.1} parent=1 // pred_check_branch
      %96 = sbr.rel (0) target = $region61
    $region60: #{tpu_custom_call.1} parent=1 // pred_region
      _
    $region61: #{tpu_custom_call.1} parent=1 // pred_fallthru
      _
    // Predicated region
    $region62: #{tpu_custom_call.1} parent=1 // pred_check
      _
    $region63: #{tpu_custom_call.1} parent=1 // pred_check_branch
      %98 = sbr.rel (0) target = $region65
    $region64: #{tpu_custom_call.1} parent=1 // pred_region
      _
    $region65: #{tpu_custom_call.1} parent=1 // pred_fallthru
      _
    // Predicated region
    $region66: #{tpu_custom_call.1} parent=1 // pred_check
      _
    $region67: #{tpu_custom_call.1} parent=1 // pred_check_branch
      %100 = sbr.rel (0) target = $region69
    $region68: #{tpu_custom_call.1} parent=1 // pred_region
      _
    $region69: #{tpu_custom_call.1} parent=1 // pred_fallthru
      _
    // Predicated region
    $region70: #{tpu_custom_call.1} parent=1 // pred_check
      _
    $region71: #{tpu_custom_call.1} parent=1 // pred_check_branch
      %102 = sbr.rel (0) target = $region73
    $region72: #{tpu_custom_call.1} parent=1 // pred_region
      _
    $region73: #{tpu_custom_call.1} parent=1 // pred_fallthru
      _
    // Predicated region
    $region74: #{tpu_custom_call.1} parent=1 // pred_check
      _
    $region75: #{tpu_custom_call.1} parent=1 // pred_check_branch
      %104 = sbr.rel (0) target = $region77
    $region76: #{tpu_custom_call.1} parent=1 // pred_region
      _
    $region77: #{tpu_custom_call.1} parent=1 // pred_fallthru
      _
    // Predicated region
    $region78: #{tpu_custom_call.1} parent=1 // pred_check
      _
    $region79: #{tpu_custom_call.1} parent=1 // pred_check_branch
      %106 = sbr.rel (0) target = $region81
    $region80: #{tpu_custom_call.1} parent=1 // pred_region
      %107 = dma.done [#allocation3], 13312
    $region81: #{tpu_custom_call.1} parent=1 // pred_fallthru
      _
    // Predicated region
    $region82: #{tpu_custom_call.1} parent=1 // pred_check
      _
    $region83: #{tpu_custom_call.1} parent=1 // pred_check_branch
      %109 = sbr.rel (0) target = $region85
    $region84: #{tpu_custom_call.1} parent=1 // pred_region
      %110 = dma.done [#allocation5], 24576
    $region85: #{tpu_custom_call.1} parent=1 // pred_fallthru
      _
    // Predicated region
    $region86: #{tpu_custom_call.1} parent=1 // pred_check
      _
    $region87: #{tpu_custom_call.1} parent=1 // pred_check_branch
      %112 = sbr.rel (0) target = $region89
    $region88: #{tpu_custom_call.1} parent=1 // pred_region
      %113 = dma.done [#allocation5], 24576
    $region89: #{tpu_custom_call.1} parent=1 // pred_fallthru
      _
    // Predicated region
    $region90: #{tpu_custom_call.1} parent=1 // pred_check
      _
    $region91: #{tpu_custom_call.1} parent=1 // pred_check_branch
      %115 = sbr.rel (0) target = $region93
    $region92: #{tpu_custom_call.1} parent=1 // pred_region
      %116 = dma.done [#allocation8], 24576
    $region93: #{tpu_custom_call.1} parent=1 // pred_fallthru
      _
    %v117 = vlaneseq
    %v118 = vshrl.u32 %v117, 7
    %v119 = vadd.s32 %v118, 8
    %v120 = vlaneseq
    %v121 = vand.u32 %v120, 127
    %v122 = vadd.s32 %v118, 4
    %v123 = vadd.s32 %v119, 4
    %vm124 = vcmp.eq.s32.totalorder %v121, %v122
    %vm125 = vcmp.eq.s32.totalorder %v121, %v123
    %v126 = vsel %vm124, 1, 0
    %v127 = vsel %vm125, 1, 0
    %v128 = vcvt.s32.f32 %v126
    %v129 = vcvt.s32.f32 %v127
    %v130 = vadd.s32 %v121, 4
    %vm131 = vcmp.eq.s32.totalorder %v130, %v118
    %vm132 = vcmp.eq.s32.totalorder %v130, %v119
    %v133 = vsel %vm131, 1, 0
    %v134 = vsel %vm132, 1, 0
    %v135 = vcvt.s32.f32 %v133
    %v136 = vcvt.s32.f32 %v134
    %v137 = vld [vmem:[%s0] sm:$0xf]
    %v138 = vld [vmem:[#allocation2] sm:$0xff]
    %v139 = vld [vmem:[#allocation2 + $0x8] sm:$0xff]
    %v140 = vld [vmem:[#allocation2 + $0x10] sm:$0xff]
    %v141 = vld [vmem:[#allocation2 + $0x18] sm:$0xff]
    %v142 = vld [vmem:[#allocation2 + $0x20] sm:$0xff]
    %v143 = vld [vmem:[#allocation2 + $0x28] sm:$0xff]
    %v144 = vld [vmem:[#allocation2 + $0x30] sm:$0xff]
    %v145 = vld [vmem:[#allocation2 + $0x38] sm:$0xff]
    %v146 = vld [vmem:[#allocation2 + $0x40] sm:$0xff]
    %v147 = vld [vmem:[#allocation2 + $0x48] sm:$0xff]
    %v148 = vld [vmem:[#allocation2 + $0x50] sm:$0xff]
    %v149 = vld [vmem:[#allocation2 + $0x58] sm:$0xff]
    %v150 = vld [vmem:[#allocation2 + $0x60] sm:$0xff]
    %v151 = vld [vmem:[#allocation2 + $0x68] sm:$0xff]
    %v152 = vld [vmem:[#allocation2 + $0x70] sm:$0xff]
    %v153 = vld [vmem:[#allocation2 + $0x78] sm:$0xff]
    %v154 = vld [vmem:[#allocation2 + $0x80] sm:$0xff]
    %v155 = vld [vmem:[#allocation2 + $0x88] sm:$0xff]
    %v156 = vld [vmem:[#allocation2 + $0x90] sm:$0xff]
    %v157 = vld [vmem:[#allocation2 + $0x98] sm:$0xff]
    %v158 = vld [vmem:[#allocation2 + $0xa0] sm:$0xff]
    %v159 = vld [vmem:[#allocation2 + $0xa8] sm:$0xff]
    %v160 = vld [vmem:[#allocation2 + $0xb0] sm:$0xff]
    %v161 = vld [vmem:[#allocation2 + $0xb8] sm:$0xff]
    %v162 = vld [vmem:[#allocation2 + $0xc0] sm:$0xff]
    %v163 = vld [vmem:[#allocation2 + $0xc8] sm:$0xff]
    %v164 = vld [vmem:[#allocation2 + $0xd0] sm:$0xff]
    %v165 = vld [vmem:[#allocation2 + $0xd8] sm:$0xff]
    %v166 = vld [vmem:[#allocation2 + $0xe0] sm:$0xff]
    %v167 = vld [vmem:[#allocation2 + $0xe8] sm:$0xff]
    %v168 = vld [vmem:[#allocation2 + $0xf0] sm:$0xff]
    %v169 = vld [vmem:[#allocation2 + $0xf8] sm:$0xff]
    %v170 = vld [vmem:[#allocation2 + $0x100] sm:$0xff]
    %v171 = vld [vmem:[#allocation2 + $0x108] sm:$0xff]
    %v172 = vld [vmem:[#allocation2 + $0x110] sm:$0xff]
    %v173 = vld [vmem:[#allocation2 + $0x118] sm:$0xff]
    %v174 = vld [vmem:[#allocation2 + $0x120] sm:$0xff]
    %v175 = vld [vmem:[#allocation2 + $0x128] sm:$0xff]
    %v176 = vld [vmem:[#allocation2 + $0x130] sm:$0xff]
    %v177 = vld [vmem:[#allocation2 + $0x138] sm:$0xff]
    %v178 = vld [vmem:[#allocation2 + $0x140] sm:$0xff]
    %v179 = vld [vmem:[#allocation2 + $0x148] sm:$0xff]
    %v180 = vld [vmem:[#allocation2 + $0x150] sm:$0xff]
    %v181 = vld [vmem:[#allocation2 + $0x158] sm:$0xff]
    %v182 = vld [vmem:[#allocation2 + $0x160] sm:$0xff]
    %v183 = vld [vmem:[#allocation2 + $0x168] sm:$0xff]
    %v184 = vld [vmem:[#allocation2 + $0x170] sm:$0xff]
    %v185 = vld [vmem:[#allocation2 + $0x178] sm:$0xff]
    %v186 = vld [vmem:[#allocation2 + $0x180] sm:$0xff]
    %v187 = vld [vmem:[#allocation2 + $0x188] sm:$0xff]
    %v188 = vld [vmem:[#allocation2 + $0x190] sm:$0xff]
    %v189 = vld [vmem:[#allocation2 + $0x198] sm:$0xff]
    %v190 = vld [vmem:[#allocation2 + $0x1a0] sm:$0xff]
    %v191 = vld [vmem:[#allocation2 + $0x1a8] sm:$0xff]
    %v192 = vld [vmem:[#allocation2 + $0x1b0] sm:$0xff]
    %v193 = vld [vmem:[#allocation2 + $0x1b8] sm:$0xff]
    %v194 = vld [vmem:[#allocation2 + $0x1c0] sm:$0xff]
    %v195 = vld [vmem:[#allocation2 + $0x1c8] sm:$0xff]
    %v196 = vld [vmem:[#allocation2 + $0x1d0] sm:$0xff]
    %v197 = vld [vmem:[#allocation2 + $0x1d8] sm:$0xff]
    %v198 = vld [vmem:[#allocation2 + $0x1e0] sm:$0xff]
    %v199 = vld [vmem:[#allocation2 + $0x1e8] sm:$0xff]
    %v200 = vld [vmem:[#allocation2 + $0x1f0] sm:$0xff]
    %v201 = vld [vmem:[#allocation2 + $0x1f8] sm:$0xff]
    %v202 = vld [vmem:[#allocation2 + $0x200] sm:$0xff]
    %v203 = vld [vmem:[#allocation2 + $0x208] sm:$0xff]
    %v204 = vld [vmem:[#allocation2 + $0x210] sm:$0xff]
    %v205 = vld [vmem:[#allocation2 + $0x218] sm:$0xff]
    %v206 = vld [vmem:[#allocation2 + $0x220] sm:$0xff]
    %v207 = vld [vmem:[#allocation2 + $0x228] sm:$0xff]
    %v208 = vld [vmem:[#allocation2 + $0x230] sm:$0xff]
    %v209 = vld [vmem:[#allocation2 + $0x238] sm:$0xff]
    %v210 = vld [vmem:[#allocation2 + $0x240] sm:$0xff]
    %v211 = vld [vmem:[#allocation2 + $0x248] sm:$0xff]
    %v212 = vld [vmem:[#allocation2 + $0x250] sm:$0xff]
    %v213 = vld [vmem:[#allocation2 + $0x258] sm:$0xff]
    %v214 = vld [vmem:[#allocation2 + $0x260] sm:$0xff]
    %v215 = vld [vmem:[#allocation2 + $0x268] sm:$0xff]
    %v216 = vld [vmem:[#allocation2 + $0x270] sm:$0xff]
    %v217 = vld [vmem:[#allocation2 + $0x278] sm:$0xff]
    %v218 = vld [vmem:[#allocation2 + $0x280] sm:$0xff]
    %v219 = vld [vmem:[#allocation2 + $0x288] sm:$0xff]
    %v220 = vld [vmem:[#allocation2 + $0x290] sm:$0xff]
    %v221 = vld [vmem:[#allocation2 + $0x298] sm:$0xff]
    %v222 = vld [vmem:[#allocation2 + $0x2a0] sm:$0xff]
    %v223 = vld [vmem:[#allocation2 + $0x2a8] sm:$0xff]
    %v224 = vld [vmem:[#allocation2 + $0x2b0] sm:$0xff]
    %v225 = vld [vmem:[#allocation2 + $0x2b8] sm:$0xff]
    %v226 = vld [vmem:[#allocation2 + $0x2c0] sm:$0xff]
    %v227 = vld [vmem:[#allocation2 + $0x2c8] sm:$0xff]
    %v228 = vld [vmem:[#allocation2 + $0x2d0] sm:$0xff]
    %v229 = vld [vmem:[#allocation2 + $0x2d8] sm:$0xff]
    %v230 = vld [vmem:[#allocation2 + $0x2e0] sm:$0xff]
    %v231 = vld [vmem:[#allocation2 + $0x2e8] sm:$0xff]
    %v232 = vld [vmem:[#allocation2 + $0x2f0] sm:$0xff]
    %v233 = vld [vmem:[#allocation2 + $0x2f8] sm:$0xff]
    %v234 = vld [vmem:[#allocation2 + $0x300] sm:$0xf]
    %v235 = vld [vmem:[#allocation2 + $0x308] sm:$0xf]
    %v236 = vld [vmem:[#allocation2 + $0x310] sm:$0xf]
    %v237 = vld [vmem:[#allocation2 + $0x318] sm:$0xf]
    %v238 = vld [vmem:[#allocation2 + $0x320] sm:$0xf]
    %v239 = vld [vmem:[#allocation2 + $0x328] sm:$0xf]
    %v240 = vld [vmem:[#allocation2 + $0x330] sm:$0xf]
    %v241 = vld [vmem:[#allocation2 + $0x338] sm:$0xf]
    %v242 = vld [vmem:[%s2] sm:$0xff]
    %v244 = vlaneseq
    %v245 = vshrl.u32 %v244, 7
    %v246 = vsub.s32 0, %v245
    %v247 = vrot.slane %v242, %v246
    %v248 = vlaneseq
    %v249 = vshrl.u32 %v248, 7
    %v250 = vsub.s32 1, %v249
    %v251 = vrot.slane %v242, %v250
    %v252 = vlaneseq
    %v253 = vshrl.u32 %v252, 7
    %v254 = vsub.s32 2, %v253
    %v255 = vrot.slane %v242, %v254
    %v256 = vlaneseq
    %v257 = vshrl.u32 %v256, 7
    %v258 = vsub.s32 3, %v257
    %v259 = vrot.slane %v242, %v258
    %v260 = vlaneseq
    %v261 = vshrl.u32 %v260, 7
    %v262 = vsub.s32 4, %v261
    %v263 = vrot.slane %v242, %v262
    %v264 = vlaneseq
    %v265 = vshrl.u32 %v264, 7
    %v266 = vsub.s32 5, %v265
    %v267 = vrot.slane %v242, %v266
    %v268 = vlaneseq
    %v269 = vshrl.u32 %v268, 7
    %v270 = vsub.s32 6, %v269
    %v271 = vrot.slane %v242, %v270
    %v272 = vlaneseq
    %v273 = vshrl.u32 %v272, 7
    %v274 = vsub.s32 7, %v273
    %v275 = vrot.slane %v242, %v274
    %vm284 = vcmask 818176
    %v286 = vsel %vm284, %v137, 0
    %vm288 = vcmask 1043456
    %v290 = vsel %vm288, %v234, 0
    %v293 = vsel %vm288, %v235, 0
    %v296 = vsel %vm288, %v236, 0
    %v299 = vsel %vm288, %v237, 0
    %v302 = vsel %vm288, %v238, 0
    %v305 = vsel %vm288, %v239, 0
    %v308 = vsel %vm288, %v240, 0
    %v311 = vsel %vm288, %v241, 0
    %313 = vmatprep.subr.mxu0 %v139
    %314 = vmatpush1.msra.mxu0 %v138
    %315 = vmatprep.subr.mxu0 %v147
    %316 = vmatpush1.msra.mxu0 %v146
    %317 = vmatprep.subr.mxu0 %v155
    %318 = vmatpush1.msra.mxu0 %v154
    %319 = vmatprep.subr.mxu0 %v163
    %320 = vmatpush1.msra.mxu0 %v162
    %321 = vmatprep.subr.mxu0 %v171
    %322 = vmatpush1.msra.mxu0 %v170
    %323 = vmatprep.subr.mxu0 %v179
    %324 = vmatpush1.msra.mxu0 %v178
    %325 = vmatprep.subr.mxu0 %v187
    %326 = vmatpush1.msra.mxu0 %v186
    %327 = vmatprep.subr.mxu0 %v195
    %328 = vmatpush1.msra.mxu0 %v194
    %329 = vmatprep.subr.mxu0 %v203
    %330 = vmatpush1.msra.mxu0 %v202
    %331 = vmatprep.subr.mxu0 %v211
    %332 = vmatpush1.msra.mxu0 %v210
    %333 = vmatprep.subr.mxu0 %v219
    %334 = vmatpush1.msra.mxu0 %v218
    %335 = vmatprep.subr.mxu0 %v227
    %336 = vmatpush1.msra.mxu0 %v226
    %337 = vmatprep.subr.mxu0 %v293
    %338 = vmatpush1.msra.mxu0 %v290
    %339 = vmatprep.subr.mxu0 0.0
    %340 = vmatpush1.msra.mxu0 0.0
    %341 = vmatprep.subr.mxu0 0.0
    %342 = vmatpush1.msra.mxu0 0.0
    %343 = vmatprep.subr.mxu0 0.0
    %344 = vmatpush1.msra.mxu0 0.0
    %345 = vmatprep.subr.mxu0 0.0
    %346 = vmatpush1.msra.mxu0 0.0
    %347 = vmatprep.subr.mxu0 0.0
    %348 = vmatpush1.msra.mxu0 0.0
    %349 = vmatprep.subr.mxu0 0.0
    %350 = vmatpush1.msra.mxu0 0.0
    %351 = vmatprep.subr.mxu0 0.0
    %352 = vmatpush1.msra.mxu0 0.0
    %353 = vmatprep.subr.mxu0 0.0
    %354 = vmatpush1.msra.mxu0 0.0
    %355 = vmatprep.subr.mxu0 0.0
    %356 = vmatpush1.msra.mxu0 0.0
    %357 = vmatprep.subr.mxu0 0.0
    %358 = vmatpush1.msra.mxu0 0.0
    %359 = vmatprep.subr.mxu0 0.0
    %360 = vmatpush1.msra.mxu0 0.0
    %361 = vmatprep.subr.mxu0 0.0
    %362 = vmatpush1.msra.mxu0 0.0
    %363 = vmatprep.subr.mxu0 0.0
    %364 = vmatpush1.msra.mxu0 0.0
    %365 = vmatprep.subr.mxu0 0.0
    %366 = vmatpush1.msra.mxu0 0.0
    %367 = vmatprep.subr.mxu0 0.0
    %368 = vmatpush1.msra.mxu0 0.0
    %369 = vmatprep.subr.mxu0 0.0
    %370 = vmatpush1.msra.mxu0 0.0
    %371 = vmatprep.subr.mxu0 0.0
    %372 = vmatpush1.msra.mxu0 0.0
    %373 = vmatprep.subr.mxu0 0.0
    %374 = vmatpush1.msra.mxu0 0.0
    %375 = vmatprep.subr.mxu0 0.0
    %376 = vmatpush1.msra.mxu0 0.0
    %377 = vmatprep.mubr.f32.mxu0 0.0
    %378 = vmatmul.mubr.f32.gmra.mrb[0].mxu0 %v286
    %v379 = vpop.f32.mrb[0].mxu0
    %v380 = vadd.f32 %v247, %v379
    %v381 = vpop.f32.mrb[0].mxu0
    %v382 = vadd.f32 %v251, %v381
    %383 = vdwg.mxu0
    %384 = vmatprep.subr.mxu0 %v141
    %385 = vmatpush1.msra.mxu0 %v140
    %386 = vmatprep.subr.mxu0 %v149
    %387 = vmatpush1.msra.mxu0 %v148
    %388 = vmatprep.subr.mxu0 %v157
    %389 = vmatpush1.msra.mxu0 %v156
    %390 = vmatprep.subr.mxu0 %v165
    %391 = vmatpush1.msra.mxu0 %v164
    %392 = vmatprep.subr.mxu0 %v173
    %393 = vmatpush1.msra.mxu0 %v172
    %394 = vmatprep.subr.mxu0 %v181
    %395 = vmatpush1.msra.mxu0 %v180
    %396 = vmatprep.subr.mxu0 %v189
    %397 = vmatpush1.msra.mxu0 %v188
    %398 = vmatprep.subr.mxu0 %v197
    %399 = vmatpush1.msra.mxu0 %v196
    %400 = vmatprep.subr.mxu0 %v205
    %401 = vmatpush1.msra.mxu0 %v204
    %402 = vmatprep.subr.mxu0 %v213
    %403 = vmatpush1.msra.mxu0 %v212
    %404 = vmatprep.subr.mxu0 %v221
    %405 = vmatpush1.msra.mxu0 %v220
    %406 = vmatprep.subr.mxu0 %v229
    %407 = vmatpush1.msra.mxu0 %v228
    %408 = vmatprep.subr.mxu0 %v299
    %409 = vmatpush1.msra.mxu0 %v296
    %410 = vmatprep.subr.mxu0 0.0
    %411 = vmatpush1.msra.mxu0 0.0
    %412 = vmatprep.subr.mxu0 0.0
    %413 = vmatpush1.msra.mxu0 0.0
    %414 = vmatprep.subr.mxu0 0.0
    %415 = vmatpush1.msra.mxu0 0.0
    %416 = vmatprep.subr.mxu0 0.0
    %417 = vmatpush1.msra.mxu0 0.0
    %418 = vmatprep.subr.mxu0 0.0
    %419 = vmatpush1.msra.mxu0 0.0
    %420 = vmatprep.subr.mxu0 0.0
    %421 = vmatpush1.msra.mxu0 0.0
    %422 = vmatprep.subr.mxu0 0.0
    %423 = vmatpush1.msra.mxu0 0.0
    %424 = vmatprep.subr.mxu0 0.0
    %425 = vmatpush1.msra.mxu0 0.0
    %426 = vmatprep.subr.mxu0 0.0
    %427 = vmatpush1.msra.mxu0 0.0
    %428 = vmatprep.subr.mxu0 0.0
    %429 = vmatpush1.msra.mxu0 0.0
    %430 = vmatprep.subr.mxu0 0.0
    %431 = vmatpush1.msra.mxu0 0.0
    %432 = vmatprep.subr.mxu0 0.0
    %433 = vmatpush1.msra.mxu0 0.0
    %434 = vmatprep.subr.mxu0 0.0
    %435 = vmatpush1.msra.mxu0 0.0
    %436 = vmatprep.subr.mxu0 0.0
    %437 = vmatpush1.msra.mxu0 0.0
    %438 = vmatprep.subr.mxu0 0.0
    %439 = vmatpush1.msra.mxu0 0.0
    %440 = vmatprep.subr.mxu0 0.0
    %441 = vmatpush1.msra.mxu0 0.0
    %442 = vmatprep.subr.mxu0 0.0
    %443 = vmatpush1.msra.mxu0 0.0
    %444 = vmatprep.subr.mxu0 0.0
    %445 = vmatpush1.msra.mxu0 0.0
    %446 = vmatprep.subr.mxu0 0.0
    %447 = vmatpush1.msra.mxu0 0.0
    %448 = vmatprep.mubr.f32.mxu0 0.0
    %449 = vmatmul.mubr.f32.gmra.mrb[0].mxu0 %v286
    %v450 = vpop.f32.mrb[0].mxu0
    %v451 = vadd.f32 %v255, %v450
    %v452 = vpop.f32.mrb[0].mxu0
    %v453 = vadd.f32 %v259, %v452
    %454 = vdwg.mxu0
    %455 = vmatprep.subr.mxu0 %v143
    %456 = vmatpush1.msra.mxu0 %v142
    %457 = vmatprep.subr.mxu0 %v151
    %458 = vmatpush1.msra.mxu0 %v150
    %459 = vmatprep.subr.mxu0 %v159
    %460 = vmatpush1.msra.mxu0 %v158
    %461 = vmatprep.subr.mxu0 %v167
    %462 = vmatpush1.msra.mxu0 %v166
    %463 = vmatprep.subr.mxu0 %v175
    %464 = vmatpush1.msra.mxu0 %v174
    %465 = vmatprep.subr.mxu0 %v183
    %466 = vmatpush1.msra.mxu0 %v182
    %467 = vmatprep.subr.mxu0 %v191
    %468 = vmatpush1.msra.mxu0 %v190
    %469 = vmatprep.subr.mxu0 %v199
    %470 = vmatpush1.msra.mxu0 %v198
    %471 = vmatprep.subr.mxu0 %v207
    %472 = vmatpush1.msra.mxu0 %v206
    %473 = vmatprep.subr.mxu0 %v215
    %474 = vmatpush1.msra.mxu0 %v214
    %475 = vmatprep.subr.mxu0 %v223
    %476 = vmatpush1.msra.mxu0 %v222
    %477 = vmatprep.subr.mxu0 %v231
    %478 = vmatpush1.msra.mxu0 %v230
    %479 = vmatprep.subr.mxu0 %v305
    %480 = vmatpush1.msra.mxu0 %v302
    %481 = vmatprep.subr.mxu0 0.0
    %482 = vmatpush1.msra.mxu0 0.0
    %483 = vmatprep.subr.mxu0 0.0
    %484 = vmatpush1.msra.mxu0 0.0
    %485 = vmatprep.subr.mxu0 0.0
    %486 = vmatpush1.msra.mxu0 0.0
    %487 = vmatprep.subr.mxu0 0.0
    %488 = vmatpush1.msra.mxu0 0.0
    %489 = vmatprep.subr.mxu0 0.0
    %490 = vmatpush1.msra.mxu0 0.0
    %491 = vmatprep.subr.mxu0 0.0
    %492 = vmatpush1.msra.mxu0 0.0
    %493 = vmatprep.subr.mxu0 0.0
    %494 = vmatpush1.msra.mxu0 0.0
    %495 = vmatprep.subr.mxu0 0.0
    %496 = vmatpush1.msra.mxu0 0.0
    %497 = vmatprep.subr.mxu0 0.0
    %498 = vmatpush1.msra.mxu0 0.0
    %499 = vmatprep.subr.mxu0 0.0
    %500 = vmatpush1.msra.mxu0 0.0
    %501 = vmatprep.subr.mxu0 0.0
    %502 = vmatpush1.msra.mxu0 0.0
    %503 = vmatprep.subr.mxu0 0.0
    %504 = vmatpush1.msra.mxu0 0.0
    %505 = vmatprep.subr.mxu0 0.0
    %506 = vmatpush1.msra.mxu0 0.0
    %507 = vmatprep.subr.mxu0 0.0
    %508 = vmatpush1.msra.mxu0 0.0
    %509 = vmatprep.subr.mxu0 0.0
    %510 = vmatpush1.msra.mxu0 0.0
    %511 = vmatprep.subr.mxu0 0.0
    %512 = vmatpush1.msra.mxu0 0.0
    %513 = vmatprep.subr.mxu0 0.0
    %514 = vmatpush1.msra.mxu0 0.0
    %515 = vmatprep.subr.mxu0 0.0
    %516 = vmatpush1.msra.mxu0 0.0
    %517 = vmatprep.subr.mxu0 0.0
    %518 = vmatpush1.msra.mxu0 0.0
    %519 = vmatprep.mubr.f32.mxu0 0.0
    %520 = vmatmul.mubr.f32.gmra.mrb[0].mxu0 %v286
    %v521 = vpop.f32.mrb[0].mxu0
    %v522 = vadd.f32 %v263, %v521
    %v523 = vpop.f32.mrb[0].mxu0
    %v524 = vadd.f32 %v267, %v523
    %525 = vdwg.mxu0
    %526 = vmatprep.subr.mxu0 %v145
    %527 = vmatpush1.msra.mxu0 %v144
    %528 = vmatprep.subr.mxu0 %v153
    %529 = vmatpush1.msra.mxu0 %v152
    %530 = vmatprep.subr.mxu0 %v161
    %531 = vmatpush1.msra.mxu0 %v160
    %532 = vmatprep.subr.mxu0 %v169
    %533 = vmatpush1.msra.mxu0 %v168
    %534 = vmatprep.subr.mxu0 %v177
    %535 = vmatpush1.msra.mxu0 %v176
    %536 = vmatprep.subr.mxu0 %v185
    %537 = vmatpush1.msra.mxu0 %v184
    %538 = vmatprep.subr.mxu0 %v193
    %539 = vmatpush1.msra.mxu0 %v192
    %540 = vmatprep.subr.mxu0 %v201
    %541 = vmatpush1.msra.mxu0 %v200
    %542 = vmatprep.subr.mxu0 %v209
    %543 = vmatpush1.msra.mxu0 %v208
    %544 = vmatprep.subr.mxu0 %v217
    %545 = vmatpush1.msra.mxu0 %v216
    %546 = vmatprep.subr.mxu0 %v225
    %547 = vmatpush1.msra.mxu0 %v224
    %548 = vmatprep.subr.mxu0 %v233
    %549 = vmatpush1.msra.mxu0 %v232
    %550 = vmatprep.subr.mxu0 %v311
    %551 = vmatpush1.msra.mxu0 %v308
    %552 = vmatprep.subr.mxu0 0.0
    %553 = vmatpush1.msra.mxu0 0.0
    %554 = vmatprep.subr.mxu0 0.0
    %555 = vmatpush1.msra.mxu0 0.0
    %556 = vmatprep.subr.mxu0 0.0
    %557 = vmatpush1.msra.mxu0 0.0
    %558 = vmatprep.subr.mxu0 0.0
    %559 = vmatpush1.msra.mxu0 0.0
    %560 = vmatprep.subr.mxu0 0.0
    %561 = vmatpush1.msra.mxu0 0.0
    %562 = vmatprep.subr.mxu0 0.0
    %563 = vmatpush1.msra.mxu0 0.0
    %564 = vmatprep.subr.mxu0 0.0
    %565 = vmatpush1.msra.mxu0 0.0
    %566 = vmatprep.subr.mxu0 0.0
    %567 = vmatpush1.msra.mxu0 0.0
    %568 = vmatprep.subr.mxu0 0.0
    %569 = vmatpush1.msra.mxu0 0.0
    %570 = vmatprep.subr.mxu0 0.0
    %571 = vmatpush1.msra.mxu0 0.0
    %572 = vmatprep.subr.mxu0 0.0
    %573 = vmatpush1.msra.mxu0 0.0
    %574 = vmatprep.subr.mxu0 0.0
    %575 = vmatpush1.msra.mxu0 0.0
    %576 = vmatprep.subr.mxu0 0.0
    %577 = vmatpush1.msra.mxu0 0.0
    %578 = vmatprep.subr.mxu0 0.0
    %579 = vmatpush1.msra.mxu0 0.0
    %580 = vmatprep.subr.mxu0 0.0
    %581 = vmatpush1.msra.mxu0 0.0
    %582 = vmatprep.subr.mxu0 0.0
    %583 = vmatpush1.msra.mxu0 0.0
    %584 = vmatprep.subr.mxu0 0.0
    %585 = vmatpush1.msra.mxu0 0.0
    %586 = vmatprep.subr.mxu0 0.0
    %587 = vmatpush1.msra.mxu0 0.0
    %588 = vmatprep.subr.mxu0 0.0
    %589 = vmatpush1.msra.mxu0 0.0
    %590 = vmatprep.mubr.f32.mxu0 0.0
    %591 = vmatmul.mubr.f32.gmra.mrb[0].mxu0 %v286
    %v592 = vpop.f32.mrb[0].mxu0
    %v593 = vadd.f32 %v271, %v592
    %v594 = vpop.f32.mrb[0].mxu0
    %v595 = vadd.f32 %v275, %v594
    %596 = vdwg.mxu0
    %vm597 = vcmp.eq.s32.totalorder %v118, %v121
    %vm598 = vcmp.eq.s32.totalorder %v119, %v121
    %v599 = vsel %vm597, 1, 0
    %v600 = vsel %vm598, 1, 0
    %v601 = vcvt.s32.f32 %v599
    %v602 = vcvt.s32.f32 %v600
    %vm603 = vcmp.eq.s32.totalorder %v118, %v130
    %vm604 = vcmp.eq.s32.totalorder %v119, %v130
    %v605 = vsel %vm603, 1, 0
    %v606 = vsel %vm604, 1, 0
    %v607 = vcvt.s32.f32 %v605
    %v608 = vcvt.s32.f32 %v606
    %vm609 = vcmask 31744
    %v611 = vsel %vm609, %v607, 0
    %v614 = vsel %vm609, %v608, 0
    %v617 = vsel %vm288, %v451, 0
    %v620 = vsel %vm288, %v453, 0
    %622 = vmatprep.subr.mxu0 %v620
    %623 = vmatpush1.msra.mxu0 %v617
    %624 = vmatprep.subr.mxu0 0.0
    %625 = vmatpush1.msra.mxu0 0.0
    %626 = vmatprep.subr.mxu0 0.0
    %627 = vmatpush1.msra.mxu0 0.0
    %628 = vmatprep.subr.mxu0 0.0
    %629 = vmatpush1.msra.mxu0 0.0
    %630 = vmatprep.subr.mxu0 0.0
    %631 = vmatpush1.msra.mxu0 0.0
    %632 = vmatprep.subr.mxu0 0.0
    %633 = vmatpush1.msra.mxu0 0.0
    %634 = vmatprep.subr.mxu0 0.0
    %635 = vmatpush1.msra.mxu0 0.0
    %636 = vmatprep.subr.mxu0 0.0
    %637 = vmatpush1.msra.mxu0 0.0
    %638 = vmatprep.subr.mxu0 0.0
    %639 = vmatpush1.msra.mxu0 0.0
    %640 = vmatprep.subr.mxu0 0.0
    %641 = vmatpush1.msra.mxu0 0.0
    %642 = vmatprep.subr.mxu0 0.0
    %643 = vmatpush1.msra.mxu0 0.0
    %644 = vmatprep.subr.mxu0 0.0
    %645 = vmatpush1.msra.mxu0 0.0
    %646 = vmatprep.subr.mxu0 0.0
    %647 = vmatpush1.msra.mxu0 0.0
    %648 = vmatprep.subr.mxu0 0.0
    %649 = vmatpush1.msra.mxu0 0.0
    %650 = vmatprep.subr.mxu0 0.0
    %651 = vmatpush1.msra.mxu0 0.0
    %652 = vmatprep.subr.mxu0 0.0
    %653 = vmatpush1.msra.mxu0 0.0
    %654 = vmatprep.subr.mxu0 0.0
    %655 = vmatpush1.msra.mxu0 0.0
    %656 = vmatprep.subr.mxu0 0.0
    %657 = vmatpush1.msra.mxu0 0.0
    %658 = vmatprep.subr.mxu0 0.0
    %659 = vmatpush1.msra.mxu0 0.0
    %660 = vmatprep.subr.mxu0 0.0
    %661 = vmatpush1.msra.mxu0 0.0
    %662 = vmatprep.subr.mxu0 0.0
    %663 = vmatpush1.msra.mxu0 0.0
    %664 = vmatprep.subr.mxu0 0.0
    %665 = vmatpush1.msra.mxu0 0.0
    %666 = vmatprep.subr.mxu0 0.0
    %667 = vmatpush1.msra.mxu0 0.0
    %668 = vmatprep.subr.mxu0 0.0
    %669 = vmatpush1.msra.mxu0 0.0
    %670 = vmatprep.subr.mxu0 0.0
    %671 = vmatpush1.msra.mxu0 0.0
    %672 = vmatprep.subr.mxu0 0.0
    %673 = vmatpush1.msra.mxu0 0.0
    %674 = vmatprep.subr.mxu0 0.0
    %675 = vmatpush1.msra.mxu0 0.0
    %676 = vmatprep.subr.mxu0 0.0
    %677 = vmatpush1.msra.mxu0 0.0
    %678 = vmatprep.subr.mxu0 0.0
    %679 = vmatpush1.msra.mxu0 0.0
    %680 = vmatprep.subr.mxu0 0.0
    %681 = vmatpush1.msra.mxu0 0.0
    %682 = vmatprep.subr.mxu0 0.0
    %683 = vmatpush1.msra.mxu0 0.0
    %684 = vmatprep.subr.mxu0 0.0
    %685 = vmatpush1.msra.mxu0 0.0
    %686 = vmatprep.mubr.f32.mxu0 0.0
    %687 = vmatmul.mubr.f32.gmra.mrb[0].mxu0 %v611
    %v688 = vpop.f32.mrb[0].mxu0
    %v689 = vadd.f32 0.0, %v688
    %v690 = vpop.f32.mrb[0].mxu0
    %v691 = vadd.f32 0.0, %v690
    %692 = vmatprep.mubr.f32.mxu0 0.0
    %693 = vmatmul.mubr.f32.gmra.mrb[0].mxu0 %v614
    %v694 = vpop.f32.mrb[0].mxu0
    %v695 = vadd.f32 0.0, %v694
    %v696 = vpop.f32.mrb[0].mxu0
    %v697 = vadd.f32 0.0, %v696
    %698 = vdwg.mxu0
    %v700 = vsel %vm609, %v601, 0
    %v703 = vsel %vm609, %v602, 0
    %v706 = vsel %vm288, %v380, 0
    %v709 = vsel %vm288, %v382, 0
    %711 = vmatprep.subr.mxu0 %v709
    %712 = vmatpush1.msra.mxu0 %v706
    %713 = vmatprep.subr.mxu0 0.0
    %714 = vmatpush1.msra.mxu0 0.0
    %715 = vmatprep.subr.mxu0 0.0
    %716 = vmatpush1.msra.mxu0 0.0
    %717 = vmatprep.subr.mxu0 0.0
    %718 = vmatpush1.msra.mxu0 0.0
    %719 = vmatprep.subr.mxu0 0.0
    %720 = vmatpush1.msra.mxu0 0.0
    %721 = vmatprep.subr.mxu0 0.0
    %722 = vmatpush1.msra.mxu0 0.0
    %723 = vmatprep.subr.mxu0 0.0
    %724 = vmatpush1.msra.mxu0 0.0
    %725 = vmatprep.subr.mxu0 0.0
    %726 = vmatpush1.msra.mxu0 0.0
    %727 = vmatprep.subr.mxu0 0.0
    %728 = vmatpush1.msra.mxu0 0.0
    %729 = vmatprep.subr.mxu0 0.0
    %730 = vmatpush1.msra.mxu0 0.0
    %731 = vmatprep.subr.mxu0 0.0
    %732 = vmatpush1.msra.mxu0 0.0
    %733 = vmatprep.subr.mxu0 0.0
    %734 = vmatpush1.msra.mxu0 0.0
    %735 = vmatprep.subr.mxu0 0.0
    %736 = vmatpush1.msra.mxu0 0.0
    %737 = vmatprep.subr.mxu0 0.0
    %738 = vmatpush1.msra.mxu0 0.0
    %739 = vmatprep.subr.mxu0 0.0
    %740 = vmatpush1.msra.mxu0 0.0
    %741 = vmatprep.subr.mxu0 0.0
    %742 = vmatpush1.msra.mxu0 0.0
    %743 = vmatprep.subr.mxu0 0.0
    %744 = vmatpush1.msra.mxu0 0.0
    %745 = vmatprep.subr.mxu0 0.0
    %746 = vmatpush1.msra.mxu0 0.0
    %747 = vmatprep.subr.mxu0 0.0
    %748 = vmatpush1.msra.mxu0 0.0
    %749 = vmatprep.subr.mxu0 0.0
    %750 = vmatpush1.msra.mxu0 0.0
    %751 = vmatprep.subr.mxu0 0.0
    %752 = vmatpush1.msra.mxu0 0.0
    %753 = vmatprep.subr.mxu0 0.0
    %754 = vmatpush1.msra.mxu0 0.0
    %755 = vmatprep.subr.mxu0 0.0
    %756 = vmatpush1.msra.mxu0 0.0
    %757 = vmatprep.subr.mxu0 0.0
    %758 = vmatpush1.msra.mxu0 0.0
    %759 = vmatprep.subr.mxu0 0.0
    %760 = vmatpush1.msra.mxu0 0.0
    %761 = vmatprep.subr.mxu0 0.0
    %762 = vmatpush1.msra.mxu0 0.0
    %763 = vmatprep.subr.mxu0 0.0
    %764 = vmatpush1.msra.mxu0 0.0
    %765 = vmatprep.subr.mxu0 0.0
    %766 = vmatpush1.msra.mxu0 0.0
    %767 = vmatprep.subr.mxu0 0.0
    %768 = vmatpush1.msra.mxu0 0.0
    %769 = vmatprep.subr.mxu0 0.0
    %770 = vmatpush1.msra.mxu0 0.0
    %771 = vmatprep.subr.mxu0 0.0
    %772 = vmatpush1.msra.mxu0 0.0
    %773 = vmatprep.subr.mxu0 0.0
    %774 = vmatpush1.msra.mxu0 0.0
    %775 = vmatprep.mubr.f32.mxu0 0.0
    %776 = vmatmul.mubr.f32.gmra.mrb[0].mxu0 %v700
    %v777 = vpop.f32.mrb[0].mxu0
    %v778 = vadd.f32 %v689, %v777
    %v779 = vpop.f32.mrb[0].mxu0
    %v780 = vadd.f32 %v691, %v779
    %781 = vmatprep.mubr.f32.mxu0 0.0
    %782 = vmatmul.mubr.f32.gmra.mrb[0].mxu0 %v703
    %v783 = vpop.f32.mrb[0].mxu0
    %v784 = vadd.f32 %v695, %v783
    %v785 = vpop.f32.mrb[0].mxu0
    %v786 = vadd.f32 %v697, %v785
    %787 = vdwg.mxu0
    %v788 = vadd.s32 %v121, 8
    %vm789 = vcmp.eq.s32.totalorder %v118, %v788
    %vm790 = vcmp.eq.s32.totalorder %v119, %v788
    %v791 = vsel %vm789, 1, 0
    %v792 = vsel %vm790, 1, 0
    %v793 = vcvt.s32.f32 %v791
    %v794 = vcvt.s32.f32 %v792
    %v796 = vsel %vm609, %v793, 0
    %v799 = vsel %vm609, %v794, 0
    %v802 = vsel %vm288, %v522, 0
    %v805 = vsel %vm288, %v524, 0
    %807 = vmatprep.subr.mxu0 %v805
    %808 = vmatpush1.msra.mxu0 %v802
    %809 = vmatprep.subr.mxu0 0.0
    %810 = vmatpush1.msra.mxu0 0.0
    %811 = vmatprep.subr.mxu0 0.0
    %812 = vmatpush1.msra.mxu0 0.0
    %813 = vmatprep.subr.mxu0 0.0
    %814 = vmatpush1.msra.mxu0 0.0
    %815 = vmatprep.subr.mxu0 0.0
    %816 = vmatpush1.msra.mxu0 0.0
    %817 = vmatprep.subr.mxu0 0.0
    %818 = vmatpush1.msra.mxu0 0.0
    %819 = vmatprep.subr.mxu0 0.0
    %820 = vmatpush1.msra.mxu0 0.0
    %821 = vmatprep.subr.mxu0 0.0
    %822 = vmatpush1.msra.mxu0 0.0
    %823 = vmatprep.subr.mxu0 0.0
    %824 = vmatpush1.msra.mxu0 0.0
    %825 = vmatprep.subr.mxu0 0.0
    %826 = vmatpush1.msra.mxu0 0.0
    %827 = vmatprep.subr.mxu0 0.0
    %828 = vmatpush1.msra.mxu0 0.0
    %829 = vmatprep.subr.mxu0 0.0
    %830 = vmatpush1.msra.mxu0 0.0
    %831 = vmatprep.subr.mxu0 0.0
    %832 = vmatpush1.msra.mxu0 0.0
    %833 = vmatprep.subr.mxu0 0.0
    %834 = vmatpush1.msra.mxu0 0.0
    %835 = vmatprep.subr.mxu0 0.0
    %836 = vmatpush1.msra.mxu0 0.0
    %837 = vmatprep.subr.mxu0 0.0
    %838 = vmatpush1.msra.mxu0 0.0
    %839 = vmatprep.subr.mxu0 0.0
    %840 = vmatpush1.msra.mxu0 0.0
    %841 = vmatprep.subr.mxu0 0.0
    %842 = vmatpush1.msra.mxu0 0.0
    %843 = vmatprep.subr.mxu0 0.0
    %844 = vmatpush1.msra.mxu0 0.0
    %845 = vmatprep.subr.mxu0 0.0
    %846 = vmatpush1.msra.mxu0 0.0
    %847 = vmatprep.subr.mxu0 0.0
    %848 = vmatpush1.msra.mxu0 0.0
    %849 = vmatprep.subr.mxu0 0.0
    %850 = vmatpush1.msra.mxu0 0.0
    %851 = vmatprep.subr.mxu0 0.0
    %852 = vmatpush1.msra.mxu0 0.0
    %853 = vmatprep.subr.mxu0 0.0
    %854 = vmatpush1.msra.mxu0 0.0
    %855 = vmatprep.subr.mxu0 0.0
    %856 = vmatpush1.msra.mxu0 0.0
    %857 = vmatprep.subr.mxu0 0.0
    %858 = vmatpush1.msra.mxu0 0.0
    %859 = vmatprep.subr.mxu0 0.0
    %860 = vmatpush1.msra.mxu0 0.0
    %861 = vmatprep.subr.mxu0 0.0
    %862 = vmatpush1.msra.mxu0 0.0
    %863 = vmatprep.subr.mxu0 0.0
    %864 = vmatpush1.msra.mxu0 0.0
    %865 = vmatprep.subr.mxu0 0.0
    %866 = vmatpush1.msra.mxu0 0.0
    %867 = vmatprep.subr.mxu0 0.0
    %868 = vmatpush1.msra.mxu0 0.0
    %869 = vmatprep.subr.mxu0 0.0
    %870 = vmatpush1.msra.mxu0 0.0
    %871 = vmatprep.mubr.f32.mxu0 0.0
    %872 = vmatmul.mubr.f32.gmra.mrb[0].mxu0 %v796
    %v873 = vpop.f32.mrb[0].mxu0
    %v874 = vadd.f32 0.0, %v873
    %v875 = vpop.f32.mrb[0].mxu0
    %v876 = vadd.f32 0.0, %v875
    %877 = vmatprep.mubr.f32.mxu0 0.0
    %878 = vmatmul.mubr.f32.gmra.mrb[0].mxu0 %v799
    %v879 = vpop.f32.mrb[0].mxu0
    %v880 = vadd.f32 0.0, %v879
    %v881 = vpop.f32.mrb[0].mxu0
    %v882 = vadd.f32 0.0, %v881
    %883 = vdwg.mxu0
    %v884 = vadd.f32 %v778, %v874
    %v885 = vadd.f32 %v780, %v876
    %v886 = vadd.f32 %v784, %v880
    %v887 = vadd.f32 %v786, %v882
    %v888 = vadd.s32 %v121, 12
    %vm889 = vcmp.eq.s32.totalorder %v118, %v888
    %vm890 = vcmp.eq.s32.totalorder %v119, %v888
    %v891 = vsel %vm889, 1, 0
    %v892 = vsel %vm890, 1, 0
    %v893 = vcvt.s32.f32 %v891
    %v894 = vcvt.s32.f32 %v892
    %v896 = vsel %vm609, %v893, 0
    %v899 = vsel %vm609, %v894, 0
    %v902 = vsel %vm288, %v593, 0
    %v905 = vsel %vm288, %v595, 0
    %907 = vmatprep.subr.mxu0 %v905
    %908 = vmatpush1.msra.mxu0 %v902
    %909 = vmatprep.subr.mxu0 0.0
    %910 = vmatpush1.msra.mxu0 0.0
    %911 = vmatprep.subr.mxu0 0.0
    %912 = vmatpush1.msra.mxu0 0.0
    %913 = vmatprep.subr.mxu0 0.0
    %914 = vmatpush1.msra.mxu0 0.0
    %915 = vmatprep.subr.mxu0 0.0
    %916 = vmatpush1.msra.mxu0 0.0
    %917 = vmatprep.subr.mxu0 0.0
    %918 = vmatpush1.msra.mxu0 0.0
    %919 = vmatprep.subr.mxu0 0.0
    %920 = vmatpush1.msra.mxu0 0.0
    %921 = vmatprep.subr.mxu0 0.0
    %922 = vmatpush1.msra.mxu0 0.0
    %923 = vmatprep.subr.mxu0 0.0
    %924 = vmatpush1.msra.mxu0 0.0
    %925 = vmatprep.subr.mxu0 0.0
    %926 = vmatpush1.msra.mxu0 0.0
    %927 = vmatprep.subr.mxu0 0.0
    %928 = vmatpush1.msra.mxu0 0.0
    %929 = vmatprep.subr.mxu0 0.0
    %930 = vmatpush1.msra.mxu0 0.0
    %931 = vmatprep.subr.mxu0 0.0
    %932 = vmatpush1.msra.mxu0 0.0
    %933 = vmatprep.subr.mxu0 0.0
    %934 = vmatpush1.msra.mxu0 0.0
    %935 = vmatprep.subr.mxu0 0.0
    %936 = vmatpush1.msra.mxu0 0.0
    %937 = vmatprep.subr.mxu0 0.0
    %938 = vmatpush1.msra.mxu0 0.0
    %939 = vmatprep.subr.mxu0 0.0
    %940 = vmatpush1.msra.mxu0 0.0
    %941 = vmatprep.subr.mxu0 0.0
    %942 = vmatpush1.msra.mxu0 0.0
    %943 = vmatprep.subr.mxu0 0.0
    %944 = vmatpush1.msra.mxu0 0.0
    %945 = vmatprep.subr.mxu0 0.0
    %946 = vmatpush1.msra.mxu0 0.0
    %947 = vmatprep.subr.mxu0 0.0
    %948 = vmatpush1.msra.mxu0 0.0
    %949 = vmatprep.subr.mxu0 0.0
    %950 = vmatpush1.msra.mxu0 0.0
    %951 = vmatprep.subr.mxu0 0.0
    %952 = vmatpush1.msra.mxu0 0.0
    %953 = vmatprep.subr.mxu0 0.0
    %954 = vmatpush1.msra.mxu0 0.0
    %955 = vmatprep.subr.mxu0 0.0
    %956 = vmatpush1.msra.mxu0 0.0
    %957 = vmatprep.subr.mxu0 0.0
    %958 = vmatpush1.msra.mxu0 0.0
    %959 = vmatprep.subr.mxu0 0.0
    %960 = vmatpush1.msra.mxu0 0.0
    %961 = vmatprep.subr.mxu0 0.0
    %962 = vmatpush1.msra.mxu0 0.0
    %963 = vmatprep.subr.mxu0 0.0
    %964 = vmatpush1.msra.mxu0 0.0
    %965 = vmatprep.subr.mxu0 0.0
    %966 = vmatpush1.msra.mxu0 0.0
    %967 = vmatprep.subr.mxu0 0.0
    %968 = vmatpush1.msra.mxu0 0.0
    %969 = vmatprep.subr.mxu0 0.0
    %970 = vmatpush1.msra.mxu0 0.0
    %971 = vmatprep.mubr.f32.mxu0 0.0
    %972 = vmatmul.mubr.f32.gmra.mrb[0].mxu0 %v896
    %v973 = vpop.f32.mrb[0].mxu0
    %v974 = vadd.f32 0.0, %v973
    %v975 = vpop.f32.mrb[0].mxu0
    %v976 = vadd.f32 0.0, %v975
    %977 = vmatprep.mubr.f32.mxu0 0.0
    %978 = vmatmul.mubr.f32.gmra.mrb[0].mxu0 %v899
    %v979 = vpop.f32.mrb[0].mxu0
    %v980 = vadd.f32 0.0, %v979
    %v981 = vpop.f32.mrb[0].mxu0
    %v982 = vadd.f32 0.0, %v981
    %983 = vdwg.mxu0
    %v984 = vadd.f32 %v884, %v974
    %v985 = vadd.f32 %v885, %v976
    %v986 = vadd.f32 %v886, %v980
    %v987 = vadd.f32 %v887, %v982
    %v988 = vld [vmem:[%s3] sm:$0x3]
    %v989 = vld [vmem:[%s4] sm:$0x3]
    %v990 = vadd.s32 %v118, 16
    %v991 = vadd.s32 %v118, 24
    %v992 = vadd.s32 %v118, 32
    %v993 = vadd.s32 %v118, 40
    %v994 = vadd.s32 %v118, 48
    %v995 = vadd.s32 %v118, 56
    %v996 = vadd.s32 %v118, 64
    %v997 = vadd.s32 %v118, 72
    %v998 = vadd.s32 %v118, 80
    %v999 = vadd.s32 %v118, 88
    %v1000 = vadd.s32 %v118, 96
    %v1001 = vadd.s32 %v118, 104
    %v1002 = vadd.s32 %v118, 112
    %v1003 = vadd.s32 %v118, 120
    %v1004 = vadd.s32 %v118, 128
    %v1005 = vadd.s32 %v118, 136
    %v1006 = vadd.s32 %v118, 144
    %v1007 = vadd.s32 %v118, 152
    %v1008 = vadd.s32 %v118, 160
    %v1009 = vadd.s32 %v118, 168
    %v1010 = vadd.s32 %v118, 176
    %v1011 = vadd.s32 %v118, 184
    %v1012 = vadd.s32 %v118, 192
    %v1013 = vadd.s32 %v118, 200
    %v1014 = vadd.s32 %v118, 208
    %v1015 = vadd.s32 %v118, 216
    %v1016 = vadd.s32 %v118, 224
    %v1017 = vadd.s32 %v118, 232
    %v1018 = vadd.s32 %v118, 240
    %v1019 = vadd.s32 %v118, 248
    %v1020 = vadd.s32 %v121, 128
    %vm1021 = vcmp.lt.s32.totalorder %v118, 0
    %v1022 = vsub.s32 0, %v118
    %v1023 = vsel %vm1021, %v1022, %v118
    %v1024 = vshrl.u32 %v1023, 8
    %v1025 = vand.u32 %v1023, 255
    %v1026 = vsub.s32 0, %v1025
    %v1027 = vsel %vm1021, %v1026, %v1025
    %vm1028 = vcmp.lt.s32.totalorder %v119, 0
    %v1029 = vsub.s32 0, %v119
    %v1030 = vsel %vm1028, %v1029, %v119
    %v1031 = vshrl.u32 %v1030, 8
    %v1032 = vand.u32 %v1030, 255
    %v1033 = vsub.s32 0, %v1032
    %v1034 = vsel %vm1028, %v1033, %v1032
    %vm1035 = vcmp.lt.s32.totalorder %v990, 0
    %v1036 = vsub.s32 0, %v990
    %v1037 = vsel %vm1035, %v1036, %v990
    %v1038 = vshrl.u32 %v1037, 8
    %v1039 = vand.u32 %v1037, 255
    %v1040 = vsub.s32 0, %v1039
    %v1041 = vsel %vm1035, %v1040, %v1039
    %vm1042 = vcmp.lt.s32.totalorder %v991, 0
    %v1043 = vsub.s32 0, %v991
    %v1044 = vsel %vm1042, %v1043, %v991
    %v1045 = vshrl.u32 %v1044, 8
    %v1046 = vand.u32 %v1044, 255
    %v1047 = vsub.s32 0, %v1046
    %v1048 = vsel %vm1042, %v1047, %v1046
    %vm1049 = vcmp.lt.s32.totalorder %v992, 0
    %v1050 = vsub.s32 0, %v992
    %v1051 = vsel %vm1049, %v1050, %v992
    %v1052 = vshrl.u32 %v1051, 8
    %v1053 = vand.u32 %v1051, 255
    %v1054 = vsub.s32 0, %v1053
    %v1055 = vsel %vm1049, %v1054, %v1053
    %vm1056 = vcmp.lt.s32.totalorder %v993, 0
    %v1057 = vsub.s32 0, %v993
    %v1058 = vsel %vm1056, %v1057, %v993
    %v1059 = vshrl.u32 %v1058, 8
    %v1060 = vand.u32 %v1058, 255
    %v1061 = vsub.s32 0, %v1060
    %v1062 = vsel %vm1056, %v1061, %v1060
    %vm1063 = vcmp.lt.s32.totalorder %v994, 0
    %v1064 = vsub.s32 0, %v994
    %v1065 = vsel %vm1063, %v1064, %v994
    %v1066 = vshrl.u32 %v1065, 8
    %v1067 = vand.u32 %v1065, 255
    %v1068 = vsub.s32 0, %v1067
    %v1069 = vsel %vm1063, %v1068, %v1067
    %vm1070 = vcmp.lt.s32.totalorder %v995, 0
    %v1071 = vsub.s32 0, %v995
    %v1072 = vsel %vm1070, %v1071, %v995
    %v1073 = vshrl.u32 %v1072, 8
    %v1074 = vand.u32 %v1072, 255
    %v1075 = vsub.s32 0, %v1074
    %v1076 = vsel %vm1070, %v1075, %v1074
    %vm1077 = vcmp.lt.s32.totalorder %v996, 0
    %v1078 = vsub.s32 0, %v996
    %v1079 = vsel %vm1077, %v1078, %v996
    %v1080 = vshrl.u32 %v1079, 8
    %v1081 = vand.u32 %v1079, 255
    %v1082 = vsub.s32 0, %v1081
    %v1083 = vsel %vm1077, %v1082, %v1081
    %vm1084 = vcmp.lt.s32.totalorder %v997, 0
    %v1085 = vsub.s32 0, %v997
    %v1086 = vsel %vm1084, %v1085, %v997
    %v1087 = vshrl.u32 %v1086, 8
    %v1088 = vand.u32 %v1086, 255
    %v1089 = vsub.s32 0, %v1088
    %v1090 = vsel %vm1084, %v1089, %v1088
    %vm1091 = vcmp.lt.s32.totalorder %v998, 0
    %v1092 = vsub.s32 0, %v998
    %v1093 = vsel %vm1091, %v1092, %v998
    %v1094 = vshrl.u32 %v1093, 8
    %v1095 = vand.u32 %v1093, 255
    %v1096 = vsub.s32 0, %v1095
    %v1097 = vsel %vm1091, %v1096, %v1095
    %vm1098 = vcmp.lt.s32.totalorder %v999, 0
    %v1099 = vsub.s32 0, %v999
    %v1100 = vsel %vm1098, %v1099, %v999
    %v1101 = vshrl.u32 %v1100, 8
    %v1102 = vand.u32 %v1100, 255
    %v1103 = vsub.s32 0, %v1102
    %v1104 = vsel %vm1098, %v1103, %v1102
    %vm1105 = vcmp.lt.s32.totalorder %v1000, 0
    %v1106 = vsub.s32 0, %v1000
    %v1107 = vsel %vm1105, %v1106, %v1000
    %v1108 = vshrl.u32 %v1107, 8
    %v1109 = vand.u32 %v1107, 255
    %v1110 = vsub.s32 0, %v1109
    %v1111 = vsel %vm1105, %v1110, %v1109
    %vm1112 = vcmp.lt.s32.totalorder %v1001, 0
    %v1113 = vsub.s32 0, %v1001
    %v1114 = vsel %vm1112, %v1113, %v1001
    %v1115 = vshrl.u32 %v1114, 8
    %v1116 = vand.u32 %v1114, 255
    %v1117 = vsub.s32 0, %v1116
    %v1118 = vsel %vm1112, %v1117, %v1116
    %vm1119 = vcmp.lt.s32.totalorder %v1002, 0
    %v1120 = vsub.s32 0, %v1002
    %v1121 = vsel %vm1119, %v1120, %v1002
    %v1122 = vshrl.u32 %v1121, 8
    %v1123 = vand.u32 %v1121, 255
    %v1124 = vsub.s32 0, %v1123
    %v1125 = vsel %vm1119, %v1124, %v1123
    %vm1126 = vcmp.lt.s32.totalorder %v1003, 0
    %v1127 = vsub.s32 0, %v1003
    %v1128 = vsel %vm1126, %v1127, %v1003
    %v1129 = vshrl.u32 %v1128, 8
    %v1130 = vand.u32 %v1128, 255
    %v1131 = vsub.s32 0, %v1130
    %v1132 = vsel %vm1126, %v1131, %v1130
    %vm1133 = vcmp.lt.s32.totalorder %v1004, 0
    %v1134 = vsub.s32 0, %v1004
    %v1135 = vsel %vm1133, %v1134, %v1004
    %v1136 = vshrl.u32 %v1135, 8
    %v1137 = vand.u32 %v1135, 255
    %v1138 = vsub.s32 0, %v1137
    %v1139 = vsel %vm1133, %v1138, %v1137
    %vm1140 = vcmp.lt.s32.totalorder %v1005, 0
    %v1141 = vsub.s32 0, %v1005
    %v1142 = vsel %vm1140, %v1141, %v1005
    %v1143 = vshrl.u32 %v1142, 8
    %v1144 = vand.u32 %v1142, 255
    %v1145 = vsub.s32 0, %v1144
    %v1146 = vsel %vm1140, %v1145, %v1144
    %vm1147 = vcmp.lt.s32.totalorder %v1006, 0
    %v1148 = vsub.s32 0, %v1006
    %v1149 = vsel %vm1147, %v1148, %v1006
    %v1150 = vshrl.u32 %v1149, 8
    %v1151 = vand.u32 %v1149, 255
    %v1152 = vsub.s32 0, %v1151
    %v1153 = vsel %vm1147, %v1152, %v1151
    %vm1154 = vcmp.lt.s32.totalorder %v1007, 0
    %v1155 = vsub.s32 0, %v1007
    %v1156 = vsel %vm1154, %v1155, %v1007
    %v1157 = vshrl.u32 %v1156, 8
    %v1158 = vand.u32 %v1156, 255
    %v1159 = vsub.s32 0, %v1158
    %v1160 = vsel %vm1154, %v1159, %v1158
    %vm1161 = vcmp.lt.s32.totalorder %v1008, 0
    %v1162 = vsub.s32 0, %v1008
    %v1163 = vsel %vm1161, %v1162, %v1008
    %v1164 = vshrl.u32 %v1163, 8
    %v1165 = vand.u32 %v1163, 255
    %v1166 = vsub.s32 0, %v1165
    %v1167 = vsel %vm1161, %v1166, %v1165
    %vm1168 = vcmp.lt.s32.totalorder %v1009, 0
    %v1169 = vsub.s32 0, %v1009
    %v1170 = vsel %vm1168, %v1169, %v1009
    %v1171 = vshrl.u32 %v1170, 8
    %v1172 = vand.u32 %v1170, 255
    %v1173 = vsub.s32 0, %v1172
    %v1174 = vsel %vm1168, %v1173, %v1172
    %vm1175 = vcmp.lt.s32.totalorder %v1010, 0
    %v1176 = vsub.s32 0, %v1010
    %v1177 = vsel %vm1175, %v1176, %v1010
    %v1178 = vshrl.u32 %v1177, 8
    %v1179 = vand.u32 %v1177, 255
    %v1180 = vsub.s32 0, %v1179
    %v1181 = vsel %vm1175, %v1180, %v1179
    %vm1182 = vcmp.lt.s32.totalorder %v1011, 0
    %v1183 = vsub.s32 0, %v1011
    %v1184 = vsel %vm1182, %v1183, %v1011
    %v1185 = vshrl.u32 %v1184, 8
    %v1186 = vand.u32 %v1184, 255
    %v1187 = vsub.s32 0, %v1186
    %v1188 = vsel %vm1182, %v1187, %v1186
    %vm1189 = vcmp.lt.s32.totalorder %v1012, 0
    %v1190 = vsub.s32 0, %v1012
    %v1191 = vsel %vm1189, %v1190, %v1012
    %v1192 = vshrl.u32 %v1191, 8
    %v1193 = vand.u32 %v1191, 255
    %v1194 = vsub.s32 0, %v1193
    %v1195 = vsel %vm1189, %v1194, %v1193
    %vm1196 = vcmp.lt.s32.totalorder %v1013, 0
    %v1197 = vsub.s32 0, %v1013
    %v1198 = vsel %vm1196, %v1197, %v1013
    %v1199 = vshrl.u32 %v1198, 8
    %v1200 = vand.u32 %v1198, 255
    %v1201 = vsub.s32 0, %v1200
    %v1202 = vsel %vm1196, %v1201, %v1200
    %vm1203 = vcmp.lt.s32.totalorder %v1014, 0
    %v1204 = vsub.s32 0, %v1014
    %v1205 = vsel %vm1203, %v1204, %v1014
    %v1206 = vshrl.u32 %v1205, 8
    %v1207 = vand.u32 %v1205, 255
    %v1208 = vsub.s32 0, %v1207
    %v1209 = vsel %vm1203, %v1208, %v1207
    %vm1210 = vcmp.lt.s32.totalorder %v1015, 0
    %v1211 = vsub.s32 0, %v1015
    %v1212 = vsel %vm1210, %v1211, %v1015
    %v1213 = vshrl.u32 %v1212, 8
    %v1214 = vand.u32 %v1212, 255
    %v1215 = vsub.s32 0, %v1214
    %v1216 = vsel %vm1210, %v1215, %v1214
    %vm1217 = vcmp.lt.s32.totalorder %v1016, 0
    %v1218 = vsub.s32 0, %v1016
    %v1219 = vsel %vm1217, %v1218, %v1016
    %v1220 = vshrl.u32 %v1219, 8
    %v1221 = vand.u32 %v1219, 255
    %v1222 = vsub.s32 0, %v1221
    %v1223 = vsel %vm1217, %v1222, %v1221
    %vm1224 = vcmp.lt.s32.totalorder %v1017, 0
    %v1225 = vsub.s32 0, %v1017
    %v1226 = vsel %vm1224, %v1225, %v1017
    %v1227 = vshrl.u32 %v1226, 8
    %v1228 = vand.u32 %v1226, 255
    %v1229 = vsub.s32 0, %v1228
    %v1230 = vsel %vm1224, %v1229, %v1228
    %vm1231 = vcmp.lt.s32.totalorder %v1018, 0
    %v1232 = vsub.s32 0, %v1018
    %v1233 = vsel %vm1231, %v1232, %v1018
    %v1234 = vshrl.u32 %v1233, 8
    %v1235 = vand.u32 %v1233, 255
    %v1236 = vsub.s32 0, %v1235
    %v1237 = vsel %vm1231, %v1236, %v1235
    %vm1238 = vcmp.lt.s32.totalorder %v1019, 0
    %v1239 = vsub.s32 0, %v1019
    %v1240 = vsel %vm1238, %v1239, %v1019
    %v1241 = vshrl.u32 %v1240, 8
    %v1242 = vand.u32 %v1240, 255
    %v1243 = vsub.s32 0, %v1242
    %v1244 = vsel %vm1238, %v1243, %v1242
    %vm1245 = vcmp.ne.s32.totalorder %v1027, 0
    %vm1246 = vcmp.ne.s32.totalorder %v1034, 0
    %vm1247 = vcmp.ne.s32.totalorder %v1041, 0
    %vm1248 = vcmp.ne.s32.totalorder %v1048, 0
    %vm1249 = vcmp.ne.s32.totalorder %v1055, 0
    %vm1250 = vcmp.ne.s32.totalorder %v1062, 0
    %vm1251 = vcmp.ne.s32.totalorder %v1069, 0
    %vm1252 = vcmp.ne.s32.totalorder %v1076, 0
    %vm1253 = vcmp.ne.s32.totalorder %v1083, 0
    %vm1254 = vcmp.ne.s32.totalorder %v1090, 0
    %vm1255 = vcmp.ne.s32.totalorder %v1097, 0
    %vm1256 = vcmp.ne.s32.totalorder %v1104, 0
    %vm1257 = vcmp.ne.s32.totalorder %v1111, 0
    %vm1258 = vcmp.ne.s32.totalorder %v1118, 0
    %vm1259 = vcmp.ne.s32.totalorder %v1125, 0
    %vm1260 = vcmp.ne.s32.totalorder %v1132, 0
    %vm1261 = vcmp.ne.s32.totalorder %v1139, 0
    %vm1262 = vcmp.ne.s32.totalorder %v1146, 0
    %vm1263 = vcmp.ne.s32.totalorder %v1153, 0
    %vm1264 = vcmp.ne.s32.totalorder %v1160, 0
    %vm1265 = vcmp.ne.s32.totalorder %v1167, 0
    %vm1266 = vcmp.ne.s32.totalorder %v1174, 0
    %vm1267 = vcmp.ne.s32.totalorder %v1181, 0
    %vm1268 = vcmp.ne.s32.totalorder %v1188, 0
    %vm1269 = vcmp.ne.s32.totalorder %v1195, 0
    %vm1270 = vcmp.ne.s32.totalorder %v1202, 0
    %vm1271 = vcmp.ne.s32.totalorder %v1209, 0
    %vm1272 = vcmp.ne.s32.totalorder %v1216, 0
    %vm1273 = vcmp.ne.s32.totalorder %v1223, 0
    %vm1274 = vcmp.ne.s32.totalorder %v1230, 0
    %vm1275 = vcmp.ne.s32.totalorder %v1237, 0
    %vm1276 = vcmp.ne.s32.totalorder %v1244, 0
    %vm1277 = vcmp.lt.s32.totalorder %v1027, 0
    %vm1278 = vcmp.lt.s32.totalorder %v1034, 0
    %vm1279 = vcmp.lt.s32.totalorder %v1041, 0
    %vm1280 = vcmp.lt.s32.totalorder %v1048, 0
    %vm1281 = vcmp.lt.s32.totalorder %v1055, 0
    %vm1282 = vcmp.lt.s32.totalorder %v1062, 0
    %vm1283 = vcmp.lt.s32.totalorder %v1069, 0
    %vm1284 = vcmp.lt.s32.totalorder %v1076, 0
    %vm1285 = vcmp.lt.s32.totalorder %v1083, 0
    %vm1286 = vcmp.lt.s32.totalorder %v1090, 0
    %vm1287 = vcmp.lt.s32.totalorder %v1097, 0
    %vm1288 = vcmp.lt.s32.totalorder %v1104, 0
    %vm1289 = vcmp.lt.s32.totalorder %v1111, 0
    %vm1290 = vcmp.lt.s32.totalorder %v1118, 0
    %vm1291 = vcmp.lt.s32.totalorder %v1125, 0
    %vm1292 = vcmp.lt.s32.totalorder %v1132, 0
    %vm1293 = vcmp.lt.s32.totalorder %v1139, 0
    %vm1294 = vcmp.lt.s32.totalorder %v1146, 0
    %vm1295 = vcmp.lt.s32.totalorder %v1153, 0
    %vm1296 = vcmp.lt.s32.totalorder %v1160, 0
    %vm1297 = vcmp.lt.s32.totalorder %v1167, 0
    %vm1298 = vcmp.lt.s32.totalorder %v1174, 0
    %vm1299 = vcmp.lt.s32.totalorder %v1181, 0
    %vm1300 = vcmp.lt.s32.totalorder %v1188, 0
    %vm1301 = vcmp.lt.s32.totalorder %v1195, 0
    %vm1302 = vcmp.lt.s32.totalorder %v1202, 0
    %vm1303 = vcmp.lt.s32.totalorder %v1209, 0
    %vm1304 = vcmp.lt.s32.totalorder %v1216, 0
    %vm1305 = vcmp.lt.s32.totalorder %v1223, 0
    %vm1306 = vcmp.lt.s32.totalorder %v1230, 0
    %vm1307 = vcmp.lt.s32.totalorder %v1237, 0
    %vm1308 = vcmp.lt.s32.totalorder %v1244, 0
    %vm1309 = vmand %vm1277, %vm1245
    %vm1310 = vmand %vm1278, %vm1246
    %vm1311 = vmand %vm1279, %vm1247
    %vm1312 = vmand %vm1280, %vm1248
    %vm1313 = vmand %vm1281, %vm1249
    %vm1314 = vmand %vm1282, %vm1250
    %vm1315 = vmand %vm1283, %vm1251
    %vm1316 = vmand %vm1284, %vm1252
    %vm1317 = vmand %vm1285, %vm1253
    %vm1318 = vmand %vm1286, %vm1254
    %vm1319 = vmand %vm1287, %vm1255
    %vm1320 = vmand %vm1288, %vm1256
    %vm1321 = vmand %vm1289, %vm1257
    %vm1322 = vmand %vm1290, %vm1258
    %vm1323 = vmand %vm1291, %vm1259
    %vm1324 = vmand %vm1292, %vm1260
    %vm1325 = vmand %vm1293, %vm1261
    %vm1326 = vmand %vm1294, %vm1262
    %vm1327 = vmand %vm1295, %vm1263
    %vm1328 = vmand %vm1296, %vm1264
    %vm1329 = vmand %vm1297, %vm1265
    %vm1330 = vmand %vm1298, %vm1266
    %vm1331 = vmand %vm1299, %vm1267
    %vm1332 = vmand %vm1300, %vm1268
    %vm1333 = vmand %vm1301, %vm1269
    %vm1334 = vmand %vm1302, %vm1270
    %vm1335 = vmand %vm1303, %vm1271
    %vm1336 = vmand %vm1304, %vm1272
    %vm1337 = vmand %vm1305, %vm1273
    %vm1338 = vmand %vm1306, %vm1274
    %vm1339 = vmand %vm1307, %vm1275
    %vm1340 = vmand %vm1308, %vm1276
    %v1341 = vadd.s32 %v1027, 256
    %v1342 = vadd.s32 %v1034, 256
    %v1343 = vadd.s32 %v1041, 256
    %v1344 = vadd.s32 %v1048, 256
    %v1345 = vadd.s32 %v1055, 256
    %v1346 = vadd.s32 %v1062, 256
    %v1347 = vadd.s32 %v1069, 256
    %v1348 = vadd.s32 %v1076, 256
    %v1349 = vadd.s32 %v1083, 256
    %v1350 = vadd.s32 %v1090, 256
    %v1351 = vadd.s32 %v1097, 256
    %v1352 = vadd.s32 %v1104, 256
    %v1353 = vadd.s32 %v1111, 256
    %v1354 = vadd.s32 %v1118, 256
    %v1355 = vadd.s32 %v1125, 256
    %v1356 = vadd.s32 %v1132, 256
    %v1357 = vadd.s32 %v1139, 256
    %v1358 = vadd.s32 %v1146, 256
    %v1359 = vadd.s32 %v1153, 256
    %v1360 = vadd.s32 %v1160, 256
    %v1361 = vadd.s32 %v1167, 256
    %v1362 = vadd.s32 %v1174, 256
    %v1363 = vadd.s32 %v1181, 256
    %v1364 = vadd.s32 %v1188, 256
    %v1365 = vadd.s32 %v1195, 256
    %v1366 = vadd.s32 %v1202, 256
    %v1367 = vadd.s32 %v1209, 256
    %v1368 = vadd.s32 %v1216, 256
    %v1369 = vadd.s32 %v1223, 256
    %v1370 = vadd.s32 %v1230, 256
    %v1371 = vadd.s32 %v1237, 256
    %v1372 = vadd.s32 %v1244, 256
    %v1373 = vsel %vm1309, %v1341, %v1027
    %v1374 = vsel %vm1310, %v1342, %v1034
    %v1375 = vsel %vm1311, %v1343, %v1041
    %v1376 = vsel %vm1312, %v1344, %v1048
    %v1377 = vsel %vm1313, %v1345, %v1055
    %v1378 = vsel %vm1314, %v1346, %v1062
    %v1379 = vsel %vm1315, %v1347, %v1069
    %v1380 = vsel %vm1316, %v1348, %v1076
    %v1381 = vsel %vm1317, %v1349, %v1083
    %v1382 = vsel %vm1318, %v1350, %v1090
    %v1383 = vsel %vm1319, %v1351, %v1097
    %v1384 = vsel %vm1320, %v1352, %v1104
    %v1385 = vsel %vm1321, %v1353, %v1111
    %v1386 = vsel %vm1322, %v1354, %v1118
    %v1387 = vsel %vm1323, %v1355, %v1125
    %v1388 = vsel %vm1324, %v1356, %v1132
    %v1389 = vsel %vm1325, %v1357, %v1139
    %v1390 = vsel %vm1326, %v1358, %v1146
    %v1391 = vsel %vm1327, %v1359, %v1153
    %v1392 = vsel %vm1328, %v1360, %v1160
    %v1393 = vsel %vm1329, %v1361, %v1167
    %v1394 = vsel %vm1330, %v1362, %v1174
    %v1395 = vsel %vm1331, %v1363, %v1181
    %v1396 = vsel %vm1332, %v1364, %v1188
    %v1397 = vsel %vm1333, %v1365, %v1195
    %v1398 = vsel %vm1334, %v1366, %v1202
    %v1399 = vsel %vm1335, %v1367, %v1209
    %v1400 = vsel %vm1336, %v1368, %v1216
    %v1401 = vsel %vm1337, %v1369, %v1223
    %v1402 = vsel %vm1338, %v1370, %v1230
    %v1403 = vsel %vm1339, %v1371, %v1237
    %v1404 = vsel %vm1340, %v1372, %v1244
    %vm1405 = vcmp.lt.s32.totalorder %v121, 0
    %v1406 = vsub.s32 0, %v121
    %v1407 = vsel %vm1405, %v1406, %v121
    %v1408 = vshrl.u32 %v1407, 8
    %v1409 = vand.u32 %v1407, 255
    %v1410 = vsub.s32 0, %v1409
    %v1411 = vsel %vm1405, %v1410, %v1409
    %vm1412 = vcmp.lt.s32.totalorder %v1020, 0
    %v1413 = vsub.s32 0, %v1020
    %v1414 = vsel %vm1412, %v1413, %v1020
    %v1415 = vshrl.u32 %v1414, 8
    %v1416 = vand.u32 %v1414, 255
    %v1417 = vsub.s32 0, %v1416
    %v1418 = vsel %vm1412, %v1417, %v1416
    %vm1419 = vcmp.ne.s32.totalorder %v1411, 0
    %vm1420 = vcmp.ne.s32.totalorder %v1418, 0
    %vm1421 = vcmp.lt.s32.totalorder %v1411, 0
    %vm1422 = vcmp.lt.s32.totalorder %v1418, 0
    %vm1423 = vmand %vm1421, %vm1419
    %vm1424 = vmand %vm1422, %vm1420
    %v1425 = vadd.s32 %v1411, 256
    %v1426 = vadd.s32 %v1418, 256
    %v1427 = vsel %vm1423, %v1425, %v1411
    %v1428 = vsel %vm1424, %v1426, %v1418
    %vm1429 = vcmp.eq.s32.totalorder %v1373, %v1427
    %vm1430 = vcmp.eq.s32.totalorder %v1373, %v1428
    %vm1431 = vcmp.eq.s32.totalorder %v1374, %v1427
    %vm1432 = vcmp.eq.s32.totalorder %v1374, %v1428
    %vm1433 = vcmp.eq.s32.totalorder %v1375, %v1427
    %vm1434 = vcmp.eq.s32.totalorder %v1375, %v1428
    %vm1435 = vcmp.eq.s32.totalorder %v1376, %v1427
    %vm1436 = vcmp.eq.s32.totalorder %v1376, %v1428
    %vm1437 = vcmp.eq.s32.totalorder %v1377, %v1427
    %vm1438 = vcmp.eq.s32.totalorder %v1377, %v1428
    %vm1439 = vcmp.eq.s32.totalorder %v1378, %v1427
    %vm1440 = vcmp.eq.s32.totalorder %v1378, %v1428
    %vm1441 = vcmp.eq.s32.totalorder %v1379, %v1427
    %vm1442 = vcmp.eq.s32.totalorder %v1379, %v1428
    %vm1443 = vcmp.eq.s32.totalorder %v1380, %v1427
    %vm1444 = vcmp.eq.s32.totalorder %v1380, %v1428
    %vm1445 = vcmp.eq.s32.totalorder %v1381, %v1427
    %vm1446 = vcmp.eq.s32.totalorder %v1381, %v1428
    %vm1447 = vcmp.eq.s32.totalorder %v1382, %v1427
    %vm1448 = vcmp.eq.s32.totalorder %v1382, %v1428
    %vm1449 = vcmp.eq.s32.totalorder %v1383, %v1427
    %vm1450 = vcmp.eq.s32.totalorder %v1383, %v1428
    %vm1451 = vcmp.eq.s32.totalorder %v1384, %v1427
    %vm1452 = vcmp.eq.s32.totalorder %v1384, %v1428
    %vm1453 = vcmp.eq.s32.totalorder %v1385, %v1427
    %vm1454 = vcmp.eq.s32.totalorder %v1385, %v1428
    %vm1455 = vcmp.eq.s32.totalorder %v1386, %v1427
    %vm1456 = vcmp.eq.s32.totalorder %v1386, %v1428
    %vm1457 = vcmp.eq.s32.totalorder %v1387, %v1427
    %vm1458 = vcmp.eq.s32.totalorder %v1387, %v1428
    %vm1459 = vcmp.eq.s32.totalorder %v1388, %v1427
    %vm1460 = vcmp.eq.s32.totalorder %v1388, %v1428
    %vm1461 = vcmp.eq.s32.totalorder %v1389, %v1427
    %vm1462 = vcmp.eq.s32.totalorder %v1389, %v1428
    %vm1463 = vcmp.eq.s32.totalorder %v1390, %v1427
    %vm1464 = vcmp.eq.s32.totalorder %v1390, %v1428
    %vm1465 = vcmp.eq.s32.totalorder %v1391, %v1427
    %vm1466 = vcmp.eq.s32.totalorder %v1391, %v1428
    %vm1467 = vcmp.eq.s32.totalorder %v1392, %v1427
    %vm1468 = vcmp.eq.s32.totalorder %v1392, %v1428
    %vm1469 = vcmp.eq.s32.totalorder %v1393, %v1427
    %vm1470 = vcmp.eq.s32.totalorder %v1393, %v1428
    %vm1471 = vcmp.eq.s32.totalorder %v1394, %v1427
    %vm1472 = vcmp.eq.s32.totalorder %v1394, %v1428
    %vm1473 = vcmp.eq.s32.totalorder %v1395, %v1427
    %vm1474 = vcmp.eq.s32.totalorder %v1395, %v1428
    %vm1475 = vcmp.eq.s32.totalorder %v1396, %v1427
    %vm1476 = vcmp.eq.s32.totalorder %v1396, %v1428
    %vm1477 = vcmp.eq.s32.totalorder %v1397, %v1427
    %vm1478 = vcmp.eq.s32.totalorder %v1397, %v1428
    %vm1479 = vcmp.eq.s32.totalorder %v1398, %v1427
    %vm1480 = vcmp.eq.s32.totalorder %v1398, %v1428
    %vm1481 = vcmp.eq.s32.totalorder %v1399, %v1427
    %vm1482 = vcmp.eq.s32.totalorder %v1399, %v1428
    %vm1483 = vcmp.eq.s32.totalorder %v1400, %v1427
    %vm1484 = vcmp.eq.s32.totalorder %v1400, %v1428
    %vm1485 = vcmp.eq.s32.totalorder %v1401, %v1427
    %vm1486 = vcmp.eq.s32.totalorder %v1401, %v1428
    %vm1487 = vcmp.eq.s32.totalorder %v1402, %v1427
    %vm1488 = vcmp.eq.s32.totalorder %v1402, %v1428
    %vm1489 = vcmp.eq.s32.totalorder %v1403, %v1427
    %vm1490 = vcmp.eq.s32.totalorder %v1403, %v1428
    %vm1491 = vcmp.eq.s32.totalorder %v1404, %v1427
    %vm1492 = vcmp.eq.s32.totalorder %v1404, %v1428
    %v1493 = vsel %vm1429, 1, 0
    %v1494 = vsel %vm1430, 1, 0
    %v1495 = vsel %vm1431, 1, 0
    %v1496 = vsel %vm1432, 1, 0
    %v1497 = vsel %vm1433, 1, 0
    %v1498 = vsel %vm1434, 1, 0
    %v1499 = vsel %vm1435, 1, 0
    %v1500 = vsel %vm1436, 1, 0
    %v1501 = vsel %vm1437, 1, 0
    %v1502 = vsel %vm1438, 1, 0
    %v1503 = vsel %vm1439, 1, 0
    %v1504 = vsel %vm1440, 1, 0
    %v1505 = vsel %vm1441, 1, 0
    %v1506 = vsel %vm1442, 1, 0
    %v1507 = vsel %vm1443, 1, 0
    %v1508 = vsel %vm1444, 1, 0
    %v1509 = vsel %vm1445, 1, 0
    %v1510 = vsel %vm1446, 1, 0
    %v1511 = vsel %vm1447, 1, 0
    %v1512 = vsel %vm1448, 1, 0
    %v1513 = vsel %vm1449, 1, 0
    %v1514 = vsel %vm1450, 1, 0
    %v1515 = vsel %vm1451, 1, 0
    %v1516 = vsel %vm1452, 1, 0
    %v1517 = vsel %vm1453, 1, 0
    %v1518 = vsel %vm1454, 1, 0
    %v1519 = vsel %vm1455, 1, 0
    %v1520 = vsel %vm1456, 1, 0
    %v1521 = vsel %vm1457, 1, 0
    %v1522 = vsel %vm1458, 1, 0
    %v1523 = vsel %vm1459, 1, 0
    %v1524 = vsel %vm1460, 1, 0
    %v1525 = vsel %vm1461, 1, 0
    %v1526 = vsel %vm1462, 1, 0
    %v1527 = vsel %vm1463, 1, 0
    %v1528 = vsel %vm1464, 1, 0
    %v1529 = vsel %vm1465, 1, 0
    %v1530 = vsel %vm1466, 1, 0
    %v1531 = vsel %vm1467, 1, 0
    %v1532 = vsel %vm1468, 1, 0
    %v1533 = vsel %vm1469, 1, 0
    %v1534 = vsel %vm1470, 1, 0
    %v1535 = vsel %vm1471, 1, 0
    %v1536 = vsel %vm1472, 1, 0
    %v1537 = vsel %vm1473, 1, 0
    %v1538 = vsel %vm1474, 1, 0
    %v1539 = vsel %vm1475, 1, 0
    %v1540 = vsel %vm1476, 1, 0
    %v1541 = vsel %vm1477, 1, 0
    %v1542 = vsel %vm1478, 1, 0
    %v1543 = vsel %vm1479, 1, 0
    %v1544 = vsel %vm1480, 1, 0
    %v1545 = vsel %vm1481, 1, 0
    %v1546 = vsel %vm1482, 1, 0
    %v1547 = vsel %vm1483, 1, 0
    %v1548 = vsel %vm1484, 1, 0
    %v1549 = vsel %vm1485, 1, 0
    %v1550 = vsel %vm1486, 1, 0
    %v1551 = vsel %vm1487, 1, 0
    %v1552 = vsel %vm1488, 1, 0
    %v1553 = vsel %vm1489, 1, 0
    %v1554 = vsel %vm1490, 1, 0
    %v1555 = vsel %vm1491, 1, 0
    %v1556 = vsel %vm1492, 1, 0
    %v1557 = vcvt.s32.f32 %v1493
    %v1558 = vcvt.s32.f32 %v1494
    %v1559 = vcvt.s32.f32 %v1495
    %v1560 = vcvt.s32.f32 %v1496
    %v1561 = vcvt.s32.f32 %v1497
    %v1562 = vcvt.s32.f32 %v1498
    %v1563 = vcvt.s32.f32 %v1499
    %v1564 = vcvt.s32.f32 %v1500
    %v1565 = vcvt.s32.f32 %v1501
    %v1566 = vcvt.s32.f32 %v1502
    %v1567 = vcvt.s32.f32 %v1503
    %v1568 = vcvt.s32.f32 %v1504
    %v1569 = vcvt.s32.f32 %v1505
    %v1570 = vcvt.s32.f32 %v1506
    %v1571 = vcvt.s32.f32 %v1507
    %v1572 = vcvt.s32.f32 %v1508
    %v1573 = vcvt.s32.f32 %v1509
    %v1574 = vcvt.s32.f32 %v1510
    %v1575 = vcvt.s32.f32 %v1511
    %v1576 = vcvt.s32.f32 %v1512
    %v1577 = vcvt.s32.f32 %v1513
    %v1578 = vcvt.s32.f32 %v1514
    %v1579 = vcvt.s32.f32 %v1515
    %v1580 = vcvt.s32.f32 %v1516
    %v1581 = vcvt.s32.f32 %v1517
    %v1582 = vcvt.s32.f32 %v1518
    %v1583 = vcvt.s32.f32 %v1519
    %v1584 = vcvt.s32.f32 %v1520
    %v1585 = vcvt.s32.f32 %v1521
    %v1586 = vcvt.s32.f32 %v1522
    %v1587 = vcvt.s32.f32 %v1523
    %v1588 = vcvt.s32.f32 %v1524
    %v1589 = vcvt.s32.f32 %v1525
    %v1590 = vcvt.s32.f32 %v1526
    %v1591 = vcvt.s32.f32 %v1527
    %v1592 = vcvt.s32.f32 %v1528
    %v1593 = vcvt.s32.f32 %v1529
    %v1594 = vcvt.s32.f32 %v1530
    %v1595 = vcvt.s32.f32 %v1531
    %v1596 = vcvt.s32.f32 %v1532
    %v1597 = vcvt.s32.f32 %v1533
    %v1598 = vcvt.s32.f32 %v1534
    %v1599 = vcvt.s32.f32 %v1535
    %v1600 = vcvt.s32.f32 %v1536
    %v1601 = vcvt.s32.f32 %v1537
    %v1602 = vcvt.s32.f32 %v1538
    %v1603 = vcvt.s32.f32 %v1539
    %v1604 = vcvt.s32.f32 %v1540
    %v1605 = vcvt.s32.f32 %v1541
    %v1606 = vcvt.s32.f32 %v1542
    %v1607 = vcvt.s32.f32 %v1543
    %v1608 = vcvt.s32.f32 %v1544
    %v1609 = vcvt.s32.f32 %v1545
    %v1610 = vcvt.s32.f32 %v1546
    %v1611 = vcvt.s32.f32 %v1547
    %v1612 = vcvt.s32.f32 %v1548
    %v1613 = vcvt.s32.f32 %v1549
    %v1614 = vcvt.s32.f32 %v1550
    %v1615 = vcvt.s32.f32 %v1551
    %v1616 = vcvt.s32.f32 %v1552
    %v1617 = vcvt.s32.f32 %v1553
    %v1618 = vcvt.s32.f32 %v1554
    %v1619 = vcvt.s32.f32 %v1555
    %v1620 = vcvt.s32.f32 %v1556
    %v1621 = vadd.f32 %v984, %v986
    %v1622 = vrot.slane %v1621, 4
    %v1623 = vadd.f32 %v1621, %v1622
    %v1624 = vrot.slane %v1623, 2
    %v1625 = vadd.f32 %v1623, %v1624
    %v1626 = vrot.slane %v1625, 1
    %v1627 = vadd.f32 %v1625, %v1626
    %v1628 = vadd.f32 %v985, %v987
    %v1629 = vrot.slane %v1628, 4
    %v1630 = vadd.f32 %v1628, %v1629
    %v1631 = vrot.slane %v1630, 2
    %v1632 = vadd.f32 %v1630, %v1631
    %v1633 = vrot.slane %v1632, 1
    %v1634 = vadd.f32 %v1632, %v1633
    %1635 = vmatprep.subr.mxu0 %v1558
    %1636 = vmatpush1.msra.mxu0 %v1557
    %1637 = vmatprep.subr.mxu0 %v1560
    %1638 = vmatpush1.msra.mxu0 %v1559
    %1639 = vmatprep.subr.mxu0 %v1562
    %1640 = vmatpush1.msra.mxu0 %v1561
    %1641 = vmatprep.subr.mxu0 %v1564
    %1642 = vmatpush1.msra.mxu0 %v1563
    %1643 = vmatprep.subr.mxu0 %v1566
    %1644 = vmatpush1.msra.mxu0 %v1565
    %1645 = vmatprep.subr.mxu0 %v1568
    %1646 = vmatpush1.msra.mxu0 %v1567
    %1647 = vmatprep.subr.mxu0 %v1570
    %1648 = vmatpush1.msra.mxu0 %v1569
    %1649 = vmatprep.subr.mxu0 %v1572
    %1650 = vmatpush1.msra.mxu0 %v1571
    %1651 = vmatprep.subr.mxu0 %v1574
    %1652 = vmatpush1.msra.mxu0 %v1573
    %1653 = vmatprep.subr.mxu0 %v1576
    %1654 = vmatpush1.msra.mxu0 %v1575
    %1655 = vmatprep.subr.mxu0 %v1578
    %1656 = vmatpush1.msra.mxu0 %v1577
    %1657 = vmatprep.subr.mxu0 %v1580
    %1658 = vmatpush1.msra.mxu0 %v1579
    %1659 = vmatprep.subr.mxu0 %v1582
    %1660 = vmatpush1.msra.mxu0 %v1581
    %1661 = vmatprep.subr.mxu0 %v1584
    %1662 = vmatpush1.msra.mxu0 %v1583
    %1663 = vmatprep.subr.mxu0 %v1586
    %1664 = vmatpush1.msra.mxu0 %v1585
    %1665 = vmatprep.subr.mxu0 %v1588
    %1666 = vmatpush1.msra.mxu0 %v1587
    %1667 = vmatprep.subr.mxu0 %v1590
    %1668 = vmatpush1.msra.mxu0 %v1589
    %1669 = vmatprep.subr.mxu0 %v1592
    %1670 = vmatpush1.msra.mxu0 %v1591
    %1671 = vmatprep.subr.mxu0 %v1594
    %1672 = vmatpush1.msra.mxu0 %v1593
    %1673 = vmatprep.subr.mxu0 %v1596
    %1674 = vmatpush1.msra.mxu0 %v1595
    %1675 = vmatprep.subr.mxu0 %v1598
    %1676 = vmatpush1.msra.mxu0 %v1597
    %1677 = vmatprep.subr.mxu0 %v1600
    %1678 = vmatpush1.msra.mxu0 %v1599
    %1679 = vmatprep.subr.mxu0 %v1602
    %1680 = vmatpush1.msra.mxu0 %v1601
    %1681 = vmatprep.subr.mxu0 %v1604
    %1682 = vmatpush1.msra.mxu0 %v1603
    %1683 = vmatprep.subr.mxu0 %v1606
    %1684 = vmatpush1.msra.mxu0 %v1605
    %1685 = vmatprep.subr.mxu0 %v1608
    %1686 = vmatpush1.msra.mxu0 %v1607
    %1687 = vmatprep.subr.mxu0 %v1610
    %1688 = vmatpush1.msra.mxu0 %v1609
    %1689 = vmatprep.subr.mxu0 %v1612
    %1690 = vmatpush1.msra.mxu0 %v1611
    %1691 = vmatprep.subr.mxu0 %v1614
    %1692 = vmatpush1.msra.mxu0 %v1613
    %1693 = vmatprep.subr.mxu0 %v1616
    %1694 = vmatpush1.msra.mxu0 %v1615
    %1695 = vmatprep.subr.mxu0 %v1618
    %1696 = vmatpush1.msra.mxu0 %v1617
    %1697 = vmatprep.subr.mxu0 %v1620
    %1698 = vmatpush1.msra.mxu0 %v1619
    %1699 = vmatprep.mubr.f32.mxu0 %v1634
    %1700 = vmatmul.mubr.f32.gmra.mrb[0].mxu0 %v1627
    %v1701 = vpop.f32.mrb[0].mxu0
    %v1702 = vadd.f32 0.0, %v1701
    %v1703 = vpop.f32.mrb[0].mxu0
    %v1704 = vadd.f32 0.0, %v1703
    %1705 = vdwg.mxu0
    %v1706 = vrcp.pop 16.0
    %v1707 = vmul.f32 %v1702, %v1706
    %v1708 = vmul.f32 %v1704, %v1706
    %v1709 = vlaneseq
    %v1710 = vshrl.u32 %v1709, 7
    %v1711 = vsub.s32 0, %v1710
    %v1712 = vrot.slane %v1707, %v1711
    %v1713 = vlaneseq
    %v1714 = vshrl.u32 %v1713, 7
    %v1715 = vsub.s32 0, %v1714
    %v1716 = vrot.slane %v1708, %v1715
    %v1717 = vsub.f32 %v984, %v1712
    %v1718 = vsub.f32 %v985, %v1716
    %v1719 = vsub.f32 %v986, %v1712
    %v1720 = vsub.f32 %v987, %v1716
    %v1721 = vmul.f32 %v1717, %v1717
    %v1722 = vmul.f32 %v1718, %v1718
    %v1723 = vmul.f32 %v1719, %v1719
    %v1724 = vmul.f32 %v1720, %v1720
    %v1725 = vadd.f32 %v1721, %v1723
    %v1726 = vrot.slane %v1725, 4
    %v1727 = vadd.f32 %v1725, %v1726
    %v1728 = vrot.slane %v1727, 2
    %v1729 = vadd.f32 %v1727, %v1728
    %v1730 = vrot.slane %v1729, 1
    %v1731 = vadd.f32 %v1729, %v1730
    %v1732 = vadd.f32 %v1722, %v1724
    %v1733 = vrot.slane %v1732, 4
    %v1734 = vadd.f32 %v1732, %v1733
    %v1735 = vrot.slane %v1734, 2
    %v1736 = vadd.f32 %v1734, %v1735
    %v1737 = vrot.slane %v1736, 1
    %v1738 = vadd.f32 %v1736, %v1737
    %1739 = vmatprep.subr.mxu0 %v1558
    %1740 = vmatpush1.msra.mxu0 %v1557
    %1741 = vmatprep.subr.mxu0 %v1560
    %1742 = vmatpush1.msra.mxu0 %v1559
    %1743 = vmatprep.subr.mxu0 %v1562
    %1744 = vmatpush1.msra.mxu0 %v1561
    %1745 = vmatprep.subr.mxu0 %v1564
    %1746 = vmatpush1.msra.mxu0 %v1563
    %1747 = vmatprep.subr.mxu0 %v1566
    %1748 = vmatpush1.msra.mxu0 %v1565
    %1749 = vmatprep.subr.mxu0 %v1568
    %1750 = vmatpush1.msra.mxu0 %v1567
    %1751 = vmatprep.subr.mxu0 %v1570
    %1752 = vmatpush1.msra.mxu0 %v1569
    %1753 = vmatprep.subr.mxu0 %v1572
    %1754 = vmatpush1.msra.mxu0 %v1571
    %1755 = vmatprep.subr.mxu0 %v1574
    %1756 = vmatpush1.msra.mxu0 %v1573
    %1757 = vmatprep.subr.mxu0 %v1576
    %1758 = vmatpush1.msra.mxu0 %v1575
    %1759 = vmatprep.subr.mxu0 %v1578
    %1760 = vmatpush1.msra.mxu0 %v1577
    %1761 = vmatprep.subr.mxu0 %v1580
    %1762 = vmatpush1.msra.mxu0 %v1579
    %1763 = vmatprep.subr.mxu0 %v1582
    %1764 = vmatpush1.msra.mxu0 %v1581
    %1765 = vmatprep.subr.mxu0 %v1584
    %1766 = vmatpush1.msra.mxu0 %v1583
    %1767 = vmatprep.subr.mxu0 %v1586
    %1768 = vmatpush1.msra.mxu0 %v1585
    %1769 = vmatprep.subr.mxu0 %v1588
    %1770 = vmatpush1.msra.mxu0 %v1587
    %1771 = vmatprep.subr.mxu0 %v1590
    %1772 = vmatpush1.msra.mxu0 %v1589
    %1773 = vmatprep.subr.mxu0 %v1592
    %1774 = vmatpush1.msra.mxu0 %v1591
    %1775 = vmatprep.subr.mxu0 %v1594
    %1776 = vmatpush1.msra.mxu0 %v1593
    %1777 = vmatprep.subr.mxu0 %v1596
    %1778 = vmatpush1.msra.mxu0 %v1595
    %1779 = vmatprep.subr.mxu0 %v1598
    %1780 = vmatpush1.msra.mxu0 %v1597
    %1781 = vmatprep.subr.mxu0 %v1600
    %1782 = vmatpush1.msra.mxu0 %v1599
    %1783 = vmatprep.subr.mxu0 %v1602
    %1784 = vmatpush1.msra.mxu0 %v1601
    %1785 = vmatprep.subr.mxu0 %v1604
    %1786 = vmatpush1.msra.mxu0 %v1603
    %1787 = vmatprep.subr.mxu0 %v1606
    %1788 = vmatpush1.msra.mxu0 %v1605
    %1789 = vmatprep.subr.mxu0 %v1608
    %1790 = vmatpush1.msra.mxu0 %v1607
    %1791 = vmatprep.subr.mxu0 %v1610
    %1792 = vmatpush1.msra.mxu0 %v1609
    %1793 = vmatprep.subr.mxu0 %v1612
    %1794 = vmatpush1.msra.mxu0 %v1611
    %1795 = vmatprep.subr.mxu0 %v1614
    %1796 = vmatpush1.msra.mxu0 %v1613
    %1797 = vmatprep.subr.mxu0 %v1616
    %1798 = vmatpush1.msra.mxu0 %v1615
    %1799 = vmatprep.subr.mxu0 %v1618
    %1800 = vmatpush1.msra.mxu0 %v1617
    %1801 = vmatprep.subr.mxu0 %v1620
    %1802 = vmatpush1.msra.mxu0 %v1619
    %1803 = vmatprep.mubr.f32.mxu0 %v1738
    %1804 = vmatmul.mubr.f32.gmra.mrb[0].mxu0 %v1731
    %v1805 = vpop.f32.mrb[0].mxu0
    %v1806 = vadd.f32 0.0, %v1805
    %v1807 = vpop.f32.mrb[0].mxu0
    %v1808 = vadd.f32 0.0, %v1807
    %1809 = vdwg.mxu0
    %v1810 = vmul.f32 %v1806, %v1706
    %v1811 = vmul.f32 %v1808, %v1706
    %v1812 = vadd.f32 %v1810, 1e-05
    %v1813 = vadd.f32 %v1811, 1e-05
    %v1814 = vrsqrt.pop %v1812
    %v1815 = vrsqrt.pop %v1813
    %v1818 = vcombine.low %v1814, %v1815
    %v1820 = vunpack.c.l.s4 1966171168
    %v1821 = vunpack.c.0.s8 %v1820
    %v1822 = vlaneseq
    %v1823 = vshrl.u32 %v1822, 7
    %v1824 = vsub.s32 %v1821, %v1823
    %v1825 = vrot.slane %v1818, %v1824
    %v1827 = vunpack.c.l.s4 1966171168
    %v1828 = vunpack.c.0.s8 %v1827
    %v1829 = vlaneseq
    %v1830 = vshrl.u32 %v1829, 7
    %v1831 = vsub.s32 %v1828, %v1830
    %v1832 = vrot.slane %v1825, %v1831
    %v1834 = vmul.f32 %v988, %v1832
    %v1836 = vlaneseq
    %v1837 = vshrl.u32 %v1836, 7
    %v1838 = vsub.s32 0, %v1837
    %v1839 = vrot.slane %v1834, %v1838
    %v1840 = vlaneseq
    %v1841 = vshrl.u32 %v1840, 7
    %v1842 = vsub.s32 1, %v1841
    %v1843 = vrot.slane %v1834, %v1842
    %v1846 = vmul.f32 %v1717, %v1839
    %v1847 = vmul.f32 %v1718, %v1843
    %v1848 = vmul.f32 %v1719, %v1839
    %v1849 = vmul.f32 %v1720, %v1843
    %v1851 = vlaneseq
    %v1852 = vshrl.u32 %v1851, 7
    %v1853 = vsub.s32 0, %v1852
    %v1854 = vrot.slane %v989, %v1853
    %v1855 = vlaneseq
    %v1856 = vshrl.u32 %v1855, 7
    %v1857 = vsub.s32 1, %v1856
    %v1858 = vrot.slane %v989, %v1857
    %v1861 = vadd.f32 %v1846, %v1854
    %v1862 = vadd.f32 %v1847, %v1858
    %v1863 = vadd.f32 %v1848, %v1854
    %v1864 = vadd.f32 %v1849, %v1858
    %vm1865 = vcmp.ge.f32.partialorder %v1861, 0.0
    %vm1866 = vcmp.ge.f32.partialorder %v1862, 0.0
    %vm1867 = vcmp.ge.f32.partialorder %v1863, 0.0
    %vm1868 = vcmp.ge.f32.partialorder %v1864, 0.0
    %v1869 = vmul.f32 %v1861, 0.01
    %v1870 = vmul.f32 %v1862, 0.01
    %v1871 = vmul.f32 %v1863, 0.01
    %v1872 = vmul.f32 %v1864, 0.01
    %v1873 = vsel %vm1865, %v1861, %v1869
    %v1874 = vsel %vm1866, %v1862, %v1870
    %v1875 = vsel %vm1867, %v1863, %v1871
    %v1876 = vsel %vm1868, %v1864, %v1872
    %vm1877 = vcmask 130048
    %v1879 = vsel %vm1877, %v135, 0
    %v1882 = vsel %vm1877, %v136, 0
    %1884 = vmatprep.subr.mxu0 %v1874
    %1885 = vmatpush1.msra.mxu0 %v1873
    %1886 = vmatprep.subr.mxu0 %v1876
    %1887 = vmatpush1.msra.mxu0 %v1875
    %1888 = vmatprep.subr.mxu0 0.0
    %1889 = vmatpush1.msra.mxu0 0.0
    %1890 = vmatprep.subr.mxu0 0.0
    %1891 = vmatpush1.msra.mxu0 0.0
    %1892 = vmatprep.subr.mxu0 0.0
    %1893 = vmatpush1.msra.mxu0 0.0
    %1894 = vmatprep.subr.mxu0 0.0
    %1895 = vmatpush1.msra.mxu0 0.0
    %1896 = vmatprep.subr.mxu0 0.0
    %1897 = vmatpush1.msra.mxu0 0.0
    %1898 = vmatprep.subr.mxu0 0.0
    %1899 = vmatpush1.msra.mxu0 0.0
    %1900 = vmatprep.subr.mxu0 0.0
    %1901 = vmatpush1.msra.mxu0 0.0
    %1902 = vmatprep.subr.mxu0 0.0
    %1903 = vmatpush1.msra.mxu0 0.0
    %1904 = vmatprep.subr.mxu0 0.0
    %1905 = vmatpush1.msra.mxu0 0.0
    %1906 = vmatprep.subr.mxu0 0.0
    %1907 = vmatpush1.msra.mxu0 0.0
    %1908 = vmatprep.subr.mxu0 0.0
    %1909 = vmatpush1.msra.mxu0 0.0
    %1910 = vmatprep.subr.mxu0 0.0
    %1911 = vmatpush1.msra.mxu0 0.0
    %1912 = vmatprep.subr.mxu0 0.0
    %1913 = vmatpush1.msra.mxu0 0.0
    %1914 = vmatprep.subr.mxu0 0.0
    %1915 = vmatpush1.msra.mxu0 0.0
    %1916 = vmatprep.subr.mxu0 0.0
    %1917 = vmatpush1.msra.mxu0 0.0
    %1918 = vmatprep.subr.mxu0 0.0
    %1919 = vmatpush1.msra.mxu0 0.0
    %1920 = vmatprep.subr.mxu0 0.0
    %1921 = vmatpush1.msra.mxu0 0.0
    %1922 = vmatprep.subr.mxu0 0.0
    %1923 = vmatpush1.msra.mxu0 0.0
    %1924 = vmatprep.subr.mxu0 0.0
    %1925 = vmatpush1.msra.mxu0 0.0
    %1926 = vmatprep.subr.mxu0 0.0
    %1927 = vmatpush1.msra.mxu0 0.0
    %1928 = vmatprep.subr.mxu0 0.0
    %1929 = vmatpush1.msra.mxu0 0.0
    %1930 = vmatprep.subr.mxu0 0.0
    %1931 = vmatpush1.msra.mxu0 0.0
    %1932 = vmatprep.subr.mxu0 0.0
    %1933 = vmatpush1.msra.mxu0 0.0
    %1934 = vmatprep.subr.mxu0 0.0
    %1935 = vmatpush1.msra.mxu0 0.0
    %1936 = vmatprep.subr.mxu0 0.0
    %1937 = vmatpush1.msra.mxu0 0.0
    %1938 = vmatprep.subr.mxu0 0.0
    %1939 = vmatpush1.msra.mxu0 0.0
    %1940 = vmatprep.subr.mxu0 0.0
    %1941 = vmatpush1.msra.mxu0 0.0
    %1942 = vmatprep.subr.mxu0 0.0
    %1943 = vmatpush1.msra.mxu0 0.0
    %1944 = vmatprep.subr.mxu0 0.0
    %1945 = vmatpush1.msra.mxu0 0.0
    %1946 = vmatprep.subr.mxu0 0.0
    %1947 = vmatpush1.msra.mxu0 0.0
    %1948 = vmatprep.mubr.f32.mxu0 0.0
    %1949 = vmatmul.mubr.f32.gmra.mrb[0].mxu0 %v1879
    %v1950 = vpop.f32.mrb[0].mxu0
    %v1951 = vadd.f32 0.0, %v1950
    %v1952 = vpop.f32.mrb[0].mxu0
    %v1953 = vadd.f32 0.0, %v1952
    %1954 = vmatprep.mubr.f32.mxu0 0.0
    %1955 = vmatmul.mubr.f32.gmra.mrb[0].mxu0 %v1882
    %v1956 = vpop.f32.mrb[0].mxu0
    %v1957 = vadd.f32 0.0, %v1956
    %v1958 = vpop.f32.mrb[0].mxu0
    %v1959 = vadd.f32 0.0, %v1958
    %1960 = vdwg.mxu0
    %v1961 = vld [vmem:[#allocation4] sm:$0xff]
    %v1962 = vld [vmem:[#allocation4 + $0x8] sm:$0xff]
    %v1963 = vld [vmem:[#allocation4 + $0x10] sm:$0xff]
    %v1964 = vld [vmem:[#allocation4 + $0x18] sm:$0xff]
    %v1965 = vld [vmem:[#allocation4 + $0x20] sm:$0xff]
    %v1966 = vld [vmem:[#allocation4 + $0x28] sm:$0xff]
    %v1967 = vld [vmem:[#allocation4 + $0x30] sm:$0xff]
    %v1968 = vld [vmem:[#allocation4 + $0x38] sm:$0xff]
    %v1969 = vld [vmem:[#allocation4 + $0x40] sm:$0xff]
    %v1970 = vld [vmem:[#allocation4 + $0x48] sm:$0xff]
    %v1971 = vld [vmem:[#allocation4 + $0x50] sm:$0xff]
    %v1972 = vld [vmem:[#allocation4 + $0x58] sm:$0xff]
    %v1973 = vld [vmem:[#allocation4 + $0x60] sm:$0xff]
    %v1974 = vld [vmem:[#allocation4 + $0x68] sm:$0xff]
    %v1975 = vld [vmem:[#allocation4 + $0x70] sm:$0xff]
    %v1976 = vld [vmem:[#allocation4 + $0x78] sm:$0xff]
    %v1977 = vld [vmem:[#allocation4 + $0x80] sm:$0xff]
    %v1978 = vld [vmem:[#allocation4 + $0x88] sm:$0xff]
    %v1979 = vld [vmem:[#allocation4 + $0x90] sm:$0xff]
    %v1980 = vld [vmem:[#allocation4 + $0x98] sm:$0xff]
    %v1981 = vld [vmem:[#allocation4 + $0xa0] sm:$0xff]
    %v1982 = vld [vmem:[#allocation4 + $0xa8] sm:$0xff]
    %v1983 = vld [vmem:[#allocation4 + $0xb0] sm:$0xff]
    %v1984 = vld [vmem:[#allocation4 + $0xb8] sm:$0xff]
    %v1985 = vld [vmem:[#allocation4 + $0xc0] sm:$0xff]
    %v1986 = vld [vmem:[#allocation4 + $0xc8] sm:$0xff]
    %v1987 = vld [vmem:[#allocation4 + $0xd0] sm:$0xff]
    %v1988 = vld [vmem:[#allocation4 + $0xd8] sm:$0xff]
    %v1989 = vld [vmem:[#allocation4 + $0xe0] sm:$0xff]
    %v1990 = vld [vmem:[#allocation4 + $0xe8] sm:$0xff]
    %v1991 = vld [vmem:[#allocation4 + $0xf0] sm:$0xff]
    %v1992 = vld [vmem:[#allocation4 + $0xf8] sm:$0xff]
    %v1993 = vld [vmem:[#allocation4 + $0x100] sm:$0xff]
    %v1994 = vld [vmem:[#allocation4 + $0x108] sm:$0xff]
    %v1995 = vld [vmem:[#allocation4 + $0x110] sm:$0xff]
    %v1996 = vld [vmem:[#allocation4 + $0x118] sm:$0xff]
    %v1997 = vld [vmem:[#allocation4 + $0x120] sm:$0xff]
    %v1998 = vld [vmem:[#allocation4 + $0x128] sm:$0xff]
    %v1999 = vld [vmem:[#allocation4 + $0x130] sm:$0xff]
    %v2000 = vld [vmem:[#allocation4 + $0x138] sm:$0xff]
    %v2001 = vld [vmem:[#allocation4 + $0x140] sm:$0xff]
    %v2002 = vld [vmem:[#allocation4 + $0x148] sm:$0xff]
    %v2003 = vld [vmem:[#allocation4 + $0x150] sm:$0xff]
    %v2004 = vld [vmem:[#allocation4 + $0x158] sm:$0xff]
    %v2005 = vld [vmem:[#allocation4 + $0x160] sm:$0xff]
    %v2006 = vld [vmem:[#allocation4 + $0x168] sm:$0xff]
    %v2007 = vld [vmem:[#allocation4 + $0x170] sm:$0xff]
    %v2008 = vld [vmem:[#allocation4 + $0x178] sm:$0xff]
    %v2009 = vld [vmem:[#allocation4 + $0x180] sm:$0xff]
    %v2010 = vld [vmem:[#allocation4 + $0x188] sm:$0xff]
    %v2011 = vld [vmem:[#allocation4 + $0x190] sm:$0xff]
    %v2012 = vld [vmem:[#allocation4 + $0x198] sm:$0xff]
    %v2013 = vld [vmem:[#allocation4 + $0x1a0] sm:$0xff]
    %v2014 = vld [vmem:[#allocation4 + $0x1a8] sm:$0xff]
    %v2015 = vld [vmem:[#allocation4 + $0x1b0] sm:$0xff]
    %v2016 = vld [vmem:[#allocation4 + $0x1b8] sm:$0xff]
    %v2017 = vld [vmem:[#allocation4 + $0x1c0] sm:$0xff]
    %v2018 = vld [vmem:[#allocation4 + $0x1c8] sm:$0xff]
    %v2019 = vld [vmem:[#allocation4 + $0x1d0] sm:$0xff]
    %v2020 = vld [vmem:[#allocation4 + $0x1d8] sm:$0xff]
    %v2021 = vld [vmem:[#allocation4 + $0x1e0] sm:$0xff]
    %v2022 = vld [vmem:[#allocation4 + $0x1e8] sm:$0xff]
    %v2023 = vld [vmem:[#allocation4 + $0x1f0] sm:$0xff]
    %v2024 = vld [vmem:[#allocation4 + $0x1f8] sm:$0xff]
    %s2025 = scalar_lea.vmem [#allocation4], 512
    %v2026 = vld [vmem:[%s2025] sm:$0xff]
    %v2027 = vld [vmem:[%s2025 + $0x8] sm:$0xff]
    %v2028 = vld [vmem:[%s2025 + $0x10] sm:$0xff]
    %v2029 = vld [vmem:[%s2025 + $0x18] sm:$0xff]
    %v2030 = vld [vmem:[%s2025 + $0x20] sm:$0xff]
    %v2031 = vld [vmem:[%s2025 + $0x28] sm:$0xff]
    %v2032 = vld [vmem:[%s2025 + $0x30] sm:$0xff]
    %v2033 = vld [vmem:[%s2025 + $0x38] sm:$0xff]
    %v2034 = vld [vmem:[%s2025 + $0x40] sm:$0xff]
    %v2035 = vld [vmem:[%s2025 + $0x48] sm:$0xff]
    %v2036 = vld [vmem:[%s2025 + $0x50] sm:$0xff]
    %v2037 = vld [vmem:[%s2025 + $0x58] sm:$0xff]
    %v2038 = vld [vmem:[%s2025 + $0x60] sm:$0xff]
    %v2039 = vld [vmem:[%s2025 + $0x68] sm:$0xff]
    %v2040 = vld [vmem:[%s2025 + $0x70] sm:$0xff]
    %v2041 = vld [vmem:[%s2025 + $0x78] sm:$0xff]
    %v2042 = vld [vmem:[%s2025 + $0x80] sm:$0xff]
    %v2043 = vld [vmem:[%s2025 + $0x88] sm:$0xff]
    %v2044 = vld [vmem:[%s2025 + $0x90] sm:$0xff]
    %v2045 = vld [vmem:[%s2025 + $0x98] sm:$0xff]
    %v2046 = vld [vmem:[%s2025 + $0xa0] sm:$0xff]
    %v2047 = vld [vmem:[%s2025 + $0xa8] sm:$0xff]
    %v2048 = vld [vmem:[%s2025 + $0xb0] sm:$0xff]
    %v2049 = vld [vmem:[%s2025 + $0xb8] sm:$0xff]
    %v2050 = vld [vmem:[%s2025 + $0xc0] sm:$0xff]
    %v2051 = vld [vmem:[%s2025 + $0xc8] sm:$0xff]
    %v2052 = vld [vmem:[%s2025 + $0xd0] sm:$0xff]
    %v2053 = vld [vmem:[%s2025 + $0xd8] sm:$0xff]
    %v2054 = vld [vmem:[%s2025 + $0xe0] sm:$0xff]
    %v2055 = vld [vmem:[%s2025 + $0xe8] sm:$0xff]
    %v2056 = vld [vmem:[%s2025 + $0xf0] sm:$0xff]
    %v2057 = vld [vmem:[%s2025 + $0xf8] sm:$0xff]
    %v2058 = vld [vmem:[%s2025 + $0x100] sm:$0xff]
    %v2059 = vld [vmem:[%s2025 + $0x108] sm:$0xff]
    %v2060 = vld [vmem:[%s2025 + $0x110] sm:$0xff]
    %v2061 = vld [vmem:[%s2025 + $0x118] sm:$0xff]
    %v2062 = vld [vmem:[%s2025 + $0x120] sm:$0xff]
    %v2063 = vld [vmem:[%s2025 + $0x128] sm:$0xff]
    %v2064 = vld [vmem:[%s2025 + $0x130] sm:$0xff]
    %v2065 = vld [vmem:[%s2025 + $0x138] sm:$0xff]
    %v2066 = vld [vmem:[%s2025 + $0x140] sm:$0xff]
    %v2067 = vld [vmem:[%s2025 + $0x148] sm:$0xff]
    %v2068 = vld [vmem:[%s2025 + $0x150] sm:$0xff]
    %v2069 = vld [vmem:[%s2025 + $0x158] sm:$0xff]
    %v2070 = vld [vmem:[%s2025 + $0x160] sm:$0xff]
    %v2071 = vld [vmem:[%s2025 + $0x168] sm:$0xff]
    %v2072 = vld [vmem:[%s2025 + $0x170] sm:$0xff]
    %v2073 = vld [vmem:[%s2025 + $0x178] sm:$0xff]
    %v2074 = vld [vmem:[%s2025 + $0x180] sm:$0xff]
    %v2075 = vld [vmem:[%s2025 + $0x188] sm:$0xff]
    %v2076 = vld [vmem:[%s2025 + $0x190] sm:$0xff]
    %v2077 = vld [vmem:[%s2025 + $0x198] sm:$0xff]
    %v2078 = vld [vmem:[%s2025 + $0x1a0] sm:$0xff]
    %v2079 = vld [vmem:[%s2025 + $0x1a8] sm:$0xff]
    %v2080 = vld [vmem:[%s2025 + $0x1b0] sm:$0xff]
    %v2081 = vld [vmem:[%s2025 + $0x1b8] sm:$0xff]
    %v2082 = vld [vmem:[%s2025 + $0x1c0] sm:$0xff]
    %v2083 = vld [vmem:[%s2025 + $0x1c8] sm:$0xff]
    %v2084 = vld [vmem:[%s2025 + $0x1d0] sm:$0xff]
    %v2085 = vld [vmem:[%s2025 + $0x1d8] sm:$0xff]
    %v2086 = vld [vmem:[%s2025 + $0x1e0] sm:$0xff]
    %v2087 = vld [vmem:[%s2025 + $0x1e8] sm:$0xff]
    %v2088 = vld [vmem:[%s2025 + $0x1f0] sm:$0xff]
    %v2089 = vld [vmem:[%s2025 + $0x1f8] sm:$0xff]
    %2090 = vmatprep.subr.mxu0 %v2027
    %2091 = vmatpush1.msra.mxu0 %v2026
    %2092 = vmatprep.subr.mxu0 %v2029
    %2093 = vmatpush1.msra.mxu0 %v2028
    %2094 = vmatprep.subr.mxu0 %v2031
    %2095 = vmatpush1.msra.mxu0 %v2030
    %2096 = vmatprep.subr.mxu0 %v2033
    %2097 = vmatpush1.msra.mxu0 %v2032
    %2098 = vmatprep.subr.mxu0 %v2035
    %2099 = vmatpush1.msra.mxu0 %v2034
    %2100 = vmatprep.subr.mxu0 %v2037
    %2101 = vmatpush1.msra.mxu0 %v2036
    %2102 = vmatprep.subr.mxu0 %v2039
    %2103 = vmatpush1.msra.mxu0 %v2038
    %2104 = vmatprep.subr.mxu0 %v2041
    %2105 = vmatpush1.msra.mxu0 %v2040
    %2106 = vmatprep.subr.mxu0 %v2043
    %2107 = vmatpush1.msra.mxu0 %v2042
    %2108 = vmatprep.subr.mxu0 %v2045
    %2109 = vmatpush1.msra.mxu0 %v2044
    %2110 = vmatprep.subr.mxu0 %v2047
    %2111 = vmatpush1.msra.mxu0 %v2046
    %2112 = vmatprep.subr.mxu0 %v2049
    %2113 = vmatpush1.msra.mxu0 %v2048
    %2114 = vmatprep.subr.mxu0 %v2051
    %2115 = vmatpush1.msra.mxu0 %v2050
    %2116 = vmatprep.subr.mxu0 %v2053
    %2117 = vmatpush1.msra.mxu0 %v2052
    %2118 = vmatprep.subr.mxu0 %v2055
    %2119 = vmatpush1.msra.mxu0 %v2054
    %2120 = vmatprep.subr.mxu0 %v2057
    %2121 = vmatpush1.msra.mxu0 %v2056
    %2122 = vmatprep.subr.mxu0 %v2059
    %2123 = vmatpush1.msra.mxu0 %v2058
    %2124 = vmatprep.subr.mxu0 %v2061
    %2125 = vmatpush1.msra.mxu0 %v2060
    %2126 = vmatprep.subr.mxu0 %v2063
    %2127 = vmatpush1.msra.mxu0 %v2062
    %2128 = vmatprep.subr.mxu0 %v2065
    %2129 = vmatpush1.msra.mxu0 %v2064
    %2130 = vmatprep.subr.mxu0 %v2067
    %2131 = vmatpush1.msra.mxu0 %v2066
    %2132 = vmatprep.subr.mxu0 %v2069
    %2133 = vmatpush1.msra.mxu0 %v2068
    %2134 = vmatprep.subr.mxu0 %v2071
    %2135 = vmatpush1.msra.mxu0 %v2070
    %2136 = vmatprep.subr.mxu0 %v2073
    %2137 = vmatpush1.msra.mxu0 %v2072
    %2138 = vmatprep.subr.mxu0 %v2075
    %2139 = vmatpush1.msra.mxu0 %v2074
    %2140 = vmatprep.subr.mxu0 %v2077
    %2141 = vmatpush1.msra.mxu0 %v2076
    %2142 = vmatprep.subr.mxu0 %v2079
    %2143 = vmatpush1.msra.mxu0 %v2078
    %2144 = vmatprep.subr.mxu0 %v2081
    %2145 = vmatpush1.msra.mxu0 %v2080
    %2146 = vmatprep.subr.mxu0 %v2083
    %2147 = vmatpush1.msra.mxu0 %v2082
    %2148 = vmatprep.subr.mxu0 %v2085
    %2149 = vmatpush1.msra.mxu0 %v2084
    %2150 = vmatprep.subr.mxu0 %v2087
    %2151 = vmatpush1.msra.mxu0 %v2086
    %2152 = vmatprep.subr.mxu0 %v2089
    %2153 = vmatpush1.msra.mxu0 %v2088
    %2154 = vmatprep.mubr.f32.mxu0 %v1874
    %2155 = vmatmul.mubr.f32.gmra.mrb[0].mxu0 %v1873
    %v2156 = vpop.f32.mrb[0].mxu0
    %v2157 = vadd.f32 0.0, %v2156
    %v2158 = vpop.f32.mrb[0].mxu0
    %v2159 = vadd.f32 0.0, %v2158
    %2160 = vmatprep.mubr.f32.mxu0 %v1876
    %2161 = vmatmul.mubr.f32.gmra.mrb[0].mxu0 %v1875
    %v2162 = vpop.f32.mrb[0].mxu0
    %v2163 = vadd.f32 0.0, %v2162
    %v2164 = vpop.f32.mrb[0].mxu0
    %v2165 = vadd.f32 0.0, %v2164
    %2166 = vdwg.mxu0
    %2167 = vmatprep.subr.mxu0 %v1962
    %2168 = vmatpush1.msra.mxu0 %v1961
    %2169 = vmatprep.subr.mxu0 %v1964
    %2170 = vmatpush1.msra.mxu0 %v1963
    %2171 = vmatprep.subr.mxu0 %v1966
    %2172 = vmatpush1.msra.mxu0 %v1965
    %2173 = vmatprep.subr.mxu0 %v1968
    %2174 = vmatpush1.msra.mxu0 %v1967
    %2175 = vmatprep.subr.mxu0 %v1970
    %2176 = vmatpush1.msra.mxu0 %v1969
    %2177 = vmatprep.subr.mxu0 %v1972
    %2178 = vmatpush1.msra.mxu0 %v1971
    %2179 = vmatprep.subr.mxu0 %v1974
    %2180 = vmatpush1.msra.mxu0 %v1973
    %2181 = vmatprep.subr.mxu0 %v1976
    %2182 = vmatpush1.msra.mxu0 %v1975
    %2183 = vmatprep.subr.mxu0 %v1978
    %2184 = vmatpush1.msra.mxu0 %v1977
    %2185 = vmatprep.subr.mxu0 %v1980
    %2186 = vmatpush1.msra.mxu0 %v1979
    %2187 = vmatprep.subr.mxu0 %v1982
    %2188 = vmatpush1.msra.mxu0 %v1981
    %2189 = vmatprep.subr.mxu0 %v1984
    %2190 = vmatpush1.msra.mxu0 %v1983
    %2191 = vmatprep.subr.mxu0 %v1986
    %2192 = vmatpush1.msra.mxu0 %v1985
    %2193 = vmatprep.subr.mxu0 %v1988
    %2194 = vmatpush1.msra.mxu0 %v1987
    %2195 = vmatprep.subr.mxu0 %v1990
    %2196 = vmatpush1.msra.mxu0 %v1989
    %2197 = vmatprep.subr.mxu0 %v1992
    %2198 = vmatpush1.msra.mxu0 %v1991
    %2199 = vmatprep.subr.mxu0 %v1994
    %2200 = vmatpush1.msra.mxu0 %v1993
    %2201 = vmatprep.subr.mxu0 %v1996
    %2202 = vmatpush1.msra.mxu0 %v1995
    %2203 = vmatprep.subr.mxu0 %v1998
    %2204 = vmatpush1.msra.mxu0 %v1997
    %2205 = vmatprep.subr.mxu0 %v2000
    %2206 = vmatpush1.msra.mxu0 %v1999
    %2207 = vmatprep.subr.mxu0 %v2002
    %2208 = vmatpush1.msra.mxu0 %v2001
    %2209 = vmatprep.subr.mxu0 %v2004
    %2210 = vmatpush1.msra.mxu0 %v2003
    %2211 = vmatprep.subr.mxu0 %v2006
    %2212 = vmatpush1.msra.mxu0 %v2005
    %2213 = vmatprep.subr.mxu0 %v2008
    %2214 = vmatpush1.msra.mxu0 %v2007
    %2215 = vmatprep.subr.mxu0 %v2010
    %2216 = vmatpush1.msra.mxu0 %v2009
    %2217 = vmatprep.subr.mxu0 %v2012
    %2218 = vmatpush1.msra.mxu0 %v2011
    %2219 = vmatprep.subr.mxu0 %v2014
    %2220 = vmatpush1.msra.mxu0 %v2013
    %2221 = vmatprep.subr.mxu0 %v2016
    %2222 = vmatpush1.msra.mxu0 %v2015
    %2223 = vmatprep.subr.mxu0 %v2018
    %2224 = vmatpush1.msra.mxu0 %v2017
    %2225 = vmatprep.subr.mxu0 %v2020
    %2226 = vmatpush1.msra.mxu0 %v2019
    %2227 = vmatprep.subr.mxu0 %v2022
    %2228 = vmatpush1.msra.mxu0 %v2021
    %2229 = vmatprep.subr.mxu0 %v2024
    %2230 = vmatpush1.msra.mxu0 %v2023
    %2231 = vmatprep.mubr.f32.mxu0 %v1953
    %2232 = vmatmul.mubr.f32.gmra.mrb[0].mxu0 %v1951
    %v2233 = vpop.f32.mrb[0].mxu0
    %v2234 = vadd.f32 %v2157, %v2233
    %v2235 = vpop.f32.mrb[0].mxu0
    %v2236 = vadd.f32 %v2159, %v2235
    %2237 = vmatprep.mubr.f32.mxu0 %v1959
    %2238 = vmatmul.mubr.f32.gmra.mrb[0].mxu0 %v1957
    %v2239 = vpop.f32.mrb[0].mxu0
    %v2240 = vadd.f32 %v2163, %v2239
    %v2241 = vpop.f32.mrb[0].mxu0
    %v2242 = vadd.f32 %v2165, %v2241
    %2243 = vdwg.mxu0
    %v2245 = vsel %vm1877, %v128, 0
    %v2248 = vsel %vm1877, %v129, 0
    %2250 = vmatprep.subr.mxu0 %v1874
    %2251 = vmatpush1.msra.mxu0 %v1873
    %2252 = vmatprep.subr.mxu0 %v1876
    %2253 = vmatpush1.msra.mxu0 %v1875
    %2254 = vmatprep.subr.mxu0 0.0
    %2255 = vmatpush1.msra.mxu0 0.0
    %2256 = vmatprep.subr.mxu0 0.0
    %2257 = vmatpush1.msra.mxu0 0.0
    %2258 = vmatprep.subr.mxu0 0.0
    %2259 = vmatpush1.msra.mxu0 0.0
    %2260 = vmatprep.subr.mxu0 0.0
    %2261 = vmatpush1.msra.mxu0 0.0
    %2262 = vmatprep.subr.mxu0 0.0
    %2263 = vmatpush1.msra.mxu0 0.0
    %2264 = vmatprep.subr.mxu0 0.0
    %2265 = vmatpush1.msra.mxu0 0.0
    %2266 = vmatprep.subr.mxu0 0.0
    %2267 = vmatpush1.msra.mxu0 0.0
    %2268 = vmatprep.subr.mxu0 0.0
    %2269 = vmatpush1.msra.mxu0 0.0
    %2270 = vmatprep.subr.mxu0 0.0
    %2271 = vmatpush1.msra.mxu0 0.0
    %2272 = vmatprep.subr.mxu0 0.0
    %2273 = vmatpush1.msra.mxu0 0.0
    %2274 = vmatprep.subr.mxu0 0.0
    %2275 = vmatpush1.msra.mxu0 0.0
    %2276 = vmatprep.subr.mxu0 0.0
    %2277 = vmatpush1.msra.mxu0 0.0
    %2278 = vmatprep.subr.mxu0 0.0
    %2279 = vmatpush1.msra.mxu0 0.0
    %2280 = vmatprep.subr.mxu0 0.0
    %2281 = vmatpush1.msra.mxu0 0.0
    %2282 = vmatprep.subr.mxu0 0.0
    %2283 = vmatpush1.msra.mxu0 0.0
    %2284 = vmatprep.subr.mxu0 0.0
    %2285 = vmatpush1.msra.mxu0 0.0
    %2286 = vmatprep.subr.mxu0 0.0
    %2287 = vmatpush1.msra.mxu0 0.0
    %2288 = vmatprep.subr.mxu0 0.0
    %2289 = vmatpush1.msra.mxu0 0.0
    %2290 = vmatprep.subr.mxu0 0.0
    %2291 = vmatpush1.msra.mxu0 0.0
    %2292 = vmatprep.subr.mxu0 0.0
    %2293 = vmatpush1.msra.mxu0 0.0
    %2294 = vmatprep.subr.mxu0 0.0
    %2295 = vmatpush1.msra.mxu0 0.0
    %2296 = vmatprep.subr.mxu0 0.0
    %2297 = vmatpush1.msra.mxu0 0.0
    %2298 = vmatprep.subr.mxu0 0.0
    %2299 = vmatpush1.msra.mxu0 0.0
    %2300 = vmatprep.subr.mxu0 0.0
    %2301 = vmatpush1.msra.mxu0 0.0
    %2302 = vmatprep.subr.mxu0 0.0
    %2303 = vmatpush1.msra.mxu0 0.0
    %2304 = vmatprep.subr.mxu0 0.0
    %2305 = vmatpush1.msra.mxu0 0.0
    %2306 = vmatprep.subr.mxu0 0.0
    %2307 = vmatpush1.msra.mxu0 0.0
    %2308 = vmatprep.subr.mxu0 0.0
    %2309 = vmatpush1.msra.mxu0 0.0
    %2310 = vmatprep.subr.mxu0 0.0
    %2311 = vmatpush1.msra.mxu0 0.0
    %2312 = vmatprep.subr.mxu0 0.0
    %2313 = vmatpush1.msra.mxu0 0.0
    %2314 = vmatprep.mubr.f32.mxu0 0.0
    %2315 = vmatmul.mubr.f32.gmra.mrb[0].mxu0 %v2245
    %v2316 = vpop.f32.mrb[0].mxu0
    %v2317 = vadd.f32 0.0, %v2316
    %v2318 = vpop.f32.mrb[0].mxu0
    %v2319 = vadd.f32 0.0, %v2318
    %2320 = vmatprep.mubr.f32.mxu0 0.0
    %2321 = vmatmul.mubr.f32.gmra.mrb[0].mxu0 %v2248
    %v2322 = vpop.f32.mrb[0].mxu0
    %v2323 = vadd.f32 0.0, %v2322
    %v2324 = vpop.f32.mrb[0].mxu0
    %v2325 = vadd.f32 0.0, %v2324
    %2326 = vdwg.mxu0
    %s2327 = scalar_lea.vmem [#allocation4], 1024
    %v2328 = vld [vmem:[%s2327] sm:$0xff]
    %v2329 = vld [vmem:[%s2327 + $0x8] sm:$0xff]
    %v2330 = vld [vmem:[%s2327 + $0x10] sm:$0xff]
    %v2331 = vld [vmem:[%s2327 + $0x18] sm:$0xff]
    %v2332 = vld [vmem:[%s2327 + $0x20] sm:$0xff]
    %v2333 = vld [vmem:[%s2327 + $0x28] sm:$0xff]
    %v2334 = vld [vmem:[%s2327 + $0x30] sm:$0xff]
    %v2335 = vld [vmem:[%s2327 + $0x38] sm:$0xff]
    %v2336 = vld [vmem:[%s2327 + $0x40] sm:$0xff]
    %v2337 = vld [vmem:[%s2327 + $0x48] sm:$0xff]
    %v2338 = vld [vmem:[%s2327 + $0x50] sm:$0xff]
    %v2339 = vld [vmem:[%s2327 + $0x58] sm:$0xff]
    %v2340 = vld [vmem:[%s2327 + $0x60] sm:$0xff]
    %v2341 = vld [vmem:[%s2327 + $0x68] sm:$0xff]
    %v2342 = vld [vmem:[%s2327 + $0x70] sm:$0xff]
    %v2343 = vld [vmem:[%s2327 + $0x78] sm:$0xff]
    %v2344 = vld [vmem:[%s2327 + $0x80] sm:$0xff]
    %v2345 = vld [vmem:[%s2327 + $0x88] sm:$0xff]
    %v2346 = vld [vmem:[%s2327 + $0x90] sm:$0xff]
    %v2347 = vld [vmem:[%s2327 + $0x98] sm:$0xff]
    %v2348 = vld [vmem:[%s2327 + $0xa0] sm:$0xff]
    %v2349 = vld [vmem:[%s2327 + $0xa8] sm:$0xff]
    %v2350 = vld [vmem:[%s2327 + $0xb0] sm:$0xff]
    %v2351 = vld [vmem:[%s2327 + $0xb8] sm:$0xff]
    %v2352 = vld [vmem:[%s2327 + $0xc0] sm:$0xff]
    %v2353 = vld [vmem:[%s2327 + $0xc8] sm:$0xff]
    %v2354 = vld [vmem:[%s2327 + $0xd0] sm:$0xff]
    %v2355 = vld [vmem:[%s2327 + $0xd8] sm:$0xff]
    %v2356 = vld [vmem:[%s2327 + $0xe0] sm:$0xff]
    %v2357 = vld [vmem:[%s2327 + $0xe8] sm:$0xff]
    %v2358 = vld [vmem:[%s2327 + $0xf0] sm:$0xff]
    %v2359 = vld [vmem:[%s2327 + $0xf8] sm:$0xff]
    %v2360 = vld [vmem:[%s2327 + $0x100] sm:$0xff]
    %v2361 = vld [vmem:[%s2327 + $0x108] sm:$0xff]
    %v2362 = vld [vmem:[%s2327 + $0x110] sm:$0xff]
    %v2363 = vld [vmem:[%s2327 + $0x118] sm:$0xff]
    %v2364 = vld [vmem:[%s2327 + $0x120] sm:$0xff]
    %v2365 = vld [vmem:[%s2327 + $0x128] sm:$0xff]
    %v2366 = vld [vmem:[%s2327 + $0x130] sm:$0xff]
    %v2367 = vld [vmem:[%s2327 + $0x138] sm:$0xff]
    %v2368 = vld [vmem:[%s2327 + $0x140] sm:$0xff]
    %v2369 = vld [vmem:[%s2327 + $0x148] sm:$0xff]
    %v2370 = vld [vmem:[%s2327 + $0x150] sm:$0xff]
    %v2371 = vld [vmem:[%s2327 + $0x158] sm:$0xff]
    %v2372 = vld [vmem:[%s2327 + $0x160] sm:$0xff]
    %v2373 = vld [vmem:[%s2327 + $0x168] sm:$0xff]
    %v2374 = vld [vmem:[%s2327 + $0x170] sm:$0xff]
    %v2375 = vld [vmem:[%s2327 + $0x178] sm:$0xff]
    %v2376 = vld [vmem:[%s2327 + $0x180] sm:$0xff]
    %v2377 = vld [vmem:[%s2327 + $0x188] sm:$0xff]
    %v2378 = vld [vmem:[%s2327 + $0x190] sm:$0xff]
    %v2379 = vld [vmem:[%s2327 + $0x198] sm:$0xff]
    %v2380 = vld [vmem:[%s2327 + $0x1a0] sm:$0xff]
    %v2381 = vld [vmem:[%s2327 + $0x1a8] sm:$0xff]
    %v2382 = vld [vmem:[%s2327 + $0x1b0] sm:$0xff]
    %v2383 = vld [vmem:[%s2327 + $0x1b8] sm:$0xff]
    %v2384 = vld [vmem:[%s2327 + $0x1c0] sm:$0xff]
    %v2385 = vld [vmem:[%s2327 + $0x1c8] sm:$0xff]
    %v2386 = vld [vmem:[%s2327 + $0x1d0] sm:$0xff]
    %v2387 = vld [vmem:[%s2327 + $0x1d8] sm:$0xff]
    %v2388 = vld [vmem:[%s2327 + $0x1e0] sm:$0xff]
    %v2389 = vld [vmem:[%s2327 + $0x1e8] sm:$0xff]
    %v2390 = vld [vmem:[%s2327 + $0x1f0] sm:$0xff]
    %v2391 = vld [vmem:[%s2327 + $0x1f8] sm:$0xff]
    %2392 = vmatprep.subr.mxu0 %v2329
    %2393 = vmatpush1.msra.mxu0 %v2328
    %2394 = vmatprep.subr.mxu0 %v2331
    %2395 = vmatpush1.msra.mxu0 %v2330
    %2396 = vmatprep.subr.mxu0 %v2333
    %2397 = vmatpush1.msra.mxu0 %v2332
    %2398 = vmatprep.subr.mxu0 %v2335
    %2399 = vmatpush1.msra.mxu0 %v2334
    %2400 = vmatprep.subr.mxu0 %v2337
    %2401 = vmatpush1.msra.mxu0 %v2336
    %2402 = vmatprep.subr.mxu0 %v2339
    %2403 = vmatpush1.msra.mxu0 %v2338
    %2404 = vmatprep.subr.mxu0 %v2341
    %2405 = vmatpush1.msra.mxu0 %v2340
    %2406 = vmatprep.subr.mxu0 %v2343
    %2407 = vmatpush1.msra.mxu0 %v2342
    %2408 = vmatprep.subr.mxu0 %v2345
    %2409 = vmatpush1.msra.mxu0 %v2344
    %2410 = vmatprep.subr.mxu0 %v2347
    %2411 = vmatpush1.msra.mxu0 %v2346
    %2412 = vmatprep.subr.mxu0 %v2349
    %2413 = vmatpush1.msra.mxu0 %v2348
    %2414 = vmatprep.subr.mxu0 %v2351
    %2415 = vmatpush1.msra.mxu0 %v2350
    %2416 = vmatprep.subr.mxu0 %v2353
    %2417 = vmatpush1.msra.mxu0 %v2352
    %2418 = vmatprep.subr.mxu0 %v2355
    %2419 = vmatpush1.msra.mxu0 %v2354
    %2420 = vmatprep.subr.mxu0 %v2357
    %2421 = vmatpush1.msra.mxu0 %v2356
    %2422 = vmatprep.subr.mxu0 %v2359
    %2423 = vmatpush1.msra.mxu0 %v2358
    %2424 = vmatprep.subr.mxu0 %v2361
    %2425 = vmatpush1.msra.mxu0 %v2360
    %2426 = vmatprep.subr.mxu0 %v2363
    %2427 = vmatpush1.msra.mxu0 %v2362
    %2428 = vmatprep.subr.mxu0 %v2365
    %2429 = vmatpush1.msra.mxu0 %v2364
    %2430 = vmatprep.subr.mxu0 %v2367
    %2431 = vmatpush1.msra.mxu0 %v2366
    %2432 = vmatprep.subr.mxu0 %v2369
    %2433 = vmatpush1.msra.mxu0 %v2368
    %2434 = vmatprep.subr.mxu0 %v2371
    %2435 = vmatpush1.msra.mxu0 %v2370
    %2436 = vmatprep.subr.mxu0 %v2373
    %2437 = vmatpush1.msra.mxu0 %v2372
    %2438 = vmatprep.subr.mxu0 %v2375
    %2439 = vmatpush1.msra.mxu0 %v2374
    %2440 = vmatprep.subr.mxu0 %v2377
    %2441 = vmatpush1.msra.mxu0 %v2376
    %2442 = vmatprep.subr.mxu0 %v2379
    %2443 = vmatpush1.msra.mxu0 %v2378
    %2444 = vmatprep.subr.mxu0 %v2381
    %2445 = vmatpush1.msra.mxu0 %v2380
    %2446 = vmatprep.subr.mxu0 %v2383
    %2447 = vmatpush1.msra.mxu0 %v2382
    %2448 = vmatprep.subr.mxu0 %v2385
    %2449 = vmatpush1.msra.mxu0 %v2384
    %2450 = vmatprep.subr.mxu0 %v2387
    %2451 = vmatpush1.msra.mxu0 %v2386
    %2452 = vmatprep.subr.mxu0 %v2389
    %2453 = vmatpush1.msra.mxu0 %v2388
    %2454 = vmatprep.subr.mxu0 %v2391
    %2455 = vmatpush1.msra.mxu0 %v2390
    %2456 = vmatprep.mubr.f32.mxu0 %v2319
    %2457 = vmatmul.mubr.f32.gmra.mrb[0].mxu0 %v2317
    %v2458 = vpop.f32.mrb[0].mxu0
    %v2459 = vadd.f32 0.0, %v2458
    %v2460 = vpop.f32.mrb[0].mxu0
    %v2461 = vadd.f32 0.0, %v2460
    %2462 = vmatprep.mubr.f32.mxu0 %v2325
    %2463 = vmatmul.mubr.f32.gmra.mrb[0].mxu0 %v2323
    %v2464 = vpop.f32.mrb[0].mxu0
    %v2465 = vadd.f32 0.0, %v2464
    %v2466 = vpop.f32.mrb[0].mxu0
    %v2467 = vadd.f32 0.0, %v2466
    %2468 = vdwg.mxu0
    %v2469 = vadd.f32 %v2234, %v2459
    %v2470 = vadd.f32 %v2236, %v2461
    %v2471 = vadd.f32 %v2240, %v2465
    %v2472 = vadd.f32 %v2242, %v2467
    %v2473 = vld [vmem:[%s6] sm:$0x3]
    %v2475 = vlaneseq
    %v2476 = vshrl.u32 %v2475, 7
    %v2477 = vsub.s32 0, %v2476
    %v2478 = vrot.slane %v2473, %v2477
    %v2479 = vlaneseq
    %v2480 = vshrl.u32 %v2479, 7
    %v2481 = vsub.s32 1, %v2480
    %v2482 = vrot.slane %v2473, %v2481
    %v2485 = vadd.f32 %v2469, %v2478
    %v2486 = vadd.f32 %v2470, %v2482
    %v2487 = vadd.f32 %v2471, %v2478
    %v2488 = vadd.f32 %v2472, %v2482
    %v2489 = vld [vmem:[%s7] sm:$0x3]
    %v2490 = vld [vmem:[%s8] sm:$0x3]
    %vm2491 = vcmp.lt.s32.totalorder %v118, 0
    %v2492 = vsub.s32 0, %v118
    %v2493 = vsel %vm2491, %v2492, %v118
    %v2494 = vshrl.u32 %v2493, 7
    %v2495 = vand.u32 %v2493, 127
    %v2496 = vsub.s32 0, %v2495
    %v2497 = vsel %vm2491, %v2496, %v2495
    %vm2498 = vcmp.lt.s32.totalorder %v119, 0
    %v2499 = vsub.s32 0, %v119
    %v2500 = vsel %vm2498, %v2499, %v119
    %v2501 = vshrl.u32 %v2500, 7
    %v2502 = vand.u32 %v2500, 127
    %v2503 = vsub.s32 0, %v2502
    %v2504 = vsel %vm2498, %v2503, %v2502
    %vm2505 = vcmp.lt.s32.totalorder %v990, 0
    %v2506 = vsub.s32 0, %v990
    %v2507 = vsel %vm2505, %v2506, %v990
    %v2508 = vshrl.u32 %v2507, 7
    %v2509 = vand.u32 %v2507, 127
    %v2510 = vsub.s32 0, %v2509
    %v2511 = vsel %vm2505, %v2510, %v2509
    %vm2512 = vcmp.lt.s32.totalorder %v991, 0
    %v2513 = vsub.s32 0, %v991
    %v2514 = vsel %vm2512, %v2513, %v991
    %v2515 = vshrl.u32 %v2514, 7
    %v2516 = vand.u32 %v2514, 127
    %v2517 = vsub.s32 0, %v2516
    %v2518 = vsel %vm2512, %v2517, %v2516
    %vm2519 = vcmp.lt.s32.totalorder %v992, 0
    %v2520 = vsub.s32 0, %v992
    %v2521 = vsel %vm2519, %v2520, %v992
    %v2522 = vshrl.u32 %v2521, 7
    %v2523 = vand.u32 %v2521, 127
    %v2524 = vsub.s32 0, %v2523
    %v2525 = vsel %vm2519, %v2524, %v2523
    %vm2526 = vcmp.lt.s32.totalorder %v993, 0
    %v2527 = vsub.s32 0, %v993
    %v2528 = vsel %vm2526, %v2527, %v993
    %v2529 = vshrl.u32 %v2528, 7
    %v2530 = vand.u32 %v2528, 127
    %v2531 = vsub.s32 0, %v2530
    %v2532 = vsel %vm2526, %v2531, %v2530
    %vm2533 = vcmp.lt.s32.totalorder %v994, 0
    %v2534 = vsub.s32 0, %v994
    %v2535 = vsel %vm2533, %v2534, %v994
    %v2536 = vshrl.u32 %v2535, 7
    %v2537 = vand.u32 %v2535, 127
    %v2538 = vsub.s32 0, %v2537
    %v2539 = vsel %vm2533, %v2538, %v2537
    %vm2540 = vcmp.lt.s32.totalorder %v995, 0
    %v2541 = vsub.s32 0, %v995
    %v2542 = vsel %vm2540, %v2541, %v995
    %v2543 = vshrl.u32 %v2542, 7
    %v2544 = vand.u32 %v2542, 127
    %v2545 = vsub.s32 0, %v2544
    %v2546 = vsel %vm2540, %v2545, %v2544
    %vm2547 = vcmp.lt.s32.totalorder %v996, 0
    %v2548 = vsub.s32 0, %v996
    %v2549 = vsel %vm2547, %v2548, %v996
    %v2550 = vshrl.u32 %v2549, 7
    %v2551 = vand.u32 %v2549, 127
    %v2552 = vsub.s32 0, %v2551
    %v2553 = vsel %vm2547, %v2552, %v2551
    %vm2554 = vcmp.lt.s32.totalorder %v997, 0
    %v2555 = vsub.s32 0, %v997
    %v2556 = vsel %vm2554, %v2555, %v997
    %v2557 = vshrl.u32 %v2556, 7
    %v2558 = vand.u32 %v2556, 127
    %v2559 = vsub.s32 0, %v2558
    %v2560 = vsel %vm2554, %v2559, %v2558
    %vm2561 = vcmp.lt.s32.totalorder %v998, 0
    %v2562 = vsub.s32 0, %v998
    %v2563 = vsel %vm2561, %v2562, %v998
    %v2564 = vshrl.u32 %v2563, 7
    %v2565 = vand.u32 %v2563, 127
    %v2566 = vsub.s32 0, %v2565
    %v2567 = vsel %vm2561, %v2566, %v2565
    %vm2568 = vcmp.lt.s32.totalorder %v999, 0
    %v2569 = vsub.s32 0, %v999
    %v2570 = vsel %vm2568, %v2569, %v999
    %v2571 = vshrl.u32 %v2570, 7
    %v2572 = vand.u32 %v2570, 127
    %v2573 = vsub.s32 0, %v2572
    %v2574 = vsel %vm2568, %v2573, %v2572
    %vm2575 = vcmp.lt.s32.totalorder %v1000, 0
    %v2576 = vsub.s32 0, %v1000
    %v2577 = vsel %vm2575, %v2576, %v1000
    %v2578 = vshrl.u32 %v2577, 7
    %v2579 = vand.u32 %v2577, 127
    %v2580 = vsub.s32 0, %v2579
    %v2581 = vsel %vm2575, %v2580, %v2579
    %vm2582 = vcmp.lt.s32.totalorder %v1001, 0
    %v2583 = vsub.s32 0, %v1001
    %v2584 = vsel %vm2582, %v2583, %v1001
    %v2585 = vshrl.u32 %v2584, 7
    %v2586 = vand.u32 %v2584, 127
    %v2587 = vsub.s32 0, %v2586
    %v2588 = vsel %vm2582, %v2587, %v2586
    %vm2589 = vcmp.lt.s32.totalorder %v1002, 0
    %v2590 = vsub.s32 0, %v1002
    %v2591 = vsel %vm2589, %v2590, %v1002
    %v2592 = vshrl.u32 %v2591, 7
    %v2593 = vand.u32 %v2591, 127
    %v2594 = vsub.s32 0, %v2593
    %v2595 = vsel %vm2589, %v2594, %v2593
    %vm2596 = vcmp.lt.s32.totalorder %v1003, 0
    %v2597 = vsub.s32 0, %v1003
    %v2598 = vsel %vm2596, %v2597, %v1003
    %v2599 = vshrl.u32 %v2598, 7
    %v2600 = vand.u32 %v2598, 127
    %v2601 = vsub.s32 0, %v2600
    %v2602 = vsel %vm2596, %v2601, %v2600
    %vm2603 = vcmp.lt.s32.totalorder %v1004, 0
    %v2604 = vsub.s32 0, %v1004
    %v2605 = vsel %vm2603, %v2604, %v1004
    %v2606 = vshrl.u32 %v2605, 7
    %v2607 = vand.u32 %v2605, 127
    %v2608 = vsub.s32 0, %v2607
    %v2609 = vsel %vm2603, %v2608, %v2607
    %vm2610 = vcmp.lt.s32.totalorder %v1005, 0
    %v2611 = vsub.s32 0, %v1005
    %v2612 = vsel %vm2610, %v2611, %v1005
    %v2613 = vshrl.u32 %v2612, 7
    %v2614 = vand.u32 %v2612, 127
    %v2615 = vsub.s32 0, %v2614
    %v2616 = vsel %vm2610, %v2615, %v2614
    %vm2617 = vcmp.lt.s32.totalorder %v1006, 0
    %v2618 = vsub.s32 0, %v1006
    %v2619 = vsel %vm2617, %v2618, %v1006
    %v2620 = vshrl.u32 %v2619, 7
    %v2621 = vand.u32 %v2619, 127
    %v2622 = vsub.s32 0, %v2621
    %v2623 = vsel %vm2617, %v2622, %v2621
    %vm2624 = vcmp.lt.s32.totalorder %v1007, 0
    %v2625 = vsub.s32 0, %v1007
    %v2626 = vsel %vm2624, %v2625, %v1007
    %v2627 = vshrl.u32 %v2626, 7
    %v2628 = vand.u32 %v2626, 127
    %v2629 = vsub.s32 0, %v2628
    %v2630 = vsel %vm2624, %v2629, %v2628
    %vm2631 = vcmp.lt.s32.totalorder %v1008, 0
    %v2632 = vsub.s32 0, %v1008
    %v2633 = vsel %vm2631, %v2632, %v1008
    %v2634 = vshrl.u32 %v2633, 7
    %v2635 = vand.u32 %v2633, 127
    %v2636 = vsub.s32 0, %v2635
    %v2637 = vsel %vm2631, %v2636, %v2635
    %vm2638 = vcmp.lt.s32.totalorder %v1009, 0
    %v2639 = vsub.s32 0, %v1009
    %v2640 = vsel %vm2638, %v2639, %v1009
    %v2641 = vshrl.u32 %v2640, 7
    %v2642 = vand.u32 %v2640, 127
    %v2643 = vsub.s32 0, %v2642
    %v2644 = vsel %vm2638, %v2643, %v2642
    %vm2645 = vcmp.lt.s32.totalorder %v1010, 0
    %v2646 = vsub.s32 0, %v1010
    %v2647 = vsel %vm2645, %v2646, %v1010
    %v2648 = vshrl.u32 %v2647, 7
    %v2649 = vand.u32 %v2647, 127
    %v2650 = vsub.s32 0, %v2649
    %v2651 = vsel %vm2645, %v2650, %v2649
    %vm2652 = vcmp.lt.s32.totalorder %v1011, 0
    %v2653 = vsub.s32 0, %v1011
    %v2654 = vsel %vm2652, %v2653, %v1011
    %v2655 = vshrl.u32 %v2654, 7
    %v2656 = vand.u32 %v2654, 127
    %v2657 = vsub.s32 0, %v2656
    %v2658 = vsel %vm2652, %v2657, %v2656
    %vm2659 = vcmp.lt.s32.totalorder %v1012, 0
    %v2660 = vsub.s32 0, %v1012
    %v2661 = vsel %vm2659, %v2660, %v1012
    %v2662 = vshrl.u32 %v2661, 7
    %v2663 = vand.u32 %v2661, 127
    %v2664 = vsub.s32 0, %v2663
    %v2665 = vsel %vm2659, %v2664, %v2663
    %vm2666 = vcmp.lt.s32.totalorder %v1013, 0
    %v2667 = vsub.s32 0, %v1013
    %v2668 = vsel %vm2666, %v2667, %v1013
    %v2669 = vshrl.u32 %v2668, 7
    %v2670 = vand.u32 %v2668, 127
    %v2671 = vsub.s32 0, %v2670
    %v2672 = vsel %vm2666, %v2671, %v2670
    %vm2673 = vcmp.lt.s32.totalorder %v1014, 0
    %v2674 = vsub.s32 0, %v1014
    %v2675 = vsel %vm2673, %v2674, %v1014
    %v2676 = vshrl.u32 %v2675, 7
    %v2677 = vand.u32 %v2675, 127
    %v2678 = vsub.s32 0, %v2677
    %v2679 = vsel %vm2673, %v2678, %v2677
    %vm2680 = vcmp.lt.s32.totalorder %v1015, 0
    %v2681 = vsub.s32 0, %v1015
    %v2682 = vsel %vm2680, %v2681, %v1015
    %v2683 = vshrl.u32 %v2682, 7
    %v2684 = vand.u32 %v2682, 127
    %v2685 = vsub.s32 0, %v2684
    %v2686 = vsel %vm2680, %v2685, %v2684
    %vm2687 = vcmp.lt.s32.totalorder %v1016, 0
    %v2688 = vsub.s32 0, %v1016
    %v2689 = vsel %vm2687, %v2688, %v1016
    %v2690 = vshrl.u32 %v2689, 7
    %v2691 = vand.u32 %v2689, 127
    %v2692 = vsub.s32 0, %v2691
    %v2693 = vsel %vm2687, %v2692, %v2691
    %vm2694 = vcmp.lt.s32.totalorder %v1017, 0
    %v2695 = vsub.s32 0, %v1017
    %v2696 = vsel %vm2694, %v2695, %v1017
    %v2697 = vshrl.u32 %v2696, 7
    %v2698 = vand.u32 %v2696, 127
    %v2699 = vsub.s32 0, %v2698
    %v2700 = vsel %vm2694, %v2699, %v2698
    %vm2701 = vcmp.lt.s32.totalorder %v1018, 0
    %v2702 = vsub.s32 0, %v1018
    %v2703 = vsel %vm2701, %v2702, %v1018
    %v2704 = vshrl.u32 %v2703, 7
    %v2705 = vand.u32 %v2703, 127
    %v2706 = vsub.s32 0, %v2705
    %v2707 = vsel %vm2701, %v2706, %v2705
    %vm2708 = vcmp.lt.s32.totalorder %v1019, 0
    %v2709 = vsub.s32 0, %v1019
    %v2710 = vsel %vm2708, %v2709, %v1019
    %v2711 = vshrl.u32 %v2710, 7
    %v2712 = vand.u32 %v2710, 127
    %v2713 = vsub.s32 0, %v2712
    %v2714 = vsel %vm2708, %v2713, %v2712
    %vm2715 = vcmp.ne.s32.totalorder %v2497, 0
    %vm2716 = vcmp.ne.s32.totalorder %v2504, 0
    %vm2717 = vcmp.ne.s32.totalorder %v2511, 0
    %vm2718 = vcmp.ne.s32.totalorder %v2518, 0
    %vm2719 = vcmp.ne.s32.totalorder %v2525, 0
    %vm2720 = vcmp.ne.s32.totalorder %v2532, 0
    %vm2721 = vcmp.ne.s32.totalorder %v2539, 0
    %vm2722 = vcmp.ne.s32.totalorder %v2546, 0
    %vm2723 = vcmp.ne.s32.totalorder %v2553, 0
    %vm2724 = vcmp.ne.s32.totalorder %v2560, 0
    %vm2725 = vcmp.ne.s32.totalorder %v2567, 0
    %vm2726 = vcmp.ne.s32.totalorder %v2574, 0
    %vm2727 = vcmp.ne.s32.totalorder %v2581, 0
    %vm2728 = vcmp.ne.s32.totalorder %v2588, 0
    %vm2729 = vcmp.ne.s32.totalorder %v2595, 0
    %vm2730 = vcmp.ne.s32.totalorder %v2602, 0
    %vm2731 = vcmp.ne.s32.totalorder %v2609, 0
    %vm2732 = vcmp.ne.s32.totalorder %v2616, 0
    %vm2733 = vcmp.ne.s32.totalorder %v2623, 0
    %vm2734 = vcmp.ne.s32.totalorder %v2630, 0
    %vm2735 = vcmp.ne.s32.totalorder %v2637, 0
    %vm2736 = vcmp.ne.s32.totalorder %v2644, 0
    %vm2737 = vcmp.ne.s32.totalorder %v2651, 0
    %vm2738 = vcmp.ne.s32.totalorder %v2658, 0
    %vm2739 = vcmp.ne.s32.totalorder %v2665, 0
    %vm2740 = vcmp.ne.s32.totalorder %v2672, 0
    %vm2741 = vcmp.ne.s32.totalorder %v2679, 0
    %vm2742 = vcmp.ne.s32.totalorder %v2686, 0
    %vm2743 = vcmp.ne.s32.totalorder %v2693, 0
    %vm2744 = vcmp.ne.s32.totalorder %v2700, 0
    %vm2745 = vcmp.ne.s32.totalorder %v2707, 0
    %vm2746 = vcmp.ne.s32.totalorder %v2714, 0
    %vm2747 = vcmp.lt.s32.totalorder %v2497, 0
    %vm2748 = vcmp.lt.s32.totalorder %v2504, 0
    %vm2749 = vcmp.lt.s32.totalorder %v2511, 0
    %vm2750 = vcmp.lt.s32.totalorder %v2518, 0
    %vm2751 = vcmp.lt.s32.totalorder %v2525, 0
    %vm2752 = vcmp.lt.s32.totalorder %v2532, 0
    %vm2753 = vcmp.lt.s32.totalorder %v2539, 0
    %vm2754 = vcmp.lt.s32.totalorder %v2546, 0
    %vm2755 = vcmp.lt.s32.totalorder %v2553, 0
    %vm2756 = vcmp.lt.s32.totalorder %v2560, 0
    %vm2757 = vcmp.lt.s32.totalorder %v2567, 0
    %vm2758 = vcmp.lt.s32.totalorder %v2574, 0
    %vm2759 = vcmp.lt.s32.totalorder %v2581, 0
    %vm2760 = vcmp.lt.s32.totalorder %v2588, 0
    %vm2761 = vcmp.lt.s32.totalorder %v2595, 0
    %vm2762 = vcmp.lt.s32.totalorder %v2602, 0
    %vm2763 = vcmp.lt.s32.totalorder %v2609, 0
    %vm2764 = vcmp.lt.s32.totalorder %v2616, 0
    %vm2765 = vcmp.lt.s32.totalorder %v2623, 0
    %vm2766 = vcmp.lt.s32.totalorder %v2630, 0
    %vm2767 = vcmp.lt.s32.totalorder %v2637, 0
    %vm2768 = vcmp.lt.s32.totalorder %v2644, 0
    %vm2769 = vcmp.lt.s32.totalorder %v2651, 0
    %vm2770 = vcmp.lt.s32.totalorder %v2658, 0
    %vm2771 = vcmp.lt.s32.totalorder %v2665, 0
    %vm2772 = vcmp.lt.s32.totalorder %v2672, 0
    %vm2773 = vcmp.lt.s32.totalorder %v2679, 0
    %vm2774 = vcmp.lt.s32.totalorder %v2686, 0
    %vm2775 = vcmp.lt.s32.totalorder %v2693, 0
    %vm2776 = vcmp.lt.s32.totalorder %v2700, 0
    %vm2777 = vcmp.lt.s32.totalorder %v2707, 0
    %vm2778 = vcmp.lt.s32.totalorder %v2714, 0
    %vm2779 = vmand %vm2747, %vm2715
    %vm2780 = vmand %vm2748, %vm2716
    %vm2781 = vmand %vm2749, %vm2717
    %vm2782 = vmand %vm2750, %vm2718
    %vm2783 = vmand %vm2751, %vm2719
    %vm2784 = vmand %vm2752, %vm2720
    %vm2785 = vmand %vm2753, %vm2721
    %vm2786 = vmand %vm2754, %vm2722
    %vm2787 = vmand %vm2755, %vm2723
    %vm2788 = vmand %vm2756, %vm2724
    %vm2789 = vmand %vm2757, %vm2725
    %vm2790 = vmand %vm2758, %vm2726
    %vm2791 = vmand %vm2759, %vm2727
    %vm2792 = vmand %vm2760, %vm2728
    %vm2793 = vmand %vm2761, %vm2729
    %vm2794 = vmand %vm2762, %vm2730
    %vm2795 = vmand %vm2763, %vm2731
    %vm2796 = vmand %vm2764, %vm2732
    %vm2797 = vmand %vm2765, %vm2733
    %vm2798 = vmand %vm2766, %vm2734
    %vm2799 = vmand %vm2767, %vm2735
    %vm2800 = vmand %vm2768, %vm2736
    %vm2801 = vmand %vm2769, %vm2737
    %vm2802 = vmand %vm2770, %vm2738
    %vm2803 = vmand %vm2771, %vm2739
    %vm2804 = vmand %vm2772, %vm2740
    %vm2805 = vmand %vm2773, %vm2741
    %vm2806 = vmand %vm2774, %vm2742
    %vm2807 = vmand %vm2775, %vm2743
    %vm2808 = vmand %vm2776, %vm2744
    %vm2809 = vmand %vm2777, %vm2745
    %vm2810 = vmand %vm2778, %vm2746
    %v2811 = vadd.s32 %v2497, 128
    %v2812 = vadd.s32 %v2504, 128
    %v2813 = vadd.s32 %v2511, 128
    %v2814 = vadd.s32 %v2518, 128
    %v2815 = vadd.s32 %v2525, 128
    %v2816 = vadd.s32 %v2532, 128
    %v2817 = vadd.s32 %v2539, 128
    %v2818 = vadd.s32 %v2546, 128
    %v2819 = vadd.s32 %v2553, 128
    %v2820 = vadd.s32 %v2560, 128
    %v2821 = vadd.s32 %v2567, 128
    %v2822 = vadd.s32 %v2574, 128
    %v2823 = vadd.s32 %v2581, 128
    %v2824 = vadd.s32 %v2588, 128
    %v2825 = vadd.s32 %v2595, 128
    %v2826 = vadd.s32 %v2602, 128
    %v2827 = vadd.s32 %v2609, 128
    %v2828 = vadd.s32 %v2616, 128
    %v2829 = vadd.s32 %v2623, 128
    %v2830 = vadd.s32 %v2630, 128
    %v2831 = vadd.s32 %v2637, 128
    %v2832 = vadd.s32 %v2644, 128
    %v2833 = vadd.s32 %v2651, 128
    %v2834 = vadd.s32 %v2658, 128
    %v2835 = vadd.s32 %v2665, 128
    %v2836 = vadd.s32 %v2672, 128
    %v2837 = vadd.s32 %v2679, 128
    %v2838 = vadd.s32 %v2686, 128
    %v2839 = vadd.s32 %v2693, 128
    %v2840 = vadd.s32 %v2700, 128
    %v2841 = vadd.s32 %v2707, 128
    %v2842 = vadd.s32 %v2714, 128
    %v2843 = vsel %vm2779, %v2811, %v2497
    %v2844 = vsel %vm2780, %v2812, %v2504
    %v2845 = vsel %vm2781, %v2813, %v2511
    %v2846 = vsel %vm2782, %v2814, %v2518
    %v2847 = vsel %vm2783, %v2815, %v2525
    %v2848 = vsel %vm2784, %v2816, %v2532
    %v2849 = vsel %vm2785, %v2817, %v2539
    %v2850 = vsel %vm2786, %v2818, %v2546
    %v2851 = vsel %vm2787, %v2819, %v2553
    %v2852 = vsel %vm2788, %v2820, %v2560
    %v2853 = vsel %vm2789, %v2821, %v2567
    %v2854 = vsel %vm2790, %v2822, %v2574
    %v2855 = vsel %vm2791, %v2823, %v2581
    %v2856 = vsel %vm2792, %v2824, %v2588
    %v2857 = vsel %vm2793, %v2825, %v2595
    %v2858 = vsel %vm2794, %v2826, %v2602
    %v2859 = vsel %vm2795, %v2827, %v2609
    %v2860 = vsel %vm2796, %v2828, %v2616
    %v2861 = vsel %vm2797, %v2829, %v2623
    %v2862 = vsel %vm2798, %v2830, %v2630
    %v2863 = vsel %vm2799, %v2831, %v2637
    %v2864 = vsel %vm2800, %v2832, %v2644
    %v2865 = vsel %vm2801, %v2833, %v2651
    %v2866 = vsel %vm2802, %v2834, %v2658
    %v2867 = vsel %vm2803, %v2835, %v2665
    %v2868 = vsel %vm2804, %v2836, %v2672
    %v2869 = vsel %vm2805, %v2837, %v2679
    %v2870 = vsel %vm2806, %v2838, %v2686
    %v2871 = vsel %vm2807, %v2839, %v2693
    %v2872 = vsel %vm2808, %v2840, %v2700
    %v2873 = vsel %vm2809, %v2841, %v2707
    %v2874 = vsel %vm2810, %v2842, %v2714
    %vm2875 = vcmp.lt.s32.totalorder %v121, 0
    %v2876 = vsub.s32 0, %v121
    %v2877 = vsel %vm2875, %v2876, %v121
    %v2878 = vshrl.u32 %v2877, 7
    %v2879 = vand.u32 %v2877, 127
    %v2880 = vsub.s32 0, %v2879
    %v2881 = vsel %vm2875, %v2880, %v2879
    %vm2882 = vcmp.lt.s32.totalorder %v1020, 0
    %v2883 = vsub.s32 0, %v1020
    %v2884 = vsel %vm2882, %v2883, %v1020
    %v2885 = vshrl.u32 %v2884, 7
    %v2886 = vand.u32 %v2884, 127
    %v2887 = vsub.s32 0, %v2886
    %v2888 = vsel %vm2882, %v2887, %v2886
    %vm2889 = vcmp.ne.s32.totalorder %v2881, 0
    %vm2890 = vcmp.ne.s32.totalorder %v2888, 0
    %vm2891 = vcmp.lt.s32.totalorder %v2881, 0
    %vm2892 = vcmp.lt.s32.totalorder %v2888, 0
    %vm2893 = vmand %vm2891, %vm2889
    %vm2894 = vmand %vm2892, %vm2890
    %v2895 = vadd.s32 %v2881, 128
    %v2896 = vadd.s32 %v2888, 128
    %v2897 = vsel %vm2893, %v2895, %v2881
    %v2898 = vsel %vm2894, %v2896, %v2888
    %vm2899 = vcmp.eq.s32.totalorder %v2843, %v2897
    %vm2900 = vcmp.eq.s32.totalorder %v2843, %v2898
    %vm2901 = vcmp.eq.s32.totalorder %v2844, %v2897
    %vm2902 = vcmp.eq.s32.totalorder %v2844, %v2898
    %vm2903 = vcmp.eq.s32.totalorder %v2845, %v2897
    %vm2904 = vcmp.eq.s32.totalorder %v2845, %v2898
    %vm2905 = vcmp.eq.s32.totalorder %v2846, %v2897
    %vm2906 = vcmp.eq.s32.totalorder %v2846, %v2898
    %vm2907 = vcmp.eq.s32.totalorder %v2847, %v2897
    %vm2908 = vcmp.eq.s32.totalorder %v2847, %v2898
    %vm2909 = vcmp.eq.s32.totalorder %v2848, %v2897
    %vm2910 = vcmp.eq.s32.totalorder %v2848, %v2898
    %vm2911 = vcmp.eq.s32.totalorder %v2849, %v2897
    %vm2912 = vcmp.eq.s32.totalorder %v2849, %v2898
    %vm2913 = vcmp.eq.s32.totalorder %v2850, %v2897
    %vm2914 = vcmp.eq.s32.totalorder %v2850, %v2898
    %vm2915 = vcmp.eq.s32.totalorder %v2851, %v2897
    %vm2916 = vcmp.eq.s32.totalorder %v2851, %v2898
    %vm2917 = vcmp.eq.s32.totalorder %v2852, %v2897
    %vm2918 = vcmp.eq.s32.totalorder %v2852, %v2898
    %vm2919 = vcmp.eq.s32.totalorder %v2853, %v2897
    %vm2920 = vcmp.eq.s32.totalorder %v2853, %v2898
    %vm2921 = vcmp.eq.s32.totalorder %v2854, %v2897
    %vm2922 = vcmp.eq.s32.totalorder %v2854, %v2898
    %vm2923 = vcmp.eq.s32.totalorder %v2855, %v2897
    %vm2924 = vcmp.eq.s32.totalorder %v2855, %v2898
    %vm2925 = vcmp.eq.s32.totalorder %v2856, %v2897
    %vm2926 = vcmp.eq.s32.totalorder %v2856, %v2898
    %vm2927 = vcmp.eq.s32.totalorder %v2857, %v2897
    %vm2928 = vcmp.eq.s32.totalorder %v2857, %v2898
    %vm2929 = vcmp.eq.s32.totalorder %v2858, %v2897
    %vm2930 = vcmp.eq.s32.totalorder %v2858, %v2898
    %vm2931 = vcmp.eq.s32.totalorder %v2859, %v2897
    %vm2932 = vcmp.eq.s32.totalorder %v2859, %v2898
    %vm2933 = vcmp.eq.s32.totalorder %v2860, %v2897
    %vm2934 = vcmp.eq.s32.totalorder %v2860, %v2898
    %vm2935 = vcmp.eq.s32.totalorder %v2861, %v2897
    %vm2936 = vcmp.eq.s32.totalorder %v2861, %v2898
    %vm2937 = vcmp.eq.s32.totalorder %v2862, %v2897
    %vm2938 = vcmp.eq.s32.totalorder %v2862, %v2898
    %vm2939 = vcmp.eq.s32.totalorder %v2863, %v2897
    %vm2940 = vcmp.eq.s32.totalorder %v2863, %v2898
    %vm2941 = vcmp.eq.s32.totalorder %v2864, %v2897
    %vm2942 = vcmp.eq.s32.totalorder %v2864, %v2898
    %vm2943 = vcmp.eq.s32.totalorder %v2865, %v2897
    %vm2944 = vcmp.eq.s32.totalorder %v2865, %v2898
    %vm2945 = vcmp.eq.s32.totalorder %v2866, %v2897
    %vm2946 = vcmp.eq.s32.totalorder %v2866, %v2898
    %vm2947 = vcmp.eq.s32.totalorder %v2867, %v2897
    %vm2948 = vcmp.eq.s32.totalorder %v2867, %v2898
    %vm2949 = vcmp.eq.s32.totalorder %v2868, %v2897
    %vm2950 = vcmp.eq.s32.totalorder %v2868, %v2898
    %vm2951 = vcmp.eq.s32.totalorder %v2869, %v2897
    %vm2952 = vcmp.eq.s32.totalorder %v2869, %v2898
    %vm2953 = vcmp.eq.s32.totalorder %v2870, %v2897
    %vm2954 = vcmp.eq.s32.totalorder %v2870, %v2898
    %vm2955 = vcmp.eq.s32.totalorder %v2871, %v2897
    %vm2956 = vcmp.eq.s32.totalorder %v2871, %v2898
    %vm2957 = vcmp.eq.s32.totalorder %v2872, %v2897
    %vm2958 = vcmp.eq.s32.totalorder %v2872, %v2898
    %vm2959 = vcmp.eq.s32.totalorder %v2873, %v2897
    %vm2960 = vcmp.eq.s32.totalorder %v2873, %v2898
    %vm2961 = vcmp.eq.s32.totalorder %v2874, %v2897
    %vm2962 = vcmp.eq.s32.totalorder %v2874, %v2898
    %v2963 = vsel %vm2899, 1, 0
    %v2964 = vsel %vm2900, 1, 0
    %v2965 = vsel %vm2901, 1, 0
    %v2966 = vsel %vm2902, 1, 0
    %v2967 = vsel %vm2903, 1, 0
    %v2968 = vsel %vm2904, 1, 0
    %v2969 = vsel %vm2905, 1, 0
    %v2970 = vsel %vm2906, 1, 0
    %v2971 = vsel %vm2907, 1, 0
    %v2972 = vsel %vm2908, 1, 0
    %v2973 = vsel %vm2909, 1, 0
    %v2974 = vsel %vm2910, 1, 0
    %v2975 = vsel %vm2911, 1, 0
    %v2976 = vsel %vm2912, 1, 0
    %v2977 = vsel %vm2913, 1, 0
    %v2978 = vsel %vm2914, 1, 0
    %v2979 = vsel %vm2915, 1, 0
    %v2980 = vsel %vm2916, 1, 0
    %v2981 = vsel %vm2917, 1, 0
    %v2982 = vsel %vm2918, 1, 0
    %v2983 = vsel %vm2919, 1, 0
    %v2984 = vsel %vm2920, 1, 0
    %v2985 = vsel %vm2921, 1, 0
    %v2986 = vsel %vm2922, 1, 0
    %v2987 = vsel %vm2923, 1, 0
    %v2988 = vsel %vm2924, 1, 0
    %v2989 = vsel %vm2925, 1, 0
    %v2990 = vsel %vm2926, 1, 0
    %v2991 = vsel %vm2927, 1, 0
    %v2992 = vsel %vm2928, 1, 0
    %v2993 = vsel %vm2929, 1, 0
    %v2994 = vsel %vm2930, 1, 0
    %v2995 = vsel %vm2931, 1, 0
    %v2996 = vsel %vm2932, 1, 0
    %v2997 = vsel %vm2933, 1, 0
    %v2998 = vsel %vm2934, 1, 0
    %v2999 = vsel %vm2935, 1, 0
    %v3000 = vsel %vm2936, 1, 0
    %v3001 = vsel %vm2937, 1, 0
    %v3002 = vsel %vm2938, 1, 0
    %v3003 = vsel %vm2939, 1, 0
    %v3004 = vsel %vm2940, 1, 0
    %v3005 = vsel %vm2941, 1, 0
    %v3006 = vsel %vm2942, 1, 0
    %v3007 = vsel %vm2943, 1, 0
    %v3008 = vsel %vm2944, 1, 0
    %v3009 = vsel %vm2945, 1, 0
    %v3010 = vsel %vm2946, 1, 0
    %v3011 = vsel %vm2947, 1, 0
    %v3012 = vsel %vm2948, 1, 0
    %v3013 = vsel %vm2949, 1, 0
    %v3014 = vsel %vm2950, 1, 0
    %v3015 = vsel %vm2951, 1, 0
    %v3016 = vsel %vm2952, 1, 0
    %v3017 = vsel %vm2953, 1, 0
    %v3018 = vsel %vm2954, 1, 0
    %v3019 = vsel %vm2955, 1, 0
    %v3020 = vsel %vm2956, 1, 0
    %v3021 = vsel %vm2957, 1, 0
    %v3022 = vsel %vm2958, 1, 0
    %v3023 = vsel %vm2959, 1, 0
    %v3024 = vsel %vm2960, 1, 0
    %v3025 = vsel %vm2961, 1, 0
    %v3026 = vsel %vm2962, 1, 0
    %v3027 = vcvt.s32.f32 %v2963
    %v3028 = vcvt.s32.f32 %v2964
    %v3029 = vcvt.s32.f32 %v2965
    %v3030 = vcvt.s32.f32 %v2966
    %v3031 = vcvt.s32.f32 %v2967
    %v3032 = vcvt.s32.f32 %v2968
    %v3033 = vcvt.s32.f32 %v2969
    %v3034 = vcvt.s32.f32 %v2970
    %v3035 = vcvt.s32.f32 %v2971
    %v3036 = vcvt.s32.f32 %v2972
    %v3037 = vcvt.s32.f32 %v2973
    %v3038 = vcvt.s32.f32 %v2974
    %v3039 = vcvt.s32.f32 %v2975
    %v3040 = vcvt.s32.f32 %v2976
    %v3041 = vcvt.s32.f32 %v2977
    %v3042 = vcvt.s32.f32 %v2978
    %v3043 = vcvt.s32.f32 %v2979
    %v3044 = vcvt.s32.f32 %v2980
    %v3045 = vcvt.s32.f32 %v2981
    %v3046 = vcvt.s32.f32 %v2982
    %v3047 = vcvt.s32.f32 %v2983
    %v3048 = vcvt.s32.f32 %v2984
    %v3049 = vcvt.s32.f32 %v2985
    %v3050 = vcvt.s32.f32 %v2986
    %v3051 = vcvt.s32.f32 %v2987
    %v3052 = vcvt.s32.f32 %v2988
    %v3053 = vcvt.s32.f32 %v2989
    %v3054 = vcvt.s32.f32 %v2990
    %v3055 = vcvt.s32.f32 %v2991
    %v3056 = vcvt.s32.f32 %v2992
    %v3057 = vcvt.s32.f32 %v2993
    %v3058 = vcvt.s32.f32 %v2994
    %v3059 = vcvt.s32.f32 %v2995
    %v3060 = vcvt.s32.f32 %v2996
    %v3061 = vcvt.s32.f32 %v2997
    %v3062 = vcvt.s32.f32 %v2998
    %v3063 = vcvt.s32.f32 %v2999
    %v3064 = vcvt.s32.f32 %v3000
    %v3065 = vcvt.s32.f32 %v3001
    %v3066 = vcvt.s32.f32 %v3002
    %v3067 = vcvt.s32.f32 %v3003
    %v3068 = vcvt.s32.f32 %v3004
    %v3069 = vcvt.s32.f32 %v3005
    %v3070 = vcvt.s32.f32 %v3006
    %v3071 = vcvt.s32.f32 %v3007
    %v3072 = vcvt.s32.f32 %v3008
    %v3073 = vcvt.s32.f32 %v3009
    %v3074 = vcvt.s32.f32 %v3010
    %v3075 = vcvt.s32.f32 %v3011
    %v3076 = vcvt.s32.f32 %v3012
    %v3077 = vcvt.s32.f32 %v3013
    %v3078 = vcvt.s32.f32 %v3014
    %v3079 = vcvt.s32.f32 %v3015
    %v3080 = vcvt.s32.f32 %v3016
    %v3081 = vcvt.s32.f32 %v3017
    %v3082 = vcvt.s32.f32 %v3018
    %v3083 = vcvt.s32.f32 %v3019
    %v3084 = vcvt.s32.f32 %v3020
    %v3085 = vcvt.s32.f32 %v3021
    %v3086 = vcvt.s32.f32 %v3022
    %v3087 = vcvt.s32.f32 %v3023
    %v3088 = vcvt.s32.f32 %v3024
    %v3089 = vcvt.s32.f32 %v3025
    %v3090 = vcvt.s32.f32 %v3026
    %v3091 = vadd.f32 %v2485, %v2487
    %v3092 = vrot.slane %v3091, 4
    %v3093 = vadd.f32 %v3091, %v3092
    %v3094 = vrot.slane %v3093, 2
    %v3095 = vadd.f32 %v3093, %v3094
    %v3096 = vrot.slane %v3095, 1
    %v3097 = vadd.f32 %v3095, %v3096
    %v3098 = vadd.f32 %v2486, %v2488
    %v3099 = vrot.slane %v3098, 4
    %v3100 = vadd.f32 %v3098, %v3099
    %v3101 = vrot.slane %v3100, 2
    %v3102 = vadd.f32 %v3100, %v3101
    %v3103 = vrot.slane %v3102, 1
    %v3104 = vadd.f32 %v3102, %v3103
    %3105 = vmatprep.subr.mxu0 %v3028
    %3106 = vmatpush1.msra.mxu0 %v3027
    %3107 = vmatprep.subr.mxu0 %v3030
    %3108 = vmatpush1.msra.mxu0 %v3029
    %3109 = vmatprep.subr.mxu0 %v3032
    %3110 = vmatpush1.msra.mxu0 %v3031
    %3111 = vmatprep.subr.mxu0 %v3034
    %3112 = vmatpush1.msra.mxu0 %v3033
    %3113 = vmatprep.subr.mxu0 %v3036
    %3114 = vmatpush1.msra.mxu0 %v3035
    %3115 = vmatprep.subr.mxu0 %v3038
    %3116 = vmatpush1.msra.mxu0 %v3037
    %3117 = vmatprep.subr.mxu0 %v3040
    %3118 = vmatpush1.msra.mxu0 %v3039
    %3119 = vmatprep.subr.mxu0 %v3042
    %3120 = vmatpush1.msra.mxu0 %v3041
    %3121 = vmatprep.subr.mxu0 %v3044
    %3122 = vmatpush1.msra.mxu0 %v3043
    %3123 = vmatprep.subr.mxu0 %v3046
    %3124 = vmatpush1.msra.mxu0 %v3045
    %3125 = vmatprep.subr.mxu0 %v3048
    %3126 = vmatpush1.msra.mxu0 %v3047
    %3127 = vmatprep.subr.mxu0 %v3050
    %3128 = vmatpush1.msra.mxu0 %v3049
    %3129 = vmatprep.subr.mxu0 %v3052
    %3130 = vmatpush1.msra.mxu0 %v3051
    %3131 = vmatprep.subr.mxu0 %v3054
    %3132 = vmatpush1.msra.mxu0 %v3053
    %3133 = vmatprep.subr.mxu0 %v3056
    %3134 = vmatpush1.msra.mxu0 %v3055
    %3135 = vmatprep.subr.mxu0 %v3058
    %3136 = vmatpush1.msra.mxu0 %v3057
    %3137 = vmatprep.subr.mxu0 %v3060
    %3138 = vmatpush1.msra.mxu0 %v3059
    %3139 = vmatprep.subr.mxu0 %v3062
    %3140 = vmatpush1.msra.mxu0 %v3061
    %3141 = vmatprep.subr.mxu0 %v3064
    %3142 = vmatpush1.msra.mxu0 %v3063
    %3143 = vmatprep.subr.mxu0 %v3066
    %3144 = vmatpush1.msra.mxu0 %v3065
    %3145 = vmatprep.subr.mxu0 %v3068
    %3146 = vmatpush1.msra.mxu0 %v3067
    %3147 = vmatprep.subr.mxu0 %v3070
    %3148 = vmatpush1.msra.mxu0 %v3069
    %3149 = vmatprep.subr.mxu0 %v3072
    %3150 = vmatpush1.msra.mxu0 %v3071
    %3151 = vmatprep.subr.mxu0 %v3074
    %3152 = vmatpush1.msra.mxu0 %v3073
    %3153 = vmatprep.subr.mxu0 %v3076
    %3154 = vmatpush1.msra.mxu0 %v3075
    %3155 = vmatprep.subr.mxu0 %v3078
    %3156 = vmatpush1.msra.mxu0 %v3077
    %3157 = vmatprep.subr.mxu0 %v3080
    %3158 = vmatpush1.msra.mxu0 %v3079
    %3159 = vmatprep.subr.mxu0 %v3082
    %3160 = vmatpush1.msra.mxu0 %v3081
    %3161 = vmatprep.subr.mxu0 %v3084
    %3162 = vmatpush1.msra.mxu0 %v3083
    %3163 = vmatprep.subr.mxu0 %v3086
    %3164 = vmatpush1.msra.mxu0 %v3085
    %3165 = vmatprep.subr.mxu0 %v3088
    %3166 = vmatpush1.msra.mxu0 %v3087
    %3167 = vmatprep.subr.mxu0 %v3090
    %3168 = vmatpush1.msra.mxu0 %v3089
    %3169 = vmatprep.mubr.f32.mxu0 %v3104
    %3170 = vmatmul.mubr.f32.gmra.mrb[0].mxu0 %v3097
    %v3171 = vpop.f32.mrb[0].mxu0
    %v3172 = vadd.f32 0.0, %v3171
    %v3173 = vpop.f32.mrb[0].mxu0
    %v3174 = vadd.f32 0.0, %v3173
    %3175 = vdwg.mxu0
    %v3176 = vrcp.pop 32.0
    %v3177 = vmul.f32 %v3172, %v3176
    %v3178 = vmul.f32 %v3174, %v3176
    %v3179 = vlaneseq
    %v3180 = vshrl.u32 %v3179, 7
    %v3181 = vsub.s32 0, %v3180
    %v3182 = vrot.slane %v3177, %v3181
    %v3183 = vlaneseq
    %v3184 = vshrl.u32 %v3183, 7
    %v3185 = vsub.s32 0, %v3184
    %v3186 = vrot.slane %v3178, %v3185
    %v3187 = vsub.f32 %v2485, %v3182
    %v3188 = vsub.f32 %v2486, %v3186
    %v3189 = vsub.f32 %v2487, %v3182
    %v3190 = vsub.f32 %v2488, %v3186
    %v3191 = vmul.f32 %v3187, %v3187
    %v3192 = vmul.f32 %v3188, %v3188
    %v3193 = vmul.f32 %v3189, %v3189
    %v3194 = vmul.f32 %v3190, %v3190
    %v3195 = vadd.f32 %v3191, %v3193
    %v3196 = vrot.slane %v3195, 4
    %v3197 = vadd.f32 %v3195, %v3196
    %v3198 = vrot.slane %v3197, 2
    %v3199 = vadd.f32 %v3197, %v3198
    %v3200 = vrot.slane %v3199, 1
    %v3201 = vadd.f32 %v3199, %v3200
    %v3202 = vadd.f32 %v3192, %v3194
    %v3203 = vrot.slane %v3202, 4
    %v3204 = vadd.f32 %v3202, %v3203
    %v3205 = vrot.slane %v3204, 2
    %v3206 = vadd.f32 %v3204, %v3205
    %v3207 = vrot.slane %v3206, 1
    %v3208 = vadd.f32 %v3206, %v3207
    %3209 = vmatprep.subr.mxu0 %v3028
    %3210 = vmatpush1.msra.mxu0 %v3027
    %3211 = vmatprep.subr.mxu0 %v3030
    %3212 = vmatpush1.msra.mxu0 %v3029
    %3213 = vmatprep.subr.mxu0 %v3032
    %3214 = vmatpush1.msra.mxu0 %v3031
    %3215 = vmatprep.subr.mxu0 %v3034
    %3216 = vmatpush1.msra.mxu0 %v3033
    %3217 = vmatprep.subr.mxu0 %v3036
    %3218 = vmatpush1.msra.mxu0 %v3035
    %3219 = vmatprep.subr.mxu0 %v3038
    %3220 = vmatpush1.msra.mxu0 %v3037
    %3221 = vmatprep.subr.mxu0 %v3040
    %3222 = vmatpush1.msra.mxu0 %v3039
    %3223 = vmatprep.subr.mxu0 %v3042
    %3224 = vmatpush1.msra.mxu0 %v3041
    %3225 = vmatprep.subr.mxu0 %v3044
    %3226 = vmatpush1.msra.mxu0 %v3043
    %3227 = vmatprep.subr.mxu0 %v3046
    %3228 = vmatpush1.msra.mxu0 %v3045
    %3229 = vmatprep.subr.mxu0 %v3048
    %3230 = vmatpush1.msra.mxu0 %v3047
    %3231 = vmatprep.subr.mxu0 %v3050
    %3232 = vmatpush1.msra.mxu0 %v3049
    %3233 = vmatprep.subr.mxu0 %v3052
    %3234 = vmatpush1.msra.mxu0 %v3051
    %3235 = vmatprep.subr.mxu0 %v3054
    %3236 = vmatpush1.msra.mxu0 %v3053
    %3237 = vmatprep.subr.mxu0 %v3056
    %3238 = vmatpush1.msra.mxu0 %v3055
    %3239 = vmatprep.subr.mxu0 %v3058
    %3240 = vmatpush1.msra.mxu0 %v3057
    %3241 = vmatprep.subr.mxu0 %v3060
    %3242 = vmatpush1.msra.mxu0 %v3059
    %3243 = vmatprep.subr.mxu0 %v3062
    %3244 = vmatpush1.msra.mxu0 %v3061
    %3245 = vmatprep.subr.mxu0 %v3064
    %3246 = vmatpush1.msra.mxu0 %v3063
    %3247 = vmatprep.subr.mxu0 %v3066
    %3248 = vmatpush1.msra.mxu0 %v3065
    %3249 = vmatprep.subr.mxu0 %v3068
    %3250 = vmatpush1.msra.mxu0 %v3067
    %3251 = vmatprep.subr.mxu0 %v3070
    %3252 = vmatpush1.msra.mxu0 %v3069
    %3253 = vmatprep.subr.mxu0 %v3072
    %3254 = vmatpush1.msra.mxu0 %v3071
    %3255 = vmatprep.subr.mxu0 %v3074
    %3256 = vmatpush1.msra.mxu0 %v3073
    %3257 = vmatprep.subr.mxu0 %v3076
    %3258 = vmatpush1.msra.mxu0 %v3075
    %3259 = vmatprep.subr.mxu0 %v3078
    %3260 = vmatpush1.msra.mxu0 %v3077
    %3261 = vmatprep.subr.mxu0 %v3080
    %3262 = vmatpush1.msra.mxu0 %v3079
    %3263 = vmatprep.subr.mxu0 %v3082
    %3264 = vmatpush1.msra.mxu0 %v3081
    %3265 = vmatprep.subr.mxu0 %v3084
    %3266 = vmatpush1.msra.mxu0 %v3083
    %3267 = vmatprep.subr.mxu0 %v3086
    %3268 = vmatpush1.msra.mxu0 %v3085
    %3269 = vmatprep.subr.mxu0 %v3088
    %3270 = vmatpush1.msra.mxu0 %v3087
    %3271 = vmatprep.subr.mxu0 %v3090
    %3272 = vmatpush1.msra.mxu0 %v3089
    %3273 = vmatprep.mubr.f32.mxu0 %v3208
    %3274 = vmatmul.mubr.f32.gmra.mrb[0].mxu0 %v3201
    %v3275 = vpop.f32.mrb[0].mxu0
    %v3276 = vadd.f32 0.0, %v3275
    %v3277 = vpop.f32.mrb[0].mxu0
    %v3278 = vadd.f32 0.0, %v3277
    %3279 = vdwg.mxu0
    %v3280 = vmul.f32 %v3276, %v3176
    %v3281 = vmul.f32 %v3278, %v3176
    %v3282 = vadd.f32 %v3280, 1e-05
    %v3283 = vadd.f32 %v3281, 1e-05
    %v3284 = vrsqrt.pop %v3282
    %v3285 = vrsqrt.pop %v3283
    %v3288 = vcombine.low %v3284, %v3285
    %v3290 = vunpack.c.l.s4 1966171168
    %v3291 = vunpack.c.0.s8 %v3290
    %v3292 = vlaneseq
    %v3293 = vshrl.u32 %v3292, 7
    %v3294 = vsub.s32 %v3291, %v3293
    %v3295 = vrot.slane %v3288, %v3294
    %v3297 = vunpack.c.l.s4 1966171168
    %v3298 = vunpack.c.0.s8 %v3297
    %v3299 = vlaneseq
    %v3300 = vshrl.u32 %v3299, 7
    %v3301 = vsub.s32 %v3298, %v3300
    %v3302 = vrot.slane %v3295, %v3301
    %v3304 = vmul.f32 %v2489, %v3302
    %v3306 = vlaneseq
    %v3307 = vshrl.u32 %v3306, 7
    %v3308 = vsub.s32 0, %v3307
    %v3309 = vrot.slane %v3304, %v3308
    %v3310 = vlaneseq
    %v3311 = vshrl.u32 %v3310, 7
    %v3312 = vsub.s32 1, %v3311
    %v3313 = vrot.slane %v3304, %v3312
    %v3316 = vmul.f32 %v3187, %v3309
    %v3317 = vmul.f32 %v3188, %v3313
    %v3318 = vmul.f32 %v3189, %v3309
    %v3319 = vmul.f32 %v3190, %v3313
    %v3321 = vlaneseq
    %v3322 = vshrl.u32 %v3321, 7
    %v3323 = vsub.s32 0, %v3322
    %v3324 = vrot.slane %v2490, %v3323
    %v3325 = vlaneseq
    %v3326 = vshrl.u32 %v3325, 7
    %v3327 = vsub.s32 1, %v3326
    %v3328 = vrot.slane %v2490, %v3327
    %v3331 = vadd.f32 %v3316, %v3324
    %v3332 = vadd.f32 %v3317, %v3328
    %v3333 = vadd.f32 %v3318, %v3324
    %v3334 = vadd.f32 %v3319, %v3328
    %vm3335 = vcmp.ge.f32.partialorder %v3331, 0.0
    %vm3336 = vcmp.ge.f32.partialorder %v3332, 0.0
    %vm3337 = vcmp.ge.f32.partialorder %v3333, 0.0
    %vm3338 = vcmp.ge.f32.partialorder %v3334, 0.0
    %v3339 = vmul.f32 %v3331, 0.01
    %v3340 = vmul.f32 %v3332, 0.01
    %v3341 = vmul.f32 %v3333, 0.01
    %v3342 = vmul.f32 %v3334, 0.01
    %v3343 = vsel %vm3335, %v3331, %v3339
    %v3344 = vsel %vm3336, %v3332, %v3340
    %v3345 = vsel %vm3337, %v3333, %v3341
    %v3346 = vsel %vm3338, %v3334, %v3342
    %3347 = vmatprep.subr.mxu0 %v3344
    %3348 = vmatpush1.msra.mxu0 %v3343
    %3349 = vmatprep.subr.mxu0 %v3346
    %3350 = vmatpush1.msra.mxu0 %v3345
    %3351 = vmatprep.subr.mxu0 0.0
    %3352 = vmatpush1.msra.mxu0 0.0
    %3353 = vmatprep.subr.mxu0 0.0
    %3354 = vmatpush1.msra.mxu0 0.0
    %3355 = vmatprep.subr.mxu0 0.0
    %3356 = vmatpush1.msra.mxu0 0.0
    %3357 = vmatprep.subr.mxu0 0.0
    %3358 = vmatpush1.msra.mxu0 0.0
    %3359 = vmatprep.subr.mxu0 0.0
    %3360 = vmatpush1.msra.mxu0 0.0
    %3361 = vmatprep.subr.mxu0 0.0
    %3362 = vmatpush1.msra.mxu0 0.0
    %3363 = vmatprep.subr.mxu0 0.0
    %3364 = vmatpush1.msra.mxu0 0.0
    %3365 = vmatprep.subr.mxu0 0.0
    %3366 = vmatpush1.msra.mxu0 0.0
    %3367 = vmatprep.subr.mxu0 0.0
    %3368 = vmatpush1.msra.mxu0 0.0
    %3369 = vmatprep.subr.mxu0 0.0
    %3370 = vmatpush1.msra.mxu0 0.0
    %3371 = vmatprep.subr.mxu0 0.0
    %3372 = vmatpush1.msra.mxu0 0.0
    %3373 = vmatprep.subr.mxu0 0.0
    %3374 = vmatpush1.msra.mxu0 0.0
    %3375 = vmatprep.subr.mxu0 0.0
    %3376 = vmatpush1.msra.mxu0 0.0
    %3377 = vmatprep.subr.mxu0 0.0
    %3378 = vmatpush1.msra.mxu0 0.0
    %3379 = vmatprep.subr.mxu0 0.0
    %3380 = vmatpush1.msra.mxu0 0.0
    %3381 = vmatprep.subr.mxu0 0.0
    %3382 = vmatpush1.msra.mxu0 0.0
    %3383 = vmatprep.subr.mxu0 0.0
    %3384 = vmatpush1.msra.mxu0 0.0
    %3385 = vmatprep.subr.mxu0 0.0
    %3386 = vmatpush1.msra.mxu0 0.0
    %3387 = vmatprep.subr.mxu0 0.0
    %3388 = vmatpush1.msra.mxu0 0.0
    %3389 = vmatprep.subr.mxu0 0.0
    %3390 = vmatpush1.msra.mxu0 0.0
    %3391 = vmatprep.subr.mxu0 0.0
    %3392 = vmatpush1.msra.mxu0 0.0
    %3393 = vmatprep.subr.mxu0 0.0
    %3394 = vmatpush1.msra.mxu0 0.0
    %3395 = vmatprep.subr.mxu0 0.0
    %3396 = vmatpush1.msra.mxu0 0.0
    %3397 = vmatprep.subr.mxu0 0.0
    %3398 = vmatpush1.msra.mxu0 0.0
    %3399 = vmatprep.subr.mxu0 0.0
    %3400 = vmatpush1.msra.mxu0 0.0
    %3401 = vmatprep.subr.mxu0 0.0
    %3402 = vmatpush1.msra.mxu0 0.0
    %3403 = vmatprep.subr.mxu0 0.0
    %3404 = vmatpush1.msra.mxu0 0.0
    %3405 = vmatprep.subr.mxu0 0.0
    %3406 = vmatpush1.msra.mxu0 0.0
    %3407 = vmatprep.subr.mxu0 0.0
    %3408 = vmatpush1.msra.mxu0 0.0
    %3409 = vmatprep.subr.mxu0 0.0
    %3410 = vmatpush1.msra.mxu0 0.0
    %3411 = vmatprep.mubr.f32.mxu0 0.0
    %3412 = vmatmul.mubr.f32.gmra.mrb[0].mxu0 %v1879
    %v3413 = vpop.f32.mrb[0].mxu0
    %v3414 = vadd.f32 0.0, %v3413
    %v3415 = vpop.f32.mrb[0].mxu0
    %v3416 = vadd.f32 0.0, %v3415
    %3417 = vmatprep.mubr.f32.mxu0 0.0
    %3418 = vmatmul.mubr.f32.gmra.mrb[0].mxu0 %v1882
    %v3419 = vpop.f32.mrb[0].mxu0
    %v3420 = vadd.f32 0.0, %v3419
    %v3421 = vpop.f32.mrb[0].mxu0
    %v3422 = vadd.f32 0.0, %v3421
    %3423 = vdwg.mxu0
    %v3424 = vld [vmem:[#allocation6] sm:$0xff]
    %v3425 = vld [vmem:[#allocation6 + $0x8] sm:$0xff]
    %v3426 = vld [vmem:[#allocation6 + $0x10] sm:$0xff]
    %v3427 = vld [vmem:[#allocation6 + $0x18] sm:$0xff]
    %v3428 = vld [vmem:[#allocation6 + $0x20] sm:$0xff]
    %v3429 = vld [vmem:[#allocation6 + $0x28] sm:$0xff]
    %v3430 = vld [vmem:[#allocation6 + $0x30] sm:$0xff]
    %v3431 = vld [vmem:[#allocation6 + $0x38] sm:$0xff]
    %v3432 = vld [vmem:[#allocation6 + $0x40] sm:$0xff]
    %v3433 = vld [vmem:[#allocation6 + $0x48] sm:$0xff]
    %v3434 = vld [vmem:[#allocation6 + $0x50] sm:$0xff]
    %v3435 = vld [vmem:[#allocation6 + $0x58] sm:$0xff]
    %v3436 = vld [vmem:[#allocation6 + $0x60] sm:$0xff]
    %v3437 = vld [vmem:[#allocation6 + $0x68] sm:$0xff]
    %v3438 = vld [vmem:[#allocation6 + $0x70] sm:$0xff]
    %v3439 = vld [vmem:[#allocation6 + $0x78] sm:$0xff]
    %v3440 = vld [vmem:[#allocation6 + $0x80] sm:$0xff]
    %v3441 = vld [vmem:[#allocation6 + $0x88] sm:$0xff]
    %v3442 = vld [vmem:[#allocation6 + $0x90] sm:$0xff]
    %v3443 = vld [vmem:[#allocation6 + $0x98] sm:$0xff]
    %v3444 = vld [vmem:[#allocation6 + $0xa0] sm:$0xff]
    %v3445 = vld [vmem:[#allocation6 + $0xa8] sm:$0xff]
    %v3446 = vld [vmem:[#allocation6 + $0xb0] sm:$0xff]
    %v3447 = vld [vmem:[#allocation6 + $0xb8] sm:$0xff]
    %v3448 = vld [vmem:[#allocation6 + $0xc0] sm:$0xff]
    %v3449 = vld [vmem:[#allocation6 + $0xc8] sm:$0xff]
    %v3450 = vld [vmem:[#allocation6 + $0xd0] sm:$0xff]
    %v3451 = vld [vmem:[#allocation6 + $0xd8] sm:$0xff]
    %v3452 = vld [vmem:[#allocation6 + $0xe0] sm:$0xff]
    %v3453 = vld [vmem:[#allocation6 + $0xe8] sm:$0xff]
    %v3454 = vld [vmem:[#allocation6 + $0xf0] sm:$0xff]
    %v3455 = vld [vmem:[#allocation6 + $0xf8] sm:$0xff]
    %v3456 = vld [vmem:[#allocation6 + $0x100] sm:$0xff]
    %v3457 = vld [vmem:[#allocation6 + $0x108] sm:$0xff]
    %v3458 = vld [vmem:[#allocation6 + $0x110] sm:$0xff]
    %v3459 = vld [vmem:[#allocation6 + $0x118] sm:$0xff]
    %v3460 = vld [vmem:[#allocation6 + $0x120] sm:$0xff]
    %v3461 = vld [vmem:[#allocation6 + $0x128] sm:$0xff]
    %v3462 = vld [vmem:[#allocation6 + $0x130] sm:$0xff]
    %v3463 = vld [vmem:[#allocation6 + $0x138] sm:$0xff]
    %v3464 = vld [vmem:[#allocation6 + $0x140] sm:$0xff]
    %v3465 = vld [vmem:[#allocation6 + $0x148] sm:$0xff]
    %v3466 = vld [vmem:[#allocation6 + $0x150] sm:$0xff]
    %v3467 = vld [vmem:[#allocation6 + $0x158] sm:$0xff]
    %v3468 = vld [vmem:[#allocation6 + $0x160] sm:$0xff]
    %v3469 = vld [vmem:[#allocation6 + $0x168] sm:$0xff]
    %v3470 = vld [vmem:[#allocation6 + $0x170] sm:$0xff]
    %v3471 = vld [vmem:[#allocation6 + $0x178] sm:$0xff]
    %v3472 = vld [vmem:[#allocation6 + $0x180] sm:$0xff]
    %v3473 = vld [vmem:[#allocation6 + $0x188] sm:$0xff]
    %v3474 = vld [vmem:[#allocation6 + $0x190] sm:$0xff]
    %v3475 = vld [vmem:[#allocation6 + $0x198] sm:$0xff]
    %v3476 = vld [vmem:[#allocation6 + $0x1a0] sm:$0xff]
    %v3477 = vld [vmem:[#allocation6 + $0x1a8] sm:$0xff]
    %v3478 = vld [vmem:[#allocation6 + $0x1b0] sm:$0xff]
    %v3479 = vld [vmem:[#allocation6 + $0x1b8] sm:$0xff]
    %v3480 = vld [vmem:[#allocation6 + $0x1c0] sm:$0xff]
    %v3481 = vld [vmem:[#allocation6 + $0x1c8] sm:$0xff]
    %v3482 = vld [vmem:[#allocation6 + $0x1d0] sm:$0xff]
    %v3483 = vld [vmem:[#allocation6 + $0x1d8] sm:$0xff]
    %v3484 = vld [vmem:[#allocation6 + $0x1e0] sm:$0xff]
    %v3485 = vld [vmem:[#allocation6 + $0x1e8] sm:$0xff]
    %v3486 = vld [vmem:[#allocation6 + $0x1f0] sm:$0xff]
    %v3487 = vld [vmem:[#allocation6 + $0x1f8] sm:$0xff]
    %s3488 = scalar_lea.vmem [#allocation6], 512
    %v3489 = vld [vmem:[%s3488] sm:$0xff]
    %v3490 = vld [vmem:[%s3488 + $0x8] sm:$0xff]
    %v3491 = vld [vmem:[%s3488 + $0x10] sm:$0xff]
    %v3492 = vld [vmem:[%s3488 + $0x18] sm:$0xff]
    %v3493 = vld [vmem:[%s3488 + $0x20] sm:$0xff]
    %v3494 = vld [vmem:[%s3488 + $0x28] sm:$0xff]
    %v3495 = vld [vmem:[%s3488 + $0x30] sm:$0xff]
    %v3496 = vld [vmem:[%s3488 + $0x38] sm:$0xff]
    %v3497 = vld [vmem:[%s3488 + $0x40] sm:$0xff]
    %v3498 = vld [vmem:[%s3488 + $0x48] sm:$0xff]
    %v3499 = vld [vmem:[%s3488 + $0x50] sm:$0xff]
    %v3500 = vld [vmem:[%s3488 + $0x58] sm:$0xff]
    %v3501 = vld [vmem:[%s3488 + $0x60] sm:$0xff]
    %v3502 = vld [vmem:[%s3488 + $0x68] sm:$0xff]
    %v3503 = vld [vmem:[%s3488 + $0x70] sm:$0xff]
    %v3504 = vld [vmem:[%s3488 + $0x78] sm:$0xff]
    %v3505 = vld [vmem:[%s3488 + $0x80] sm:$0xff]
    %v3506 = vld [vmem:[%s3488 + $0x88] sm:$0xff]
    %v3507 = vld [vmem:[%s3488 + $0x90] sm:$0xff]
    %v3508 = vld [vmem:[%s3488 + $0x98] sm:$0xff]
    %v3509 = vld [vmem:[%s3488 + $0xa0] sm:$0xff]
    %v3510 = vld [vmem:[%s3488 + $0xa8] sm:$0xff]
    %v3511 = vld [vmem:[%s3488 + $0xb0] sm:$0xff]
    %v3512 = vld [vmem:[%s3488 + $0xb8] sm:$0xff]
    %v3513 = vld [vmem:[%s3488 + $0xc0] sm:$0xff]
    %v3514 = vld [vmem:[%s3488 + $0xc8] sm:$0xff]
    %v3515 = vld [vmem:[%s3488 + $0xd0] sm:$0xff]
    %v3516 = vld [vmem:[%s3488 + $0xd8] sm:$0xff]
    %v3517 = vld [vmem:[%s3488 + $0xe0] sm:$0xff]
    %v3518 = vld [vmem:[%s3488 + $0xe8] sm:$0xff]
    %v3519 = vld [vmem:[%s3488 + $0xf0] sm:$0xff]
    %v3520 = vld [vmem:[%s3488 + $0xf8] sm:$0xff]
    %v3521 = vld [vmem:[%s3488 + $0x100] sm:$0xff]
    %v3522 = vld [vmem:[%s3488 + $0x108] sm:$0xff]
    %v3523 = vld [vmem:[%s3488 + $0x110] sm:$0xff]
    %v3524 = vld [vmem:[%s3488 + $0x118] sm:$0xff]
    %v3525 = vld [vmem:[%s3488 + $0x120] sm:$0xff]
    %v3526 = vld [vmem:[%s3488 + $0x128] sm:$0xff]
    %v3527 = vld [vmem:[%s3488 + $0x130] sm:$0xff]
    %v3528 = vld [vmem:[%s3488 + $0x138] sm:$0xff]
    %v3529 = vld [vmem:[%s3488 + $0x140] sm:$0xff]
    %v3530 = vld [vmem:[%s3488 + $0x148] sm:$0xff]
    %v3531 = vld [vmem:[%s3488 + $0x150] sm:$0xff]
    %v3532 = vld [vmem:[%s3488 + $0x158] sm:$0xff]
    %v3533 = vld [vmem:[%s3488 + $0x160] sm:$0xff]
    %v3534 = vld [vmem:[%s3488 + $0x168] sm:$0xff]
    %v3535 = vld [vmem:[%s3488 + $0x170] sm:$0xff]
    %v3536 = vld [vmem:[%s3488 + $0x178] sm:$0xff]
    %v3537 = vld [vmem:[%s3488 + $0x180] sm:$0xff]
    %v3538 = vld [vmem:[%s3488 + $0x188] sm:$0xff]
    %v3539 = vld [vmem:[%s3488 + $0x190] sm:$0xff]
    %v3540 = vld [vmem:[%s3488 + $0x198] sm:$0xff]
    %v3541 = vld [vmem:[%s3488 + $0x1a0] sm:$0xff]
    %v3542 = vld [vmem:[%s3488 + $0x1a8] sm:$0xff]
    %v3543 = vld [vmem:[%s3488 + $0x1b0] sm:$0xff]
    %v3544 = vld [vmem:[%s3488 + $0x1b8] sm:$0xff]
    %v3545 = vld [vmem:[%s3488 + $0x1c0] sm:$0xff]
    %v3546 = vld [vmem:[%s3488 + $0x1c8] sm:$0xff]
    %v3547 = vld [vmem:[%s3488 + $0x1d0] sm:$0xff]
    %v3548 = vld [vmem:[%s3488 + $0x1d8] sm:$0xff]
    %v3549 = vld [vmem:[%s3488 + $0x1e0] sm:$0xff]
    %v3550 = vld [vmem:[%s3488 + $0x1e8] sm:$0xff]
    %v3551 = vld [vmem:[%s3488 + $0x1f0] sm:$0xff]
    %v3552 = vld [vmem:[%s3488 + $0x1f8] sm:$0xff]
    %3553 = vmatprep.subr.mxu0 %v3490
    %3554 = vmatpush1.msra.mxu0 %v3489
    %3555 = vmatprep.subr.mxu0 %v3492
    %3556 = vmatpush1.msra.mxu0 %v3491
    %3557 = vmatprep.subr.mxu0 %v3494
    %3558 = vmatpush1.msra.mxu0 %v3493
    %3559 = vmatprep.subr.mxu0 %v3496
    %3560 = vmatpush1.msra.mxu0 %v3495
    %3561 = vmatprep.subr.mxu0 %v3498
    %3562 = vmatpush1.msra.mxu0 %v3497
    %3563 = vmatprep.subr.mxu0 %v3500
    %3564 = vmatpush1.msra.mxu0 %v3499
    %3565 = vmatprep.subr.mxu0 %v3502
    %3566 = vmatpush1.msra.mxu0 %v3501
    %3567 = vmatprep.subr.mxu0 %v3504
    %3568 = vmatpush1.msra.mxu0 %v3503
    %3569 = vmatprep.subr.mxu0 %v3506
    %3570 = vmatpush1.msra.mxu0 %v3505
    %3571 = vmatprep.subr.mxu0 %v3508
    %3572 = vmatpush1.msra.mxu0 %v3507
    %3573 = vmatprep.subr.mxu0 %v3510
    %3574 = vmatpush1.msra.mxu0 %v3509
    %3575 = vmatprep.subr.mxu0 %v3512
    %3576 = vmatpush1.msra.mxu0 %v3511
    %3577 = vmatprep.subr.mxu0 %v3514
    %3578 = vmatpush1.msra.mxu0 %v3513
    %3579 = vmatprep.subr.mxu0 %v3516
    %3580 = vmatpush1.msra.mxu0 %v3515
    %3581 = vmatprep.subr.mxu0 %v3518
    %3582 = vmatpush1.msra.mxu0 %v3517
    %3583 = vmatprep.subr.mxu0 %v3520
    %3584 = vmatpush1.msra.mxu0 %v3519
    %3585 = vmatprep.subr.mxu0 %v3522
    %3586 = vmatpush1.msra.mxu0 %v3521
    %3587 = vmatprep.subr.mxu0 %v3524
    %3588 = vmatpush1.msra.mxu0 %v3523
    %3589 = vmatprep.subr.mxu0 %v3526
    %3590 = vmatpush1.msra.mxu0 %v3525
    %3591 = vmatprep.subr.mxu0 %v3528
    %3592 = vmatpush1.msra.mxu0 %v3527
    %3593 = vmatprep.subr.mxu0 %v3530
    %3594 = vmatpush1.msra.mxu0 %v3529
    %3595 = vmatprep.subr.mxu0 %v3532
    %3596 = vmatpush1.msra.mxu0 %v3531
    %3597 = vmatprep.subr.mxu0 %v3534
    %3598 = vmatpush1.msra.mxu0 %v3533
    %3599 = vmatprep.subr.mxu0 %v3536
    %3600 = vmatpush1.msra.mxu0 %v3535
    %3601 = vmatprep.subr.mxu0 %v3538
    %3602 = vmatpush1.msra.mxu0 %v3537
    %3603 = vmatprep.subr.mxu0 %v3540
    %3604 = vmatpush1.msra.mxu0 %v3539
    %3605 = vmatprep.subr.mxu0 %v3542
    %3606 = vmatpush1.msra.mxu0 %v3541
    %3607 = vmatprep.subr.mxu0 %v3544
    %3608 = vmatpush1.msra.mxu0 %v3543
    %3609 = vmatprep.subr.mxu0 %v3546
    %3610 = vmatpush1.msra.mxu0 %v3545
    %3611 = vmatprep.subr.mxu0 %v3548
    %3612 = vmatpush1.msra.mxu0 %v3547
    %3613 = vmatprep.subr.mxu0 %v3550
    %3614 = vmatpush1.msra.mxu0 %v3549
    %3615 = vmatprep.subr.mxu0 %v3552
    %3616 = vmatpush1.msra.mxu0 %v3551
    %3617 = vmatprep.mubr.f32.mxu0 %v3344
    %3618 = vmatmul.mubr.f32.gmra.mrb[0].mxu0 %v3343
    %v3619 = vpop.f32.mrb[0].mxu0
    %v3620 = vadd.f32 0.0, %v3619
    %v3621 = vpop.f32.mrb[0].mxu0
    %v3622 = vadd.f32 0.0, %v3621
    %3623 = vmatprep.mubr.f32.mxu0 %v3346
    %3624 = vmatmul.mubr.f32.gmra.mrb[0].mxu0 %v3345
    %v3625 = vpop.f32.mrb[0].mxu0
    %v3626 = vadd.f32 0.0, %v3625
    %v3627 = vpop.f32.mrb[0].mxu0
    %v3628 = vadd.f32 0.0, %v3627
    %3629 = vdwg.mxu0
    %3630 = vmatprep.subr.mxu0 %v3425
    %3631 = vmatpush1.msra.mxu0 %v3424
    %3632 = vmatprep.subr.mxu0 %v3427
    %3633 = vmatpush1.msra.mxu0 %v3426
    %3634 = vmatprep.subr.mxu0 %v3429
    %3635 = vmatpush1.msra.mxu0 %v3428
    %3636 = vmatprep.subr.mxu0 %v3431
    %3637 = vmatpush1.msra.mxu0 %v3430
    %3638 = vmatprep.subr.mxu0 %v3433
    %3639 = vmatpush1.msra.mxu0 %v3432
    %3640 = vmatprep.subr.mxu0 %v3435
    %3641 = vmatpush1.msra.mxu0 %v3434
    %3642 = vmatprep.subr.mxu0 %v3437
    %3643 = vmatpush1.msra.mxu0 %v3436
    %3644 = vmatprep.subr.mxu0 %v3439
    %3645 = vmatpush1.msra.mxu0 %v3438
    %3646 = vmatprep.subr.mxu0 %v3441
    %3647 = vmatpush1.msra.mxu0 %v3440
    %3648 = vmatprep.subr.mxu0 %v3443
    %3649 = vmatpush1.msra.mxu0 %v3442
    %3650 = vmatprep.subr.mxu0 %v3445
    %3651 = vmatpush1.msra.mxu0 %v3444
    %3652 = vmatprep.subr.mxu0 %v3447
    %3653 = vmatpush1.msra.mxu0 %v3446
    %3654 = vmatprep.subr.mxu0 %v3449
    %3655 = vmatpush1.msra.mxu0 %v3448
    %3656 = vmatprep.subr.mxu0 %v3451
    %3657 = vmatpush1.msra.mxu0 %v3450
    %3658 = vmatprep.subr.mxu0 %v3453
    %3659 = vmatpush1.msra.mxu0 %v3452
    %3660 = vmatprep.subr.mxu0 %v3455
    %3661 = vmatpush1.msra.mxu0 %v3454
    %3662 = vmatprep.subr.mxu0 %v3457
    %3663 = vmatpush1.msra.mxu0 %v3456
    %3664 = vmatprep.subr.mxu0 %v3459
    %3665 = vmatpush1.msra.mxu0 %v3458
    %3666 = vmatprep.subr.mxu0 %v3461
    %3667 = vmatpush1.msra.mxu0 %v3460
    %3668 = vmatprep.subr.mxu0 %v3463
    %3669 = vmatpush1.msra.mxu0 %v3462
    %3670 = vmatprep.subr.mxu0 %v3465
    %3671 = vmatpush1.msra.mxu0 %v3464
    %3672 = vmatprep.subr.mxu0 %v3467
    %3673 = vmatpush1.msra.mxu0 %v3466
    %3674 = vmatprep.subr.mxu0 %v3469
    %3675 = vmatpush1.msra.mxu0 %v3468
    %3676 = vmatprep.subr.mxu0 %v3471
    %3677 = vmatpush1.msra.mxu0 %v3470
    %3678 = vmatprep.subr.mxu0 %v3473
    %3679 = vmatpush1.msra.mxu0 %v3472
    %3680 = vmatprep.subr.mxu0 %v3475
    %3681 = vmatpush1.msra.mxu0 %v3474
    %3682 = vmatprep.subr.mxu0 %v3477
    %3683 = vmatpush1.msra.mxu0 %v3476
    %3684 = vmatprep.subr.mxu0 %v3479
    %3685 = vmatpush1.msra.mxu0 %v3478
    %3686 = vmatprep.subr.mxu0 %v3481
    %3687 = vmatpush1.msra.mxu0 %v3480
    %3688 = vmatprep.subr.mxu0 %v3483
    %3689 = vmatpush1.msra.mxu0 %v3482
    %3690 = vmatprep.subr.mxu0 %v3485
    %3691 = vmatpush1.msra.mxu0 %v3484
    %3692 = vmatprep.subr.mxu0 %v3487
    %3693 = vmatpush1.msra.mxu0 %v3486
    %3694 = vmatprep.mubr.f32.mxu0 %v3416
    %3695 = vmatmul.mubr.f32.gmra.mrb[0].mxu0 %v3414
    %v3696 = vpop.f32.mrb[0].mxu0
    %v3697 = vadd.f32 %v3620, %v3696
    %v3698 = vpop.f32.mrb[0].mxu0
    %v3699 = vadd.f32 %v3622, %v3698
    %3700 = vmatprep.mubr.f32.mxu0 %v3422
    %3701 = vmatmul.mubr.f32.gmra.mrb[0].mxu0 %v3420
    %v3702 = vpop.f32.mrb[0].mxu0
    %v3703 = vadd.f32 %v3626, %v3702
    %v3704 = vpop.f32.mrb[0].mxu0
    %v3705 = vadd.f32 %v3628, %v3704
    %3706 = vdwg.mxu0
    %3707 = vmatprep.subr.mxu0 %v3344
    %3708 = vmatpush1.msra.mxu0 %v3343
    %3709 = vmatprep.subr.mxu0 %v3346
    %3710 = vmatpush1.msra.mxu0 %v3345
    %3711 = vmatprep.subr.mxu0 0.0
    %3712 = vmatpush1.msra.mxu0 0.0
    %3713 = vmatprep.subr.mxu0 0.0
    %3714 = vmatpush1.msra.mxu0 0.0
    %3715 = vmatprep.subr.mxu0 0.0
    %3716 = vmatpush1.msra.mxu0 0.0
    %3717 = vmatprep.subr.mxu0 0.0
    %3718 = vmatpush1.msra.mxu0 0.0
    %3719 = vmatprep.subr.mxu0 0.0
    %3720 = vmatpush1.msra.mxu0 0.0
    %3721 = vmatprep.subr.mxu0 0.0
    %3722 = vmatpush1.msra.mxu0 0.0
    %3723 = vmatprep.subr.mxu0 0.0
    %3724 = vmatpush1.msra.mxu0 0.0
    %3725 = vmatprep.subr.mxu0 0.0
    %3726 = vmatpush1.msra.mxu0 0.0
    %3727 = vmatprep.subr.mxu0 0.0
    %3728 = vmatpush1.msra.mxu0 0.0
    %3729 = vmatprep.subr.mxu0 0.0
    %3730 = vmatpush1.msra.mxu0 0.0
    %3731 = vmatprep.subr.mxu0 0.0
    %3732 = vmatpush1.msra.mxu0 0.0
    %3733 = vmatprep.subr.mxu0 0.0
    %3734 = vmatpush1.msra.mxu0 0.0
    %3735 = vmatprep.subr.mxu0 0.0
    %3736 = vmatpush1.msra.mxu0 0.0
    %3737 = vmatprep.subr.mxu0 0.0
    %3738 = vmatpush1.msra.mxu0 0.0
    %3739 = vmatprep.subr.mxu0 0.0
    %3740 = vmatpush1.msra.mxu0 0.0
    %3741 = vmatprep.subr.mxu0 0.0
    %3742 = vmatpush1.msra.mxu0 0.0
    %3743 = vmatprep.subr.mxu0 0.0
    %3744 = vmatpush1.msra.mxu0 0.0
    %3745 = vmatprep.subr.mxu0 0.0
    %3746 = vmatpush1.msra.mxu0 0.0
    %3747 = vmatprep.subr.mxu0 0.0
    %3748 = vmatpush1.msra.mxu0 0.0
    %3749 = vmatprep.subr.mxu0 0.0
    %3750 = vmatpush1.msra.mxu0 0.0
    %3751 = vmatprep.subr.mxu0 0.0
    %3752 = vmatpush1.msra.mxu0 0.0
    %3753 = vmatprep.subr.mxu0 0.0
    %3754 = vmatpush1.msra.mxu0 0.0
    %3755 = vmatprep.subr.mxu0 0.0
    %3756 = vmatpush1.msra.mxu0 0.0
    %3757 = vmatprep.subr.mxu0 0.0
    %3758 = vmatpush1.msra.mxu0 0.0
    %3759 = vmatprep.subr.mxu0 0.0
    %3760 = vmatpush1.msra.mxu0 0.0
    %3761 = vmatprep.subr.mxu0 0.0
    %3762 = vmatpush1.msra.mxu0 0.0
    %3763 = vmatprep.subr.mxu0 0.0
    %3764 = vmatpush1.msra.mxu0 0.0
    %3765 = vmatprep.subr.mxu0 0.0
    %3766 = vmatpush1.msra.mxu0 0.0
    %3767 = vmatprep.subr.mxu0 0.0
    %3768 = vmatpush1.msra.mxu0 0.0
    %3769 = vmatprep.subr.mxu0 0.0
    %3770 = vmatpush1.msra.mxu0 0.0
    %3771 = vmatprep.mubr.f32.mxu0 0.0
    %3772 = vmatmul.mubr.f32.gmra.mrb[0].mxu0 %v2245
    %v3773 = vpop.f32.mrb[0].mxu0
    %v3774 = vadd.f32 0.0, %v3773
    %v3775 = vpop.f32.mrb[0].mxu0
    %v3776 = vadd.f32 0.0, %v3775
    %3777 = vmatprep.mubr.f32.mxu0 0.0
    %3778 = vmatmul.mubr.f32.gmra.mrb[0].mxu0 %v2248
    %v3779 = vpop.f32.mrb[0].mxu0
    %v3780 = vadd.f32 0.0, %v3779
    %v3781 = vpop.f32.mrb[0].mxu0
    %v3782 = vadd.f32 0.0, %v3781
    %3783 = vdwg.mxu0
    %s3784 = scalar_lea.vmem [#allocation6], 1024
    %v3785 = vld [vmem:[%s3784] sm:$0xff]
    %v3786 = vld [vmem:[%s3784 + $0x8] sm:$0xff]
    %v3787 = vld [vmem:[%s3784 + $0x10] sm:$0xff]
    %v3788 = vld [vmem:[%s3784 + $0x18] sm:$0xff]
    %v3789 = vld [vmem:[%s3784 + $0x20] sm:$0xff]
    %v3790 = vld [vmem:[%s3784 + $0x28] sm:$0xff]
    %v3791 = vld [vmem:[%s3784 + $0x30] sm:$0xff]
    %v3792 = vld [vmem:[%s3784 + $0x38] sm:$0xff]
    %v3793 = vld [vmem:[%s3784 + $0x40] sm:$0xff]
    %v3794 = vld [vmem:[%s3784 + $0x48] sm:$0xff]
    %v3795 = vld [vmem:[%s3784 + $0x50] sm:$0xff]
    %v3796 = vld [vmem:[%s3784 + $0x58] sm:$0xff]
    %v3797 = vld [vmem:[%s3784 + $0x60] sm:$0xff]
    %v3798 = vld [vmem:[%s3784 + $0x68] sm:$0xff]
    %v3799 = vld [vmem:[%s3784 + $0x70] sm:$0xff]
    %v3800 = vld [vmem:[%s3784 + $0x78] sm:$0xff]
    %v3801 = vld [vmem:[%s3784 + $0x80] sm:$0xff]
    %v3802 = vld [vmem:[%s3784 + $0x88] sm:$0xff]
    %v3803 = vld [vmem:[%s3784 + $0x90] sm:$0xff]
    %v3804 = vld [vmem:[%s3784 + $0x98] sm:$0xff]
    %v3805 = vld [vmem:[%s3784 + $0xa0] sm:$0xff]
    %v3806 = vld [vmem:[%s3784 + $0xa8] sm:$0xff]
    %v3807 = vld [vmem:[%s3784 + $0xb0] sm:$0xff]
    %v3808 = vld [vmem:[%s3784 + $0xb8] sm:$0xff]
    %v3809 = vld [vmem:[%s3784 + $0xc0] sm:$0xff]
    %v3810 = vld [vmem:[%s3784 + $0xc8] sm:$0xff]
    %v3811 = vld [vmem:[%s3784 + $0xd0] sm:$0xff]
    %v3812 = vld [vmem:[%s3784 + $0xd8] sm:$0xff]
    %v3813 = vld [vmem:[%s3784 + $0xe0] sm:$0xff]
    %v3814 = vld [vmem:[%s3784 + $0xe8] sm:$0xff]
    %v3815 = vld [vmem:[%s3784 + $0xf0] sm:$0xff]
    %v3816 = vld [vmem:[%s3784 + $0xf8] sm:$0xff]
    %v3817 = vld [vmem:[%s3784 + $0x100] sm:$0xff]
    %v3818 = vld [vmem:[%s3784 + $0x108] sm:$0xff]
    %v3819 = vld [vmem:[%s3784 + $0x110] sm:$0xff]
    %v3820 = vld [vmem:[%s3784 + $0x118] sm:$0xff]
    %v3821 = vld [vmem:[%s3784 + $0x120] sm:$0xff]
    %v3822 = vld [vmem:[%s3784 + $0x128] sm:$0xff]
    %v3823 = vld [vmem:[%s3784 + $0x130] sm:$0xff]
    %v3824 = vld [vmem:[%s3784 + $0x138] sm:$0xff]
    %v3825 = vld [vmem:[%s3784 + $0x140] sm:$0xff]
    %v3826 = vld [vmem:[%s3784 + $0x148] sm:$0xff]
    %v3827 = vld [vmem:[%s3784 + $0x150] sm:$0xff]
    %v3828 = vld [vmem:[%s3784 + $0x158] sm:$0xff]
    %v3829 = vld [vmem:[%s3784 + $0x160] sm:$0xff]
    %v3830 = vld [vmem:[%s3784 + $0x168] sm:$0xff]
    %v3831 = vld [vmem:[%s3784 + $0x170] sm:$0xff]
    %v3832 = vld [vmem:[%s3784 + $0x178] sm:$0xff]
    %v3833 = vld [vmem:[%s3784 + $0x180] sm:$0xff]
    %v3834 = vld [vmem:[%s3784 + $0x188] sm:$0xff]
    %v3835 = vld [vmem:[%s3784 + $0x190] sm:$0xff]
    %v3836 = vld [vmem:[%s3784 + $0x198] sm:$0xff]
    %v3837 = vld [vmem:[%s3784 + $0x1a0] sm:$0xff]
    %v3838 = vld [vmem:[%s3784 + $0x1a8] sm:$0xff]
    %v3839 = vld [vmem:[%s3784 + $0x1b0] sm:$0xff]
    %v3840 = vld [vmem:[%s3784 + $0x1b8] sm:$0xff]
    %v3841 = vld [vmem:[%s3784 + $0x1c0] sm:$0xff]
    %v3842 = vld [vmem:[%s3784 + $0x1c8] sm:$0xff]
    %v3843 = vld [vmem:[%s3784 + $0x1d0] sm:$0xff]
    %v3844 = vld [vmem:[%s3784 + $0x1d8] sm:$0xff]
    %v3845 = vld [vmem:[%s3784 + $0x1e0] sm:$0xff]
    %v3846 = vld [vmem:[%s3784 + $0x1e8] sm:$0xff]
    %v3847 = vld [vmem:[%s3784 + $0x1f0] sm:$0xff]
    %v3848 = vld [vmem:[%s3784 + $0x1f8] sm:$0xff]
    %3849 = vmatprep.subr.mxu0 %v3786
    %3850 = vmatpush1.msra.mxu0 %v3785
    %3851 = vmatprep.subr.mxu0 %v3788
    %3852 = vmatpush1.msra.mxu0 %v3787
    %3853 = vmatprep.subr.mxu0 %v3790
    %3854 = vmatpush1.msra.mxu0 %v3789
    %3855 = vmatprep.subr.mxu0 %v3792
    %3856 = vmatpush1.msra.mxu0 %v3791
    %3857 = vmatprep.subr.mxu0 %v3794
    %3858 = vmatpush1.msra.mxu0 %v3793
    %3859 = vmatprep.subr.mxu0 %v3796
    %3860 = vmatpush1.msra.mxu0 %v3795
    %3861 = vmatprep.subr.mxu0 %v3798
    %3862 = vmatpush1.msra.mxu0 %v3797
    %3863 = vmatprep.subr.mxu0 %v3800
    %3864 = vmatpush1.msra.mxu0 %v3799
    %3865 = vmatprep.subr.mxu0 %v3802
    %3866 = vmatpush1.msra.mxu0 %v3801
    %3867 = vmatprep.subr.mxu0 %v3804
    %3868 = vmatpush1.msra.mxu0 %v3803
    %3869 = vmatprep.subr.mxu0 %v3806
    %3870 = vmatpush1.msra.mxu0 %v3805
    %3871 = vmatprep.subr.mxu0 %v3808
    %3872 = vmatpush1.msra.mxu0 %v3807
    %3873 = vmatprep.subr.mxu0 %v3810
    %3874 = vmatpush1.msra.mxu0 %v3809
    %3875 = vmatprep.subr.mxu0 %v3812
    %3876 = vmatpush1.msra.mxu0 %v3811
    %3877 = vmatprep.subr.mxu0 %v3814
    %3878 = vmatpush1.msra.mxu0 %v3813
    %3879 = vmatprep.subr.mxu0 %v3816
    %3880 = vmatpush1.msra.mxu0 %v3815
    %3881 = vmatprep.subr.mxu0 %v3818
    %3882 = vmatpush1.msra.mxu0 %v3817
    %3883 = vmatprep.subr.mxu0 %v3820
    %3884 = vmatpush1.msra.mxu0 %v3819
    %3885 = vmatprep.subr.mxu0 %v3822
    %3886 = vmatpush1.msra.mxu0 %v3821
    %3887 = vmatprep.subr.mxu0 %v3824
    %3888 = vmatpush1.msra.mxu0 %v3823
    %3889 = vmatprep.subr.mxu0 %v3826
    %3890 = vmatpush1.msra.mxu0 %v3825
    %3891 = vmatprep.subr.mxu0 %v3828
    %3892 = vmatpush1.msra.mxu0 %v3827
    %3893 = vmatprep.subr.mxu0 %v3830
    %3894 = vmatpush1.msra.mxu0 %v3829
    %3895 = vmatprep.subr.mxu0 %v3832
    %3896 = vmatpush1.msra.mxu0 %v3831
    %3897 = vmatprep.subr.mxu0 %v3834
    %3898 = vmatpush1.msra.mxu0 %v3833
    %3899 = vmatprep.subr.mxu0 %v3836
    %3900 = vmatpush1.msra.mxu0 %v3835
    %3901 = vmatprep.subr.mxu0 %v3838
    %3902 = vmatpush1.msra.mxu0 %v3837
    %3903 = vmatprep.subr.mxu0 %v3840
    %3904 = vmatpush1.msra.mxu0 %v3839
    %3905 = vmatprep.subr.mxu0 %v3842
    %3906 = vmatpush1.msra.mxu0 %v3841
    %3907 = vmatprep.subr.mxu0 %v3844
    %3908 = vmatpush1.msra.mxu0 %v3843
    %3909 = vmatprep.subr.mxu0 %v3846
    %3910 = vmatpush1.msra.mxu0 %v3845
    %3911 = vmatprep.subr.mxu0 %v3848
    %3912 = vmatpush1.msra.mxu0 %v3847
    %3913 = vmatprep.mubr.f32.mxu0 %v3776
    %3914 = vmatmul.mubr.f32.gmra.mrb[0].mxu0 %v3774
    %v3915 = vpop.f32.mrb[0].mxu0
    %v3916 = vadd.f32 0.0, %v3915
    %v3917 = vpop.f32.mrb[0].mxu0
    %v3918 = vadd.f32 0.0, %v3917
    %3919 = vmatprep.mubr.f32.mxu0 %v3782
    %3920 = vmatmul.mubr.f32.gmra.mrb[0].mxu0 %v3780
    %v3921 = vpop.f32.mrb[0].mxu0
    %v3922 = vadd.f32 0.0, %v3921
    %v3923 = vpop.f32.mrb[0].mxu0
    %v3924 = vadd.f32 0.0, %v3923
    %3925 = vdwg.mxu0
    %v3926 = vadd.f32 %v3697, %v3916
    %v3927 = vadd.f32 %v3699, %v3918
    %v3928 = vadd.f32 %v3703, %v3922
    %v3929 = vadd.f32 %v3705, %v3924
    %v3930 = vld [vmem:[%s10] sm:$0x3]
    %v3932 = vlaneseq
    %v3933 = vshrl.u32 %v3932, 7
    %v3934 = vsub.s32 0, %v3933
    %v3935 = vrot.slane %v3930, %v3934
    %v3936 = vlaneseq
    %v3937 = vshrl.u32 %v3936, 7
    %v3938 = vsub.s32 1, %v3937
    %v3939 = vrot.slane %v3930, %v3938
    %v3942 = vadd.f32 %v3926, %v3935
    %v3943 = vadd.f32 %v3927, %v3939
    %v3944 = vadd.f32 %v3928, %v3935
    %v3945 = vadd.f32 %v3929, %v3939
    %v3946 = vld [vmem:[%s11] sm:$0x3]
    %v3947 = vld [vmem:[%s12] sm:$0x3]
    %vm3948 = vcmp.lt.s32.totalorder %v118, 0
    %v3949 = vsub.s32 0, %v118
    %v3950 = vsel %vm3948, %v3949, %v118
    %v3951 = vshrl.u32 %v3950, 6
    %v3952 = vand.u32 %v3950, 63
    %v3953 = vsub.s32 0, %v3952
    %v3954 = vsel %vm3948, %v3953, %v3952
    %vm3955 = vcmp.lt.s32.totalorder %v119, 0
    %v3956 = vsub.s32 0, %v119
    %v3957 = vsel %vm3955, %v3956, %v119
    %v3958 = vshrl.u32 %v3957, 6
    %v3959 = vand.u32 %v3957, 63
    %v3960 = vsub.s32 0, %v3959
    %v3961 = vsel %vm3955, %v3960, %v3959
    %vm3962 = vcmp.lt.s32.totalorder %v990, 0
    %v3963 = vsub.s32 0, %v990
    %v3964 = vsel %vm3962, %v3963, %v990
    %v3965 = vshrl.u32 %v3964, 6
    %v3966 = vand.u32 %v3964, 63
    %v3967 = vsub.s32 0, %v3966
    %v3968 = vsel %vm3962, %v3967, %v3966
    %vm3969 = vcmp.lt.s32.totalorder %v991, 0
    %v3970 = vsub.s32 0, %v991
    %v3971 = vsel %vm3969, %v3970, %v991
    %v3972 = vshrl.u32 %v3971, 6
    %v3973 = vand.u32 %v3971, 63
    %v3974 = vsub.s32 0, %v3973
    %v3975 = vsel %vm3969, %v3974, %v3973
    %vm3976 = vcmp.lt.s32.totalorder %v992, 0
    %v3977 = vsub.s32 0, %v992
    %v3978 = vsel %vm3976, %v3977, %v992
    %v3979 = vshrl.u32 %v3978, 6
    %v3980 = vand.u32 %v3978, 63
    %v3981 = vsub.s32 0, %v3980
    %v3982 = vsel %vm3976, %v3981, %v3980
    %vm3983 = vcmp.lt.s32.totalorder %v993, 0
    %v3984 = vsub.s32 0, %v993
    %v3985 = vsel %vm3983, %v3984, %v993
    %v3986 = vshrl.u32 %v3985, 6
    %v3987 = vand.u32 %v3985, 63
    %v3988 = vsub.s32 0, %v3987
    %v3989 = vsel %vm3983, %v3988, %v3987
    %vm3990 = vcmp.lt.s32.totalorder %v994, 0
    %v3991 = vsub.s32 0, %v994
    %v3992 = vsel %vm3990, %v3991, %v994
    %v3993 = vshrl.u32 %v3992, 6
    %v3994 = vand.u32 %v3992, 63
    %v3995 = vsub.s32 0, %v3994
    %v3996 = vsel %vm3990, %v3995, %v3994
    %vm3997 = vcmp.lt.s32.totalorder %v995, 0
    %v3998 = vsub.s32 0, %v995
    %v3999 = vsel %vm3997, %v3998, %v995
    %v4000 = vshrl.u32 %v3999, 6
    %v4001 = vand.u32 %v3999, 63
    %v4002 = vsub.s32 0, %v4001
    %v4003 = vsel %vm3997, %v4002, %v4001
    %vm4004 = vcmp.lt.s32.totalorder %v996, 0
    %v4005 = vsub.s32 0, %v996
    %v4006 = vsel %vm4004, %v4005, %v996
    %v4007 = vshrl.u32 %v4006, 6
    %v4008 = vand.u32 %v4006, 63
    %v4009 = vsub.s32 0, %v4008
    %v4010 = vsel %vm4004, %v4009, %v4008
    %vm4011 = vcmp.lt.s32.totalorder %v997, 0
    %v4012 = vsub.s32 0, %v997
    %v4013 = vsel %vm4011, %v4012, %v997
    %v4014 = vshrl.u32 %v4013, 6
    %v4015 = vand.u32 %v4013, 63
    %v4016 = vsub.s32 0, %v4015
    %v4017 = vsel %vm4011, %v4016, %v4015
    %vm4018 = vcmp.lt.s32.totalorder %v998, 0
    %v4019 = vsub.s32 0, %v998
    %v4020 = vsel %vm4018, %v4019, %v998
    %v4021 = vshrl.u32 %v4020, 6
    %v4022 = vand.u32 %v4020, 63
    %v4023 = vsub.s32 0, %v4022
    %v4024 = vsel %vm4018, %v4023, %v4022
    %vm4025 = vcmp.lt.s32.totalorder %v999, 0
    %v4026 = vsub.s32 0, %v999
    %v4027 = vsel %vm4025, %v4026, %v999
    %v4028 = vshrl.u32 %v4027, 6
    %v4029 = vand.u32 %v4027, 63
    %v4030 = vsub.s32 0, %v4029
    %v4031 = vsel %vm4025, %v4030, %v4029
    %vm4032 = vcmp.lt.s32.totalorder %v1000, 0
    %v4033 = vsub.s32 0, %v1000
    %v4034 = vsel %vm4032, %v4033, %v1000
    %v4035 = vshrl.u32 %v4034, 6
    %v4036 = vand.u32 %v4034, 63
    %v4037 = vsub.s32 0, %v4036
    %v4038 = vsel %vm4032, %v4037, %v4036
    %vm4039 = vcmp.lt.s32.totalorder %v1001, 0
    %v4040 = vsub.s32 0, %v1001
    %v4041 = vsel %vm4039, %v4040, %v1001
    %v4042 = vshrl.u32 %v4041, 6
    %v4043 = vand.u32 %v4041, 63
    %v4044 = vsub.s32 0, %v4043
    %v4045 = vsel %vm4039, %v4044, %v4043
    %vm4046 = vcmp.lt.s32.totalorder %v1002, 0
    %v4047 = vsub.s32 0, %v1002
    %v4048 = vsel %vm4046, %v4047, %v1002
    %v4049 = vshrl.u32 %v4048, 6
    %v4050 = vand.u32 %v4048, 63
    %v4051 = vsub.s32 0, %v4050
    %v4052 = vsel %vm4046, %v4051, %v4050
    %vm4053 = vcmp.lt.s32.totalorder %v1003, 0
    %v4054 = vsub.s32 0, %v1003
    %v4055 = vsel %vm4053, %v4054, %v1003
    %v4056 = vshrl.u32 %v4055, 6
    %v4057 = vand.u32 %v4055, 63
    %v4058 = vsub.s32 0, %v4057
    %v4059 = vsel %vm4053, %v4058, %v4057
    %vm4060 = vcmp.lt.s32.totalorder %v1004, 0
    %v4061 = vsub.s32 0, %v1004
    %v4062 = vsel %vm4060, %v4061, %v1004
    %v4063 = vshrl.u32 %v4062, 6
    %v4064 = vand.u32 %v4062, 63
    %v4065 = vsub.s32 0, %v4064
    %v4066 = vsel %vm4060, %v4065, %v4064
    %vm4067 = vcmp.lt.s32.totalorder %v1005, 0
    %v4068 = vsub.s32 0, %v1005
    %v4069 = vsel %vm4067, %v4068, %v1005
    %v4070 = vshrl.u32 %v4069, 6
    %v4071 = vand.u32 %v4069, 63
    %v4072 = vsub.s32 0, %v4071
    %v4073 = vsel %vm4067, %v4072, %v4071
    %vm4074 = vcmp.lt.s32.totalorder %v1006, 0
    %v4075 = vsub.s32 0, %v1006
    %v4076 = vsel %vm4074, %v4075, %v1006
    %v4077 = vshrl.u32 %v4076, 6
    %v4078 = vand.u32 %v4076, 63
    %v4079 = vsub.s32 0, %v4078
    %v4080 = vsel %vm4074, %v4079, %v4078
    %vm4081 = vcmp.lt.s32.totalorder %v1007, 0
    %v4082 = vsub.s32 0, %v1007
    %v4083 = vsel %vm4081, %v4082, %v1007
    %v4084 = vshrl.u32 %v4083, 6
    %v4085 = vand.u32 %v4083, 63
    %v4086 = vsub.s32 0, %v4085
    %v4087 = vsel %vm4081, %v4086, %v4085
    %vm4088 = vcmp.lt.s32.totalorder %v1008, 0
    %v4089 = vsub.s32 0, %v1008
    %v4090 = vsel %vm4088, %v4089, %v1008
    %v4091 = vshrl.u32 %v4090, 6
    %v4092 = vand.u32 %v4090, 63
    %v4093 = vsub.s32 0, %v4092
    %v4094 = vsel %vm4088, %v4093, %v4092
    %vm4095 = vcmp.lt.s32.totalorder %v1009, 0
    %v4096 = vsub.s32 0, %v1009
    %v4097 = vsel %vm4095, %v4096, %v1009
    %v4098 = vshrl.u32 %v4097, 6
    %v4099 = vand.u32 %v4097, 63
    %v4100 = vsub.s32 0, %v4099
    %v4101 = vsel %vm4095, %v4100, %v4099
    %vm4102 = vcmp.lt.s32.totalorder %v1010, 0
    %v4103 = vsub.s32 0, %v1010
    %v4104 = vsel %vm4102, %v4103, %v1010
    %v4105 = vshrl.u32 %v4104, 6
    %v4106 = vand.u32 %v4104, 63
    %v4107 = vsub.s32 0, %v4106
    %v4108 = vsel %vm4102, %v4107, %v4106
    %vm4109 = vcmp.lt.s32.totalorder %v1011, 0
    %v4110 = vsub.s32 0, %v1011
    %v4111 = vsel %vm4109, %v4110, %v1011
    %v4112 = vshrl.u32 %v4111, 6
    %v4113 = vand.u32 %v4111, 63
    %v4114 = vsub.s32 0, %v4113
    %v4115 = vsel %vm4109, %v4114, %v4113
    %vm4116 = vcmp.lt.s32.totalorder %v1012, 0
    %v4117 = vsub.s32 0, %v1012
    %v4118 = vsel %vm4116, %v4117, %v1012
    %v4119 = vshrl.u32 %v4118, 6
    %v4120 = vand.u32 %v4118, 63
    %v4121 = vsub.s32 0, %v4120
    %v4122 = vsel %vm4116, %v4121, %v4120
    %vm4123 = vcmp.lt.s32.totalorder %v1013, 0
    %v4124 = vsub.s32 0, %v1013
    %v4125 = vsel %vm4123, %v4124, %v1013
    %v4126 = vshrl.u32 %v4125, 6
    %v4127 = vand.u32 %v4125, 63
    %v4128 = vsub.s32 0, %v4127
    %v4129 = vsel %vm4123, %v4128, %v4127
    %vm4130 = vcmp.lt.s32.totalorder %v1014, 0
    %v4131 = vsub.s32 0, %v1014
    %v4132 = vsel %vm4130, %v4131, %v1014
    %v4133 = vshrl.u32 %v4132, 6
    %v4134 = vand.u32 %v4132, 63
    %v4135 = vsub.s32 0, %v4134
    %v4136 = vsel %vm4130, %v4135, %v4134
    %vm4137 = vcmp.lt.s32.totalorder %v1015, 0
    %v4138 = vsub.s32 0, %v1015
    %v4139 = vsel %vm4137, %v4138, %v1015
    %v4140 = vshrl.u32 %v4139, 6
    %v4141 = vand.u32 %v4139, 63
    %v4142 = vsub.s32 0, %v4141
    %v4143 = vsel %vm4137, %v4142, %v4141
    %vm4144 = vcmp.lt.s32.totalorder %v1016, 0
    %v4145 = vsub.s32 0, %v1016
    %v4146 = vsel %vm4144, %v4145, %v1016
    %v4147 = vshrl.u32 %v4146, 6
    %v4148 = vand.u32 %v4146, 63
    %v4149 = vsub.s32 0, %v4148
    %v4150 = vsel %vm4144, %v4149, %v4148
    %vm4151 = vcmp.lt.s32.totalorder %v1017, 0
    %v4152 = vsub.s32 0, %v1017
    %v4153 = vsel %vm4151, %v4152, %v1017
    %v4154 = vshrl.u32 %v4153, 6
    %v4155 = vand.u32 %v4153, 63
    %v4156 = vsub.s32 0, %v4155
    %v4157 = vsel %vm4151, %v4156, %v4155
    %vm4158 = vcmp.lt.s32.totalorder %v1018, 0
    %v4159 = vsub.s32 0, %v1018
    %v4160 = vsel %vm4158, %v4159, %v1018
    %v4161 = vshrl.u32 %v4160, 6
    %v4162 = vand.u32 %v4160, 63
    %v4163 = vsub.s32 0, %v4162
    %v4164 = vsel %vm4158, %v4163, %v4162
    %vm4165 = vcmp.lt.s32.totalorder %v1019, 0
    %v4166 = vsub.s32 0, %v1019
    %v4167 = vsel %vm4165, %v4166, %v1019
    %v4168 = vshrl.u32 %v4167, 6
    %v4169 = vand.u32 %v4167, 63
    %v4170 = vsub.s32 0, %v4169
    %v4171 = vsel %vm4165, %v4170, %v4169
    %vm4172 = vcmp.ne.s32.totalorder %v3954, 0
    %vm4173 = vcmp.ne.s32.totalorder %v3961, 0
    %vm4174 = vcmp.ne.s32.totalorder %v3968, 0
    %vm4175 = vcmp.ne.s32.totalorder %v3975, 0
    %vm4176 = vcmp.ne.s32.totalorder %v3982, 0
    %vm4177 = vcmp.ne.s32.totalorder %v3989, 0
    %vm4178 = vcmp.ne.s32.totalorder %v3996, 0
    %vm4179 = vcmp.ne.s32.totalorder %v4003, 0
    %vm4180 = vcmp.ne.s32.totalorder %v4010, 0
    %vm4181 = vcmp.ne.s32.totalorder %v4017, 0
    %vm4182 = vcmp.ne.s32.totalorder %v4024, 0
    %vm4183 = vcmp.ne.s32.totalorder %v4031, 0
    %vm4184 = vcmp.ne.s32.totalorder %v4038, 0
    %vm4185 = vcmp.ne.s32.totalorder %v4045, 0
    %vm4186 = vcmp.ne.s32.totalorder %v4052, 0
    %vm4187 = vcmp.ne.s32.totalorder %v4059, 0
    %vm4188 = vcmp.ne.s32.totalorder %v4066, 0
    %vm4189 = vcmp.ne.s32.totalorder %v4073, 0
    %vm4190 = vcmp.ne.s32.totalorder %v4080, 0
    %vm4191 = vcmp.ne.s32.totalorder %v4087, 0
    %vm4192 = vcmp.ne.s32.totalorder %v4094, 0
    %vm4193 = vcmp.ne.s32.totalorder %v4101, 0
    %vm4194 = vcmp.ne.s32.totalorder %v4108, 0
    %vm4195 = vcmp.ne.s32.totalorder %v4115, 0
    %vm4196 = vcmp.ne.s32.totalorder %v4122, 0
    %vm4197 = vcmp.ne.s32.totalorder %v4129, 0
    %vm4198 = vcmp.ne.s32.totalorder %v4136, 0
    %vm4199 = vcmp.ne.s32.totalorder %v4143, 0
    %vm4200 = vcmp.ne.s32.totalorder %v4150, 0
    %vm4201 = vcmp.ne.s32.totalorder %v4157, 0
    %vm4202 = vcmp.ne.s32.totalorder %v4164, 0
    %vm4203 = vcmp.ne.s32.totalorder %v4171, 0
    %vm4204 = vcmp.lt.s32.totalorder %v3954, 0
    %vm4205 = vcmp.lt.s32.totalorder %v3961, 0
    %vm4206 = vcmp.lt.s32.totalorder %v3968, 0
    %vm4207 = vcmp.lt.s32.totalorder %v3975, 0
    %vm4208 = vcmp.lt.s32.totalorder %v3982, 0
    %vm4209 = vcmp.lt.s32.totalorder %v3989, 0
    %vm4210 = vcmp.lt.s32.totalorder %v3996, 0
    %vm4211 = vcmp.lt.s32.totalorder %v4003, 0
    %vm4212 = vcmp.lt.s32.totalorder %v4010, 0
    %vm4213 = vcmp.lt.s32.totalorder %v4017, 0
    %vm4214 = vcmp.lt.s32.totalorder %v4024, 0
    %vm4215 = vcmp.lt.s32.totalorder %v4031, 0
    %vm4216 = vcmp.lt.s32.totalorder %v4038, 0
    %vm4217 = vcmp.lt.s32.totalorder %v4045, 0
    %vm4218 = vcmp.lt.s32.totalorder %v4052, 0
    %vm4219 = vcmp.lt.s32.totalorder %v4059, 0
    %vm4220 = vcmp.lt.s32.totalorder %v4066, 0
    %vm4221 = vcmp.lt.s32.totalorder %v4073, 0
    %vm4222 = vcmp.lt.s32.totalorder %v4080, 0
    %vm4223 = vcmp.lt.s32.totalorder %v4087, 0
    %vm4224 = vcmp.lt.s32.totalorder %v4094, 0
    %vm4225 = vcmp.lt.s32.totalorder %v4101, 0
    %vm4226 = vcmp.lt.s32.totalorder %v4108, 0
    %vm4227 = vcmp.lt.s32.totalorder %v4115, 0
    %vm4228 = vcmp.lt.s32.totalorder %v4122, 0
    %vm4229 = vcmp.lt.s32.totalorder %v4129, 0
    %vm4230 = vcmp.lt.s32.totalorder %v4136, 0
    %vm4231 = vcmp.lt.s32.totalorder %v4143, 0
    %vm4232 = vcmp.lt.s32.totalorder %v4150, 0
    %vm4233 = vcmp.lt.s32.totalorder %v4157, 0
    %vm4234 = vcmp.lt.s32.totalorder %v4164, 0
    %vm4235 = vcmp.lt.s32.totalorder %v4171, 0
    %vm4236 = vmand %vm4204, %vm4172
    %vm4237 = vmand %vm4205, %vm4173
    %vm4238 = vmand %vm4206, %vm4174
    %vm4239 = vmand %vm4207, %vm4175
    %vm4240 = vmand %vm4208, %vm4176
    %vm4241 = vmand %vm4209, %vm4177
    %vm4242 = vmand %vm4210, %vm4178
    %vm4243 = vmand %vm4211, %vm4179
    %vm4244 = vmand %vm4212, %vm4180
    %vm4245 = vmand %vm4213, %vm4181
    %vm4246 = vmand %vm4214, %vm4182
    %vm4247 = vmand %vm4215, %vm4183
    %vm4248 = vmand %vm4216, %vm4184
    %vm4249 = vmand %vm4217, %vm4185
    %vm4250 = vmand %vm4218, %vm4186
    %vm4251 = vmand %vm4219, %vm4187
    %vm4252 = vmand %vm4220, %vm4188
    %vm4253 = vmand %vm4221, %vm4189
    %vm4254 = vmand %vm4222, %vm4190
    %vm4255 = vmand %vm4223, %vm4191
    %vm4256 = vmand %vm4224, %vm4192
    %vm4257 = vmand %vm4225, %vm4193
    %vm4258 = vmand %vm4226, %vm4194
    %vm4259 = vmand %vm4227, %vm4195
    %vm4260 = vmand %vm4228, %vm4196
    %vm4261 = vmand %vm4229, %vm4197
    %vm4262 = vmand %vm4230, %vm4198
    %vm4263 = vmand %vm4231, %vm4199
    %vm4264 = vmand %vm4232, %vm4200
    %vm4265 = vmand %vm4233, %vm4201
    %vm4266 = vmand %vm4234, %vm4202
    %vm4267 = vmand %vm4235, %vm4203
    %v4268 = vadd.s32 %v3954, 64
    %v4269 = vadd.s32 %v3961, 64
    %v4270 = vadd.s32 %v3968, 64
    %v4271 = vadd.s32 %v3975, 64
    %v4272 = vadd.s32 %v3982, 64
    %v4273 = vadd.s32 %v3989, 64
    %v4274 = vadd.s32 %v3996, 64
    %v4275 = vadd.s32 %v4003, 64
    %v4276 = vadd.s32 %v4010, 64
    %v4277 = vadd.s32 %v4017, 64
    %v4278 = vadd.s32 %v4024, 64
    %v4279 = vadd.s32 %v4031, 64
    %v4280 = vadd.s32 %v4038, 64
    %v4281 = vadd.s32 %v4045, 64
    %v4282 = vadd.s32 %v4052, 64
    %v4283 = vadd.s32 %v4059, 64
    %v4284 = vadd.s32 %v4066, 64
    %v4285 = vadd.s32 %v4073, 64
    %v4286 = vadd.s32 %v4080, 64
    %v4287 = vadd.s32 %v4087, 64
    %v4288 = vadd.s32 %v4094, 64
    %v4289 = vadd.s32 %v4101, 64
    %v4290 = vadd.s32 %v4108, 64
    %v4291 = vadd.s32 %v4115, 64
    %v4292 = vadd.s32 %v4122, 64
    %v4293 = vadd.s32 %v4129, 64
    %v4294 = vadd.s32 %v4136, 64
    %v4295 = vadd.s32 %v4143, 64
    %v4296 = vadd.s32 %v4150, 64
    %v4297 = vadd.s32 %v4157, 64
    %v4298 = vadd.s32 %v4164, 64
    %v4299 = vadd.s32 %v4171, 64
    %v4300 = vsel %vm4236, %v4268, %v3954
    %v4301 = vsel %vm4237, %v4269, %v3961
    %v4302 = vsel %vm4238, %v4270, %v3968
    %v4303 = vsel %vm4239, %v4271, %v3975
    %v4304 = vsel %vm4240, %v4272, %v3982
    %v4305 = vsel %vm4241, %v4273, %v3989
    %v4306 = vsel %vm4242, %v4274, %v3996
    %v4307 = vsel %vm4243, %v4275, %v4003
    %v4308 = vsel %vm4244, %v4276, %v4010
    %v4309 = vsel %vm4245, %v4277, %v4017
    %v4310 = vsel %vm4246, %v4278, %v4024
    %v4311 = vsel %vm4247, %v4279, %v4031
    %v4312 = vsel %vm4248, %v4280, %v4038
    %v4313 = vsel %vm4249, %v4281, %v4045
    %v4314 = vsel %vm4250, %v4282, %v4052
    %v4315 = vsel %vm4251, %v4283, %v4059
    %v4316 = vsel %vm4252, %v4284, %v4066
    %v4317 = vsel %vm4253, %v4285, %v4073
    %v4318 = vsel %vm4254, %v4286, %v4080
    %v4319 = vsel %vm4255, %v4287, %v4087
    %v4320 = vsel %vm4256, %v4288, %v4094
    %v4321 = vsel %vm4257, %v4289, %v4101
    %v4322 = vsel %vm4258, %v4290, %v4108
    %v4323 = vsel %vm4259, %v4291, %v4115
    %v4324 = vsel %vm4260, %v4292, %v4122
    %v4325 = vsel %vm4261, %v4293, %v4129
    %v4326 = vsel %vm4262, %v4294, %v4136
    %v4327 = vsel %vm4263, %v4295, %v4143
    %v4328 = vsel %vm4264, %v4296, %v4150
    %v4329 = vsel %vm4265, %v4297, %v4157
    %v4330 = vsel %vm4266, %v4298, %v4164
    %v4331 = vsel %vm4267, %v4299, %v4171
    %vm4332 = vcmp.lt.s32.totalorder %v121, 0
    %v4333 = vsub.s32 0, %v121
    %v4334 = vsel %vm4332, %v4333, %v121
    %v4335 = vshrl.u32 %v4334, 6
    %v4336 = vand.u32 %v4334, 63
    %v4337 = vsub.s32 0, %v4336
    %v4338 = vsel %vm4332, %v4337, %v4336
    %vm4339 = vcmp.lt.s32.totalorder %v1020, 0
    %v4340 = vsub.s32 0, %v1020
    %v4341 = vsel %vm4339, %v4340, %v1020
    %v4342 = vshrl.u32 %v4341, 6
    %v4343 = vand.u32 %v4341, 63
    %v4344 = vsub.s32 0, %v4343
    %v4345 = vsel %vm4339, %v4344, %v4343
    %vm4346 = vcmp.ne.s32.totalorder %v4338, 0
    %vm4347 = vcmp.ne.s32.totalorder %v4345, 0
    %vm4348 = vcmp.lt.s32.totalorder %v4338, 0
    %vm4349 = vcmp.lt.s32.totalorder %v4345, 0
    %vm4350 = vmand %vm4348, %vm4346
    %vm4351 = vmand %vm4349, %vm4347
    %v4352 = vadd.s32 %v4338, 64
    %v4353 = vadd.s32 %v4345, 64
    %v4354 = vsel %vm4350, %v4352, %v4338
    %v4355 = vsel %vm4351, %v4353, %v4345
    %vm4356 = vcmp.eq.s32.totalorder %v4300, %v4354
    %vm4357 = vcmp.eq.s32.totalorder %v4300, %v4355
    %vm4358 = vcmp.eq.s32.totalorder %v4301, %v4354
    %vm4359 = vcmp.eq.s32.totalorder %v4301, %v4355
    %vm4360 = vcmp.eq.s32.totalorder %v4302, %v4354
    %vm4361 = vcmp.eq.s32.totalorder %v4302, %v4355
    %vm4362 = vcmp.eq.s32.totalorder %v4303, %v4354
    %vm4363 = vcmp.eq.s32.totalorder %v4303, %v4355
    %vm4364 = vcmp.eq.s32.totalorder %v4304, %v4354
    %vm4365 = vcmp.eq.s32.totalorder %v4304, %v4355
    %vm4366 = vcmp.eq.s32.totalorder %v4305, %v4354
    %vm4367 = vcmp.eq.s32.totalorder %v4305, %v4355
    %vm4368 = vcmp.eq.s32.totalorder %v4306, %v4354
    %vm4369 = vcmp.eq.s32.totalorder %v4306, %v4355
    %vm4370 = vcmp.eq.s32.totalorder %v4307, %v4354
    %vm4371 = vcmp.eq.s32.totalorder %v4307, %v4355
    %vm4372 = vcmp.eq.s32.totalorder %v4308, %v4354
    %vm4373 = vcmp.eq.s32.totalorder %v4308, %v4355
    %vm4374 = vcmp.eq.s32.totalorder %v4309, %v4354
    %vm4375 = vcmp.eq.s32.totalorder %v4309, %v4355
    %vm4376 = vcmp.eq.s32.totalorder %v4310, %v4354
    %vm4377 = vcmp.eq.s32.totalorder %v4310, %v4355
    %vm4378 = vcmp.eq.s32.totalorder %v4311, %v4354
    %vm4379 = vcmp.eq.s32.totalorder %v4311, %v4355
    %vm4380 = vcmp.eq.s32.totalorder %v4312, %v4354
    %vm4381 = vcmp.eq.s32.totalorder %v4312, %v4355
    %vm4382 = vcmp.eq.s32.totalorder %v4313, %v4354
    %vm4383 = vcmp.eq.s32.totalorder %v4313, %v4355
    %vm4384 = vcmp.eq.s32.totalorder %v4314, %v4354
    %vm4385 = vcmp.eq.s32.totalorder %v4314, %v4355
    %vm4386 = vcmp.eq.s32.totalorder %v4315, %v4354
    %vm4387 = vcmp.eq.s32.totalorder %v4315, %v4355
    %vm4388 = vcmp.eq.s32.totalorder %v4316, %v4354
    %vm4389 = vcmp.eq.s32.totalorder %v4316, %v4355
    %vm4390 = vcmp.eq.s32.totalorder %v4317, %v4354
    %vm4391 = vcmp.eq.s32.totalorder %v4317, %v4355
    %vm4392 = vcmp.eq.s32.totalorder %v4318, %v4354
    %vm4393 = vcmp.eq.s32.totalorder %v4318, %v4355
    %vm4394 = vcmp.eq.s32.totalorder %v4319, %v4354
    %vm4395 = vcmp.eq.s32.totalorder %v4319, %v4355
    %vm4396 = vcmp.eq.s32.totalorder %v4320, %v4354
    %vm4397 = vcmp.eq.s32.totalorder %v4320, %v4355
    %vm4398 = vcmp.eq.s32.totalorder %v4321, %v4354
    %vm4399 = vcmp.eq.s32.totalorder %v4321, %v4355
    %vm4400 = vcmp.eq.s32.totalorder %v4322, %v4354
    %vm4401 = vcmp.eq.s32.totalorder %v4322, %v4355
    %vm4402 = vcmp.eq.s32.totalorder %v4323, %v4354
    %vm4403 = vcmp.eq.s32.totalorder %v4323, %v4355
    %vm4404 = vcmp.eq.s32.totalorder %v4324, %v4354
    %vm4405 = vcmp.eq.s32.totalorder %v4324, %v4355
    %vm4406 = vcmp.eq.s32.totalorder %v4325, %v4354
    %vm4407 = vcmp.eq.s32.totalorder %v4325, %v4355
    %vm4408 = vcmp.eq.s32.totalorder %v4326, %v4354
    %vm4409 = vcmp.eq.s32.totalorder %v4326, %v4355
    %vm4410 = vcmp.eq.s32.totalorder %v4327, %v4354
    %vm4411 = vcmp.eq.s32.totalorder %v4327, %v4355
    %vm4412 = vcmp.eq.s32.totalorder %v4328, %v4354
    %vm4413 = vcmp.eq.s32.totalorder %v4328, %v4355
    %vm4414 = vcmp.eq.s32.totalorder %v4329, %v4354
    %vm4415 = vcmp.eq.s32.totalorder %v4329, %v4355
    %vm4416 = vcmp.eq.s32.totalorder %v4330, %v4354
    %vm4417 = vcmp.eq.s32.totalorder %v4330, %v4355
    %vm4418 = vcmp.eq.s32.totalorder %v4331, %v4354
    %vm4419 = vcmp.eq.s32.totalorder %v4331, %v4355
    %v4420 = vsel %vm4356, 1, 0
    %v4421 = vsel %vm4357, 1, 0
    %v4422 = vsel %vm4358, 1, 0
    %v4423 = vsel %vm4359, 1, 0
    %v4424 = vsel %vm4360, 1, 0
    %v4425 = vsel %vm4361, 1, 0
    %v4426 = vsel %vm4362, 1, 0
    %v4427 = vsel %vm4363, 1, 0
    %v4428 = vsel %vm4364, 1, 0
    %v4429 = vsel %vm4365, 1, 0
    %v4430 = vsel %vm4366, 1, 0
    %v4431 = vsel %vm4367, 1, 0
    %v4432 = vsel %vm4368, 1, 0
    %v4433 = vsel %vm4369, 1, 0
    %v4434 = vsel %vm4370, 1, 0
    %v4435 = vsel %vm4371, 1, 0
    %v4436 = vsel %vm4372, 1, 0
    %v4437 = vsel %vm4373, 1, 0
    %v4438 = vsel %vm4374, 1, 0
    %v4439 = vsel %vm4375, 1, 0
    %v4440 = vsel %vm4376, 1, 0
    %v4441 = vsel %vm4377, 1, 0
    %v4442 = vsel %vm4378, 1, 0
    %v4443 = vsel %vm4379, 1, 0
    %v4444 = vsel %vm4380, 1, 0
    %v4445 = vsel %vm4381, 1, 0
    %v4446 = vsel %vm4382, 1, 0
    %v4447 = vsel %vm4383, 1, 0
    %v4448 = vsel %vm4384, 1, 0
    %v4449 = vsel %vm4385, 1, 0
    %v4450 = vsel %vm4386, 1, 0
    %v4451 = vsel %vm4387, 1, 0
    %v4452 = vsel %vm4388, 1, 0
    %v4453 = vsel %vm4389, 1, 0
    %v4454 = vsel %vm4390, 1, 0
    %v4455 = vsel %vm4391, 1, 0
    %v4456 = vsel %vm4392, 1, 0
    %v4457 = vsel %vm4393, 1, 0
    %v4458 = vsel %vm4394, 1, 0
    %v4459 = vsel %vm4395, 1, 0
    %v4460 = vsel %vm4396, 1, 0
    %v4461 = vsel %vm4397, 1, 0
    %v4462 = vsel %vm4398, 1, 0
    %v4463 = vsel %vm4399, 1, 0
    %v4464 = vsel %vm4400, 1, 0
    %v4465 = vsel %vm4401, 1, 0
    %v4466 = vsel %vm4402, 1, 0
    %v4467 = vsel %vm4403, 1, 0
    %v4468 = vsel %vm4404, 1, 0
    %v4469 = vsel %vm4405, 1, 0
    %v4470 = vsel %vm4406, 1, 0
    %v4471 = vsel %vm4407, 1, 0
    %v4472 = vsel %vm4408, 1, 0
    %v4473 = vsel %vm4409, 1, 0
    %v4474 = vsel %vm4410, 1, 0
    %v4475 = vsel %vm4411, 1, 0
    %v4476 = vsel %vm4412, 1, 0
    %v4477 = vsel %vm4413, 1, 0
    %v4478 = vsel %vm4414, 1, 0
    %v4479 = vsel %vm4415, 1, 0
    %v4480 = vsel %vm4416, 1, 0
    %v4481 = vsel %vm4417, 1, 0
    %v4482 = vsel %vm4418, 1, 0
    %v4483 = vsel %vm4419, 1, 0
    %v4484 = vcvt.s32.f32 %v4420
    %v4485 = vcvt.s32.f32 %v4421
    %v4486 = vcvt.s32.f32 %v4422
    %v4487 = vcvt.s32.f32 %v4423
    %v4488 = vcvt.s32.f32 %v4424
    %v4489 = vcvt.s32.f32 %v4425
    %v4490 = vcvt.s32.f32 %v4426
    %v4491 = vcvt.s32.f32 %v4427
    %v4492 = vcvt.s32.f32 %v4428
    %v4493 = vcvt.s32.f32 %v4429
    %v4494 = vcvt.s32.f32 %v4430
    %v4495 = vcvt.s32.f32 %v4431
    %v4496 = vcvt.s32.f32 %v4432
    %v4497 = vcvt.s32.f32 %v4433
    %v4498 = vcvt.s32.f32 %v4434
    %v4499 = vcvt.s32.f32 %v4435
    %v4500 = vcvt.s32.f32 %v4436
    %v4501 = vcvt.s32.f32 %v4437
    %v4502 = vcvt.s32.f32 %v4438
    %v4503 = vcvt.s32.f32 %v4439
    %v4504 = vcvt.s32.f32 %v4440
    %v4505 = vcvt.s32.f32 %v4441
    %v4506 = vcvt.s32.f32 %v4442
    %v4507 = vcvt.s32.f32 %v4443
    %v4508 = vcvt.s32.f32 %v4444
    %v4509 = vcvt.s32.f32 %v4445
    %v4510 = vcvt.s32.f32 %v4446
    %v4511 = vcvt.s32.f32 %v4447
    %v4512 = vcvt.s32.f32 %v4448
    %v4513 = vcvt.s32.f32 %v4449
    %v4514 = vcvt.s32.f32 %v4450
    %v4515 = vcvt.s32.f32 %v4451
    %v4516 = vcvt.s32.f32 %v4452
    %v4517 = vcvt.s32.f32 %v4453
    %v4518 = vcvt.s32.f32 %v4454
    %v4519 = vcvt.s32.f32 %v4455
    %v4520 = vcvt.s32.f32 %v4456
    %v4521 = vcvt.s32.f32 %v4457
    %v4522 = vcvt.s32.f32 %v4458
    %v4523 = vcvt.s32.f32 %v4459
    %v4524 = vcvt.s32.f32 %v4460
    %v4525 = vcvt.s32.f32 %v4461
    %v4526 = vcvt.s32.f32 %v4462
    %v4527 = vcvt.s32.f32 %v4463
    %v4528 = vcvt.s32.f32 %v4464
    %v4529 = vcvt.s32.f32 %v4465
    %v4530 = vcvt.s32.f32 %v4466
    %v4531 = vcvt.s32.f32 %v4467
    %v4532 = vcvt.s32.f32 %v4468
    %v4533 = vcvt.s32.f32 %v4469
    %v4534 = vcvt.s32.f32 %v4470
    %v4535 = vcvt.s32.f32 %v4471
    %v4536 = vcvt.s32.f32 %v4472
    %v4537 = vcvt.s32.f32 %v4473
    %v4538 = vcvt.s32.f32 %v4474
    %v4539 = vcvt.s32.f32 %v4475
    %v4540 = vcvt.s32.f32 %v4476
    %v4541 = vcvt.s32.f32 %v4477
    %v4542 = vcvt.s32.f32 %v4478
    %v4543 = vcvt.s32.f32 %v4479
    %v4544 = vcvt.s32.f32 %v4480
    %v4545 = vcvt.s32.f32 %v4481
    %v4546 = vcvt.s32.f32 %v4482
    %v4547 = vcvt.s32.f32 %v4483
    %v4548 = vadd.f32 %v3942, %v3944
    %v4549 = vrot.slane %v4548, 4
    %v4550 = vadd.f32 %v4548, %v4549
    %v4551 = vrot.slane %v4550, 2
    %v4552 = vadd.f32 %v4550, %v4551
    %v4553 = vrot.slane %v4552, 1
    %v4554 = vadd.f32 %v4552, %v4553
    %v4555 = vadd.f32 %v3943, %v3945
    %v4556 = vrot.slane %v4555, 4
    %v4557 = vadd.f32 %v4555, %v4556
    %v4558 = vrot.slane %v4557, 2
    %v4559 = vadd.f32 %v4557, %v4558
    %v4560 = vrot.slane %v4559, 1
    %v4561 = vadd.f32 %v4559, %v4560
    %4562 = vmatprep.subr.mxu0 %v4485
    %4563 = vmatpush1.msra.mxu0 %v4484
    %4564 = vmatprep.subr.mxu0 %v4487
    %4565 = vmatpush1.msra.mxu0 %v4486
    %4566 = vmatprep.subr.mxu0 %v4489
    %4567 = vmatpush1.msra.mxu0 %v4488
    %4568 = vmatprep.subr.mxu0 %v4491
    %4569 = vmatpush1.msra.mxu0 %v4490
    %4570 = vmatprep.subr.mxu0 %v4493
    %4571 = vmatpush1.msra.mxu0 %v4492
    %4572 = vmatprep.subr.mxu0 %v4495
    %4573 = vmatpush1.msra.mxu0 %v4494
    %4574 = vmatprep.subr.mxu0 %v4497
    %4575 = vmatpush1.msra.mxu0 %v4496
    %4576 = vmatprep.subr.mxu0 %v4499
    %4577 = vmatpush1.msra.mxu0 %v4498
    %4578 = vmatprep.subr.mxu0 %v4501
    %4579 = vmatpush1.msra.mxu0 %v4500
    %4580 = vmatprep.subr.mxu0 %v4503
    %4581 = vmatpush1.msra.mxu0 %v4502
    %4582 = vmatprep.subr.mxu0 %v4505
    %4583 = vmatpush1.msra.mxu0 %v4504
    %4584 = vmatprep.subr.mxu0 %v4507
    %4585 = vmatpush1.msra.mxu0 %v4506
    %4586 = vmatprep.subr.mxu0 %v4509
    %4587 = vmatpush1.msra.mxu0 %v4508
    %4588 = vmatprep.subr.mxu0 %v4511
    %4589 = vmatpush1.msra.mxu0 %v4510
    %4590 = vmatprep.subr.mxu0 %v4513
    %4591 = vmatpush1.msra.mxu0 %v4512
    %4592 = vmatprep.subr.mxu0 %v4515
    %4593 = vmatpush1.msra.mxu0 %v4514
    %4594 = vmatprep.subr.mxu0 %v4517
    %4595 = vmatpush1.msra.mxu0 %v4516
    %4596 = vmatprep.subr.mxu0 %v4519
    %4597 = vmatpush1.msra.mxu0 %v4518
    %4598 = vmatprep.subr.mxu0 %v4521
    %4599 = vmatpush1.msra.mxu0 %v4520
    %4600 = vmatprep.subr.mxu0 %v4523
    %4601 = vmatpush1.msra.mxu0 %v4522
    %4602 = vmatprep.subr.mxu0 %v4525
    %4603 = vmatpush1.msra.mxu0 %v4524
    %4604 = vmatprep.subr.mxu0 %v4527
    %4605 = vmatpush1.msra.mxu0 %v4526
    %4606 = vmatprep.subr.mxu0 %v4529
    %4607 = vmatpush1.msra.mxu0 %v4528
    %4608 = vmatprep.subr.mxu0 %v4531
    %4609 = vmatpush1.msra.mxu0 %v4530
    %4610 = vmatprep.subr.mxu0 %v4533
    %4611 = vmatpush1.msra.mxu0 %v4532
    %4612 = vmatprep.subr.mxu0 %v4535
    %4613 = vmatpush1.msra.mxu0 %v4534
    %4614 = vmatprep.subr.mxu0 %v4537
    %4615 = vmatpush1.msra.mxu0 %v4536
    %4616 = vmatprep.subr.mxu0 %v4539
    %4617 = vmatpush1.msra.mxu0 %v4538
    %4618 = vmatprep.subr.mxu0 %v4541
    %4619 = vmatpush1.msra.mxu0 %v4540
    %4620 = vmatprep.subr.mxu0 %v4543
    %4621 = vmatpush1.msra.mxu0 %v4542
    %4622 = vmatprep.subr.mxu0 %v4545
    %4623 = vmatpush1.msra.mxu0 %v4544
    %4624 = vmatprep.subr.mxu0 %v4547
    %4625 = vmatpush1.msra.mxu0 %v4546
    %4626 = vmatprep.mubr.f32.mxu0 %v4561
    %4627 = vmatmul.mubr.f32.gmra.mrb[0].mxu0 %v4554
    %v4628 = vpop.f32.mrb[0].mxu0
    %v4629 = vadd.f32 0.0, %v4628
    %v4630 = vpop.f32.mrb[0].mxu0
    %v4631 = vadd.f32 0.0, %v4630
    %4632 = vdwg.mxu0
    %v4633 = vrcp.pop 64.0
    %v4634 = vmul.f32 %v4629, %v4633
    %v4635 = vmul.f32 %v4631, %v4633
    %v4636 = vlaneseq
    %v4637 = vshrl.u32 %v4636, 7
    %v4638 = vsub.s32 0, %v4637
    %v4639 = vrot.slane %v4634, %v4638
    %v4640 = vlaneseq
    %v4641 = vshrl.u32 %v4640, 7
    %v4642 = vsub.s32 0, %v4641
    %v4643 = vrot.slane %v4635, %v4642
    %v4644 = vsub.f32 %v3942, %v4639
    %v4645 = vsub.f32 %v3943, %v4643
    %v4646 = vsub.f32 %v3944, %v4639
    %v4647 = vsub.f32 %v3945, %v4643
    %v4648 = vmul.f32 %v4644, %v4644
    %v4649 = vmul.f32 %v4645, %v4645
    %v4650 = vmul.f32 %v4646, %v4646
    %v4651 = vmul.f32 %v4647, %v4647
    %v4652 = vadd.f32 %v4648, %v4650
    %v4653 = vrot.slane %v4652, 4
    %v4654 = vadd.f32 %v4652, %v4653
    %v4655 = vrot.slane %v4654, 2
    %v4656 = vadd.f32 %v4654, %v4655
    %v4657 = vrot.slane %v4656, 1
    %v4658 = vadd.f32 %v4656, %v4657
    %v4659 = vadd.f32 %v4649, %v4651
    %v4660 = vrot.slane %v4659, 4
    %v4661 = vadd.f32 %v4659, %v4660
    %v4662 = vrot.slane %v4661, 2
    %v4663 = vadd.f32 %v4661, %v4662
    %v4664 = vrot.slane %v4663, 1
    %v4665 = vadd.f32 %v4663, %v4664
    %4666 = vmatprep.subr.mxu0 %v4485
    %4667 = vmatpush1.msra.mxu0 %v4484
    %4668 = vmatprep.subr.mxu0 %v4487
    %4669 = vmatpush1.msra.mxu0 %v4486
    %4670 = vmatprep.subr.mxu0 %v4489
    %4671 = vmatpush1.msra.mxu0 %v4488
    %4672 = vmatprep.subr.mxu0 %v4491
    %4673 = vmatpush1.msra.mxu0 %v4490
    %4674 = vmatprep.subr.mxu0 %v4493
    %4675 = vmatpush1.msra.mxu0 %v4492
    %4676 = vmatprep.subr.mxu0 %v4495
    %4677 = vmatpush1.msra.mxu0 %v4494
    %4678 = vmatprep.subr.mxu0 %v4497
    %4679 = vmatpush1.msra.mxu0 %v4496
    %4680 = vmatprep.subr.mxu0 %v4499
    %4681 = vmatpush1.msra.mxu0 %v4498
    %4682 = vmatprep.subr.mxu0 %v4501
    %4683 = vmatpush1.msra.mxu0 %v4500
    %4684 = vmatprep.subr.mxu0 %v4503
    %4685 = vmatpush1.msra.mxu0 %v4502
    %4686 = vmatprep.subr.mxu0 %v4505
    %4687 = vmatpush1.msra.mxu0 %v4504
    %4688 = vmatprep.subr.mxu0 %v4507
    %4689 = vmatpush1.msra.mxu0 %v4506
    %4690 = vmatprep.subr.mxu0 %v4509
    %4691 = vmatpush1.msra.mxu0 %v4508
    %4692 = vmatprep.subr.mxu0 %v4511
    %4693 = vmatpush1.msra.mxu0 %v4510
    %4694 = vmatprep.subr.mxu0 %v4513
    %4695 = vmatpush1.msra.mxu0 %v4512
    %4696 = vmatprep.subr.mxu0 %v4515
    %4697 = vmatpush1.msra.mxu0 %v4514
    %4698 = vmatprep.subr.mxu0 %v4517
    %4699 = vmatpush1.msra.mxu0 %v4516
    %4700 = vmatprep.subr.mxu0 %v4519
    %4701 = vmatpush1.msra.mxu0 %v4518
    %4702 = vmatprep.subr.mxu0 %v4521
    %4703 = vmatpush1.msra.mxu0 %v4520
    %4704 = vmatprep.subr.mxu0 %v4523
    %4705 = vmatpush1.msra.mxu0 %v4522
    %4706 = vmatprep.subr.mxu0 %v4525
    %4707 = vmatpush1.msra.mxu0 %v4524
    %4708 = vmatprep.subr.mxu0 %v4527
    %4709 = vmatpush1.msra.mxu0 %v4526
    %4710 = vmatprep.subr.mxu0 %v4529
    %4711 = vmatpush1.msra.mxu0 %v4528
    %4712 = vmatprep.subr.mxu0 %v4531
    %4713 = vmatpush1.msra.mxu0 %v4530
    %4714 = vmatprep.subr.mxu0 %v4533
    %4715 = vmatpush1.msra.mxu0 %v4532
    %4716 = vmatprep.subr.mxu0 %v4535
    %4717 = vmatpush1.msra.mxu0 %v4534
    %4718 = vmatprep.subr.mxu0 %v4537
    %4719 = vmatpush1.msra.mxu0 %v4536
    %4720 = vmatprep.subr.mxu0 %v4539
    %4721 = vmatpush1.msra.mxu0 %v4538
    %4722 = vmatprep.subr.mxu0 %v4541
    %4723 = vmatpush1.msra.mxu0 %v4540
    %4724 = vmatprep.subr.mxu0 %v4543
    %4725 = vmatpush1.msra.mxu0 %v4542
    %4726 = vmatprep.subr.mxu0 %v4545
    %4727 = vmatpush1.msra.mxu0 %v4544
    %4728 = vmatprep.subr.mxu0 %v4547
    %4729 = vmatpush1.msra.mxu0 %v4546
    %4730 = vmatprep.mubr.f32.mxu0 %v4665
    %4731 = vmatmul.mubr.f32.gmra.mrb[0].mxu0 %v4658
    %v4732 = vpop.f32.mrb[0].mxu0
    %v4733 = vadd.f32 0.0, %v4732
    %v4734 = vpop.f32.mrb[0].mxu0
    %v4735 = vadd.f32 0.0, %v4734
    %4736 = vdwg.mxu0
    %v4737 = vmul.f32 %v4733, %v4633
    %v4738 = vmul.f32 %v4735, %v4633
    %v4739 = vadd.f32 %v4737, 1e-05
    %v4740 = vadd.f32 %v4738, 1e-05
    %v4741 = vrsqrt.pop %v4739
    %v4742 = vrsqrt.pop %v4740
    %v4745 = vcombine.low %v4741, %v4742
    %v4747 = vunpack.c.l.s4 1966171168
    %v4748 = vunpack.c.0.s8 %v4747
    %v4749 = vlaneseq
    %v4750 = vshrl.u32 %v4749, 7
    %v4751 = vsub.s32 %v4748, %v4750
    %v4752 = vrot.slane %v4745, %v4751
    %v4754 = vunpack.c.l.s4 1966171168
    %v4755 = vunpack.c.0.s8 %v4754
    %v4756 = vlaneseq
    %v4757 = vshrl.u32 %v4756, 7
    %v4758 = vsub.s32 %v4755, %v4757
    %v4759 = vrot.slane %v4752, %v4758
    %v4761 = vmul.f32 %v3946, %v4759
    %v4763 = vlaneseq
    %v4764 = vshrl.u32 %v4763, 7
    %v4765 = vsub.s32 0, %v4764
    %v4766 = vrot.slane %v4761, %v4765
    %v4767 = vlaneseq
    %v4768 = vshrl.u32 %v4767, 7
    %v4769 = vsub.s32 1, %v4768
    %v4770 = vrot.slane %v4761, %v4769
    %v4773 = vmul.f32 %v4644, %v4766
    %v4774 = vmul.f32 %v4645, %v4770
    %v4775 = vmul.f32 %v4646, %v4766
    %v4776 = vmul.f32 %v4647, %v4770
    %v4778 = vlaneseq
    %v4779 = vshrl.u32 %v4778, 7
    %v4780 = vsub.s32 0, %v4779
    %v4781 = vrot.slane %v3947, %v4780
    %v4782 = vlaneseq
    %v4783 = vshrl.u32 %v4782, 7
    %v4784 = vsub.s32 1, %v4783
    %v4785 = vrot.slane %v3947, %v4784
    %v4788 = vadd.f32 %v4773, %v4781
    %v4789 = vadd.f32 %v4774, %v4785
    %v4790 = vadd.f32 %v4775, %v4781
    %v4791 = vadd.f32 %v4776, %v4785
    %vm4792 = vcmp.ge.f32.partialorder %v4788, 0.0
    %vm4793 = vcmp.ge.f32.partialorder %v4789, 0.0
    %vm4794 = vcmp.ge.f32.partialorder %v4790, 0.0
    %vm4795 = vcmp.ge.f32.partialorder %v4791, 0.0
    %v4796 = vmul.f32 %v4788, 0.01
    %v4797 = vmul.f32 %v4789, 0.01
    %v4798 = vmul.f32 %v4790, 0.01
    %v4799 = vmul.f32 %v4791, 0.01
    %v4800 = vsel %vm4792, %v4788, %v4796
    %v4801 = vsel %vm4793, %v4789, %v4797
    %v4802 = vsel %vm4794, %v4790, %v4798
    %v4803 = vsel %vm4795, %v4791, %v4799
    %4804 = vmatprep.subr.mxu0 %v4801
    %4805 = vmatpush1.msra.mxu0 %v4800
    %4806 = vmatprep.subr.mxu0 %v4803
    %4807 = vmatpush1.msra.mxu0 %v4802
    %4808 = vmatprep.subr.mxu0 0.0
    %4809 = vmatpush1.msra.mxu0 0.0
    %4810 = vmatprep.subr.mxu0 0.0
    %4811 = vmatpush1.msra.mxu0 0.0
    %4812 = vmatprep.subr.mxu0 0.0
    %4813 = vmatpush1.msra.mxu0 0.0
    %4814 = vmatprep.subr.mxu0 0.0
    %4815 = vmatpush1.msra.mxu0 0.0
    %4816 = vmatprep.subr.mxu0 0.0
    %4817 = vmatpush1.msra.mxu0 0.0
    %4818 = vmatprep.subr.mxu0 0.0
    %4819 = vmatpush1.msra.mxu0 0.0
    %4820 = vmatprep.subr.mxu0 0.0
    %4821 = vmatpush1.msra.mxu0 0.0
    %4822 = vmatprep.subr.mxu0 0.0
    %4823 = vmatpush1.msra.mxu0 0.0
    %4824 = vmatprep.subr.mxu0 0.0
    %4825 = vmatpush1.msra.mxu0 0.0
    %4826 = vmatprep.subr.mxu0 0.0
    %4827 = vmatpush1.msra.mxu0 0.0
    %4828 = vmatprep.subr.mxu0 0.0
    %4829 = vmatpush1.msra.mxu0 0.0
    %4830 = vmatprep.subr.mxu0 0.0
    %4831 = vmatpush1.msra.mxu0 0.0
    %4832 = vmatprep.subr.mxu0 0.0
    %4833 = vmatpush1.msra.mxu0 0.0
    %4834 = vmatprep.subr.mxu0 0.0
    %4835 = vmatpush1.msra.mxu0 0.0
    %4836 = vmatprep.subr.mxu0 0.0
    %4837 = vmatpush1.msra.mxu0 0.0
    %4838 = vmatprep.subr.mxu0 0.0
    %4839 = vmatpush1.msra.mxu0 0.0
    %4840 = vmatprep.subr.mxu0 0.0
    %4841 = vmatpush1.msra.mxu0 0.0
    %4842 = vmatprep.subr.mxu0 0.0
    %4843 = vmatpush1.msra.mxu0 0.0
    %4844 = vmatprep.subr.mxu0 0.0
    %4845 = vmatpush1.msra.mxu0 0.0
    %4846 = vmatprep.subr.mxu0 0.0
    %4847 = vmatpush1.msra.mxu0 0.0
    %4848 = vmatprep.subr.mxu0 0.0
    %4849 = vmatpush1.msra.mxu0 0.0
    %4850 = vmatprep.subr.mxu0 0.0
    %4851 = vmatpush1.msra.mxu0 0.0
    %4852 = vmatprep.subr.mxu0 0.0
    %4853 = vmatpush1.msra.mxu0 0.0
    %4854 = vmatprep.subr.mxu0 0.0
    %4855 = vmatpush1.msra.mxu0 0.0
    %4856 = vmatprep.subr.mxu0 0.0
    %4857 = vmatpush1.msra.mxu0 0.0
    %4858 = vmatprep.subr.mxu0 0.0
    %4859 = vmatpush1.msra.mxu0 0.0
    %4860 = vmatprep.subr.mxu0 0.0
    %4861 = vmatpush1.msra.mxu0 0.0
    %4862 = vmatprep.subr.mxu0 0.0
    %4863 = vmatpush1.msra.mxu0 0.0
    %4864 = vmatprep.subr.mxu0 0.0
    %4865 = vmatpush1.msra.mxu0 0.0
    %4866 = vmatprep.subr.mxu0 0.0
    %4867 = vmatpush1.msra.mxu0 0.0
    %4868 = vmatprep.mubr.f32.mxu0 0.0
    %4869 = vmatmul.mubr.f32.gmra.mrb[0].mxu0 %v1879
    %v4870 = vpop.f32.mrb[0].mxu0
    %v4871 = vadd.f32 0.0, %v4870
    %v4872 = vpop.f32.mrb[0].mxu0
    %v4873 = vadd.f32 0.0, %v4872
    %4874 = vmatprep.mubr.f32.mxu0 0.0
    %4875 = vmatmul.mubr.f32.gmra.mrb[0].mxu0 %v1882
    %v4876 = vpop.f32.mrb[0].mxu0
    %v4877 = vadd.f32 0.0, %v4876
    %v4878 = vpop.f32.mrb[0].mxu0
    %v4879 = vadd.f32 0.0, %v4878
    %4880 = vdwg.mxu0
    %v4881 = vld [vmem:[#allocation7] sm:$0xff]
    %v4882 = vld [vmem:[#allocation7 + $0x8] sm:$0xff]
    %v4883 = vld [vmem:[#allocation7 + $0x10] sm:$0xff]
    %v4884 = vld [vmem:[#allocation7 + $0x18] sm:$0xff]
    %v4885 = vld [vmem:[#allocation7 + $0x20] sm:$0xff]
    %v4886 = vld [vmem:[#allocation7 + $0x28] sm:$0xff]
    %v4887 = vld [vmem:[#allocation7 + $0x30] sm:$0xff]
    %v4888 = vld [vmem:[#allocation7 + $0x38] sm:$0xff]
    %v4889 = vld [vmem:[#allocation7 + $0x40] sm:$0xff]
    %v4890 = vld [vmem:[#allocation7 + $0x48] sm:$0xff]
    %v4891 = vld [vmem:[#allocation7 + $0x50] sm:$0xff]
    %v4892 = vld [vmem:[#allocation7 + $0x58] sm:$0xff]
    %v4893 = vld [vmem:[#allocation7 + $0x60] sm:$0xff]
    %v4894 = vld [vmem:[#allocation7 + $0x68] sm:$0xff]
    %v4895 = vld [vmem:[#allocation7 + $0x70] sm:$0xff]
    %v4896 = vld [vmem:[#allocation7 + $0x78] sm:$0xff]
    %v4897 = vld [vmem:[#allocation7 + $0x80] sm:$0xff]
    %v4898 = vld [vmem:[#allocation7 + $0x88] sm:$0xff]
    %v4899 = vld [vmem:[#allocation7 + $0x90] sm:$0xff]
    %v4900 = vld [vmem:[#allocation7 + $0x98] sm:$0xff]
    %v4901 = vld [vmem:[#allocation7 + $0xa0] sm:$0xff]
    %v4902 = vld [vmem:[#allocation7 + $0xa8] sm:$0xff]
    %v4903 = vld [vmem:[#allocation7 + $0xb0] sm:$0xff]
    %v4904 = vld [vmem:[#allocation7 + $0xb8] sm:$0xff]
    %v4905 = vld [vmem:[#allocation7 + $0xc0] sm:$0xff]
    %v4906 = vld [vmem:[#allocation7 + $0xc8] sm:$0xff]
    %v4907 = vld [vmem:[#allocation7 + $0xd0] sm:$0xff]
    %v4908 = vld [vmem:[#allocation7 + $0xd8] sm:$0xff]
    %v4909 = vld [vmem:[#allocation7 + $0xe0] sm:$0xff]
    %v4910 = vld [vmem:[#allocation7 + $0xe8] sm:$0xff]
    %v4911 = vld [vmem:[#allocation7 + $0xf0] sm:$0xff]
    %v4912 = vld [vmem:[#allocation7 + $0xf8] sm:$0xff]
    %v4913 = vld [vmem:[#allocation7 + $0x100] sm:$0xff]
    %v4914 = vld [vmem:[#allocation7 + $0x108] sm:$0xff]
    %v4915 = vld [vmem:[#allocation7 + $0x110] sm:$0xff]
    %v4916 = vld [vmem:[#allocation7 + $0x118] sm:$0xff]
    %v4917 = vld [vmem:[#allocation7 + $0x120] sm:$0xff]
    %v4918 = vld [vmem:[#allocation7 + $0x128] sm:$0xff]
    %v4919 = vld [vmem:[#allocation7 + $0x130] sm:$0xff]
    %v4920 = vld [vmem:[#allocation7 + $0x138] sm:$0xff]
    %v4921 = vld [vmem:[#allocation7 + $0x140] sm:$0xff]
    %v4922 = vld [vmem:[#allocation7 + $0x148] sm:$0xff]
    %v4923 = vld [vmem:[#allocation7 + $0x150] sm:$0xff]
    %v4924 = vld [vmem:[#allocation7 + $0x158] sm:$0xff]
    %v4925 = vld [vmem:[#allocation7 + $0x160] sm:$0xff]
    %v4926 = vld [vmem:[#allocation7 + $0x168] sm:$0xff]
    %v4927 = vld [vmem:[#allocation7 + $0x170] sm:$0xff]
    %v4928 = vld [vmem:[#allocation7 + $0x178] sm:$0xff]
    %v4929 = vld [vmem:[#allocation7 + $0x180] sm:$0xff]
    %v4930 = vld [vmem:[#allocation7 + $0x188] sm:$0xff]
    %v4931 = vld [vmem:[#allocation7 + $0x190] sm:$0xff]
    %v4932 = vld [vmem:[#allocation7 + $0x198] sm:$0xff]
    %v4933 = vld [vmem:[#allocation7 + $0x1a0] sm:$0xff]
    %v4934 = vld [vmem:[#allocation7 + $0x1a8] sm:$0xff]
    %v4935 = vld [vmem:[#allocation7 + $0x1b0] sm:$0xff]
    %v4936 = vld [vmem:[#allocation7 + $0x1b8] sm:$0xff]
    %v4937 = vld [vmem:[#allocation7 + $0x1c0] sm:$0xff]
    %v4938 = vld [vmem:[#allocation7 + $0x1c8] sm:$0xff]
    %v4939 = vld [vmem:[#allocation7 + $0x1d0] sm:$0xff]
    %v4940 = vld [vmem:[#allocation7 + $0x1d8] sm:$0xff]
    %v4941 = vld [vmem:[#allocation7 + $0x1e0] sm:$0xff]
    %v4942 = vld [vmem:[#allocation7 + $0x1e8] sm:$0xff]
    %v4943 = vld [vmem:[#allocation7 + $0x1f0] sm:$0xff]
    %v4944 = vld [vmem:[#allocation7 + $0x1f8] sm:$0xff]
    %s4945 = scalar_lea.vmem [#allocation7], 512
    %v4946 = vld [vmem:[%s4945] sm:$0xff]
    %v4947 = vld [vmem:[%s4945 + $0x8] sm:$0xff]
    %v4948 = vld [vmem:[%s4945 + $0x10] sm:$0xff]
    %v4949 = vld [vmem:[%s4945 + $0x18] sm:$0xff]
    %v4950 = vld [vmem:[%s4945 + $0x20] sm:$0xff]
    %v4951 = vld [vmem:[%s4945 + $0x28] sm:$0xff]
    %v4952 = vld [vmem:[%s4945 + $0x30] sm:$0xff]
    %v4953 = vld [vmem:[%s4945 + $0x38] sm:$0xff]
    %v4954 = vld [vmem:[%s4945 + $0x40] sm:$0xff]
    %v4955 = vld [vmem:[%s4945 + $0x48] sm:$0xff]
    %v4956 = vld [vmem:[%s4945 + $0x50] sm:$0xff]
    %v4957 = vld [vmem:[%s4945 + $0x58] sm:$0xff]
    %v4958 = vld [vmem:[%s4945 + $0x60] sm:$0xff]
    %v4959 = vld [vmem:[%s4945 + $0x68] sm:$0xff]
    %v4960 = vld [vmem:[%s4945 + $0x70] sm:$0xff]
    %v4961 = vld [vmem:[%s4945 + $0x78] sm:$0xff]
    %v4962 = vld [vmem:[%s4945 + $0x80] sm:$0xff]
    %v4963 = vld [vmem:[%s4945 + $0x88] sm:$0xff]
    %v4964 = vld [vmem:[%s4945 + $0x90] sm:$0xff]
    %v4965 = vld [vmem:[%s4945 + $0x98] sm:$0xff]
    %v4966 = vld [vmem:[%s4945 + $0xa0] sm:$0xff]
    %v4967 = vld [vmem:[%s4945 + $0xa8] sm:$0xff]
    %v4968 = vld [vmem:[%s4945 + $0xb0] sm:$0xff]
    %v4969 = vld [vmem:[%s4945 + $0xb8] sm:$0xff]
    %v4970 = vld [vmem:[%s4945 + $0xc0] sm:$0xff]
    %v4971 = vld [vmem:[%s4945 + $0xc8] sm:$0xff]
    %v4972 = vld [vmem:[%s4945 + $0xd0] sm:$0xff]
    %v4973 = vld [vmem:[%s4945 + $0xd8] sm:$0xff]
    %v4974 = vld [vmem:[%s4945 + $0xe0] sm:$0xff]
    %v4975 = vld [vmem:[%s4945 + $0xe8] sm:$0xff]
    %v4976 = vld [vmem:[%s4945 + $0xf0] sm:$0xff]
    %v4977 = vld [vmem:[%s4945 + $0xf8] sm:$0xff]
    %v4978 = vld [vmem:[%s4945 + $0x100] sm:$0xff]
    %v4979 = vld [vmem:[%s4945 + $0x108] sm:$0xff]
    %v4980 = vld [vmem:[%s4945 + $0x110] sm:$0xff]
    %v4981 = vld [vmem:[%s4945 + $0x118] sm:$0xff]
    %v4982 = vld [vmem:[%s4945 + $0x120] sm:$0xff]
    %v4983 = vld [vmem:[%s4945 + $0x128] sm:$0xff]
    %v4984 = vld [vmem:[%s4945 + $0x130] sm:$0xff]
    %v4985 = vld [vmem:[%s4945 + $0x138] sm:$0xff]
    %v4986 = vld [vmem:[%s4945 + $0x140] sm:$0xff]
    %v4987 = vld [vmem:[%s4945 + $0x148] sm:$0xff]
    %v4988 = vld [vmem:[%s4945 + $0x150] sm:$0xff]
    %v4989 = vld [vmem:[%s4945 + $0x158] sm:$0xff]
    %v4990 = vld [vmem:[%s4945 + $0x160] sm:$0xff]
    %v4991 = vld [vmem:[%s4945 + $0x168] sm:$0xff]
    %v4992 = vld [vmem:[%s4945 + $0x170] sm:$0xff]
    %v4993 = vld [vmem:[%s4945 + $0x178] sm:$0xff]
    %v4994 = vld [vmem:[%s4945 + $0x180] sm:$0xff]
    %v4995 = vld [vmem:[%s4945 + $0x188] sm:$0xff]
    %v4996 = vld [vmem:[%s4945 + $0x190] sm:$0xff]
    %v4997 = vld [vmem:[%s4945 + $0x198] sm:$0xff]
    %v4998 = vld [vmem:[%s4945 + $0x1a0] sm:$0xff]
    %v4999 = vld [vmem:[%s4945 + $0x1a8] sm:$0xff]
    %v5000 = vld [vmem:[%s4945 + $0x1b0] sm:$0xff]
    %v5001 = vld [vmem:[%s4945 + $0x1b8] sm:$0xff]
    %v5002 = vld [vmem:[%s4945 + $0x1c0] sm:$0xff]
    %v5003 = vld [vmem:[%s4945 + $0x1c8] sm:$0xff]
    %v5004 = vld [vmem:[%s4945 + $0x1d0] sm:$0xff]
    %v5005 = vld [vmem:[%s4945 + $0x1d8] sm:$0xff]
    %v5006 = vld [vmem:[%s4945 + $0x1e0] sm:$0xff]
    %v5007 = vld [vmem:[%s4945 + $0x1e8] sm:$0xff]
    %v5008 = vld [vmem:[%s4945 + $0x1f0] sm:$0xff]
    %v5009 = vld [vmem:[%s4945 + $0x1f8] sm:$0xff]
    %5010 = vmatprep.subr.mxu0 %v4947
    %5011 = vmatpush1.msra.mxu0 %v4946
    %5012 = vmatprep.subr.mxu0 %v4949
    %5013 = vmatpush1.msra.mxu0 %v4948
    %5014 = vmatprep.subr.mxu0 %v4951
    %5015 = vmatpush1.msra.mxu0 %v4950
    %5016 = vmatprep.subr.mxu0 %v4953
    %5017 = vmatpush1.msra.mxu0 %v4952
    %5018 = vmatprep.subr.mxu0 %v4955
    %5019 = vmatpush1.msra.mxu0 %v4954
    %5020 = vmatprep.subr.mxu0 %v4957
    %5021 = vmatpush1.msra.mxu0 %v4956
    %5022 = vmatprep.subr.mxu0 %v4959
    %5023 = vmatpush1.msra.mxu0 %v4958
    %5024 = vmatprep.subr.mxu0 %v4961
    %5025 = vmatpush1.msra.mxu0 %v4960
    %5026 = vmatprep.subr.mxu0 %v4963
    %5027 = vmatpush1.msra.mxu0 %v4962
    %5028 = vmatprep.subr.mxu0 %v4965
    %5029 = vmatpush1.msra.mxu0 %v4964
    %5030 = vmatprep.subr.mxu0 %v4967
    %5031 = vmatpush1.msra.mxu0 %v4966
    %5032 = vmatprep.subr.mxu0 %v4969
    %5033 = vmatpush1.msra.mxu0 %v4968
    %5034 = vmatprep.subr.mxu0 %v4971
    %5035 = vmatpush1.msra.mxu0 %v4970
    %5036 = vmatprep.subr.mxu0 %v4973
    %5037 = vmatpush1.msra.mxu0 %v4972
    %5038 = vmatprep.subr.mxu0 %v4975
    %5039 = vmatpush1.msra.mxu0 %v4974
    %5040 = vmatprep.subr.mxu0 %v4977
    %5041 = vmatpush1.msra.mxu0 %v4976
    %5042 = vmatprep.subr.mxu0 %v4979
    %5043 = vmatpush1.msra.mxu0 %v4978
    %5044 = vmatprep.subr.mxu0 %v4981
    %5045 = vmatpush1.msra.mxu0 %v4980
    %5046 = vmatprep.subr.mxu0 %v4983
    %5047 = vmatpush1.msra.mxu0 %v4982
    %5048 = vmatprep.subr.mxu0 %v4985
    %5049 = vmatpush1.msra.mxu0 %v4984
    %5050 = vmatprep.subr.mxu0 %v4987
    %5051 = vmatpush1.msra.mxu0 %v4986
    %5052 = vmatprep.subr.mxu0 %v4989
    %5053 = vmatpush1.msra.mxu0 %v4988
    %5054 = vmatprep.subr.mxu0 %v4991
    %5055 = vmatpush1.msra.mxu0 %v4990
    %5056 = vmatprep.subr.mxu0 %v4993
    %5057 = vmatpush1.msra.mxu0 %v4992
    %5058 = vmatprep.subr.mxu0 %v4995
    %5059 = vmatpush1.msra.mxu0 %v4994
    %5060 = vmatprep.subr.mxu0 %v4997
    %5061 = vmatpush1.msra.mxu0 %v4996
    %5062 = vmatprep.subr.mxu0 %v4999
    %5063 = vmatpush1.msra.mxu0 %v4998
    %5064 = vmatprep.subr.mxu0 %v5001
    %5065 = vmatpush1.msra.mxu0 %v5000
    %5066 = vmatprep.subr.mxu0 %v5003
    %5067 = vmatpush1.msra.mxu0 %v5002
    %5068 = vmatprep.subr.mxu0 %v5005
    %5069 = vmatpush1.msra.mxu0 %v5004
    %5070 = vmatprep.subr.mxu0 %v5007
    %5071 = vmatpush1.msra.mxu0 %v5006
    %5072 = vmatprep.subr.mxu0 %v5009
    %5073 = vmatpush1.msra.mxu0 %v5008
    %5074 = vmatprep.mubr.f32.mxu0 %v4801
    %5075 = vmatmul.mubr.f32.gmra.mrb[0].mxu0 %v4800
    %v5076 = vpop.f32.mrb[0].mxu0
    %v5077 = vadd.f32 0.0, %v5076
    %v5078 = vpop.f32.mrb[0].mxu0
    %v5079 = vadd.f32 0.0, %v5078
    %5080 = vmatprep.mubr.f32.mxu0 %v4803
    %5081 = vmatmul.mubr.f32.gmra.mrb[0].mxu0 %v4802
    %v5082 = vpop.f32.mrb[0].mxu0
    %v5083 = vadd.f32 0.0, %v5082
    %v5084 = vpop.f32.mrb[0].mxu0
    %v5085 = vadd.f32 0.0, %v5084
    %5086 = vdwg.mxu0
    %5087 = vmatprep.subr.mxu0 %v4882
    %5088 = vmatpush1.msra.mxu0 %v4881
    %5089 = vmatprep.subr.mxu0 %v4884
    %5090 = vmatpush1.msra.mxu0 %v4883
    %5091 = vmatprep.subr.mxu0 %v4886
    %5092 = vmatpush1.msra.mxu0 %v4885
    %5093 = vmatprep.subr.mxu0 %v4888
    %5094 = vmatpush1.msra.mxu0 %v4887
    %5095 = vmatprep.subr.mxu0 %v4890
    %5096 = vmatpush1.msra.mxu0 %v4889
    %5097 = vmatprep.subr.mxu0 %v4892
    %5098 = vmatpush1.msra.mxu0 %v4891
    %5099 = vmatprep.subr.mxu0 %v4894
    %5100 = vmatpush1.msra.mxu0 %v4893
    %5101 = vmatprep.subr.mxu0 %v4896
    %5102 = vmatpush1.msra.mxu0 %v4895
    %5103 = vmatprep.subr.mxu0 %v4898
    %5104 = vmatpush1.msra.mxu0 %v4897
    %5105 = vmatprep.subr.mxu0 %v4900
    %5106 = vmatpush1.msra.mxu0 %v4899
    %5107 = vmatprep.subr.mxu0 %v4902
    %5108 = vmatpush1.msra.mxu0 %v4901
    %5109 = vmatprep.subr.mxu0 %v4904
    %5110 = vmatpush1.msra.mxu0 %v4903
    %5111 = vmatprep.subr.mxu0 %v4906
    %5112 = vmatpush1.msra.mxu0 %v4905
    %5113 = vmatprep.subr.mxu0 %v4908
    %5114 = vmatpush1.msra.mxu0 %v4907
    %5115 = vmatprep.subr.mxu0 %v4910
    %5116 = vmatpush1.msra.mxu0 %v4909
    %5117 = vmatprep.subr.mxu0 %v4912
    %5118 = vmatpush1.msra.mxu0 %v4911
    %5119 = vmatprep.subr.mxu0 %v4914
    %5120 = vmatpush1.msra.mxu0 %v4913
    %5121 = vmatprep.subr.mxu0 %v4916
    %5122 = vmatpush1.msra.mxu0 %v4915
    %5123 = vmatprep.subr.mxu0 %v4918
    %5124 = vmatpush1.msra.mxu0 %v4917
    %5125 = vmatprep.subr.mxu0 %v4920
    %5126 = vmatpush1.msra.mxu0 %v4919
    %5127 = vmatprep.subr.mxu0 %v4922
    %5128 = vmatpush1.msra.mxu0 %v4921
    %5129 = vmatprep.subr.mxu0 %v4924
    %5130 = vmatpush1.msra.mxu0 %v4923
    %5131 = vmatprep.subr.mxu0 %v4926
    %5132 = vmatpush1.msra.mxu0 %v4925
    %5133 = vmatprep.subr.mxu0 %v4928
    %5134 = vmatpush1.msra.mxu0 %v4927
    %5135 = vmatprep.subr.mxu0 %v4930
    %5136 = vmatpush1.msra.mxu0 %v4929
    %5137 = vmatprep.subr.mxu0 %v4932
    %5138 = vmatpush1.msra.mxu0 %v4931
    %5139 = vmatprep.subr.mxu0 %v4934
    %5140 = vmatpush1.msra.mxu0 %v4933
    %5141 = vmatprep.subr.mxu0 %v4936
    %5142 = vmatpush1.msra.mxu0 %v4935
    %5143 = vmatprep.subr.mxu0 %v4938
    %5144 = vmatpush1.msra.mxu0 %v4937
    %5145 = vmatprep.subr.mxu0 %v4940
    %5146 = vmatpush1.msra.mxu0 %v4939
    %5147 = vmatprep.subr.mxu0 %v4942
    %5148 = vmatpush1.msra.mxu0 %v4941
    %5149 = vmatprep.subr.mxu0 %v4944
    %5150 = vmatpush1.msra.mxu0 %v4943
    %5151 = vmatprep.mubr.f32.mxu0 %v4873
    %5152 = vmatmul.mubr.f32.gmra.mrb[0].mxu0 %v4871
    %v5153 = vpop.f32.mrb[0].mxu0
    %v5154 = vadd.f32 %v5077, %v5153
    %v5155 = vpop.f32.mrb[0].mxu0
    %v5156 = vadd.f32 %v5079, %v5155
    %5157 = vmatprep.mubr.f32.mxu0 %v4879
    %5158 = vmatmul.mubr.f32.gmra.mrb[0].mxu0 %v4877
    %v5159 = vpop.f32.mrb[0].mxu0
    %v5160 = vadd.f32 %v5083, %v5159
    %v5161 = vpop.f32.mrb[0].mxu0
    %v5162 = vadd.f32 %v5085, %v5161
    %5163 = vdwg.mxu0
    %5164 = vmatprep.subr.mxu0 %v4801
    %5165 = vmatpush1.msra.mxu0 %v4800
    %5166 = vmatprep.subr.mxu0 %v4803
    %5167 = vmatpush1.msra.mxu0 %v4802
    %5168 = vmatprep.subr.mxu0 0.0
    %5169 = vmatpush1.msra.mxu0 0.0
    %5170 = vmatprep.subr.mxu0 0.0
    %5171 = vmatpush1.msra.mxu0 0.0
    %5172 = vmatprep.subr.mxu0 0.0
    %5173 = vmatpush1.msra.mxu0 0.0
    %5174 = vmatprep.subr.mxu0 0.0
    %5175 = vmatpush1.msra.mxu0 0.0
    %5176 = vmatprep.subr.mxu0 0.0
    %5177 = vmatpush1.msra.mxu0 0.0
    %5178 = vmatprep.subr.mxu0 0.0
    %5179 = vmatpush1.msra.mxu0 0.0
    %5180 = vmatprep.subr.mxu0 0.0
    %5181 = vmatpush1.msra.mxu0 0.0
    %5182 = vmatprep.subr.mxu0 0.0
    %5183 = vmatpush1.msra.mxu0 0.0
    %5184 = vmatprep.subr.mxu0 0.0
    %5185 = vmatpush1.msra.mxu0 0.0
    %5186 = vmatprep.subr.mxu0 0.0
    %5187 = vmatpush1.msra.mxu0 0.0
    %5188 = vmatprep.subr.mxu0 0.0
    %5189 = vmatpush1.msra.mxu0 0.0
    %5190 = vmatprep.subr.mxu0 0.0
    %5191 = vmatpush1.msra.mxu0 0.0
    %5192 = vmatprep.subr.mxu0 0.0
    %5193 = vmatpush1.msra.mxu0 0.0
    %5194 = vmatprep.subr.mxu0 0.0
    %5195 = vmatpush1.msra.mxu0 0.0
    %5196 = vmatprep.subr.mxu0 0.0
    %5197 = vmatpush1.msra.mxu0 0.0
    %5198 = vmatprep.subr.mxu0 0.0
    %5199 = vmatpush1.msra.mxu0 0.0
    %5200 = vmatprep.subr.mxu0 0.0
    %5201 = vmatpush1.msra.mxu0 0.0
    %5202 = vmatprep.subr.mxu0 0.0
    %5203 = vmatpush1.msra.mxu0 0.0
    %5204 = vmatprep.subr.mxu0 0.0
    %5205 = vmatpush1.msra.mxu0 0.0
    %5206 = vmatprep.subr.mxu0 0.0
    %5207 = vmatpush1.msra.mxu0 0.0
    %5208 = vmatprep.subr.mxu0 0.0
    %5209 = vmatpush1.msra.mxu0 0.0
    %5210 = vmatprep.subr.mxu0 0.0
    %5211 = vmatpush1.msra.mxu0 0.0
    %5212 = vmatprep.subr.mxu0 0.0
    %5213 = vmatpush1.msra.mxu0 0.0
    %5214 = vmatprep.subr.mxu0 0.0
    %5215 = vmatpush1.msra.mxu0 0.0
    %5216 = vmatprep.subr.mxu0 0.0
    %5217 = vmatpush1.msra.mxu0 0.0
    %5218 = vmatprep.subr.mxu0 0.0
    %5219 = vmatpush1.msra.mxu0 0.0
    %5220 = vmatprep.subr.mxu0 0.0
    %5221 = vmatpush1.msra.mxu0 0.0
    %5222 = vmatprep.subr.mxu0 0.0
    %5223 = vmatpush1.msra.mxu0 0.0
    %5224 = vmatprep.subr.mxu0 0.0
    %5225 = vmatpush1.msra.mxu0 0.0
    %5226 = vmatprep.subr.mxu0 0.0
    %5227 = vmatpush1.msra.mxu0 0.0
    %5228 = vmatprep.mubr.f32.mxu0 0.0
    %5229 = vmatmul.mubr.f32.gmra.mrb[0].mxu0 %v2245
    %v5230 = vpop.f32.mrb[0].mxu0
    %v5231 = vadd.f32 0.0, %v5230
    %v5232 = vpop.f32.mrb[0].mxu0
    %v5233 = vadd.f32 0.0, %v5232
    %5234 = vmatprep.mubr.f32.mxu0 0.0
    %5235 = vmatmul.mubr.f32.gmra.mrb[0].mxu0 %v2248
    %v5236 = vpop.f32.mrb[0].mxu0
    %v5237 = vadd.f32 0.0, %v5236
    %v5238 = vpop.f32.mrb[0].mxu0
    %v5239 = vadd.f32 0.0, %v5238
    %5240 = vdwg.mxu0
    %s5241 = scalar_lea.vmem [#allocation7], 1024
    %v5242 = vld [vmem:[%s5241] sm:$0xff]
    %v5243 = vld [vmem:[%s5241 + $0x8] sm:$0xff]
    %v5244 = vld [vmem:[%s5241 + $0x10] sm:$0xff]
    %v5245 = vld [vmem:[%s5241 + $0x18] sm:$0xff]
    %v5246 = vld [vmem:[%s5241 + $0x20] sm:$0xff]
    %v5247 = vld [vmem:[%s5241 + $0x28] sm:$0xff]
    %v5248 = vld [vmem:[%s5241 + $0x30] sm:$0xff]
    %v5249 = vld [vmem:[%s5241 + $0x38] sm:$0xff]
    %v5250 = vld [vmem:[%s5241 + $0x40] sm:$0xff]
    %v5251 = vld [vmem:[%s5241 + $0x48] sm:$0xff]
    %v5252 = vld [vmem:[%s5241 + $0x50] sm:$0xff]
    %v5253 = vld [vmem:[%s5241 + $0x58] sm:$0xff]
    %v5254 = vld [vmem:[%s5241 + $0x60] sm:$0xff]
    %v5255 = vld [vmem:[%s5241 + $0x68] sm:$0xff]
    %v5256 = vld [vmem:[%s5241 + $0x70] sm:$0xff]
    %v5257 = vld [vmem:[%s5241 + $0x78] sm:$0xff]
    %v5258 = vld [vmem:[%s5241 + $0x80] sm:$0xff]
    %v5259 = vld [vmem:[%s5241 + $0x88] sm:$0xff]
    %v5260 = vld [vmem:[%s5241 + $0x90] sm:$0xff]
    %v5261 = vld [vmem:[%s5241 + $0x98] sm:$0xff]
    %v5262 = vld [vmem:[%s5241 + $0xa0] sm:$0xff]
    %v5263 = vld [vmem:[%s5241 + $0xa8] sm:$0xff]
    %v5264 = vld [vmem:[%s5241 + $0xb0] sm:$0xff]
    %v5265 = vld [vmem:[%s5241 + $0xb8] sm:$0xff]
    %v5266 = vld [vmem:[%s5241 + $0xc0] sm:$0xff]
    %v5267 = vld [vmem:[%s5241 + $0xc8] sm:$0xff]
    %v5268 = vld [vmem:[%s5241 + $0xd0] sm:$0xff]
    %v5269 = vld [vmem:[%s5241 + $0xd8] sm:$0xff]
    %v5270 = vld [vmem:[%s5241 + $0xe0] sm:$0xff]
    %v5271 = vld [vmem:[%s5241 + $0xe8] sm:$0xff]
    %v5272 = vld [vmem:[%s5241 + $0xf0] sm:$0xff]
    %v5273 = vld [vmem:[%s5241 + $0xf8] sm:$0xff]
    %v5274 = vld [vmem:[%s5241 + $0x100] sm:$0xff]
    %v5275 = vld [vmem:[%s5241 + $0x108] sm:$0xff]
    %v5276 = vld [vmem:[%s5241 + $0x110] sm:$0xff]
    %v5277 = vld [vmem:[%s5241 + $0x118] sm:$0xff]
    %v5278 = vld [vmem:[%s5241 + $0x120] sm:$0xff]
    %v5279 = vld [vmem:[%s5241 + $0x128] sm:$0xff]
    %v5280 = vld [vmem:[%s5241 + $0x130] sm:$0xff]
    %v5281 = vld [vmem:[%s5241 + $0x138] sm:$0xff]
    %v5282 = vld [vmem:[%s5241 + $0x140] sm:$0xff]
    %v5283 = vld [vmem:[%s5241 + $0x148] sm:$0xff]
    %v5284 = vld [vmem:[%s5241 + $0x150] sm:$0xff]
    %v5285 = vld [vmem:[%s5241 + $0x158] sm:$0xff]
    %v5286 = vld [vmem:[%s5241 + $0x160] sm:$0xff]
    %v5287 = vld [vmem:[%s5241 + $0x168] sm:$0xff]
    %v5288 = vld [vmem:[%s5241 + $0x170] sm:$0xff]
    %v5289 = vld [vmem:[%s5241 + $0x178] sm:$0xff]
    %v5290 = vld [vmem:[%s5241 + $0x180] sm:$0xff]
    %v5291 = vld [vmem:[%s5241 + $0x188] sm:$0xff]
    %v5292 = vld [vmem:[%s5241 + $0x190] sm:$0xff]
    %v5293 = vld [vmem:[%s5241 + $0x198] sm:$0xff]
    %v5294 = vld [vmem:[%s5241 + $0x1a0] sm:$0xff]
    %v5295 = vld [vmem:[%s5241 + $0x1a8] sm:$0xff]
    %v5296 = vld [vmem:[%s5241 + $0x1b0] sm:$0xff]
    %v5297 = vld [vmem:[%s5241 + $0x1b8] sm:$0xff]
    %v5298 = vld [vmem:[%s5241 + $0x1c0] sm:$0xff]
    %v5299 = vld [vmem:[%s5241 + $0x1c8] sm:$0xff]
    %v5300 = vld [vmem:[%s5241 + $0x1d0] sm:$0xff]
    %v5301 = vld [vmem:[%s5241 + $0x1d8] sm:$0xff]
    %v5302 = vld [vmem:[%s5241 + $0x1e0] sm:$0xff]
    %v5303 = vld [vmem:[%s5241 + $0x1e8] sm:$0xff]
    %v5304 = vld [vmem:[%s5241 + $0x1f0] sm:$0xff]
    %v5305 = vld [vmem:[%s5241 + $0x1f8] sm:$0xff]
    %5306 = vmatprep.subr.mxu0 %v5243
    %5307 = vmatpush1.msra.mxu0 %v5242
    %5308 = vmatprep.subr.mxu0 %v5245
    %5309 = vmatpush1.msra.mxu0 %v5244
    %5310 = vmatprep.subr.mxu0 %v5247
    %5311 = vmatpush1.msra.mxu0 %v5246
    %5312 = vmatprep.subr.mxu0 %v5249
    %5313 = vmatpush1.msra.mxu0 %v5248
    %5314 = vmatprep.subr.mxu0 %v5251
    %5315 = vmatpush1.msra.mxu0 %v5250
    %5316 = vmatprep.subr.mxu0 %v5253
    %5317 = vmatpush1.msra.mxu0 %v5252
    %5318 = vmatprep.subr.mxu0 %v5255
    %5319 = vmatpush1.msra.mxu0 %v5254
    %5320 = vmatprep.subr.mxu0 %v5257
    %5321 = vmatpush1.msra.mxu0 %v5256
    %5322 = vmatprep.subr.mxu0 %v5259
    %5323 = vmatpush1.msra.mxu0 %v5258
    %5324 = vmatprep.subr.mxu0 %v5261
    %5325 = vmatpush1.msra.mxu0 %v5260
    %5326 = vmatprep.subr.mxu0 %v5263
    %5327 = vmatpush1.msra.mxu0 %v5262
    %5328 = vmatprep.subr.mxu0 %v5265
    %5329 = vmatpush1.msra.mxu0 %v5264
    %5330 = vmatprep.subr.mxu0 %v5267
    %5331 = vmatpush1.msra.mxu0 %v5266
    %5332 = vmatprep.subr.mxu0 %v5269
    %5333 = vmatpush1.msra.mxu0 %v5268
    %5334 = vmatprep.subr.mxu0 %v5271
    %5335 = vmatpush1.msra.mxu0 %v5270
    %5336 = vmatprep.subr.mxu0 %v5273
    %5337 = vmatpush1.msra.mxu0 %v5272
    %5338 = vmatprep.subr.mxu0 %v5275
    %5339 = vmatpush1.msra.mxu0 %v5274
    %5340 = vmatprep.subr.mxu0 %v5277
    %5341 = vmatpush1.msra.mxu0 %v5276
    %5342 = vmatprep.subr.mxu0 %v5279
    %5343 = vmatpush1.msra.mxu0 %v5278
    %5344 = vmatprep.subr.mxu0 %v5281
    %5345 = vmatpush1.msra.mxu0 %v5280
    %5346 = vmatprep.subr.mxu0 %v5283
    %5347 = vmatpush1.msra.mxu0 %v5282
    %5348 = vmatprep.subr.mxu0 %v5285
    %5349 = vmatpush1.msra.mxu0 %v5284
    %5350 = vmatprep.subr.mxu0 %v5287
    %5351 = vmatpush1.msra.mxu0 %v5286
    %5352 = vmatprep.subr.mxu0 %v5289
    %5353 = vmatpush1.msra.mxu0 %v5288
    %5354 = vmatprep.subr.mxu0 %v5291
    %5355 = vmatpush1.msra.mxu0 %v5290
    %5356 = vmatprep.subr.mxu0 %v5293
    %5357 = vmatpush1.msra.mxu0 %v5292
    %5358 = vmatprep.subr.mxu0 %v5295
    %5359 = vmatpush1.msra.mxu0 %v5294
    %5360 = vmatprep.subr.mxu0 %v5297
    %5361 = vmatpush1.msra.mxu0 %v5296
    %5362 = vmatprep.subr.mxu0 %v5299
    %5363 = vmatpush1.msra.mxu0 %v5298
    %5364 = vmatprep.subr.mxu0 %v5301
    %5365 = vmatpush1.msra.mxu0 %v5300
    %5366 = vmatprep.subr.mxu0 %v5303
    %5367 = vmatpush1.msra.mxu0 %v5302
    %5368 = vmatprep.subr.mxu0 %v5305
    %5369 = vmatpush1.msra.mxu0 %v5304
    %5370 = vmatprep.mubr.f32.mxu0 %v5233
    %5371 = vmatmul.mubr.f32.gmra.mrb[0].mxu0 %v5231
    %v5372 = vpop.f32.mrb[0].mxu0
    %v5373 = vadd.f32 0.0, %v5372
    %v5374 = vpop.f32.mrb[0].mxu0
    %v5375 = vadd.f32 0.0, %v5374
    %5376 = vmatprep.mubr.f32.mxu0 %v5239
    %5377 = vmatmul.mubr.f32.gmra.mrb[0].mxu0 %v5237
    %v5378 = vpop.f32.mrb[0].mxu0
    %v5379 = vadd.f32 0.0, %v5378
    %v5380 = vpop.f32.mrb[0].mxu0
    %v5381 = vadd.f32 0.0, %v5380
    %5382 = vdwg.mxu0
    %v5383 = vadd.f32 %v5154, %v5373
    %v5384 = vadd.f32 %v5156, %v5375
    %v5385 = vadd.f32 %v5160, %v5379
    %v5386 = vadd.f32 %v5162, %v5381
    %v5387 = vld [vmem:[%s14] sm:$0x3]
    %v5389 = vlaneseq
    %v5390 = vshrl.u32 %v5389, 7
    %v5391 = vsub.s32 0, %v5390
    %v5392 = vrot.slane %v5387, %v5391
    %v5393 = vlaneseq
    %v5394 = vshrl.u32 %v5393, 7
    %v5395 = vsub.s32 1, %v5394
    %v5396 = vrot.slane %v5387, %v5395
    %v5399 = vadd.f32 %v5383, %v5392
    %v5400 = vadd.f32 %v5384, %v5396
    %v5401 = vadd.f32 %v5385, %v5392
    %v5402 = vadd.f32 %v5386, %v5396
    %v5403 = vld [vmem:[%s15] sm:$0x3]
    %v5404 = vld [vmem:[%s16] sm:$0x3]
    %vm5405 = vcmp.lt.s32.totalorder %v118, 0
    %v5406 = vsub.s32 0, %v118
    %v5407 = vsel %vm5405, %v5406, %v118
    %v5408 = vshrl.u32 %v5407, 5
    %v5409 = vand.u32 %v5407, 31
    %v5410 = vsub.s32 0, %v5409
    %v5411 = vsel %vm5405, %v5410, %v5409
    %vm5412 = vcmp.lt.s32.totalorder %v119, 0
    %v5413 = vsub.s32 0, %v119
    %v5414 = vsel %vm5412, %v5413, %v119
    %v5415 = vshrl.u32 %v5414, 5
    %v5416 = vand.u32 %v5414, 31
    %v5417 = vsub.s32 0, %v5416
    %v5418 = vsel %vm5412, %v5417, %v5416
    %vm5419 = vcmp.lt.s32.totalorder %v990, 0
    %v5420 = vsub.s32 0, %v990
    %v5421 = vsel %vm5419, %v5420, %v990
    %v5422 = vshrl.u32 %v5421, 5
    %v5423 = vand.u32 %v5421, 31
    %v5424 = vsub.s32 0, %v5423
    %v5425 = vsel %vm5419, %v5424, %v5423
    %vm5426 = vcmp.lt.s32.totalorder %v991, 0
    %v5427 = vsub.s32 0, %v991
    %v5428 = vsel %vm5426, %v5427, %v991
    %v5429 = vshrl.u32 %v5428, 5
    %v5430 = vand.u32 %v5428, 31
    %v5431 = vsub.s32 0, %v5430
    %v5432 = vsel %vm5426, %v5431, %v5430
    %vm5433 = vcmp.lt.s32.totalorder %v992, 0
    %v5434 = vsub.s32 0, %v992
    %v5435 = vsel %vm5433, %v5434, %v992
    %v5436 = vshrl.u32 %v5435, 5
    %v5437 = vand.u32 %v5435, 31
    %v5438 = vsub.s32 0, %v5437
    %v5439 = vsel %vm5433, %v5438, %v5437
    %vm5440 = vcmp.lt.s32.totalorder %v993, 0
    %v5441 = vsub.s32 0, %v993
    %v5442 = vsel %vm5440, %v5441, %v993
    %v5443 = vshrl.u32 %v5442, 5
    %v5444 = vand.u32 %v5442, 31
    %v5445 = vsub.s32 0, %v5444
    %v5446 = vsel %vm5440, %v5445, %v5444
    %vm5447 = vcmp.lt.s32.totalorder %v994, 0
    %v5448 = vsub.s32 0, %v994
    %v5449 = vsel %vm5447, %v5448, %v994
    %v5450 = vshrl.u32 %v5449, 5
    %v5451 = vand.u32 %v5449, 31
    %v5452 = vsub.s32 0, %v5451
    %v5453 = vsel %vm5447, %v5452, %v5451
    %vm5454 = vcmp.lt.s32.totalorder %v995, 0
    %v5455 = vsub.s32 0, %v995
    %v5456 = vsel %vm5454, %v5455, %v995
    %v5457 = vshrl.u32 %v5456, 5
    %v5458 = vand.u32 %v5456, 31
    %v5459 = vsub.s32 0, %v5458
    %v5460 = vsel %vm5454, %v5459, %v5458
    %vm5461 = vcmp.lt.s32.totalorder %v996, 0
    %v5462 = vsub.s32 0, %v996
    %v5463 = vsel %vm5461, %v5462, %v996
    %v5464 = vshrl.u32 %v5463, 5
    %v5465 = vand.u32 %v5463, 31
    %v5466 = vsub.s32 0, %v5465
    %v5467 = vsel %vm5461, %v5466, %v5465
    %vm5468 = vcmp.lt.s32.totalorder %v997, 0
    %v5469 = vsub.s32 0, %v997
    %v5470 = vsel %vm5468, %v5469, %v997
    %v5471 = vshrl.u32 %v5470, 5
    %v5472 = vand.u32 %v5470, 31
    %v5473 = vsub.s32 0, %v5472
    %v5474 = vsel %vm5468, %v5473, %v5472
    %vm5475 = vcmp.lt.s32.totalorder %v998, 0
    %v5476 = vsub.s32 0, %v998
    %v5477 = vsel %vm5475, %v5476, %v998
    %v5478 = vshrl.u32 %v5477, 5
    %v5479 = vand.u32 %v5477, 31
    %v5480 = vsub.s32 0, %v5479
    %v5481 = vsel %vm5475, %v5480, %v5479
    %vm5482 = vcmp.lt.s32.totalorder %v999, 0
    %v5483 = vsub.s32 0, %v999
    %v5484 = vsel %vm5482, %v5483, %v999
    %v5485 = vshrl.u32 %v5484, 5
    %v5486 = vand.u32 %v5484, 31
    %v5487 = vsub.s32 0, %v5486
    %v5488 = vsel %vm5482, %v5487, %v5486
    %vm5489 = vcmp.lt.s32.totalorder %v1000, 0
    %v5490 = vsub.s32 0, %v1000
    %v5491 = vsel %vm5489, %v5490, %v1000
    %v5492 = vshrl.u32 %v5491, 5
    %v5493 = vand.u32 %v5491, 31
    %v5494 = vsub.s32 0, %v5493
    %v5495 = vsel %vm5489, %v5494, %v5493
    %vm5496 = vcmp.lt.s32.totalorder %v1001, 0
    %v5497 = vsub.s32 0, %v1001
    %v5498 = vsel %vm5496, %v5497, %v1001
    %v5499 = vshrl.u32 %v5498, 5
    %v5500 = vand.u32 %v5498, 31
    %v5501 = vsub.s32 0, %v5500
    %v5502 = vsel %vm5496, %v5501, %v5500
    %vm5503 = vcmp.lt.s32.totalorder %v1002, 0
    %v5504 = vsub.s32 0, %v1002
    %v5505 = vsel %vm5503, %v5504, %v1002
    %v5506 = vshrl.u32 %v5505, 5
    %v5507 = vand.u32 %v5505, 31
    %v5508 = vsub.s32 0, %v5507
    %v5509 = vsel %vm5503, %v5508, %v5507
    %vm5510 = vcmp.lt.s32.totalorder %v1003, 0
    %v5511 = vsub.s32 0, %v1003
    %v5512 = vsel %vm5510, %v5511, %v1003
    %v5513 = vshrl.u32 %v5512, 5
    %v5514 = vand.u32 %v5512, 31
    %v5515 = vsub.s32 0, %v5514
    %v5516 = vsel %vm5510, %v5515, %v5514
    %vm5517 = vcmp.lt.s32.totalorder %v1004, 0
    %v5518 = vsub.s32 0, %v1004
    %v5519 = vsel %vm5517, %v5518, %v1004
    %v5520 = vshrl.u32 %v5519, 5
    %v5521 = vand.u32 %v5519, 31
    %v5522 = vsub.s32 0, %v5521
    %v5523 = vsel %vm5517, %v5522, %v5521
    %vm5524 = vcmp.lt.s32.totalorder %v1005, 0
    %v5525 = vsub.s32 0, %v1005
    %v5526 = vsel %vm5524, %v5525, %v1005
    %v5527 = vshrl.u32 %v5526, 5
    %v5528 = vand.u32 %v5526, 31
    %v5529 = vsub.s32 0, %v5528
    %v5530 = vsel %vm5524, %v5529, %v5528
    %vm5531 = vcmp.lt.s32.totalorder %v1006, 0
    %v5532 = vsub.s32 0, %v1006
    %v5533 = vsel %vm5531, %v5532, %v1006
    %v5534 = vshrl.u32 %v5533, 5
    %v5535 = vand.u32 %v5533, 31
    %v5536 = vsub.s32 0, %v5535
    %v5537 = vsel %vm5531, %v5536, %v5535
    %vm5538 = vcmp.lt.s32.totalorder %v1007, 0
    %v5539 = vsub.s32 0, %v1007
    %v5540 = vsel %vm5538, %v5539, %v1007
    %v5541 = vshrl.u32 %v5540, 5
    %v5542 = vand.u32 %v5540, 31
    %v5543 = vsub.s32 0, %v5542
    %v5544 = vsel %vm5538, %v5543, %v5542
    %vm5545 = vcmp.lt.s32.totalorder %v1008, 0
    %v5546 = vsub.s32 0, %v1008
    %v5547 = vsel %vm5545, %v5546, %v1008
    %v5548 = vshrl.u32 %v5547, 5
    %v5549 = vand.u32 %v5547, 31
    %v5550 = vsub.s32 0, %v5549
    %v5551 = vsel %vm5545, %v5550, %v5549
    %vm5552 = vcmp.lt.s32.totalorder %v1009, 0
    %v5553 = vsub.s32 0, %v1009
    %v5554 = vsel %vm5552, %v5553, %v1009
    %v5555 = vshrl.u32 %v5554, 5
    %v5556 = vand.u32 %v5554, 31
    %v5557 = vsub.s32 0, %v5556
    %v5558 = vsel %vm5552, %v5557, %v5556
    %vm5559 = vcmp.lt.s32.totalorder %v1010, 0
    %v5560 = vsub.s32 0, %v1010
    %v5561 = vsel %vm5559, %v5560, %v1010
    %v5562 = vshrl.u32 %v5561, 5
    %v5563 = vand.u32 %v5561, 31
    %v5564 = vsub.s32 0, %v5563
    %v5565 = vsel %vm5559, %v5564, %v5563
    %vm5566 = vcmp.lt.s32.totalorder %v1011, 0
    %v5567 = vsub.s32 0, %v1011
    %v5568 = vsel %vm5566, %v5567, %v1011
    %v5569 = vshrl.u32 %v5568, 5
    %v5570 = vand.u32 %v5568, 31
    %v5571 = vsub.s32 0, %v5570
    %v5572 = vsel %vm5566, %v5571, %v5570
    %vm5573 = vcmp.lt.s32.totalorder %v1012, 0
    %v5574 = vsub.s32 0, %v1012
    %v5575 = vsel %vm5573, %v5574, %v1012
    %v5576 = vshrl.u32 %v5575, 5
    %v5577 = vand.u32 %v5575, 31
    %v5578 = vsub.s32 0, %v5577
    %v5579 = vsel %vm5573, %v5578, %v5577
    %vm5580 = vcmp.lt.s32.totalorder %v1013, 0
    %v5581 = vsub.s32 0, %v1013
    %v5582 = vsel %vm5580, %v5581, %v1013
    %v5583 = vshrl.u32 %v5582, 5
    %v5584 = vand.u32 %v5582, 31
    %v5585 = vsub.s32 0, %v5584
    %v5586 = vsel %vm5580, %v5585, %v5584
    %vm5587 = vcmp.lt.s32.totalorder %v1014, 0
    %v5588 = vsub.s32 0, %v1014
    %v5589 = vsel %vm5587, %v5588, %v1014
    %v5590 = vshrl.u32 %v5589, 5
    %v5591 = vand.u32 %v5589, 31
    %v5592 = vsub.s32 0, %v5591
    %v5593 = vsel %vm5587, %v5592, %v5591
    %vm5594 = vcmp.lt.s32.totalorder %v1015, 0
    %v5595 = vsub.s32 0, %v1015
    %v5596 = vsel %vm5594, %v5595, %v1015
    %v5597 = vshrl.u32 %v5596, 5
    %v5598 = vand.u32 %v5596, 31
    %v5599 = vsub.s32 0, %v5598
    %v5600 = vsel %vm5594, %v5599, %v5598
    %vm5601 = vcmp.lt.s32.totalorder %v1016, 0
    %v5602 = vsub.s32 0, %v1016
    %v5603 = vsel %vm5601, %v5602, %v1016
    %v5604 = vshrl.u32 %v5603, 5
    %v5605 = vand.u32 %v5603, 31
    %v5606 = vsub.s32 0, %v5605
    %v5607 = vsel %vm5601, %v5606, %v5605
    %vm5608 = vcmp.lt.s32.totalorder %v1017, 0
    %v5609 = vsub.s32 0, %v1017
    %v5610 = vsel %vm5608, %v5609, %v1017
    %v5611 = vshrl.u32 %v5610, 5
    %v5612 = vand.u32 %v5610, 31
    %v5613 = vsub.s32 0, %v5612
    %v5614 = vsel %vm5608, %v5613, %v5612
    %vm5615 = vcmp.lt.s32.totalorder %v1018, 0
    %v5616 = vsub.s32 0, %v1018
    %v5617 = vsel %vm5615, %v5616, %v1018
    %v5618 = vshrl.u32 %v5617, 5
    %v5619 = vand.u32 %v5617, 31
    %v5620 = vsub.s32 0, %v5619
    %v5621 = vsel %vm5615, %v5620, %v5619
    %vm5622 = vcmp.lt.s32.totalorder %v1019, 0
    %v5623 = vsub.s32 0, %v1019
    %v5624 = vsel %vm5622, %v5623, %v1019
    %v5625 = vshrl.u32 %v5624, 5
    %v5626 = vand.u32 %v5624, 31
    %v5627 = vsub.s32 0, %v5626
    %v5628 = vsel %vm5622, %v5627, %v5626
    %vm5629 = vcmp.ne.s32.totalorder %v5411, 0
    %vm5630 = vcmp.ne.s32.totalorder %v5418, 0
    %vm5631 = vcmp.ne.s32.totalorder %v5425, 0
    %vm5632 = vcmp.ne.s32.totalorder %v5432, 0
    %vm5633 = vcmp.ne.s32.totalorder %v5439, 0
    %vm5634 = vcmp.ne.s32.totalorder %v5446, 0
    %vm5635 = vcmp.ne.s32.totalorder %v5453, 0
    %vm5636 = vcmp.ne.s32.totalorder %v5460, 0
    %vm5637 = vcmp.ne.s32.totalorder %v5467, 0
    %vm5638 = vcmp.ne.s32.totalorder %v5474, 0
    %vm5639 = vcmp.ne.s32.totalorder %v5481, 0
    %vm5640 = vcmp.ne.s32.totalorder %v5488, 0
    %vm5641 = vcmp.ne.s32.totalorder %v5495, 0
    %vm5642 = vcmp.ne.s32.totalorder %v5502, 0
    %vm5643 = vcmp.ne.s32.totalorder %v5509, 0
    %vm5644 = vcmp.ne.s32.totalorder %v5516, 0
    %vm5645 = vcmp.ne.s32.totalorder %v5523, 0
    %vm5646 = vcmp.ne.s32.totalorder %v5530, 0
    %vm5647 = vcmp.ne.s32.totalorder %v5537, 0
    %vm5648 = vcmp.ne.s32.totalorder %v5544, 0
    %vm5649 = vcmp.ne.s32.totalorder %v5551, 0
    %vm5650 = vcmp.ne.s32.totalorder %v5558, 0
    %vm5651 = vcmp.ne.s32.totalorder %v5565, 0
    %vm5652 = vcmp.ne.s32.totalorder %v5572, 0
    %vm5653 = vcmp.ne.s32.totalorder %v5579, 0
    %vm5654 = vcmp.ne.s32.totalorder %v5586, 0
    %vm5655 = vcmp.ne.s32.totalorder %v5593, 0
    %vm5656 = vcmp.ne.s32.totalorder %v5600, 0
    %vm5657 = vcmp.ne.s32.totalorder %v5607, 0
    %vm5658 = vcmp.ne.s32.totalorder %v5614, 0
    %vm5659 = vcmp.ne.s32.totalorder %v5621, 0
    %vm5660 = vcmp.ne.s32.totalorder %v5628, 0
    %vm5661 = vcmp.lt.s32.totalorder %v5411, 0
    %vm5662 = vcmp.lt.s32.totalorder %v5418, 0
    %vm5663 = vcmp.lt.s32.totalorder %v5425, 0
    %vm5664 = vcmp.lt.s32.totalorder %v5432, 0
    %vm5665 = vcmp.lt.s32.totalorder %v5439, 0
    %vm5666 = vcmp.lt.s32.totalorder %v5446, 0
    %vm5667 = vcmp.lt.s32.totalorder %v5453, 0
    %vm5668 = vcmp.lt.s32.totalorder %v5460, 0
    %vm5669 = vcmp.lt.s32.totalorder %v5467, 0
    %vm5670 = vcmp.lt.s32.totalorder %v5474, 0
    %vm5671 = vcmp.lt.s32.totalorder %v5481, 0
    %vm5672 = vcmp.lt.s32.totalorder %v5488, 0
    %vm5673 = vcmp.lt.s32.totalorder %v5495, 0
    %vm5674 = vcmp.lt.s32.totalorder %v5502, 0
    %vm5675 = vcmp.lt.s32.totalorder %v5509, 0
    %vm5676 = vcmp.lt.s32.totalorder %v5516, 0
    %vm5677 = vcmp.lt.s32.totalorder %v5523, 0
    %vm5678 = vcmp.lt.s32.totalorder %v5530, 0
    %vm5679 = vcmp.lt.s32.totalorder %v5537, 0
    %vm5680 = vcmp.lt.s32.totalorder %v5544, 0
    %vm5681 = vcmp.lt.s32.totalorder %v5551, 0
    %vm5682 = vcmp.lt.s32.totalorder %v5558, 0
    %vm5683 = vcmp.lt.s32.totalorder %v5565, 0
    %vm5684 = vcmp.lt.s32.totalorder %v5572, 0
    %vm5685 = vcmp.lt.s32.totalorder %v5579, 0
    %vm5686 = vcmp.lt.s32.totalorder %v5586, 0
    %vm5687 = vcmp.lt.s32.totalorder %v5593, 0
    %vm5688 = vcmp.lt.s32.totalorder %v5600, 0
    %vm5689 = vcmp.lt.s32.totalorder %v5607, 0
    %vm5690 = vcmp.lt.s32.totalorder %v5614, 0
    %vm5691 = vcmp.lt.s32.totalorder %v5621, 0
    %vm5692 = vcmp.lt.s32.totalorder %v5628, 0
    %vm5693 = vmand %vm5661, %vm5629
    %vm5694 = vmand %vm5662, %vm5630
    %vm5695 = vmand %vm5663, %vm5631
    %vm5696 = vmand %vm5664, %vm5632
    %vm5697 = vmand %vm5665, %vm5633
    %vm5698 = vmand %vm5666, %vm5634
    %vm5699 = vmand %vm5667, %vm5635
    %vm5700 = vmand %vm5668, %vm5636
    %vm5701 = vmand %vm5669, %vm5637
    %vm5702 = vmand %vm5670, %vm5638
    %vm5703 = vmand %vm5671, %vm5639
    %vm5704 = vmand %vm5672, %vm5640
    %vm5705 = vmand %vm5673, %vm5641
    %vm5706 = vmand %vm5674, %vm5642
    %vm5707 = vmand %vm5675, %vm5643
    %vm5708 = vmand %vm5676, %vm5644
    %vm5709 = vmand %vm5677, %vm5645
    %vm5710 = vmand %vm5678, %vm5646
    %vm5711 = vmand %vm5679, %vm5647
    %vm5712 = vmand %vm5680, %vm5648
    %vm5713 = vmand %vm5681, %vm5649
    %vm5714 = vmand %vm5682, %vm5650
    %vm5715 = vmand %vm5683, %vm5651
    %vm5716 = vmand %vm5684, %vm5652
    %vm5717 = vmand %vm5685, %vm5653
    %vm5718 = vmand %vm5686, %vm5654
    %vm5719 = vmand %vm5687, %vm5655
    %vm5720 = vmand %vm5688, %vm5656
    %vm5721 = vmand %vm5689, %vm5657
    %vm5722 = vmand %vm5690, %vm5658
    %vm5723 = vmand %vm5691, %vm5659
    %vm5724 = vmand %vm5692, %vm5660
    %v5725 = vadd.s32 %v5411, 32
    %v5726 = vadd.s32 %v5418, 32
    %v5727 = vadd.s32 %v5425, 32
    %v5728 = vadd.s32 %v5432, 32
    %v5729 = vadd.s32 %v5439, 32
    %v5730 = vadd.s32 %v5446, 32
    %v5731 = vadd.s32 %v5453, 32
    %v5732 = vadd.s32 %v5460, 32
    %v5733 = vadd.s32 %v5467, 32
    %v5734 = vadd.s32 %v5474, 32
    %v5735 = vadd.s32 %v5481, 32
    %v5736 = vadd.s32 %v5488, 32
    %v5737 = vadd.s32 %v5495, 32
    %v5738 = vadd.s32 %v5502, 32
    %v5739 = vadd.s32 %v5509, 32
    %v5740 = vadd.s32 %v5516, 32
    %v5741 = vadd.s32 %v5523, 32
    %v5742 = vadd.s32 %v5530, 32
    %v5743 = vadd.s32 %v5537, 32
    %v5744 = vadd.s32 %v5544, 32
    %v5745 = vadd.s32 %v5551, 32
    %v5746 = vadd.s32 %v5558, 32
    %v5747 = vadd.s32 %v5565, 32
    %v5748 = vadd.s32 %v5572, 32
    %v5749 = vadd.s32 %v5579, 32
    %v5750 = vadd.s32 %v5586, 32
    %v5751 = vadd.s32 %v5593, 32
    %v5752 = vadd.s32 %v5600, 32
    %v5753 = vadd.s32 %v5607, 32
    %v5754 = vadd.s32 %v5614, 32
    %v5755 = vadd.s32 %v5621, 32
    %v5756 = vadd.s32 %v5628, 32
    %v5757 = vsel %vm5693, %v5725, %v5411
    %v5758 = vsel %vm5694, %v5726, %v5418
    %v5759 = vsel %vm5695, %v5727, %v5425
    %v5760 = vsel %vm5696, %v5728, %v5432
    %v5761 = vsel %vm5697, %v5729, %v5439
    %v5762 = vsel %vm5698, %v5730, %v5446
    %v5763 = vsel %vm5699, %v5731, %v5453
    %v5764 = vsel %vm5700, %v5732, %v5460
    %v5765 = vsel %vm5701, %v5733, %v5467
    %v5766 = vsel %vm5702, %v5734, %v5474
    %v5767 = vsel %vm5703, %v5735, %v5481
    %v5768 = vsel %vm5704, %v5736, %v5488
    %v5769 = vsel %vm5705, %v5737, %v5495
    %v5770 = vsel %vm5706, %v5738, %v5502
    %v5771 = vsel %vm5707, %v5739, %v5509
    %v5772 = vsel %vm5708, %v5740, %v5516
    %v5773 = vsel %vm5709, %v5741, %v5523
    %v5774 = vsel %vm5710, %v5742, %v5530
    %v5775 = vsel %vm5711, %v5743, %v5537
    %v5776 = vsel %vm5712, %v5744, %v5544
    %v5777 = vsel %vm5713, %v5745, %v5551
    %v5778 = vsel %vm5714, %v5746, %v5558
    %v5779 = vsel %vm5715, %v5747, %v5565
    %v5780 = vsel %vm5716, %v5748, %v5572
    %v5781 = vsel %vm5717, %v5749, %v5579
    %v5782 = vsel %vm5718, %v5750, %v5586
    %v5783 = vsel %vm5719, %v5751, %v5593
    %v5784 = vsel %vm5720, %v5752, %v5600
    %v5785 = vsel %vm5721, %v5753, %v5607
    %v5786 = vsel %vm5722, %v5754, %v5614
    %v5787 = vsel %vm5723, %v5755, %v5621
    %v5788 = vsel %vm5724, %v5756, %v5628
    %vm5789 = vcmp.lt.s32.totalorder %v121, 0
    %v5790 = vsub.s32 0, %v121
    %v5791 = vsel %vm5789, %v5790, %v121
    %v5792 = vshrl.u32 %v5791, 5
    %v5793 = vand.u32 %v5791, 31
    %v5794 = vsub.s32 0, %v5793
    %v5795 = vsel %vm5789, %v5794, %v5793
    %vm5796 = vcmp.lt.s32.totalorder %v1020, 0
    %v5797 = vsub.s32 0, %v1020
    %v5798 = vsel %vm5796, %v5797, %v1020
    %v5799 = vshrl.u32 %v5798, 5
    %v5800 = vand.u32 %v5798, 31
    %v5801 = vsub.s32 0, %v5800
    %v5802 = vsel %vm5796, %v5801, %v5800
    %vm5803 = vcmp.ne.s32.totalorder %v5795, 0
    %vm5804 = vcmp.ne.s32.totalorder %v5802, 0
    %vm5805 = vcmp.lt.s32.totalorder %v5795, 0
    %vm5806 = vcmp.lt.s32.totalorder %v5802, 0
    %vm5807 = vmand %vm5805, %vm5803
    %vm5808 = vmand %vm5806, %vm5804
    %v5809 = vadd.s32 %v5795, 32
    %v5810 = vadd.s32 %v5802, 32
    %v5811 = vsel %vm5807, %v5809, %v5795
    %v5812 = vsel %vm5808, %v5810, %v5802
    %vm5813 = vcmp.eq.s32.totalorder %v5757, %v5811
    %vm5814 = vcmp.eq.s32.totalorder %v5757, %v5812
    %vm5815 = vcmp.eq.s32.totalorder %v5758, %v5811
    %vm5816 = vcmp.eq.s32.totalorder %v5758, %v5812
    %vm5817 = vcmp.eq.s32.totalorder %v5759, %v5811
    %vm5818 = vcmp.eq.s32.totalorder %v5759, %v5812
    %vm5819 = vcmp.eq.s32.totalorder %v5760, %v5811
    %vm5820 = vcmp.eq.s32.totalorder %v5760, %v5812
    %vm5821 = vcmp.eq.s32.totalorder %v5761, %v5811
    %vm5822 = vcmp.eq.s32.totalorder %v5761, %v5812
    %vm5823 = vcmp.eq.s32.totalorder %v5762, %v5811
    %vm5824 = vcmp.eq.s32.totalorder %v5762, %v5812
    %vm5825 = vcmp.eq.s32.totalorder %v5763, %v5811
    %vm5826 = vcmp.eq.s32.totalorder %v5763, %v5812
    %vm5827 = vcmp.eq.s32.totalorder %v5764, %v5811
    %vm5828 = vcmp.eq.s32.totalorder %v5764, %v5812
    %vm5829 = vcmp.eq.s32.totalorder %v5765, %v5811
    %vm5830 = vcmp.eq.s32.totalorder %v5765, %v5812
    %vm5831 = vcmp.eq.s32.totalorder %v5766, %v5811
    %vm5832 = vcmp.eq.s32.totalorder %v5766, %v5812
    %vm5833 = vcmp.eq.s32.totalorder %v5767, %v5811
    %vm5834 = vcmp.eq.s32.totalorder %v5767, %v5812
    %vm5835 = vcmp.eq.s32.totalorder %v5768, %v5811
    %vm5836 = vcmp.eq.s32.totalorder %v5768, %v5812
    %vm5837 = vcmp.eq.s32.totalorder %v5769, %v5811
    %vm5838 = vcmp.eq.s32.totalorder %v5769, %v5812
    %vm5839 = vcmp.eq.s32.totalorder %v5770, %v5811
    %vm5840 = vcmp.eq.s32.totalorder %v5770, %v5812
    %vm5841 = vcmp.eq.s32.totalorder %v5771, %v5811
    %vm5842 = vcmp.eq.s32.totalorder %v5771, %v5812
    %vm5843 = vcmp.eq.s32.totalorder %v5772, %v5811
    %vm5844 = vcmp.eq.s32.totalorder %v5772, %v5812
    %vm5845 = vcmp.eq.s32.totalorder %v5773, %v5811
    %vm5846 = vcmp.eq.s32.totalorder %v5773, %v5812
    %vm5847 = vcmp.eq.s32.totalorder %v5774, %v5811
    %vm5848 = vcmp.eq.s32.totalorder %v5774, %v5812
    %vm5849 = vcmp.eq.s32.totalorder %v5775, %v5811
    %vm5850 = vcmp.eq.s32.totalorder %v5775, %v5812
    %vm5851 = vcmp.eq.s32.totalorder %v5776, %v5811
    %vm5852 = vcmp.eq.s32.totalorder %v5776, %v5812
    %vm5853 = vcmp.eq.s32.totalorder %v5777, %v5811
    %vm5854 = vcmp.eq.s32.totalorder %v5777, %v5812
    %vm5855 = vcmp.eq.s32.totalorder %v5778, %v5811
    %vm5856 = vcmp.eq.s32.totalorder %v5778, %v5812
    %vm5857 = vcmp.eq.s32.totalorder %v5779, %v5811
    %vm5858 = vcmp.eq.s32.totalorder %v5779, %v5812
    %vm5859 = vcmp.eq.s32.totalorder %v5780, %v5811
    %vm5860 = vcmp.eq.s32.totalorder %v5780, %v5812
    %vm5861 = vcmp.eq.s32.totalorder %v5781, %v5811
    %vm5862 = vcmp.eq.s32.totalorder %v5781, %v5812
    %vm5863 = vcmp.eq.s32.totalorder %v5782, %v5811
    %vm5864 = vcmp.eq.s32.totalorder %v5782, %v5812
    %vm5865 = vcmp.eq.s32.totalorder %v5783, %v5811
    %vm5866 = vcmp.eq.s32.totalorder %v5783, %v5812
    %vm5867 = vcmp.eq.s32.totalorder %v5784, %v5811
    %vm5868 = vcmp.eq.s32.totalorder %v5784, %v5812
    %vm5869 = vcmp.eq.s32.totalorder %v5785, %v5811
    %vm5870 = vcmp.eq.s32.totalorder %v5785, %v5812
    %vm5871 = vcmp.eq.s32.totalorder %v5786, %v5811
    %vm5872 = vcmp.eq.s32.totalorder %v5786, %v5812
    %vm5873 = vcmp.eq.s32.totalorder %v5787, %v5811
    %vm5874 = vcmp.eq.s32.totalorder %v5787, %v5812
    %vm5875 = vcmp.eq.s32.totalorder %v5788, %v5811
    %vm5876 = vcmp.eq.s32.totalorder %v5788, %v5812
    %v5877 = vsel %vm5813, 1, 0
    %v5878 = vsel %vm5814, 1, 0
    %v5879 = vsel %vm5815, 1, 0
    %v5880 = vsel %vm5816, 1, 0
    %v5881 = vsel %vm5817, 1, 0
    %v5882 = vsel %vm5818, 1, 0
    %v5883 = vsel %vm5819, 1, 0
    %v5884 = vsel %vm5820, 1, 0
    %v5885 = vsel %vm5821, 1, 0
    %v5886 = vsel %vm5822, 1, 0
    %v5887 = vsel %vm5823, 1, 0
    %v5888 = vsel %vm5824, 1, 0
    %v5889 = vsel %vm5825, 1, 0
    %v5890 = vsel %vm5826, 1, 0
    %v5891 = vsel %vm5827, 1, 0
    %v5892 = vsel %vm5828, 1, 0
    %v5893 = vsel %vm5829, 1, 0
    %v5894 = vsel %vm5830, 1, 0
    %v5895 = vsel %vm5831, 1, 0
    %v5896 = vsel %vm5832, 1, 0
    %v5897 = vsel %vm5833, 1, 0
    %v5898 = vsel %vm5834, 1, 0
    %v5899 = vsel %vm5835, 1, 0
    %v5900 = vsel %vm5836, 1, 0
    %v5901 = vsel %vm5837, 1, 0
    %v5902 = vsel %vm5838, 1, 0
    %v5903 = vsel %vm5839, 1, 0
    %v5904 = vsel %vm5840, 1, 0
    %v5905 = vsel %vm5841, 1, 0
    %v5906 = vsel %vm5842, 1, 0
    %v5907 = vsel %vm5843, 1, 0
    %v5908 = vsel %vm5844, 1, 0
    %v5909 = vsel %vm5845, 1, 0
    %v5910 = vsel %vm5846, 1, 0
    %v5911 = vsel %vm5847, 1, 0
    %v5912 = vsel %vm5848, 1, 0
    %v5913 = vsel %vm5849, 1, 0
    %v5914 = vsel %vm5850, 1, 0
    %v5915 = vsel %vm5851, 1, 0
    %v5916 = vsel %vm5852, 1, 0
    %v5917 = vsel %vm5853, 1, 0
    %v5918 = vsel %vm5854, 1, 0
    %v5919 = vsel %vm5855, 1, 0
    %v5920 = vsel %vm5856, 1, 0
    %v5921 = vsel %vm5857, 1, 0
    %v5922 = vsel %vm5858, 1, 0
    %v5923 = vsel %vm5859, 1, 0
    %v5924 = vsel %vm5860, 1, 0
    %v5925 = vsel %vm5861, 1, 0
    %v5926 = vsel %vm5862, 1, 0
    %v5927 = vsel %vm5863, 1, 0
    %v5928 = vsel %vm5864, 1, 0
    %v5929 = vsel %vm5865, 1, 0
    %v5930 = vsel %vm5866, 1, 0
    %v5931 = vsel %vm5867, 1, 0
    %v5932 = vsel %vm5868, 1, 0
    %v5933 = vsel %vm5869, 1, 0
    %v5934 = vsel %vm5870, 1, 0
    %v5935 = vsel %vm5871, 1, 0
    %v5936 = vsel %vm5872, 1, 0
    %v5937 = vsel %vm5873, 1, 0
    %v5938 = vsel %vm5874, 1, 0
    %v5939 = vsel %vm5875, 1, 0
    %v5940 = vsel %vm5876, 1, 0
    %v5941 = vcvt.s32.f32 %v5877
    %v5942 = vcvt.s32.f32 %v5878
    %v5943 = vcvt.s32.f32 %v5879
    %v5944 = vcvt.s32.f32 %v5880
    %v5945 = vcvt.s32.f32 %v5881
    %v5946 = vcvt.s32.f32 %v5882
    %v5947 = vcvt.s32.f32 %v5883
    %v5948 = vcvt.s32.f32 %v5884
    %v5949 = vcvt.s32.f32 %v5885
    %v5950 = vcvt.s32.f32 %v5886
    %v5951 = vcvt.s32.f32 %v5887
    %v5952 = vcvt.s32.f32 %v5888
    %v5953 = vcvt.s32.f32 %v5889
    %v5954 = vcvt.s32.f32 %v5890
    %v5955 = vcvt.s32.f32 %v5891
    %v5956 = vcvt.s32.f32 %v5892
    %v5957 = vcvt.s32.f32 %v5893
    %v5958 = vcvt.s32.f32 %v5894
    %v5959 = vcvt.s32.f32 %v5895
    %v5960 = vcvt.s32.f32 %v5896
    %v5961 = vcvt.s32.f32 %v5897
    %v5962 = vcvt.s32.f32 %v5898
    %v5963 = vcvt.s32.f32 %v5899
    %v5964 = vcvt.s32.f32 %v5900
    %v5965 = vcvt.s32.f32 %v5901
    %v5966 = vcvt.s32.f32 %v5902
    %v5967 = vcvt.s32.f32 %v5903
    %v5968 = vcvt.s32.f32 %v5904
    %v5969 = vcvt.s32.f32 %v5905
    %v5970 = vcvt.s32.f32 %v5906
    %v5971 = vcvt.s32.f32 %v5907
    %v5972 = vcvt.s32.f32 %v5908
    %v5973 = vcvt.s32.f32 %v5909
    %v5974 = vcvt.s32.f32 %v5910
    %v5975 = vcvt.s32.f32 %v5911
    %v5976 = vcvt.s32.f32 %v5912
    %v5977 = vcvt.s32.f32 %v5913
    %v5978 = vcvt.s32.f32 %v5914
    %v5979 = vcvt.s32.f32 %v5915
    %v5980 = vcvt.s32.f32 %v5916
    %v5981 = vcvt.s32.f32 %v5917
    %v5982 = vcvt.s32.f32 %v5918
    %v5983 = vcvt.s32.f32 %v5919
    %v5984 = vcvt.s32.f32 %v5920
    %v5985 = vcvt.s32.f32 %v5921
    %v5986 = vcvt.s32.f32 %v5922
    %v5987 = vcvt.s32.f32 %v5923
    %v5988 = vcvt.s32.f32 %v5924
    %v5989 = vcvt.s32.f32 %v5925
    %v5990 = vcvt.s32.f32 %v5926
    %v5991 = vcvt.s32.f32 %v5927
    %v5992 = vcvt.s32.f32 %v5928
    %v5993 = vcvt.s32.f32 %v5929
    %v5994 = vcvt.s32.f32 %v5930
    %v5995 = vcvt.s32.f32 %v5931
    %v5996 = vcvt.s32.f32 %v5932
    %v5997 = vcvt.s32.f32 %v5933
    %v5998 = vcvt.s32.f32 %v5934
    %v5999 = vcvt.s32.f32 %v5935
    %v6000 = vcvt.s32.f32 %v5936
    %v6001 = vcvt.s32.f32 %v5937
    %v6002 = vcvt.s32.f32 %v5938
    %v6003 = vcvt.s32.f32 %v5939
    %v6004 = vcvt.s32.f32 %v5940
    %v6005 = vadd.f32 %v5399, %v5401
    %v6006 = vrot.slane %v6005, 4
    %v6007 = vadd.f32 %v6005, %v6006
    %v6008 = vrot.slane %v6007, 2
    %v6009 = vadd.f32 %v6007, %v6008
    %v6010 = vrot.slane %v6009, 1
    %v6011 = vadd.f32 %v6009, %v6010
    %v6012 = vadd.f32 %v5400, %v5402
    %v6013 = vrot.slane %v6012, 4
    %v6014 = vadd.f32 %v6012, %v6013
    %v6015 = vrot.slane %v6014, 2
    %v6016 = vadd.f32 %v6014, %v6015
    %v6017 = vrot.slane %v6016, 1
    %v6018 = vadd.f32 %v6016, %v6017
    %6019 = vmatprep.subr.mxu0 %v5942
    %6020 = vmatpush1.msra.mxu0 %v5941
    %6021 = vmatprep.subr.mxu0 %v5944
    %6022 = vmatpush1.msra.mxu0 %v5943
    %6023 = vmatprep.subr.mxu0 %v5946
    %6024 = vmatpush1.msra.mxu0 %v5945
    %6025 = vmatprep.subr.mxu0 %v5948
    %6026 = vmatpush1.msra.mxu0 %v5947
    %6027 = vmatprep.subr.mxu0 %v5950
    %6028 = vmatpush1.msra.mxu0 %v5949
    %6029 = vmatprep.subr.mxu0 %v5952
    %6030 = vmatpush1.msra.mxu0 %v5951
    %6031 = vmatprep.subr.mxu0 %v5954
    %6032 = vmatpush1.msra.mxu0 %v5953
    %6033 = vmatprep.subr.mxu0 %v5956
    %6034 = vmatpush1.msra.mxu0 %v5955
    %6035 = vmatprep.subr.mxu0 %v5958
    %6036 = vmatpush1.msra.mxu0 %v5957
    %6037 = vmatprep.subr.mxu0 %v5960
    %6038 = vmatpush1.msra.mxu0 %v5959
    %6039 = vmatprep.subr.mxu0 %v5962
    %6040 = vmatpush1.msra.mxu0 %v5961
    %6041 = vmatprep.subr.mxu0 %v5964
    %6042 = vmatpush1.msra.mxu0 %v5963
    %6043 = vmatprep.subr.mxu0 %v5966
    %6044 = vmatpush1.msra.mxu0 %v5965
    %6045 = vmatprep.subr.mxu0 %v5968
    %6046 = vmatpush1.msra.mxu0 %v5967
    %6047 = vmatprep.subr.mxu0 %v5970
    %6048 = vmatpush1.msra.mxu0 %v5969
    %6049 = vmatprep.subr.mxu0 %v5972
    %6050 = vmatpush1.msra.mxu0 %v5971
    %6051 = vmatprep.subr.mxu0 %v5974
    %6052 = vmatpush1.msra.mxu0 %v5973
    %6053 = vmatprep.subr.mxu0 %v5976
    %6054 = vmatpush1.msra.mxu0 %v5975
    %6055 = vmatprep.subr.mxu0 %v5978
    %6056 = vmatpush1.msra.mxu0 %v5977
    %6057 = vmatprep.subr.mxu0 %v5980
    %6058 = vmatpush1.msra.mxu0 %v5979
    %6059 = vmatprep.subr.mxu0 %v5982
    %6060 = vmatpush1.msra.mxu0 %v5981
    %6061 = vmatprep.subr.mxu0 %v5984
    %6062 = vmatpush1.msra.mxu0 %v5983
    %6063 = vmatprep.subr.mxu0 %v5986
    %6064 = vmatpush1.msra.mxu0 %v5985
    %6065 = vmatprep.subr.mxu0 %v5988
    %6066 = vmatpush1.msra.mxu0 %v5987
    %6067 = vmatprep.subr.mxu0 %v5990
    %6068 = vmatpush1.msra.mxu0 %v5989
    %6069 = vmatprep.subr.mxu0 %v5992
    %6070 = vmatpush1.msra.mxu0 %v5991
    %6071 = vmatprep.subr.mxu0 %v5994
    %6072 = vmatpush1.msra.mxu0 %v5993
    %6073 = vmatprep.subr.mxu0 %v5996
    %6074 = vmatpush1.msra.mxu0 %v5995
    %6075 = vmatprep.subr.mxu0 %v5998
    %6076 = vmatpush1.msra.mxu0 %v5997
    %6077 = vmatprep.subr.mxu0 %v6000
    %6078 = vmatpush1.msra.mxu0 %v5999
    %6079 = vmatprep.subr.mxu0 %v6002
    %6080 = vmatpush1.msra.mxu0 %v6001
    %6081 = vmatprep.subr.mxu0 %v6004
    %6082 = vmatpush1.msra.mxu0 %v6003
    %6083 = vmatprep.mubr.f32.mxu0 %v6018
    %6084 = vmatmul.mubr.f32.gmra.mrb[0].mxu0 %v6011
    %v6085 = vpop.f32.mrb[0].mxu0
    %v6086 = vadd.f32 0.0, %v6085
    %v6087 = vpop.f32.mrb[0].mxu0
    %v6088 = vadd.f32 0.0, %v6087
    %6089 = vdwg.mxu0
    %v6090 = vrcp.pop 128.0
    %v6091 = vmul.f32 %v6086, %v6090
    %v6092 = vmul.f32 %v6088, %v6090
    %v6093 = vlaneseq
    %v6094 = vshrl.u32 %v6093, 7
    %v6095 = vsub.s32 0, %v6094
    %v6096 = vrot.slane %v6091, %v6095
    %v6097 = vlaneseq
    %v6098 = vshrl.u32 %v6097, 7
    %v6099 = vsub.s32 0, %v6098
    %v6100 = vrot.slane %v6092, %v6099
    %v6101 = vsub.f32 %v5399, %v6096
    %v6102 = vsub.f32 %v5400, %v6100
    %v6103 = vsub.f32 %v5401, %v6096
    %v6104 = vsub.f32 %v5402, %v6100
    %v6105 = vmul.f32 %v6101, %v6101
    %v6106 = vmul.f32 %v6102, %v6102
    %v6107 = vmul.f32 %v6103, %v6103
    %v6108 = vmul.f32 %v6104, %v6104
    %v6109 = vadd.f32 %v6105, %v6107
    %v6110 = vrot.slane %v6109, 4
    %v6111 = vadd.f32 %v6109, %v6110
    %v6112 = vrot.slane %v6111, 2
    %v6113 = vadd.f32 %v6111, %v6112
    %v6114 = vrot.slane %v6113, 1
    %v6115 = vadd.f32 %v6113, %v6114
    %v6116 = vadd.f32 %v6106, %v6108
    %v6117 = vrot.slane %v6116, 4
    %v6118 = vadd.f32 %v6116, %v6117
    %v6119 = vrot.slane %v6118, 2
    %v6120 = vadd.f32 %v6118, %v6119
    %v6121 = vrot.slane %v6120, 1
    %v6122 = vadd.f32 %v6120, %v6121
    %6123 = vmatprep.subr.mxu0 %v5942
    %6124 = vmatpush1.msra.mxu0 %v5941
    %6125 = vmatprep.subr.mxu0 %v5944
    %6126 = vmatpush1.msra.mxu0 %v5943
    %6127 = vmatprep.subr.mxu0 %v5946
    %6128 = vmatpush1.msra.mxu0 %v5945
    %6129 = vmatprep.subr.mxu0 %v5948
    %6130 = vmatpush1.msra.mxu0 %v5947
    %6131 = vmatprep.subr.mxu0 %v5950
    %6132 = vmatpush1.msra.mxu0 %v5949
    %6133 = vmatprep.subr.mxu0 %v5952
    %6134 = vmatpush1.msra.mxu0 %v5951
    %6135 = vmatprep.subr.mxu0 %v5954
    %6136 = vmatpush1.msra.mxu0 %v5953
    %6137 = vmatprep.subr.mxu0 %v5956
    %6138 = vmatpush1.msra.mxu0 %v5955
    %6139 = vmatprep.subr.mxu0 %v5958
    %6140 = vmatpush1.msra.mxu0 %v5957
    %6141 = vmatprep.subr.mxu0 %v5960
    %6142 = vmatpush1.msra.mxu0 %v5959
    %6143 = vmatprep.subr.mxu0 %v5962
    %6144 = vmatpush1.msra.mxu0 %v5961
    %6145 = vmatprep.subr.mxu0 %v5964
    %6146 = vmatpush1.msra.mxu0 %v5963
    %6147 = vmatprep.subr.mxu0 %v5966
    %6148 = vmatpush1.msra.mxu0 %v5965
    %6149 = vmatprep.subr.mxu0 %v5968
    %6150 = vmatpush1.msra.mxu0 %v5967
    %6151 = vmatprep.subr.mxu0 %v5970
    %6152 = vmatpush1.msra.mxu0 %v5969
    %6153 = vmatprep.subr.mxu0 %v5972
    %6154 = vmatpush1.msra.mxu0 %v5971
    %6155 = vmatprep.subr.mxu0 %v5974
    %6156 = vmatpush1.msra.mxu0 %v5973
    %6157 = vmatprep.subr.mxu0 %v5976
    %6158 = vmatpush1.msra.mxu0 %v5975
    %6159 = vmatprep.subr.mxu0 %v5978
    %6160 = vmatpush1.msra.mxu0 %v5977
    %6161 = vmatprep.subr.mxu0 %v5980
    %6162 = vmatpush1.msra.mxu0 %v5979
    %6163 = vmatprep.subr.mxu0 %v5982
    %6164 = vmatpush1.msra.mxu0 %v5981
    %6165 = vmatprep.subr.mxu0 %v5984
    %6166 = vmatpush1.msra.mxu0 %v5983
    %6167 = vmatprep.subr.mxu0 %v5986
    %6168 = vmatpush1.msra.mxu0 %v5985
    %6169 = vmatprep.subr.mxu0 %v5988
    %6170 = vmatpush1.msra.mxu0 %v5987
    %6171 = vmatprep.subr.mxu0 %v5990
    %6172 = vmatpush1.msra.mxu0 %v5989
    %6173 = vmatprep.subr.mxu0 %v5992
    %6174 = vmatpush1.msra.mxu0 %v5991
    %6175 = vmatprep.subr.mxu0 %v5994
    %6176 = vmatpush1.msra.mxu0 %v5993
    %6177 = vmatprep.subr.mxu0 %v5996
    %6178 = vmatpush1.msra.mxu0 %v5995
    %6179 = vmatprep.subr.mxu0 %v5998
    %6180 = vmatpush1.msra.mxu0 %v5997
    %6181 = vmatprep.subr.mxu0 %v6000
    %6182 = vmatpush1.msra.mxu0 %v5999
    %6183 = vmatprep.subr.mxu0 %v6002
    %6184 = vmatpush1.msra.mxu0 %v6001
    %6185 = vmatprep.subr.mxu0 %v6004
    %6186 = vmatpush1.msra.mxu0 %v6003
    %6187 = vmatprep.mubr.f32.mxu0 %v6122
    %6188 = vmatmul.mubr.f32.gmra.mrb[0].mxu0 %v6115
    %v6189 = vpop.f32.mrb[0].mxu0
    %v6190 = vadd.f32 0.0, %v6189
    %v6191 = vpop.f32.mrb[0].mxu0
    %v6192 = vadd.f32 0.0, %v6191
    %6193 = vdwg.mxu0
    %v6194 = vmul.f32 %v6190, %v6090
    %v6195 = vmul.f32 %v6192, %v6090
    %v6196 = vadd.f32 %v6194, 1e-05
    %v6197 = vadd.f32 %v6195, 1e-05
    %v6198 = vrsqrt.pop %v6196
    %v6199 = vrsqrt.pop %v6197
    %v6202 = vcombine.low %v6198, %v6199
    %v6204 = vunpack.c.l.s4 1966171168
    %v6205 = vunpack.c.0.s8 %v6204
    %v6206 = vlaneseq
    %v6207 = vshrl.u32 %v6206, 7
    %v6208 = vsub.s32 %v6205, %v6207
    %v6209 = vrot.slane %v6202, %v6208
    %v6211 = vunpack.c.l.s4 1966171168
    %v6212 = vunpack.c.0.s8 %v6211
    %v6213 = vlaneseq
    %v6214 = vshrl.u32 %v6213, 7
    %v6215 = vsub.s32 %v6212, %v6214
    %v6216 = vrot.slane %v6209, %v6215
    %v6218 = vmul.f32 %v5403, %v6216
    %v6220 = vlaneseq
    %v6221 = vshrl.u32 %v6220, 7
    %v6222 = vsub.s32 0, %v6221
    %v6223 = vrot.slane %v6218, %v6222
    %v6224 = vlaneseq
    %v6225 = vshrl.u32 %v6224, 7
    %v6226 = vsub.s32 1, %v6225
    %v6227 = vrot.slane %v6218, %v6226
    %v6230 = vmul.f32 %v6101, %v6223
    %v6231 = vmul.f32 %v6102, %v6227
    %v6232 = vmul.f32 %v6103, %v6223
    %v6233 = vmul.f32 %v6104, %v6227
    %v6235 = vlaneseq
    %v6236 = vshrl.u32 %v6235, 7
    %v6237 = vsub.s32 0, %v6236
    %v6238 = vrot.slane %v5404, %v6237
    %v6239 = vlaneseq
    %v6240 = vshrl.u32 %v6239, 7
    %v6241 = vsub.s32 1, %v6240
    %v6242 = vrot.slane %v5404, %v6241
    %v6245 = vadd.f32 %v6230, %v6238
    %v6246 = vadd.f32 %v6231, %v6242
    %v6247 = vadd.f32 %v6232, %v6238
    %v6248 = vadd.f32 %v6233, %v6242
    %vm6249 = vcmp.ge.f32.partialorder %v6245, 0.0
    %vm6250 = vcmp.ge.f32.partialorder %v6246, 0.0
    %vm6251 = vcmp.ge.f32.partialorder %v6247, 0.0
    %vm6252 = vcmp.ge.f32.partialorder %v6248, 0.0
    %v6253 = vmul.f32 %v6245, 0.01
    %v6254 = vmul.f32 %v6246, 0.01
    %v6255 = vmul.f32 %v6247, 0.01
    %v6256 = vmul.f32 %v6248, 0.01
    %v6257 = vsel %vm6249, %v6245, %v6253
    %v6258 = vsel %vm6250, %v6246, %v6254
    %v6259 = vsel %vm6251, %v6247, %v6255
    %v6260 = vsel %vm6252, %v6248, %v6256
    %6261 = vmatprep.subr.mxu0 %v6258
    %6262 = vmatpush1.msra.mxu0 %v6257
    %6263 = vmatprep.subr.mxu0 %v6260
    %6264 = vmatpush1.msra.mxu0 %v6259
    %6265 = vmatprep.subr.mxu0 0.0
    %6266 = vmatpush1.msra.mxu0 0.0
    %6267 = vmatprep.subr.mxu0 0.0
    %6268 = vmatpush1.msra.mxu0 0.0
    %6269 = vmatprep.subr.mxu0 0.0
    %6270 = vmatpush1.msra.mxu0 0.0
    %6271 = vmatprep.subr.mxu0 0.0
    %6272 = vmatpush1.msra.mxu0 0.0
    %6273 = vmatprep.subr.mxu0 0.0
    %6274 = vmatpush1.msra.mxu0 0.0
    %6275 = vmatprep.subr.mxu0 0.0
    %6276 = vmatpush1.msra.mxu0 0.0
    %6277 = vmatprep.subr.mxu0 0.0
    %6278 = vmatpush1.msra.mxu0 0.0
    %6279 = vmatprep.subr.mxu0 0.0
    %6280 = vmatpush1.msra.mxu0 0.0
    %6281 = vmatprep.subr.mxu0 0.0
    %6282 = vmatpush1.msra.mxu0 0.0
    %6283 = vmatprep.subr.mxu0 0.0
    %6284 = vmatpush1.msra.mxu0 0.0
    %6285 = vmatprep.subr.mxu0 0.0
    %6286 = vmatpush1.msra.mxu0 0.0
    %6287 = vmatprep.subr.mxu0 0.0
    %6288 = vmatpush1.msra.mxu0 0.0
    %6289 = vmatprep.subr.mxu0 0.0
    %6290 = vmatpush1.msra.mxu0 0.0
    %6291 = vmatprep.subr.mxu0 0.0
    %6292 = vmatpush1.msra.mxu0 0.0
    %6293 = vmatprep.subr.mxu0 0.0
    %6294 = vmatpush1.msra.mxu0 0.0
    %6295 = vmatprep.subr.mxu0 0.0
    %6296 = vmatpush1.msra.mxu0 0.0
    %6297 = vmatprep.subr.mxu0 0.0
    %6298 = vmatpush1.msra.mxu0 0.0
    %6299 = vmatprep.subr.mxu0 0.0
    %6300 = vmatpush1.msra.mxu0 0.0
    %6301 = vmatprep.subr.mxu0 0.0
    %6302 = vmatpush1.msra.mxu0 0.0
    %6303 = vmatprep.subr.mxu0 0.0
    %6304 = vmatpush1.msra.mxu0 0.0
    %6305 = vmatprep.subr.mxu0 0.0
    %6306 = vmatpush1.msra.mxu0 0.0
    %6307 = vmatprep.subr.mxu0 0.0
    %6308 = vmatpush1.msra.mxu0 0.0
    %6309 = vmatprep.subr.mxu0 0.0
    %6310 = vmatpush1.msra.mxu0 0.0
    %6311 = vmatprep.subr.mxu0 0.0
    %6312 = vmatpush1.msra.mxu0 0.0
    %6313 = vmatprep.subr.mxu0 0.0
    %6314 = vmatpush1.msra.mxu0 0.0
    %6315 = vmatprep.subr.mxu0 0.0
    %6316 = vmatpush1.msra.mxu0 0.0
    %6317 = vmatprep.subr.mxu0 0.0
    %6318 = vmatpush1.msra.mxu0 0.0
    %6319 = vmatprep.subr.mxu0 0.0
    %6320 = vmatpush1.msra.mxu0 0.0
    %6321 = vmatprep.subr.mxu0 0.0
    %6322 = vmatpush1.msra.mxu0 0.0
    %6323 = vmatprep.subr.mxu0 0.0
    %6324 = vmatpush1.msra.mxu0 0.0
    %6325 = vmatprep.mubr.f32.mxu0 0.0
    %6326 = vmatmul.mubr.f32.gmra.mrb[0].mxu0 %v1879
    %v6327 = vpop.f32.mrb[0].mxu0
    %v6328 = vadd.f32 0.0, %v6327
    %v6329 = vpop.f32.mrb[0].mxu0
    %v6330 = vadd.f32 0.0, %v6329
    %6331 = vmatprep.mubr.f32.mxu0 0.0
    %6332 = vmatmul.mubr.f32.gmra.mrb[0].mxu0 %v1882
    %v6333 = vpop.f32.mrb[0].mxu0
    %v6334 = vadd.f32 0.0, %v6333
    %v6335 = vpop.f32.mrb[0].mxu0
    %v6336 = vadd.f32 0.0, %v6335
    %6337 = vdwg.mxu0
    %v6338 = vld [vmem:[%s17] sm:$0xff]
    %v6339 = vld [vmem:[%s17 + $0x8] sm:$0xff]
    %v6340 = vld [vmem:[%s17 + $0x10] sm:$0xff]
    %v6341 = vld [vmem:[%s17 + $0x18] sm:$0xff]
    %v6342 = vld [vmem:[%s17 + $0x20] sm:$0xff]
    %v6343 = vld [vmem:[%s17 + $0x28] sm:$0xff]
    %v6344 = vld [vmem:[%s17 + $0x30] sm:$0xff]
    %v6345 = vld [vmem:[%s17 + $0x38] sm:$0xff]
    %v6346 = vld [vmem:[%s17 + $0x40] sm:$0xff]
    %v6347 = vld [vmem:[%s17 + $0x48] sm:$0xff]
    %v6348 = vld [vmem:[%s17 + $0x50] sm:$0xff]
    %v6349 = vld [vmem:[%s17 + $0x58] sm:$0xff]
    %v6350 = vld [vmem:[%s17 + $0x60] sm:$0xff]
    %v6351 = vld [vmem:[%s17 + $0x68] sm:$0xff]
    %v6352 = vld [vmem:[%s17 + $0x70] sm:$0xff]
    %v6353 = vld [vmem:[%s17 + $0x78] sm:$0xff]
    %v6354 = vld [vmem:[%s17 + $0x80] sm:$0xff]
    %v6355 = vld [vmem:[%s17 + $0x88] sm:$0xff]
    %v6356 = vld [vmem:[%s17 + $0x90] sm:$0xff]
    %v6357 = vld [vmem:[%s17 + $0x98] sm:$0xff]
    %v6358 = vld [vmem:[%s17 + $0xa0] sm:$0xff]
    %v6359 = vld [vmem:[%s17 + $0xa8] sm:$0xff]
    %v6360 = vld [vmem:[%s17 + $0xb0] sm:$0xff]
    %v6361 = vld [vmem:[%s17 + $0xb8] sm:$0xff]
    %v6362 = vld [vmem:[%s17 + $0xc0] sm:$0xff]
    %v6363 = vld [vmem:[%s17 + $0xc8] sm:$0xff]
    %v6364 = vld [vmem:[%s17 + $0xd0] sm:$0xff]
    %v6365 = vld [vmem:[%s17 + $0xd8] sm:$0xff]
    %v6366 = vld [vmem:[%s17 + $0xe0] sm:$0xff]
    %v6367 = vld [vmem:[%s17 + $0xe8] sm:$0xff]
    %v6368 = vld [vmem:[%s17 + $0xf0] sm:$0xff]
    %v6369 = vld [vmem:[%s17 + $0xf8] sm:$0xff]
    %s6370 = scalar_lea.vmem %s17, 256
    %v6371 = vld [vmem:[%s6370] sm:$0xff]
    %v6372 = vld [vmem:[%s6370 + $0x8] sm:$0xff]
    %v6373 = vld [vmem:[%s6370 + $0x10] sm:$0xff]
    %v6374 = vld [vmem:[%s6370 + $0x18] sm:$0xff]
    %v6375 = vld [vmem:[%s6370 + $0x20] sm:$0xff]
    %v6376 = vld [vmem:[%s6370 + $0x28] sm:$0xff]
    %v6377 = vld [vmem:[%s6370 + $0x30] sm:$0xff]
    %v6378 = vld [vmem:[%s6370 + $0x38] sm:$0xff]
    %v6379 = vld [vmem:[%s6370 + $0x40] sm:$0xff]
    %v6380 = vld [vmem:[%s6370 + $0x48] sm:$0xff]
    %v6381 = vld [vmem:[%s6370 + $0x50] sm:$0xff]
    %v6382 = vld [vmem:[%s6370 + $0x58] sm:$0xff]
    %v6383 = vld [vmem:[%s6370 + $0x60] sm:$0xff]
    %v6384 = vld [vmem:[%s6370 + $0x68] sm:$0xff]
    %v6385 = vld [vmem:[%s6370 + $0x70] sm:$0xff]
    %v6386 = vld [vmem:[%s6370 + $0x78] sm:$0xff]
    %v6387 = vld [vmem:[%s6370 + $0x80] sm:$0xff]
    %v6388 = vld [vmem:[%s6370 + $0x88] sm:$0xff]
    %v6389 = vld [vmem:[%s6370 + $0x90] sm:$0xff]
    %v6390 = vld [vmem:[%s6370 + $0x98] sm:$0xff]
    %v6391 = vld [vmem:[%s6370 + $0xa0] sm:$0xff]
    %v6392 = vld [vmem:[%s6370 + $0xa8] sm:$0xff]
    %v6393 = vld [vmem:[%s6370 + $0xb0] sm:$0xff]
    %v6394 = vld [vmem:[%s6370 + $0xb8] sm:$0xff]
    %v6395 = vld [vmem:[%s6370 + $0xc0] sm:$0xff]
    %v6396 = vld [vmem:[%s6370 + $0xc8] sm:$0xff]
    %v6397 = vld [vmem:[%s6370 + $0xd0] sm:$0xff]
    %v6398 = vld [vmem:[%s6370 + $0xd8] sm:$0xff]
    %v6399 = vld [vmem:[%s6370 + $0xe0] sm:$0xff]
    %v6400 = vld [vmem:[%s6370 + $0xe8] sm:$0xff]
    %v6401 = vld [vmem:[%s6370 + $0xf0] sm:$0xff]
    %v6402 = vld [vmem:[%s6370 + $0xf8] sm:$0xff]
    %6403 = vmatprep.subr.mxu0 0.0
    %6404 = vmatpush1.msra.mxu0 %v6371
    %6405 = vmatprep.subr.mxu0 0.0
    %6406 = vmatpush1.msra.mxu0 %v6372
    %6407 = vmatprep.subr.mxu0 0.0
    %6408 = vmatpush1.msra.mxu0 %v6373
    %6409 = vmatprep.subr.mxu0 0.0
    %6410 = vmatpush1.msra.mxu0 %v6374
    %6411 = vmatprep.subr.mxu0 0.0
    %6412 = vmatpush1.msra.mxu0 %v6375
    %6413 = vmatprep.subr.mxu0 0.0
    %6414 = vmatpush1.msra.mxu0 %v6376
    %6415 = vmatprep.subr.mxu0 0.0
    %6416 = vmatpush1.msra.mxu0 %v6377
    %6417 = vmatprep.subr.mxu0 0.0
    %6418 = vmatpush1.msra.mxu0 %v6378
    %6419 = vmatprep.subr.mxu0 0.0
    %6420 = vmatpush1.msra.mxu0 %v6379
    %6421 = vmatprep.subr.mxu0 0.0
    %6422 = vmatpush1.msra.mxu0 %v6380
    %6423 = vmatprep.subr.mxu0 0.0
    %6424 = vmatpush1.msra.mxu0 %v6381
    %6425 = vmatprep.subr.mxu0 0.0
    %6426 = vmatpush1.msra.mxu0 %v6382
    %6427 = vmatprep.subr.mxu0 0.0
    %6428 = vmatpush1.msra.mxu0 %v6383
    %6429 = vmatprep.subr.mxu0 0.0
    %6430 = vmatpush1.msra.mxu0 %v6384
    %6431 = vmatprep.subr.mxu0 0.0
    %6432 = vmatpush1.msra.mxu0 %v6385
    %6433 = vmatprep.subr.mxu0 0.0
    %6434 = vmatpush1.msra.mxu0 %v6386
    %6435 = vmatprep.subr.mxu0 0.0
    %6436 = vmatpush1.msra.mxu0 %v6387
    %6437 = vmatprep.subr.mxu0 0.0
    %6438 = vmatpush1.msra.mxu0 %v6388
    %6439 = vmatprep.subr.mxu0 0.0
    %6440 = vmatpush1.msra.mxu0 %v6389
    %6441 = vmatprep.subr.mxu0 0.0
    %6442 = vmatpush1.msra.mxu0 %v6390
    %6443 = vmatprep.subr.mxu0 0.0
    %6444 = vmatpush1.msra.mxu0 %v6391
    %6445 = vmatprep.subr.mxu0 0.0
    %6446 = vmatpush1.msra.mxu0 %v6392
    %6447 = vmatprep.subr.mxu0 0.0
    %6448 = vmatpush1.msra.mxu0 %v6393
    %6449 = vmatprep.subr.mxu0 0.0
    %6450 = vmatpush1.msra.mxu0 %v6394
    %6451 = vmatprep.subr.mxu0 0.0
    %6452 = vmatpush1.msra.mxu0 %v6395
    %6453 = vmatprep.subr.mxu0 0.0
    %6454 = vmatpush1.msra.mxu0 %v6396
    %6455 = vmatprep.subr.mxu0 0.0
    %6456 = vmatpush1.msra.mxu0 %v6397
    %6457 = vmatprep.subr.mxu0 0.0
    %6458 = vmatpush1.msra.mxu0 %v6398
    %6459 = vmatprep.subr.mxu0 0.0
    %6460 = vmatpush1.msra.mxu0 %v6399
    %6461 = vmatprep.subr.mxu0 0.0
    %6462 = vmatpush1.msra.mxu0 %v6400
    %6463 = vmatprep.subr.mxu0 0.0
    %6464 = vmatpush1.msra.mxu0 %v6401
    %6465 = vmatprep.subr.mxu0 0.0
    %6466 = vmatpush1.msra.mxu0 %v6402
    %6467 = vmatprep.mubr.f32.mxu0 %v6258
    %6468 = vmatmul.mubr.f32.gmra.mrb[0].mxu0 %v6257
    %v6469 = vpop.f32.mrb[0].mxu0
    %v6470 = vadd.f32 0.0, %v6469
    %v6471 = vpop.f32.mrb[0].mxu0
    %6472 = vmatprep.mubr.f32.mxu0 %v6260
    %6473 = vmatmul.mubr.f32.gmra.mrb[0].mxu0 %v6259
    %v6474 = vpop.f32.mrb[0].mxu0
    %v6475 = vadd.f32 0.0, %v6474
    %v6476 = vpop.f32.mrb[0].mxu0
    %6477 = vdwg.mxu0
    %6478 = vmatprep.subr.mxu0 0.0
    %6479 = vmatpush1.msra.mxu0 %v6338
    %6480 = vmatprep.subr.mxu0 0.0
    %6481 = vmatpush1.msra.mxu0 %v6339
    %6482 = vmatprep.subr.mxu0 0.0
    %6483 = vmatpush1.msra.mxu0 %v6340
    %6484 = vmatprep.subr.mxu0 0.0
    %6485 = vmatpush1.msra.mxu0 %v6341
    %6486 = vmatprep.subr.mxu0 0.0
    %6487 = vmatpush1.msra.mxu0 %v6342
    %6488 = vmatprep.subr.mxu0 0.0
    %6489 = vmatpush1.msra.mxu0 %v6343
    %6490 = vmatprep.subr.mxu0 0.0
    %6491 = vmatpush1.msra.mxu0 %v6344
    %6492 = vmatprep.subr.mxu0 0.0
    %6493 = vmatpush1.msra.mxu0 %v6345
    %6494 = vmatprep.subr.mxu0 0.0
    %6495 = vmatpush1.msra.mxu0 %v6346
    %6496 = vmatprep.subr.mxu0 0.0
    %6497 = vmatpush1.msra.mxu0 %v6347
    %6498 = vmatprep.subr.mxu0 0.0
    %6499 = vmatpush1.msra.mxu0 %v6348
    %6500 = vmatprep.subr.mxu0 0.0
    %6501 = vmatpush1.msra.mxu0 %v6349
    %6502 = vmatprep.subr.mxu0 0.0
    %6503 = vmatpush1.msra.mxu0 %v6350
    %6504 = vmatprep.subr.mxu0 0.0
    %6505 = vmatpush1.msra.mxu0 %v6351
    %6506 = vmatprep.subr.mxu0 0.0
    %6507 = vmatpush1.msra.mxu0 %v6352
    %6508 = vmatprep.subr.mxu0 0.0
    %6509 = vmatpush1.msra.mxu0 %v6353
    %6510 = vmatprep.subr.mxu0 0.0
    %6511 = vmatpush1.msra.mxu0 %v6354
    %6512 = vmatprep.subr.mxu0 0.0
    %6513 = vmatpush1.msra.mxu0 %v6355
    %6514 = vmatprep.subr.mxu0 0.0
    %6515 = vmatpush1.msra.mxu0 %v6356
    %6516 = vmatprep.subr.mxu0 0.0
    %6517 = vmatpush1.msra.mxu0 %v6357
    %6518 = vmatprep.subr.mxu0 0.0
    %6519 = vmatpush1.msra.mxu0 %v6358
    %6520 = vmatprep.subr.mxu0 0.0
    %6521 = vmatpush1.msra.mxu0 %v6359
    %6522 = vmatprep.subr.mxu0 0.0
    %6523 = vmatpush1.msra.mxu0 %v6360
    %6524 = vmatprep.subr.mxu0 0.0
    %6525 = vmatpush1.msra.mxu0 %v6361
    %6526 = vmatprep.subr.mxu0 0.0
    %6527 = vmatpush1.msra.mxu0 %v6362
    %6528 = vmatprep.subr.mxu0 0.0
    %6529 = vmatpush1.msra.mxu0 %v6363
    %6530 = vmatprep.subr.mxu0 0.0
    %6531 = vmatpush1.msra.mxu0 %v6364
    %6532 = vmatprep.subr.mxu0 0.0
    %6533 = vmatpush1.msra.mxu0 %v6365
    %6534 = vmatprep.subr.mxu0 0.0
    %6535 = vmatpush1.msra.mxu0 %v6366
    %6536 = vmatprep.subr.mxu0 0.0
    %6537 = vmatpush1.msra.mxu0 %v6367
    %6538 = vmatprep.subr.mxu0 0.0
    %6539 = vmatpush1.msra.mxu0 %v6368
    %6540 = vmatprep.subr.mxu0 0.0
    %6541 = vmatpush1.msra.mxu0 %v6369
    %6542 = vmatprep.mubr.f32.mxu0 %v6330
    %6543 = vmatmul.mubr.f32.gmra.mrb[0].mxu0 %v6328
    %v6544 = vpop.f32.mrb[0].mxu0
    %v6545 = vadd.f32 %v6470, %v6544
    %v6546 = vpop.f32.mrb[0].mxu0
    %6547 = vmatprep.mubr.f32.mxu0 %v6336
    %6548 = vmatmul.mubr.f32.gmra.mrb[0].mxu0 %v6334
    %v6549 = vpop.f32.mrb[0].mxu0
    %v6550 = vadd.f32 %v6475, %v6549
    %v6551 = vpop.f32.mrb[0].mxu0
    %6552 = vdwg.mxu0
    %6553 = vmatprep.subr.mxu0 %v6258
    %6554 = vmatpush1.msra.mxu0 %v6257
    %6555 = vmatprep.subr.mxu0 %v6260
    %6556 = vmatpush1.msra.mxu0 %v6259
    %6557 = vmatprep.subr.mxu0 0.0
    %6558 = vmatpush1.msra.mxu0 0.0
    %6559 = vmatprep.subr.mxu0 0.0
    %6560 = vmatpush1.msra.mxu0 0.0
    %6561 = vmatprep.subr.mxu0 0.0
    %6562 = vmatpush1.msra.mxu0 0.0
    %6563 = vmatprep.subr.mxu0 0.0
    %6564 = vmatpush1.msra.mxu0 0.0
    %6565 = vmatprep.subr.mxu0 0.0
    %6566 = vmatpush1.msra.mxu0 0.0
    %6567 = vmatprep.subr.mxu0 0.0
    %6568 = vmatpush1.msra.mxu0 0.0
    %6569 = vmatprep.subr.mxu0 0.0
    %6570 = vmatpush1.msra.mxu0 0.0
    %6571 = vmatprep.subr.mxu0 0.0
    %6572 = vmatpush1.msra.mxu0 0.0
    %6573 = vmatprep.subr.mxu0 0.0
    %6574 = vmatpush1.msra.mxu0 0.0
    %6575 = vmatprep.subr.mxu0 0.0
    %6576 = vmatpush1.msra.mxu0 0.0
    %6577 = vmatprep.subr.mxu0 0.0
    %6578 = vmatpush1.msra.mxu0 0.0
    %6579 = vmatprep.subr.mxu0 0.0
    %6580 = vmatpush1.msra.mxu0 0.0
    %6581 = vmatprep.subr.mxu0 0.0
    %6582 = vmatpush1.msra.mxu0 0.0
    %6583 = vmatprep.subr.mxu0 0.0
    %6584 = vmatpush1.msra.mxu0 0.0
    %6585 = vmatprep.subr.mxu0 0.0
    %6586 = vmatpush1.msra.mxu0 0.0
    %6587 = vmatprep.subr.mxu0 0.0
    %6588 = vmatpush1.msra.mxu0 0.0
    %6589 = vmatprep.subr.mxu0 0.0
    %6590 = vmatpush1.msra.mxu0 0.0
    %6591 = vmatprep.subr.mxu0 0.0
    %6592 = vmatpush1.msra.mxu0 0.0
    %6593 = vmatprep.subr.mxu0 0.0
    %6594 = vmatpush1.msra.mxu0 0.0
    %6595 = vmatprep.subr.mxu0 0.0
    %6596 = vmatpush1.msra.mxu0 0.0
    %6597 = vmatprep.subr.mxu0 0.0
    %6598 = vmatpush1.msra.mxu0 0.0
    %6599 = vmatprep.subr.mxu0 0.0
    %6600 = vmatpush1.msra.mxu0 0.0
    %6601 = vmatprep.subr.mxu0 0.0
    %6602 = vmatpush1.msra.mxu0 0.0
    %6603 = vmatprep.subr.mxu0 0.0
    %6604 = vmatpush1.msra.mxu0 0.0
    %6605 = vmatprep.subr.mxu0 0.0
    %6606 = vmatpush1.msra.mxu0 0.0
    %6607 = vmatprep.subr.mxu0 0.0
    %6608 = vmatpush1.msra.mxu0 0.0
    %6609 = vmatprep.subr.mxu0 0.0
    %6610 = vmatpush1.msra.mxu0 0.0
    %6611 = vmatprep.subr.mxu0 0.0
    %6612 = vmatpush1.msra.mxu0 0.0
    %6613 = vmatprep.subr.mxu0 0.0
    %6614 = vmatpush1.msra.mxu0 0.0
    %6615 = vmatprep.subr.mxu0 0.0
    %6616 = vmatpush1.msra.mxu0 0.0
    %6617 = vmatprep.mubr.f32.mxu0 0.0
    %6618 = vmatmul.mubr.f32.gmra.mrb[0].mxu0 %v2245
    %v6619 = vpop.f32.mrb[0].mxu0
    %v6620 = vadd.f32 0.0, %v6619
    %v6621 = vpop.f32.mrb[0].mxu0
    %v6622 = vadd.f32 0.0, %v6621
    %6623 = vmatprep.mubr.f32.mxu0 0.0
    %6624 = vmatmul.mubr.f32.gmra.mrb[0].mxu0 %v2248
    %v6625 = vpop.f32.mrb[0].mxu0
    %v6626 = vadd.f32 0.0, %v6625
    %v6627 = vpop.f32.mrb[0].mxu0
    %v6628 = vadd.f32 0.0, %v6627
    %6629 = vdwg.mxu0
    %s6630 = scalar_lea.vmem %s17, 512
    %v6631 = vld [vmem:[%s6630] sm:$0xff]
    %v6632 = vld [vmem:[%s6630 + $0x8] sm:$0xff]
    %v6633 = vld [vmem:[%s6630 + $0x10] sm:$0xff]
    %v6634 = vld [vmem:[%s6630 + $0x18] sm:$0xff]
    %v6635 = vld [vmem:[%s6630 + $0x20] sm:$0xff]
    %v6636 = vld [vmem:[%s6630 + $0x28] sm:$0xff]
    %v6637 = vld [vmem:[%s6630 + $0x30] sm:$0xff]
    %v6638 = vld [vmem:[%s6630 + $0x38] sm:$0xff]
    %v6639 = vld [vmem:[%s6630 + $0x40] sm:$0xff]
    %v6640 = vld [vmem:[%s6630 + $0x48] sm:$0xff]
    %v6641 = vld [vmem:[%s6630 + $0x50] sm:$0xff]
    %v6642 = vld [vmem:[%s6630 + $0x58] sm:$0xff]
    %v6643 = vld [vmem:[%s6630 + $0x60] sm:$0xff]
    %v6644 = vld [vmem:[%s6630 + $0x68] sm:$0xff]
    %v6645 = vld [vmem:[%s6630 + $0x70] sm:$0xff]
    %v6646 = vld [vmem:[%s6630 + $0x78] sm:$0xff]
    %v6647 = vld [vmem:[%s6630 + $0x80] sm:$0xff]
    %v6648 = vld [vmem:[%s6630 + $0x88] sm:$0xff]
    %v6649 = vld [vmem:[%s6630 + $0x90] sm:$0xff]
    %v6650 = vld [vmem:[%s6630 + $0x98] sm:$0xff]
    %v6651 = vld [vmem:[%s6630 + $0xa0] sm:$0xff]
    %v6652 = vld [vmem:[%s6630 + $0xa8] sm:$0xff]
    %v6653 = vld [vmem:[%s6630 + $0xb0] sm:$0xff]
    %v6654 = vld [vmem:[%s6630 + $0xb8] sm:$0xff]
    %v6655 = vld [vmem:[%s6630 + $0xc0] sm:$0xff]
    %v6656 = vld [vmem:[%s6630 + $0xc8] sm:$0xff]
    %v6657 = vld [vmem:[%s6630 + $0xd0] sm:$0xff]
    %v6658 = vld [vmem:[%s6630 + $0xd8] sm:$0xff]
    %v6659 = vld [vmem:[%s6630 + $0xe0] sm:$0xff]
    %v6660 = vld [vmem:[%s6630 + $0xe8] sm:$0xff]
    %v6661 = vld [vmem:[%s6630 + $0xf0] sm:$0xff]
    %v6662 = vld [vmem:[%s6630 + $0xf8] sm:$0xff]
    %6663 = vmatprep.subr.mxu0 0.0
    %6664 = vmatpush1.msra.mxu0 %v6631
    %6665 = vmatprep.subr.mxu0 0.0
    %6666 = vmatpush1.msra.mxu0 %v6632
    %6667 = vmatprep.subr.mxu0 0.0
    %6668 = vmatpush1.msra.mxu0 %v6633
    %6669 = vmatprep.subr.mxu0 0.0
    %6670 = vmatpush1.msra.mxu0 %v6634
    %6671 = vmatprep.subr.mxu0 0.0
    %6672 = vmatpush1.msra.mxu0 %v6635
    %6673 = vmatprep.subr.mxu0 0.0
    %6674 = vmatpush1.msra.mxu0 %v6636
    %6675 = vmatprep.subr.mxu0 0.0
    %6676 = vmatpush1.msra.mxu0 %v6637
    %6677 = vmatprep.subr.mxu0 0.0
    %6678 = vmatpush1.msra.mxu0 %v6638
    %6679 = vmatprep.subr.mxu0 0.0
    %6680 = vmatpush1.msra.mxu0 %v6639
    %6681 = vmatprep.subr.mxu0 0.0
    %6682 = vmatpush1.msra.mxu0 %v6640
    %6683 = vmatprep.subr.mxu0 0.0
    %6684 = vmatpush1.msra.mxu0 %v6641
    %6685 = vmatprep.subr.mxu0 0.0
    %6686 = vmatpush1.msra.mxu0 %v6642
    %6687 = vmatprep.subr.mxu0 0.0
    %6688 = vmatpush1.msra.mxu0 %v6643
    %6689 = vmatprep.subr.mxu0 0.0
    %6690 = vmatpush1.msra.mxu0 %v6644
    %6691 = vmatprep.subr.mxu0 0.0
    %6692 = vmatpush1.msra.mxu0 %v6645
    %6693 = vmatprep.subr.mxu0 0.0
    %6694 = vmatpush1.msra.mxu0 %v6646
    %6695 = vmatprep.subr.mxu0 0.0
    %6696 = vmatpush1.msra.mxu0 %v6647
    %6697 = vmatprep.subr.mxu0 0.0
    %6698 = vmatpush1.msra.mxu0 %v6648
    %6699 = vmatprep.subr.mxu0 0.0
    %6700 = vmatpush1.msra.mxu0 %v6649
    %6701 = vmatprep.subr.mxu0 0.0
    %6702 = vmatpush1.msra.mxu0 %v6650
    %6703 = vmatprep.subr.mxu0 0.0
    %6704 = vmatpush1.msra.mxu0 %v6651
    %6705 = vmatprep.subr.mxu0 0.0
    %6706 = vmatpush1.msra.mxu0 %v6652
    %6707 = vmatprep.subr.mxu0 0.0
    %6708 = vmatpush1.msra.mxu0 %v6653
    %6709 = vmatprep.subr.mxu0 0.0
    %6710 = vmatpush1.msra.mxu0 %v6654
    %6711 = vmatprep.subr.mxu0 0.0
    %6712 = vmatpush1.msra.mxu0 %v6655
    %6713 = vmatprep.subr.mxu0 0.0
    %6714 = vmatpush1.msra.mxu0 %v6656
    %6715 = vmatprep.subr.mxu0 0.0
    %6716 = vmatpush1.msra.mxu0 %v6657
    %6717 = vmatprep.subr.mxu0 0.0
    %6718 = vmatpush1.msra.mxu0 %v6658
    %6719 = vmatprep.subr.mxu0 0.0
    %6720 = vmatpush1.msra.mxu0 %v6659
    %6721 = vmatprep.subr.mxu0 0.0
    %6722 = vmatpush1.msra.mxu0 %v6660
    %6723 = vmatprep.subr.mxu0 0.0
    %6724 = vmatpush1.msra.mxu0 %v6661
    %6725 = vmatprep.subr.mxu0 0.0
    %6726 = vmatpush1.msra.mxu0 %v6662
    %6727 = vmatprep.mubr.f32.mxu0 %v6622
    %6728 = vmatmul.mubr.f32.gmra.mrb[0].mxu0 %v6620
    %v6729 = vpop.f32.mrb[0].mxu0
    %v6730 = vadd.f32 0.0, %v6729
    %v6731 = vpop.f32.mrb[0].mxu0
    %6732 = vmatprep.mubr.f32.mxu0 %v6628
    %6733 = vmatmul.mubr.f32.gmra.mrb[0].mxu0 %v6626
    %v6734 = vpop.f32.mrb[0].mxu0
    %v6735 = vadd.f32 0.0, %v6734
    %v6736 = vpop.f32.mrb[0].mxu0
    %6737 = vdwg.mxu0
    %v6738 = vadd.f32 %v6545, %v6730
    %v6739 = vadd.f32 %v6550, %v6735
    %v6740 = vld [vmem:[%s18] sm:$0x1]
    %v6742 = vlaneseq
    %v6743 = vshrl.u32 %v6742, 7
    %v6744 = vsub.s32 0, %v6743
    %v6745 = vrot.slane %v6740, %v6744
    %v6747 = vadd.f32 %v6738, %v6745
    %v6748 = vadd.f32 %v6739, %v6745
    %vm6749 = vcmask 64512
    %6750 = vst.msk [vmem:[%s19] sm:$0xff] %vm6749, %v6747
    %6751 = vst.msk [vmem:[%s19 + $0x8] sm:$0xff] %vm6749, %v6748
    // Predicated region
    $region94: #{tpu_custom_call.1} parent=1 // pred_check
      _
    $region95: #{tpu_custom_call.1} parent=1 // pred_check_branch
      %6753 = sbr.rel (0) target = $region97
    $region96: #{tpu_custom_call.1} parent=1 // pred_region
      _
    $region97: #{tpu_custom_call.1} parent=1 // pred_fallthru
      _
    // Predicated region
    $region98: #{tpu_custom_call.1} parent=1 // pred_check
      _
    $region99: #{tpu_custom_call.1} parent=1 // pred_check_branch
      %6755 = sbr.rel (0) target = $region101
    $region100: #{tpu_custom_call.1} parent=1 // pred_region
      _
    $region101: #{tpu_custom_call.1} parent=1 // pred_fallthru
      _
    %6756 = vsyncpa [#allocation3], 1
    %6757 = vsyncpa [#allocation5], 1
    %6758 = vsyncpa [#allocation8], 1

</llo_original>
